<compile_context>
chip_gen: v5e
topology: v5e:2x2
jax: 0.10.0
libtpu: 0.0.40
codegen_flags: <defaults>
</compile_context>

<pallas_src>
import numpy as np

import jax
import jax.numpy as jnp
from jax.experimental import pallas as pl
from jax.experimental.pallas import tpu as pltpu

S = 72          # input image size implied by Linear(605, 2)
P = 24          # after avg_pool2d(3)
C = 22          # conv output rows/cols (valid 3x3 conv on 24x24)
MP = 11         # after 2x2 max-pool
OC = 5          # conv output channels
NCLS = 2        # classes
HB = 64         # half-band width: even (q=0) / odd (q=1) conv columns
PW = 12         # per-channel slot width inside a half band (11 valid + 1 pad)
BAND = 2 * HB   # 128: conv output band width, row = q*64 + oc*12 + jp
KC = 3 * S      # 216: merged conv contraction (3 kernel rows x 72 image cols)
KF = MP * HB    # 704: FC contraction (11 pooled rows x 64 half-band)


def _round_up(n, m):
    return ((n + m - 1) // m) * m


def _classical1_kernel(xT_ref, tck_ref, wfc_ref, bconv_ref, bfc_ref, out_ref):
    """Fused avgpool + conv + relu + maxpool + FC + log_softmax for one batch tile.

    xT_ref   : (72, 72, TB)   bf16  image rows x cols x batch (batch on lanes)
    tck_ref  : (22, 128, 216) bf16  per-conv-row merged (avgpool+conv) matrices
    wfc_ref  : (2, 704)       bf16  FC weights on the pooled half-band layout
    bconv_ref: (128, 1)       f32   conv bias packed onto the band
    bfc_ref  : (2, 1)         f32   FC bias
    out_ref  : (2, TB)        f32   log-probs, lane-dense (classes x batch)
    """
    x = xT_ref[...]                                    # (72, 72, TB) bf16
    tb = x.shape[-1]

    # --- avg-pool, row direction: sum each group of 3 consecutive image rows
    xg = x.reshape(P, 3, S, tb)                        # leading-dim split (free)
    r = xg[:, 0] + xg[:, 1] + xg[:, 2]                 # (24, 72, TB) bf16

    # --- conv 3x3 fused with the column avg-pool: ONE batched K=216 MXU matmul
    #     rhs[i] = [r[i] ; r[i+1] ; r[i+2]]  (sublane concat, 8-aligned pieces)
    rhs = jnp.concatenate([r[0:C], r[1:1 + C], r[2:2 + C]], axis=1)  # (22,216,TB)
    conv = jax.lax.dot_general(
        tck_ref[...], rhs, (((2,), (1,)), ((0,), (0,))),
        preferred_element_type=jnp.float32)            # (22, 128, TB) f32
    a = jnp.maximum(conv + bconv_ref[...][None], 0.0)  # bias + ReLU

    # --- 2x2 max-pool:
    #     columns: even/odd conv columns sit in the two 64-wide half-bands
    mcol = jnp.maximum(a[:, :HB, :], a[:, HB:, :])     # (22, 64, TB)  VPU only
    #     rows: pairwise max over consecutive conv rows (leading-dim split)
    mr = mcol.reshape(MP, 2, HB, tb)
    feat = jnp.maximum(mr[:, 0], mr[:, 1])             # (11, 64, TB)

    # --- Linear(605 -> 2) as one 2-D matmul with K = 704
    feat2 = feat.astype(jnp.bfloat16).reshape(KF, tb)  # (704, TB)  free reshape
    logits = jax.lax.dot_general(
        wfc_ref[...], feat2, (((1,), (0,)), ((), ())),
        preferred_element_type=jnp.float32) + bfc_ref[...]          # (2, TB)

    # --- log_softmax over the 2 classes (VPU/EUP)
    m = jnp.maximum(logits[0:1], logits[1:2])          # (1, TB)
    z = logits - m
    lse = jnp.log(jnp.exp(z[0:1]) + jnp.exp(z[1:2]))   # (1, TB)
    out_ref[...] = (z - lse).astype(out_ref.dtype)


def _band_index_tables():
    """Static lookup tables for the packed conv-output band layout.

    Band row  q*64 + oc*12 + jp  holds conv column j = 2*jp + q of channel oc.
    jp == 11 slots and rows [60,64) / [124,128) are zero padding.
    """
    oc_of = np.zeros(BAND, np.int32)
    j_of = np.zeros(BAND, np.int32)
    valid = np.zeros(BAND, np.float32)
    for q in range(2):
        for oc in range(OC):
            for jp in range(MP):
                row = q * HB + oc * PW + jp
                oc_of[row] = oc
                j_of[row] = 2 * jp + q
                valid[row] = 1.0
    return oc_of, j_of, valid


def _make_constants(w_conv, b_conv, w_fc, b_fc):
    oc_of, j_of, valid = _band_index_tables()

    # fold avg_pool2d(3) column sums into the conv taps:
    # mask[kj, j, c] = 1  iff image column c belongs to pooled column (j + kj)
    colq = np.arange(S) // 3
    j_idx = np.arange(P)
    mask = np.stack(
        [(colq[None, :] == (j_idx[:, None] + kj)).astype(np.float32)
         for kj in range(3)], axis=0)                              # (3, 24, 72)

    w_r = w_conv.reshape(OC, 3, 3).astype(jnp.float32)             # [oc, ki, kj]
    # T[ki, oc, j, c] = sum_kj w[oc,ki,kj] * mask[kj,j,c] / 9
    T = jnp.einsum('oik,kjc->iojc', w_r, mask) / 9.0               # (3, 5, 24, 72)
    # place (oc, j) rows into the packed 128-wide band (static-index gather)
    band = T[:, oc_of, j_of, :] * valid[None, :, None]             # (3, 128, 72)
    tck = jnp.transpose(band, (1, 0, 2)).reshape(BAND, KC)         # (128, 216)
    # pre-broadcast over the 22 conv rows (DMA'd once, stays resident in VMEM)
    tckb = jnp.broadcast_to(tck[None], (C, BAND, KC)).astype(jnp.bfloat16)

    bconv = (b_conv.astype(jnp.float32)[oc_of] * valid).reshape(BAND, 1)

    # FC weights remapped onto the pooled half-band: feature index u*64+oc*12+jp
    pos = (np.arange(MP)[:, None, None] * HB
           + np.arange(OC)[None, :, None] * PW
           + np.arange(MP)[None, None, :]).reshape(-1)             # (u, oc, jp)
    src = jnp.transpose(w_fc.reshape(NCLS, OC, MP, MP),
                        (0, 2, 1, 3)).reshape(NCLS, -1)            # [c, u, oc, jp]
    wfc = jnp.zeros((NCLS, KF), jnp.float32).at[:, pos].set(src)
    wfc = wfc.astype(jnp.bfloat16)

    bfc = b_fc.astype(jnp.float32).reshape(NCLS, 1)
    return tckb, wfc, bconv, bfc


def classical1_forward(x, w_conv, b_conv, w_fc, b_fc, *, tile_b=256):
    """x: (B, 1, 72, 72) float -> (B, 2) log-probabilities."""
    B = x.shape[0]

    # the only wrapper-side data movement: one fused bf16 cast + transpose
    xT = jnp.transpose(x.reshape(B, S, S).astype(jnp.bfloat16), (1, 2, 0))

    # lane tile: always a multiple of 128; 256 fills the v6e/v7x MXU N dim
    TB = min(tile_b, _round_up(B, 128))
    Bp = _round_up(B, TB)
    if Bp != B:
        xT = jnp.pad(xT, ((0, 0), (0, 0), (0, Bp - B)))

    tckb, wfc, bconv, bfc = _make_constants(w_conv, b_conv, w_fc, b_fc)

    cost = pl.CostEstimate(
        flops=2 * (C * BAND * KC + NCLS * KF) * int(Bp),
        transcendentals=3 * int(Bp),
        bytes_accessed=(2 * S * S + 4 * NCLS) * int(Bp)
        + 2 * C * BAND * KC + 2 * NCLS * KF + 4 * (BAND + NCLS),
    )

    out = pl.pallas_call(
        _classical1_kernel,
        out_shape=jax.ShapeDtypeStruct((NCLS, Bp), jnp.float32),
        grid=(Bp // TB,),
        in_specs=[
            pl.BlockSpec((S, S, TB), lambda b: (0, 0, b)),         # xT
            pl.BlockSpec((C, BAND, KC), lambda b: (0, 0, 0)),      # conv taps
            pl.BlockSpec((NCLS, KF), lambda b: (0, 0)),            # FC weights
            pl.BlockSpec((BAND, 1), lambda b: (0, 0)),             # conv bias
            pl.BlockSpec((NCLS, 1), lambda b: (0, 0)),             # FC bias
        ],
        out_specs=pl.BlockSpec((NCLS, TB), lambda b: (0, b)),
        compiler_params=pltpu.CompilerParams(
            dimension_semantics=("parallel",),
            vmem_limit_bytes=48 * 1024 * 1024),
        cost_estimate=cost,
    )(xT, tckb, wfc, bconv, bfc)

    return jnp.transpose(out[:, :B])                               # (B, 2)


def reference_forward(x, w_conv, b_conv, w_fc, b_fc):
    """Pure-JAX f32 reference mirroring the Classical1 forward (per-sample)."""
    B = x.shape[0]
    xi = x.reshape(B, S, S).astype(jnp.float32)
    pooled = xi.reshape(B, P, 3, P, 3).mean(axis=(2, 4))           # (B, 24, 24)
    conv = jnp.zeros((B, OC, C, C), jnp.float32)
    for ki in range(3):
        for kj in range(3):
            conv = conv + (w_conv[:, 0, ki, kj][None, :, None, None] *
                           pooled[:, None, ki:ki + C, kj:kj + C])
    conv = conv + b_conv[None, :, None, None]
    act = jnp.maximum(conv, 0.0)
    mp = act.reshape(B, OC, MP, 2, MP, 2).max(axis=(3, 5))         # (B, 5, 11, 11)
    feat = mp.reshape(B, OC * MP * MP)                             # (B, 605)
    logits = feat @ w_fc.T + b_fc
    return jax.nn.log_softmax(logits, axis=-1)


if __name__ == "__main__":
    key = jax.random.PRNGKey(0)
    k_x, k_wc, k_bc, k_wf, k_bf = jax.random.split(key, 5)

    B = 2
    x = jax.random.normal(k_x, (B, 1, S, S), dtype=jnp.float32)

    # parameter shapes follow Conv2d(1, 5, 3) and Linear(605, 2); init bounds
    # mimic torch's default uniform init with the respective fan-in
    w_conv = jax.random.uniform(k_wc, (OC, 1, 3, 3), jnp.float32, -1.0 / 3, 1.0 / 3)
    b_conv = jax.random.uniform(k_bc, (OC,), jnp.float32, -1.0 / 3, 1.0 / 3)
    w_fc = jax.random.uniform(k_wf, (NCLS, OC * MP * MP), jnp.float32, -0.04, 0.04)
    b_fc = jax.random.uniform(k_bf, (NCLS,), jnp.float32, -0.04, 0.04)

    fwd = jax.jit(classical1_forward)
    out = fwd(x, w_conv, b_conv, w_fc, b_fc)
    jax.block_until_ready(out)

    ref = reference_forward(x, w_conv, b_conv, w_fc, b_fc)
    assert out.shape == (B, NCLS), out.shape
    err = float(jnp.max(jnp.abs(out - ref)))
    # bf16 matmul operands with f32 accumulation: typical error ~1e-3
    assert err < 2e-2, err

    print("KERNEL_OK")
</pallas_src>

<mosaic_0001>
module attributes {stable_mosaic.version = 11 : i64} {
  func.func @_classical1_kernel(%arg0: i32, %arg1: memref<72x72x128xbf16, #tpu.memory_space<vmem>>, %arg2: memref<22x128x216xbf16, #tpu.memory_space<vmem>>, %arg3: memref<2x704xbf16, #tpu.memory_space<vmem>>, %arg4: memref<128x1xf32, #tpu.memory_space<vmem>>, %arg5: memref<2x1xf32, #tpu.memory_space<vmem>>, %arg6: memref<2x128xf32, #tpu.memory_space<vmem>>) attributes {dimension_semantics = [#tpu.dimension_semantics<parallel>], iteration_bounds = array<i64: 1>, scalar_prefetch = 0 : i64, scratch_operands = 0 : i64, tpu.core_type = #tpu.core_type<tc>, window_params = [{transform_indices = @transform_0, window_bounds = array<i64: 72, 72, 128>}, {pipeline_mode = #tpu.pipeline_mode<synchronous>, transform_indices = @transform_1, window_bounds = array<i64: 22, 128, 216>}, {pipeline_mode = #tpu.pipeline_mode<synchronous>, transform_indices = @transform_2, window_bounds = array<i64: 2, 704>}, {pipeline_mode = #tpu.pipeline_mode<synchronous>, transform_indices = @transform_3, window_bounds = array<i64: 128, 1>}, {pipeline_mode = #tpu.pipeline_mode<synchronous>, transform_indices = @transform_4, window_bounds = array<i64: 2, 1>}, {transform_indices = @transform_5, window_bounds = array<i64: 2, 128>}]} {
    %c0 = arith.constant 0 : index
    %c0_0 = arith.constant 0 : index
    %c0_1 = arith.constant 0 : index
    %0 = vector.load %arg1[%c0, %c0_0, %c0_1] : memref<72x72x128xbf16, #tpu.memory_space<vmem>>, vector<72x72x128xbf16>
    %1 = vector.shape_cast %0 : vector<72x72x128xbf16> to vector<24x3x72x128xbf16>
    %2 = vector.extract_strided_slice %1 {offsets = [0, 0, 0, 0], sizes = [24, 1, 72, 128], strides = [1, 1, 1, 1]} : vector<24x3x72x128xbf16> to vector<24x1x72x128xbf16>
    %3 = vector.shape_cast %2 : vector<24x1x72x128xbf16> to vector<24x72x128xbf16>
    %4 = vector.extract_strided_slice %1 {offsets = [0, 1, 0, 0], sizes = [24, 1, 72, 128], strides = [1, 1, 1, 1]} : vector<24x3x72x128xbf16> to vector<24x1x72x128xbf16>
    %5 = vector.shape_cast %4 : vector<24x1x72x128xbf16> to vector<24x72x128xbf16>
    %6 = arith.addf %3, %5 : vector<24x72x128xbf16>
    %7 = vector.extract_strided_slice %1 {offsets = [0, 2, 0, 0], sizes = [24, 1, 72, 128], strides = [1, 1, 1, 1]} : vector<24x3x72x128xbf16> to vector<24x1x72x128xbf16>
    %8 = vector.shape_cast %7 : vector<24x1x72x128xbf16> to vector<24x72x128xbf16>
    %9 = arith.addf %6, %8 : vector<24x72x128xbf16>
    %10 = vector.extract_strided_slice %9 {offsets = [0, 0, 0], sizes = [22, 72, 128], strides = [1, 1, 1]} : vector<24x72x128xbf16> to vector<22x72x128xbf16>
    %11 = vector.extract_strided_slice %9 {offsets = [1, 0, 0], sizes = [22, 72, 128], strides = [1, 1, 1]} : vector<24x72x128xbf16> to vector<22x72x128xbf16>
    %12 = vector.extract_strided_slice %9 {offsets = [2, 0, 0], sizes = [22, 72, 128], strides = [1, 1, 1]} : vector<24x72x128xbf16> to vector<22x72x128xbf16>
    %13 = tpu.concatenate %10, %11, %12 in 1 : vector<22x72x128xbf16>, vector<22x72x128xbf16>, vector<22x72x128xbf16> -> vector<22x216x128xbf16>
    %c0_2 = arith.constant 0 : index
    %c0_3 = arith.constant 0 : index
    %c0_4 = arith.constant 0 : index
    %14 = vector.load %arg2[%c0_2, %c0_3, %c0_4] : memref<22x128x216xbf16, #tpu.memory_space<vmem>>, vector<22x128x216xbf16>
    %cst = arith.constant dense<0.000000e+00> : vector<22x128x128xf32>
    %15 = tpu.matmul %14, %13, %cst {dimension_numbers = #tpu.dot_dimension_numbers<[2], [1], [1], [2], [0, 0, 0, 1, 1, 2], [0], [0]>} : vector<22x128x216xbf16>, vector<22x216x128xbf16>, vector<22x128x128xf32> -> vector<22x128x128xf32>
    %c0_5 = arith.constant 0 : index
    %c0_6 = arith.constant 0 : index
    %16 = vector.load %arg4[%c0_5, %c0_6] : memref<128x1xf32, #tpu.memory_space<vmem>>, vector<128x1xf32>
    %17 = vector.shape_cast %16 : vector<128x1xf32> to vector<1x128x1xf32>
    %18 = vector.broadcast %17 : vector<1x128x1xf32> to vector<22x128x128xf32>
    %19 = arith.addf %15, %18 : vector<22x128x128xf32>
    %cst_7 = arith.constant 0.000000e+00 : f32
    %20 = vector.broadcast %cst_7 : f32 to vector<22x128x128xf32>
    %21 = arith.maximumf %19, %20 : vector<22x128x128xf32>
    %22 = vector.extract_strided_slice %21 {offsets = [0, 0, 0], sizes = [22, 64, 128], strides = [1, 1, 1]} : vector<22x128x128xf32> to vector<22x64x128xf32>
    %23 = vector.extract_strided_slice %21 {offsets = [0, 64, 0], sizes = [22, 64, 128], strides = [1, 1, 1]} : vector<22x128x128xf32> to vector<22x64x128xf32>
    %24 = arith.maximumf %22, %23 : vector<22x64x128xf32>
    %25 = vector.shape_cast %24 : vector<22x64x128xf32> to vector<11x2x64x128xf32>
    %26 = vector.extract_strided_slice %25 {offsets = [0, 0, 0, 0], sizes = [11, 1, 64, 128], strides = [1, 1, 1, 1]} : vector<11x2x64x128xf32> to vector<11x1x64x128xf32>
    %27 = vector.shape_cast %26 : vector<11x1x64x128xf32> to vector<11x64x128xf32>
    %28 = vector.extract_strided_slice %25 {offsets = [0, 1, 0, 0], sizes = [11, 1, 64, 128], strides = [1, 1, 1, 1]} : vector<11x2x64x128xf32> to vector<11x1x64x128xf32>
    %29 = vector.shape_cast %28 : vector<11x1x64x128xf32> to vector<11x64x128xf32>
    %30 = arith.maximumf %27, %29 : vector<11x64x128xf32>
    %31 = arith.truncf %30 : vector<11x64x128xf32> to vector<11x64x128xbf16>
    %32 = vector.shape_cast %31 : vector<11x64x128xbf16> to vector<704x128xbf16>
    %c0_8 = arith.constant 0 : index
    %c0_9 = arith.constant 0 : index
    %33 = vector.load %arg3[%c0_8, %c0_9] : memref<2x704xbf16, #tpu.memory_space<vmem>>, vector<2x704xbf16>
    %cst_10 = arith.constant dense<0.000000e+00> : vector<2x128xf32>
    %34 = tpu.matmul %33, %32, %cst_10 {dimension_numbers = #tpu.dot_dimension_numbers<[1], [0], [0], [1], [0, 0, 1, 1], [], []>} : vector<2x704xbf16>, vector<704x128xbf16>, vector<2x128xf32> -> vector<2x128xf32>
    %c0_11 = arith.constant 0 : index
    %c0_12 = arith.constant 0 : index
    %35 = vector.load %arg5[%c0_11, %c0_12] : memref<2x1xf32, #tpu.memory_space<vmem>>, vector<2x1xf32>
    %36 = vector.broadcast %35 : vector<2x1xf32> to vector<2x128xf32>
    %37 = arith.addf %34, %36 : vector<2x128xf32>
    %38 = vector.extract_strided_slice %37 {offsets = [0, 0], sizes = [1, 128], strides = [1, 1]} : vector<2x128xf32> to vector<1x128xf32>
    %39 = vector.extract_strided_slice %37 {offsets = [1, 0], sizes = [1, 128], strides = [1, 1]} : vector<2x128xf32> to vector<1x128xf32>
    %40 = arith.maximumf %38, %39 : vector<1x128xf32>
    %41 = vector.broadcast %40 : vector<1x128xf32> to vector<2x128xf32>
    %42 = arith.subf %37, %41 : vector<2x128xf32>
    %43 = vector.extract_strided_slice %42 {offsets = [0, 0], sizes = [1, 128], strides = [1, 1]} : vector<2x128xf32> to vector<1x128xf32>
    %44 = math.exp %43 : vector<1x128xf32>
    %45 = vector.extract_strided_slice %42 {offsets = [1, 0], sizes = [1, 128], strides = [1, 1]} : vector<2x128xf32> to vector<1x128xf32>
    %46 = math.exp %45 : vector<1x128xf32>
    %47 = arith.addf %44, %46 : vector<1x128xf32>
    %48 = math.log %47 : vector<1x128xf32>
    %49 = vector.broadcast %48 : vector<1x128xf32> to vector<2x128xf32>
    %50 = arith.subf %42, %49 : vector<2x128xf32>
    %c0_13 = arith.constant 0 : index
    %c0_14 = arith.constant 0 : index
    %51 = vector.load %arg6[%c0_13, %c0_14] : memref<2x128xf32, #tpu.memory_space<vmem>>, vector<2x128xf32>
    tpu.vector_store %arg6[%c0_13, %c0_14], %50 {strides = array<i32>} : memref<2x128xf32, #tpu.memory_space<vmem>>, vector<2x128xf32>,
    return
  }
  func.func @transform_0(%arg0: i32) -> (i32, i32, i32) {
    %c0_i32 = arith.constant 0 : i32
    %c0_i32_0 = arith.constant 0 : i32
    %c0_i32_1 = arith.constant 0 : i32
    return %c0_i32, %c0_i32_0, %arg0 : i32, i32, i32
  }
  func.func @transform_1(%arg0: i32) -> (i32, i32, i32) {
    %c0_i32 = arith.constant 0 : i32
    %c0_i32_0 = arith.constant 0 : i32
    %c0_i32_1 = arith.constant 0 : i32
    %c0_i32_2 = arith.constant 0 : i32
    return %c0_i32, %c0_i32_0, %c0_i32_1 : i32, i32, i32
  }
  func.func @transform_2(%arg0: i32) -> (i32, i32) {
    %c0_i32 = arith.constant 0 : i32
    %c0_i32_0 = arith.constant 0 : i32
    %c0_i32_1 = arith.constant 0 : i32
    return %c0_i32, %c0_i32_0 : i32, i32
  }
  func.func @transform_3(%arg0: i32) -> (i32, i32) {
    %c0_i32 = arith.constant 0 : i32
    %c0_i32_0 = arith.constant 0 : i32
    %c0_i32_1 = arith.constant 0 : i32
    return %c0_i32, %c0_i32_0 : i32, i32
  }
  func.func @transform_4(%arg0: i32) -> (i32, i32) {
    %c0_i32 = arith.constant 0 : i32
    %c0_i32_0 = arith.constant 0 : i32
    %c0_i32_1 = arith.constant 0 : i32
    return %c0_i32, %c0_i32_0 : i32, i32
  }
  func.func @transform_5(%arg0: i32) -> (i32, i32) {
    %c0_i32 = arith.constant 0 : i32
    %c0_i32_0 = arith.constant 0 : i32
    return %c0_i32, %arg0 : i32, i32
  }
}

</mosaic_0001>

<llo_original>
// kernel: classical1_forward.1
$region0: #{classical1_forward.1}
  #allocation0 [shape = 'u32[]', space=smem, size = 0x4, offset = 0x4, fixed_abs, tag = 'smem constant byte address 0x4 - core index']
  #allocation1 [shape = 'u32[72,128]{1,0:T(1,128)}', space=vmem, size = 0x9000, scoped, tag = 'internal scratch']
  %s0 = inlined_call_operand.vmem [shape: bf16[72,72,128], index: 0, kind: input, shape index: {}]
  %s1 = inlined_call_operand.vmem [shape: bf16[22,128,216], index: 1, kind: input, shape index: {}]
  %s2 = inlined_call_operand.vmem [shape: bf16[2,704], index: 2, kind: input, shape index: {}]
  %s3 = inlined_call_operand.vmem [shape: f32[128,1], index: 3, kind: input, shape index: {}]
  %s4 = inlined_call_operand.vmem [shape: f32[2,1], index: 4, kind: input, shape index: {}]
  %s5 = inlined_call_operand.vmem [shape: f32[2,128], index: 5, kind: output, shape index: {}]
  %s6 = sld [smem:[#allocation0]]
  $region30: #{classical1_forward.1} parent=0
    _
  %s8 = ssub.s32 1, %s6
  %s9 = scalar_select 0, %s8, %s6
  // Predicated region
  $region2: #{classical1_forward.1} parent=0 // pred_check
    _
  $region3: #{classical1_forward.1} parent=0 // pred_check_branch
    %11 = sbr.rel (0) target = $region5
  $region4: #{classical1_forward.1} parent=0 // pred_region
    _
  $region5: #{classical1_forward.1} parent=0 // pred_fallthru
    _
  // Predicated region
  $region6: #{classical1_forward.1} parent=0 // pred_check
    _
  $region7: #{classical1_forward.1} parent=0 // pred_check_branch
    %13 = sbr.rel (0) target = $region9
  $region8: #{classical1_forward.1} parent=0 // pred_region
    _
  $region9: #{classical1_forward.1} parent=0 // pred_fallthru
    _
  // Predicated region
  $region10: #{classical1_forward.1} parent=0 // pred_check
    _
  $region11: #{classical1_forward.1} parent=0 // pred_check_branch
    %15 = sbr.rel (0) target = $region13
  $region12: #{classical1_forward.1} parent=0 // pred_region
    _
  $region13: #{classical1_forward.1} parent=0 // pred_fallthru
    _
  // Predicated region
  $region14: #{classical1_forward.1} parent=0 // pred_check
    _
  $region15: #{classical1_forward.1} parent=0 // pred_check_branch
    %17 = sbr.rel (0) target = $region17
  $region16: #{classical1_forward.1} parent=0 // pred_region
    _
  $region17: #{classical1_forward.1} parent=0 // pred_fallthru
    _
  // Predicated region
  $region18: #{classical1_forward.1} parent=0 // pred_check
    _
  $region19: #{classical1_forward.1} parent=0 // pred_check_branch
    %19 = sbr.rel (0) target = $region21
  $region20: #{classical1_forward.1} parent=0 // pred_region
    _
  $region21: #{classical1_forward.1} parent=0 // pred_fallthru
    _
  %v21 = vld [vmem:[%s0] sm:$0xf]
  %v22 = vld [vmem:[%s0 + $0x4] sm:$0xf]
  %v23 = vld [vmem:[%s0 + $0x8] sm:$0xf]
  %v24 = vld [vmem:[%s0 + $0xc] sm:$0xf]
  %v25 = vld [vmem:[%s0 + $0x10] sm:$0xf]
  %v26 = vld [vmem:[%s0 + $0x14] sm:$0xf]
  %v27 = vld [vmem:[%s0 + $0x18] sm:$0xf]
  %v28 = vld [vmem:[%s0 + $0x1c] sm:$0xf]
  %v29 = vld [vmem:[%s0 + $0x20] sm:$0xf]
  %v30 = vld [vmem:[%s0 + $0x24] sm:$0xf]
  %v31 = vld [vmem:[%s0 + $0x28] sm:$0xf]
  %v32 = vld [vmem:[%s0 + $0x2c] sm:$0xf]
  %v33 = vld [vmem:[%s0 + $0x30] sm:$0xf]
  %v34 = vld [vmem:[%s0 + $0x34] sm:$0xf]
  %v35 = vld [vmem:[%s0 + $0x38] sm:$0xf]
  %v36 = vld [vmem:[%s0 + $0x3c] sm:$0xf]
  %v37 = vld [vmem:[%s0 + $0x40] sm:$0xf]
  %v38 = vld [vmem:[%s0 + $0x44] sm:$0xf]
  %v39 = vld [vmem:[%s0 + $0x48] sm:$0xf]
  %v40 = vld [vmem:[%s0 + $0x4c] sm:$0xf]
  %v41 = vld [vmem:[%s0 + $0x50] sm:$0xf]
  %v42 = vld [vmem:[%s0 + $0x54] sm:$0xf]
  %v43 = vld [vmem:[%s0 + $0x58] sm:$0xf]
  %v44 = vld [vmem:[%s0 + $0x5c] sm:$0xf]
  %v45 = vld [vmem:[%s0 + $0x60] sm:$0xf]
  %v46 = vld [vmem:[%s0 + $0x64] sm:$0xf]
  %v47 = vld [vmem:[%s0 + $0x68] sm:$0xf]
  %v48 = vld [vmem:[%s0 + $0x6c] sm:$0xf]
  %v49 = vld [vmem:[%s0 + $0x70] sm:$0xf]
  %v50 = vld [vmem:[%s0 + $0x74] sm:$0xf]
  %v51 = vld [vmem:[%s0 + $0x78] sm:$0xf]
  %v52 = vld [vmem:[%s0 + $0x7c] sm:$0xf]
  %v53 = vld [vmem:[%s0 + $0x80] sm:$0xf]
  %v54 = vld [vmem:[%s0 + $0x84] sm:$0xf]
  %v55 = vld [vmem:[%s0 + $0x88] sm:$0xf]
  %v56 = vld [vmem:[%s0 + $0x8c] sm:$0xf]
  %v57 = vld [vmem:[%s0 + $0x90] sm:$0xf]
  %v58 = vld [vmem:[%s0 + $0x94] sm:$0xf]
  %v59 = vld [vmem:[%s0 + $0x98] sm:$0xf]
  %v60 = vld [vmem:[%s0 + $0x9c] sm:$0xf]
  %v61 = vld [vmem:[%s0 + $0xa0] sm:$0xf]
  %v62 = vld [vmem:[%s0 + $0xa4] sm:$0xf]
  %v63 = vld [vmem:[%s0 + $0xa8] sm:$0xf]
  %v64 = vld [vmem:[%s0 + $0xac] sm:$0xf]
  %v65 = vld [vmem:[%s0 + $0xb0] sm:$0xf]
  %v66 = vld [vmem:[%s0 + $0xb4] sm:$0xf]
  %v67 = vld [vmem:[%s0 + $0xb8] sm:$0xf]
  %v68 = vld [vmem:[%s0 + $0xbc] sm:$0xf]
  %v69 = vld [vmem:[%s0 + $0xc0] sm:$0xf]
  %v70 = vld [vmem:[%s0 + $0xc4] sm:$0xf]
  %v71 = vld [vmem:[%s0 + $0xc8] sm:$0xf]
  %v72 = vld [vmem:[%s0 + $0xcc] sm:$0xf]
  %v73 = vld [vmem:[%s0 + $0xd0] sm:$0xf]
  %v74 = vld [vmem:[%s0 + $0xd4] sm:$0xf]
  %v75 = vld [vmem:[%s0 + $0xd8] sm:$0xf]
  %v76 = vld [vmem:[%s0 + $0xdc] sm:$0xf]
  %v77 = vld [vmem:[%s0 + $0xe0] sm:$0xf]
  %v78 = vld [vmem:[%s0 + $0xe4] sm:$0xf]
  %v79 = vld [vmem:[%s0 + $0xe8] sm:$0xf]
  %v80 = vld [vmem:[%s0 + $0xec] sm:$0xf]
  %v81 = vld [vmem:[%s0 + $0xf0] sm:$0xf]
  %v82 = vld [vmem:[%s0 + $0xf4] sm:$0xf]
  %v83 = vld [vmem:[%s0 + $0xf8] sm:$0xf]
  %v84 = vld [vmem:[%s0 + $0xfc] sm:$0xf]
  %v85 = vld [vmem:[%s0 + $0x100] sm:$0xf]
  %v86 = vld [vmem:[%s0 + $0x104] sm:$0xf]
  %v87 = vld [vmem:[%s0 + $0x108] sm:$0xf]
  %v88 = vld [vmem:[%s0 + $0x10c] sm:$0xf]
  %v89 = vld [vmem:[%s0 + $0x110] sm:$0xf]
  %v90 = vld [vmem:[%s0 + $0x114] sm:$0xf]
  %v91 = vld [vmem:[%s0 + $0x118] sm:$0xf]
  %v92 = vld [vmem:[%s0 + $0x11c] sm:$0xf]
  %v93 = vld [vmem:[%s0 + $0x120] sm:$0xf]
  %v94 = vld [vmem:[%s0 + $0x124] sm:$0xf]
  %v95 = vld [vmem:[%s0 + $0x128] sm:$0xf]
  %v96 = vld [vmem:[%s0 + $0x12c] sm:$0xf]
  %v97 = vld [vmem:[%s0 + $0x130] sm:$0xf]
  %v98 = vld [vmem:[%s0 + $0x134] sm:$0xf]
  %v99 = vld [vmem:[%s0 + $0x138] sm:$0xf]
  %v100 = vld [vmem:[%s0 + $0x13c] sm:$0xf]
  %v101 = vld [vmem:[%s0 + $0x140] sm:$0xf]
  %v102 = vld [vmem:[%s0 + $0x144] sm:$0xf]
  %v103 = vld [vmem:[%s0 + $0x148] sm:$0xf]
  %v104 = vld [vmem:[%s0 + $0x14c] sm:$0xf]
  %v105 = vld [vmem:[%s0 + $0x150] sm:$0xf]
  %v106 = vld [vmem:[%s0 + $0x154] sm:$0xf]
  %v107 = vld [vmem:[%s0 + $0x158] sm:$0xf]
  %v108 = vld [vmem:[%s0 + $0x15c] sm:$0xf]
  %v109 = vld [vmem:[%s0 + $0x160] sm:$0xf]
  %v110 = vld [vmem:[%s0 + $0x164] sm:$0xf]
  %v111 = vld [vmem:[%s0 + $0x168] sm:$0xf]
  %v112 = vld [vmem:[%s0 + $0x16c] sm:$0xf]
  %v113 = vld [vmem:[%s0 + $0x170] sm:$0xf]
  %v114 = vld [vmem:[%s0 + $0x174] sm:$0xf]
  %v115 = vld [vmem:[%s0 + $0x178] sm:$0xf]
  %v116 = vld [vmem:[%s0 + $0x17c] sm:$0xf]
  %v117 = vld [vmem:[%s0 + $0x180] sm:$0xf]
  %v118 = vld [vmem:[%s0 + $0x184] sm:$0xf]
  %v119 = vld [vmem:[%s0 + $0x188] sm:$0xf]
  %v120 = vld [vmem:[%s0 + $0x18c] sm:$0xf]
  %v121 = vld [vmem:[%s0 + $0x190] sm:$0xf]
  %v122 = vld [vmem:[%s0 + $0x194] sm:$0xf]
  %v123 = vld [vmem:[%s0 + $0x198] sm:$0xf]
  %v124 = vld [vmem:[%s0 + $0x19c] sm:$0xf]
  %v125 = vld [vmem:[%s0 + $0x1a0] sm:$0xf]
  %v126 = vld [vmem:[%s0 + $0x1a4] sm:$0xf]
  %v127 = vld [vmem:[%s0 + $0x1a8] sm:$0xf]
  %v128 = vld [vmem:[%s0 + $0x1ac] sm:$0xf]
  %v129 = vld [vmem:[%s0 + $0x1b0] sm:$0xf]
  %v130 = vld [vmem:[%s0 + $0x1b4] sm:$0xf]
  %v131 = vld [vmem:[%s0 + $0x1b8] sm:$0xf]
  %v132 = vld [vmem:[%s0 + $0x1bc] sm:$0xf]
  %v133 = vld [vmem:[%s0 + $0x1c0] sm:$0xf]
  %v134 = vld [vmem:[%s0 + $0x1c4] sm:$0xf]
  %v135 = vld [vmem:[%s0 + $0x1c8] sm:$0xf]
  %v136 = vld [vmem:[%s0 + $0x1cc] sm:$0xf]
  %v137 = vld [vmem:[%s0 + $0x1d0] sm:$0xf]
  %v138 = vld [vmem:[%s0 + $0x1d4] sm:$0xf]
  %v139 = vld [vmem:[%s0 + $0x1d8] sm:$0xf]
  %v140 = vld [vmem:[%s0 + $0x1dc] sm:$0xf]
  %v141 = vld [vmem:[%s0 + $0x1e0] sm:$0xf]
  %v142 = vld [vmem:[%s0 + $0x1e4] sm:$0xf]
  %v143 = vld [vmem:[%s0 + $0x1e8] sm:$0xf]
  %v144 = vld [vmem:[%s0 + $0x1ec] sm:$0xf]
  %v145 = vld [vmem:[%s0 + $0x1f0] sm:$0xf]
  %v146 = vld [vmem:[%s0 + $0x1f4] sm:$0xf]
  %v147 = vld [vmem:[%s0 + $0x1f8] sm:$0xf]
  %v148 = vld [vmem:[%s0 + $0x1fc] sm:$0xf]
  %v149 = vld [vmem:[%s0 + $0x200] sm:$0xf]
  %v150 = vld [vmem:[%s0 + $0x204] sm:$0xf]
  %v151 = vld [vmem:[%s0 + $0x208] sm:$0xf]
  %v152 = vld [vmem:[%s0 + $0x20c] sm:$0xf]
  %v153 = vld [vmem:[%s0 + $0x210] sm:$0xf]
  %v154 = vld [vmem:[%s0 + $0x214] sm:$0xf]
  %v155 = vld [vmem:[%s0 + $0x218] sm:$0xf]
  %v156 = vld [vmem:[%s0 + $0x21c] sm:$0xf]
  %v157 = vld [vmem:[%s0 + $0x220] sm:$0xf]
  %v158 = vld [vmem:[%s0 + $0x224] sm:$0xf]
  %v159 = vld [vmem:[%s0 + $0x228] sm:$0xf]
  %v160 = vld [vmem:[%s0 + $0x22c] sm:$0xf]
  %v161 = vld [vmem:[%s0 + $0x230] sm:$0xf]
  %v162 = vld [vmem:[%s0 + $0x234] sm:$0xf]
  %v163 = vld [vmem:[%s0 + $0x238] sm:$0xf]
  %v164 = vld [vmem:[%s0 + $0x23c] sm:$0xf]
  %v165 = vld [vmem:[%s0 + $0x240] sm:$0xf]
  %v166 = vld [vmem:[%s0 + $0x244] sm:$0xf]
  %v167 = vld [vmem:[%s0 + $0x248] sm:$0xf]
  %v168 = vld [vmem:[%s0 + $0x24c] sm:$0xf]
  %v169 = vld [vmem:[%s0 + $0x250] sm:$0xf]
  %v170 = vld [vmem:[%s0 + $0x254] sm:$0xf]
  %v171 = vld [vmem:[%s0 + $0x258] sm:$0xf]
  %v172 = vld [vmem:[%s0 + $0x25c] sm:$0xf]
  %v173 = vld [vmem:[%s0 + $0x260] sm:$0xf]
  %v174 = vld [vmem:[%s0 + $0x264] sm:$0xf]
  %v175 = vld [vmem:[%s0 + $0x268] sm:$0xf]
  %v176 = vld [vmem:[%s0 + $0x26c] sm:$0xf]
  %v177 = vld [vmem:[%s0 + $0x270] sm:$0xf]
  %v178 = vld [vmem:[%s0 + $0x274] sm:$0xf]
  %v179 = vld [vmem:[%s0 + $0x278] sm:$0xf]
  %v180 = vld [vmem:[%s0 + $0x27c] sm:$0xf]
  %v181 = vld [vmem:[%s0 + $0x280] sm:$0xf]
  %v182 = vld [vmem:[%s0 + $0x284] sm:$0xf]
  %v183 = vld [vmem:[%s0 + $0x288] sm:$0xf]
  %v184 = vld [vmem:[%s0 + $0x28c] sm:$0xf]
  %v185 = vld [vmem:[%s0 + $0x290] sm:$0xf]
  %v186 = vld [vmem:[%s0 + $0x294] sm:$0xf]
  %v187 = vld [vmem:[%s0 + $0x298] sm:$0xf]
  %v188 = vld [vmem:[%s0 + $0x29c] sm:$0xf]
  %v189 = vld [vmem:[%s0 + $0x2a0] sm:$0xf]
  %v190 = vld [vmem:[%s0 + $0x2a4] sm:$0xf]
  %v191 = vld [vmem:[%s0 + $0x2a8] sm:$0xf]
  %v192 = vld [vmem:[%s0 + $0x2ac] sm:$0xf]
  %v193 = vld [vmem:[%s0 + $0x2b0] sm:$0xf]
  %v194 = vld [vmem:[%s0 + $0x2b4] sm:$0xf]
  %v195 = vld [vmem:[%s0 + $0x2b8] sm:$0xf]
  %v196 = vld [vmem:[%s0 + $0x2bc] sm:$0xf]
  %v197 = vld [vmem:[%s0 + $0x2c0] sm:$0xf]
  %v198 = vld [vmem:[%s0 + $0x2c4] sm:$0xf]
  %v199 = vld [vmem:[%s0 + $0x2c8] sm:$0xf]
  %v200 = vld [vmem:[%s0 + $0x2cc] sm:$0xf]
  %v201 = vld [vmem:[%s0 + $0x2d0] sm:$0xf]
  %v202 = vld [vmem:[%s0 + $0x2d4] sm:$0xf]
  %v203 = vld [vmem:[%s0 + $0x2d8] sm:$0xf]
  %v204 = vld [vmem:[%s0 + $0x2dc] sm:$0xf]
  %v205 = vld [vmem:[%s0 + $0x2e0] sm:$0xf]
  %v206 = vld [vmem:[%s0 + $0x2e4] sm:$0xf]
  %v207 = vld [vmem:[%s0 + $0x2e8] sm:$0xf]
  %v208 = vld [vmem:[%s0 + $0x2ec] sm:$0xf]
  %v209 = vld [vmem:[%s0 + $0x2f0] sm:$0xf]
  %v210 = vld [vmem:[%s0 + $0x2f4] sm:$0xf]
  %v211 = vld [vmem:[%s0 + $0x2f8] sm:$0xf]
  %v212 = vld [vmem:[%s0 + $0x2fc] sm:$0xf]
  %v213 = vld [vmem:[%s0 + $0x300] sm:$0xf]
  %v214 = vld [vmem:[%s0 + $0x304] sm:$0xf]
  %v215 = vld [vmem:[%s0 + $0x308] sm:$0xf]
  %v216 = vld [vmem:[%s0 + $0x30c] sm:$0xf]
  %v217 = vld [vmem:[%s0 + $0x310] sm:$0xf]
  %v218 = vld [vmem:[%s0 + $0x314] sm:$0xf]
  %v219 = vld [vmem:[%s0 + $0x318] sm:$0xf]
  %v220 = vld [vmem:[%s0 + $0x31c] sm:$0xf]
  %v221 = vld [vmem:[%s0 + $0x320] sm:$0xf]
  %v222 = vld [vmem:[%s0 + $0x324] sm:$0xf]
  %v223 = vld [vmem:[%s0 + $0x328] sm:$0xf]
  %v224 = vld [vmem:[%s0 + $0x32c] sm:$0xf]
  %v225 = vld [vmem:[%s0 + $0x330] sm:$0xf]
  %v226 = vld [vmem:[%s0 + $0x334] sm:$0xf]
  %v227 = vld [vmem:[%s0 + $0x338] sm:$0xf]
  %v228 = vld [vmem:[%s0 + $0x33c] sm:$0xf]
  %v229 = vld [vmem:[%s0 + $0x340] sm:$0xf]
  %v230 = vld [vmem:[%s0 + $0x344] sm:$0xf]
  %v231 = vld [vmem:[%s0 + $0x348] sm:$0xf]
  %v232 = vld [vmem:[%s0 + $0x34c] sm:$0xf]
  %v233 = vld [vmem:[%s0 + $0x350] sm:$0xf]
  %v234 = vld [vmem:[%s0 + $0x354] sm:$0xf]
  %v235 = vld [vmem:[%s0 + $0x358] sm:$0xf]
  %v236 = vld [vmem:[%s0 + $0x35c] sm:$0xf]
  %v237 = vld [vmem:[%s0 + $0x360] sm:$0xf]
  %v238 = vld [vmem:[%s0 + $0x364] sm:$0xf]
  %v239 = vld [vmem:[%s0 + $0x368] sm:$0xf]
  %v240 = vld [vmem:[%s0 + $0x36c] sm:$0xf]
  %v241 = vld [vmem:[%s0 + $0x370] sm:$0xf]
  %v242 = vld [vmem:[%s0 + $0x374] sm:$0xf]
  %v243 = vld [vmem:[%s0 + $0x378] sm:$0xf]
  %v244 = vld [vmem:[%s0 + $0x37c] sm:$0xf]
  %v245 = vld [vmem:[%s0 + $0x380] sm:$0xf]
  %v246 = vld [vmem:[%s0 + $0x384] sm:$0xf]
  %v247 = vld [vmem:[%s0 + $0x388] sm:$0xf]
  %v248 = vld [vmem:[%s0 + $0x38c] sm:$0xf]
  %v249 = vld [vmem:[%s0 + $0x390] sm:$0xf]
  %v250 = vld [vmem:[%s0 + $0x394] sm:$0xf]
  %v251 = vld [vmem:[%s0 + $0x398] sm:$0xf]
  %v252 = vld [vmem:[%s0 + $0x39c] sm:$0xf]
  %v253 = vld [vmem:[%s0 + $0x3a0] sm:$0xf]
  %v254 = vld [vmem:[%s0 + $0x3a4] sm:$0xf]
  %v255 = vld [vmem:[%s0 + $0x3a8] sm:$0xf]
  %v256 = vld [vmem:[%s0 + $0x3ac] sm:$0xf]
  %v257 = vld [vmem:[%s0 + $0x3b0] sm:$0xf]
  %v258 = vld [vmem:[%s0 + $0x3b4] sm:$0xf]
  %v259 = vld [vmem:[%s0 + $0x3b8] sm:$0xf]
  %v260 = vld [vmem:[%s0 + $0x3bc] sm:$0xf]
  %v261 = vld [vmem:[%s0 + $0x3c0] sm:$0xf]
  %v262 = vld [vmem:[%s0 + $0x3c4] sm:$0xf]
  %v263 = vld [vmem:[%s0 + $0x3c8] sm:$0xf]
  %v264 = vld [vmem:[%s0 + $0x3cc] sm:$0xf]
  %v265 = vld [vmem:[%s0 + $0x3d0] sm:$0xf]
  %v266 = vld [vmem:[%s0 + $0x3d4] sm:$0xf]
  %v267 = vld [vmem:[%s0 + $0x3d8] sm:$0xf]
  %v268 = vld [vmem:[%s0 + $0x3dc] sm:$0xf]
  %v269 = vld [vmem:[%s0 + $0x3e0] sm:$0xf]
  %v270 = vld [vmem:[%s0 + $0x3e4] sm:$0xf]
  %v271 = vld [vmem:[%s0 + $0x3e8] sm:$0xf]
  %v272 = vld [vmem:[%s0 + $0x3ec] sm:$0xf]
  %v273 = vld [vmem:[%s0 + $0x3f0] sm:$0xf]
  %v274 = vld [vmem:[%s0 + $0x3f4] sm:$0xf]
  %v275 = vld [vmem:[%s0 + $0x3f8] sm:$0xf]
  %v276 = vld [vmem:[%s0 + $0x3fc] sm:$0xf]
  %v277 = vld [vmem:[%s0 + $0x400] sm:$0xf]
  %v278 = vld [vmem:[%s0 + $0x404] sm:$0xf]
  %v279 = vld [vmem:[%s0 + $0x408] sm:$0xf]
  %v280 = vld [vmem:[%s0 + $0x40c] sm:$0xf]
  %v281 = vld [vmem:[%s0 + $0x410] sm:$0xf]
  %v282 = vld [vmem:[%s0 + $0x414] sm:$0xf]
  %v283 = vld [vmem:[%s0 + $0x418] sm:$0xf]
  %v284 = vld [vmem:[%s0 + $0x41c] sm:$0xf]
  %v285 = vld [vmem:[%s0 + $0x420] sm:$0xf]
  %v286 = vld [vmem:[%s0 + $0x424] sm:$0xf]
  %v287 = vld [vmem:[%s0 + $0x428] sm:$0xf]
  %v288 = vld [vmem:[%s0 + $0x42c] sm:$0xf]
  %v289 = vld [vmem:[%s0 + $0x430] sm:$0xf]
  %v290 = vld [vmem:[%s0 + $0x434] sm:$0xf]
  %v291 = vld [vmem:[%s0 + $0x438] sm:$0xf]
  %v292 = vld [vmem:[%s0 + $0x43c] sm:$0xf]
  %v293 = vld [vmem:[%s0 + $0x440] sm:$0xf]
  %v294 = vld [vmem:[%s0 + $0x444] sm:$0xf]
  %v295 = vld [vmem:[%s0 + $0x448] sm:$0xf]
  %v296 = vld [vmem:[%s0 + $0x44c] sm:$0xf]
  %v297 = vld [vmem:[%s0 + $0x450] sm:$0xf]
  %v298 = vld [vmem:[%s0 + $0x454] sm:$0xf]
  %v299 = vld [vmem:[%s0 + $0x458] sm:$0xf]
  %v300 = vld [vmem:[%s0 + $0x45c] sm:$0xf]
  %v301 = vld [vmem:[%s0 + $0x460] sm:$0xf]
  %v302 = vld [vmem:[%s0 + $0x464] sm:$0xf]
  %v303 = vld [vmem:[%s0 + $0x468] sm:$0xf]
  %v304 = vld [vmem:[%s0 + $0x46c] sm:$0xf]
  %v305 = vld [vmem:[%s0 + $0x470] sm:$0xf]
  %v306 = vld [vmem:[%s0 + $0x474] sm:$0xf]
  %v307 = vld [vmem:[%s0 + $0x478] sm:$0xf]
  %v308 = vld [vmem:[%s0 + $0x47c] sm:$0xf]
  %v309 = vld [vmem:[%s0 + $0x480] sm:$0xf]
  %v310 = vld [vmem:[%s0 + $0x484] sm:$0xf]
  %v311 = vld [vmem:[%s0 + $0x488] sm:$0xf]
  %v312 = vld [vmem:[%s0 + $0x48c] sm:$0xf]
  %v313 = vld [vmem:[%s0 + $0x490] sm:$0xf]
  %v314 = vld [vmem:[%s0 + $0x494] sm:$0xf]
  %v315 = vld [vmem:[%s0 + $0x498] sm:$0xf]
  %v316 = vld [vmem:[%s0 + $0x49c] sm:$0xf]
  %v317 = vld [vmem:[%s0 + $0x4a0] sm:$0xf]
  %v318 = vld [vmem:[%s0 + $0x4a4] sm:$0xf]
  %v319 = vld [vmem:[%s0 + $0x4a8] sm:$0xf]
  %v320 = vld [vmem:[%s0 + $0x4ac] sm:$0xf]
  %v321 = vld [vmem:[%s0 + $0x4b0] sm:$0xf]
  %v322 = vld [vmem:[%s0 + $0x4b4] sm:$0xf]
  %v323 = vld [vmem:[%s0 + $0x4b8] sm:$0xf]
  %v324 = vld [vmem:[%s0 + $0x4bc] sm:$0xf]
  %v325 = vld [vmem:[%s0 + $0x4c0] sm:$0xf]
  %v326 = vld [vmem:[%s0 + $0x4c4] sm:$0xf]
  %v327 = vld [vmem:[%s0 + $0x4c8] sm:$0xf]
  %v328 = vld [vmem:[%s0 + $0x4cc] sm:$0xf]
  %v329 = vld [vmem:[%s0 + $0x4d0] sm:$0xf]
  %v330 = vld [vmem:[%s0 + $0x4d4] sm:$0xf]
  %v331 = vld [vmem:[%s0 + $0x4d8] sm:$0xf]
  %v332 = vld [vmem:[%s0 + $0x4dc] sm:$0xf]
  %v333 = vld [vmem:[%s0 + $0x4e0] sm:$0xf]
  %v334 = vld [vmem:[%s0 + $0x4e4] sm:$0xf]
  %v335 = vld [vmem:[%s0 + $0x4e8] sm:$0xf]
  %v336 = vld [vmem:[%s0 + $0x4ec] sm:$0xf]
  %v337 = vld [vmem:[%s0 + $0x4f0] sm:$0xf]
  %v338 = vld [vmem:[%s0 + $0x4f4] sm:$0xf]
  %v339 = vld [vmem:[%s0 + $0x4f8] sm:$0xf]
  %v340 = vld [vmem:[%s0 + $0x4fc] sm:$0xf]
  %v341 = vld [vmem:[%s0 + $0x500] sm:$0xf]
  %v342 = vld [vmem:[%s0 + $0x504] sm:$0xf]
  %v343 = vld [vmem:[%s0 + $0x508] sm:$0xf]
  %v344 = vld [vmem:[%s0 + $0x50c] sm:$0xf]
  %v345 = vld [vmem:[%s0 + $0x510] sm:$0xf]
  %v346 = vld [vmem:[%s0 + $0x514] sm:$0xf]
  %v347 = vld [vmem:[%s0 + $0x518] sm:$0xf]
  %v348 = vld [vmem:[%s0 + $0x51c] sm:$0xf]
  %v349 = vld [vmem:[%s0 + $0x520] sm:$0xf]
  %v350 = vld [vmem:[%s0 + $0x524] sm:$0xf]
  %v351 = vld [vmem:[%s0 + $0x528] sm:$0xf]
  %v352 = vld [vmem:[%s0 + $0x52c] sm:$0xf]
  %v353 = vld [vmem:[%s0 + $0x530] sm:$0xf]
  %v354 = vld [vmem:[%s0 + $0x534] sm:$0xf]
  %v355 = vld [vmem:[%s0 + $0x538] sm:$0xf]
  %v356 = vld [vmem:[%s0 + $0x53c] sm:$0xf]
  %v357 = vld [vmem:[%s0 + $0x540] sm:$0xf]
  %v358 = vld [vmem:[%s0 + $0x544] sm:$0xf]
  %v359 = vld [vmem:[%s0 + $0x548] sm:$0xf]
  %v360 = vld [vmem:[%s0 + $0x54c] sm:$0xf]
  %v361 = vld [vmem:[%s0 + $0x550] sm:$0xf]
  %v362 = vld [vmem:[%s0 + $0x554] sm:$0xf]
  %v363 = vld [vmem:[%s0 + $0x558] sm:$0xf]
  %v364 = vld [vmem:[%s0 + $0x55c] sm:$0xf]
  %v365 = vld [vmem:[%s0 + $0x560] sm:$0xf]
  %v366 = vld [vmem:[%s0 + $0x564] sm:$0xf]
  %v367 = vld [vmem:[%s0 + $0x568] sm:$0xf]
  %v368 = vld [vmem:[%s0 + $0x56c] sm:$0xf]
  %v369 = vld [vmem:[%s0 + $0x570] sm:$0xf]
  %v370 = vld [vmem:[%s0 + $0x574] sm:$0xf]
  %v371 = vld [vmem:[%s0 + $0x578] sm:$0xf]
  %v372 = vld [vmem:[%s0 + $0x57c] sm:$0xf]
  %v373 = vld [vmem:[%s0 + $0x580] sm:$0xf]
  %v374 = vld [vmem:[%s0 + $0x584] sm:$0xf]
  %v375 = vld [vmem:[%s0 + $0x588] sm:$0xf]
  %v376 = vld [vmem:[%s0 + $0x58c] sm:$0xf]
  %v377 = vld [vmem:[%s0 + $0x590] sm:$0xf]
  %v378 = vld [vmem:[%s0 + $0x594] sm:$0xf]
  %v379 = vld [vmem:[%s0 + $0x598] sm:$0xf]
  %v380 = vld [vmem:[%s0 + $0x59c] sm:$0xf]
  %v381 = vld [vmem:[%s0 + $0x5a0] sm:$0xf]
  %v382 = vld [vmem:[%s0 + $0x5a4] sm:$0xf]
  %v383 = vld [vmem:[%s0 + $0x5a8] sm:$0xf]
  %v384 = vld [vmem:[%s0 + $0x5ac] sm:$0xf]
  %v385 = vld [vmem:[%s0 + $0x5b0] sm:$0xf]
  %v386 = vld [vmem:[%s0 + $0x5b4] sm:$0xf]
  %v387 = vld [vmem:[%s0 + $0x5b8] sm:$0xf]
  %v388 = vld [vmem:[%s0 + $0x5bc] sm:$0xf]
  %v389 = vld [vmem:[%s0 + $0x5c0] sm:$0xf]
  %v390 = vld [vmem:[%s0 + $0x5c4] sm:$0xf]
  %v391 = vld [vmem:[%s0 + $0x5c8] sm:$0xf]
  %v392 = vld [vmem:[%s0 + $0x5cc] sm:$0xf]
  %v393 = vld [vmem:[%s0 + $0x5d0] sm:$0xf]
  %v394 = vld [vmem:[%s0 + $0x5d4] sm:$0xf]
  %v395 = vld [vmem:[%s0 + $0x5d8] sm:$0xf]
  %v396 = vld [vmem:[%s0 + $0x5dc] sm:$0xf]
  %v397 = vld [vmem:[%s0 + $0x5e0] sm:$0xf]
  %v398 = vld [vmem:[%s0 + $0x5e4] sm:$0xf]
  %v399 = vld [vmem:[%s0 + $0x5e8] sm:$0xf]
  %v400 = vld [vmem:[%s0 + $0x5ec] sm:$0xf]
  %v401 = vld [vmem:[%s0 + $0x5f0] sm:$0xf]
  %v402 = vld [vmem:[%s0 + $0x5f4] sm:$0xf]
  %v403 = vld [vmem:[%s0 + $0x5f8] sm:$0xf]
  %v404 = vld [vmem:[%s0 + $0x5fc] sm:$0xf]
  %v405 = vld [vmem:[%s0 + $0x600] sm:$0xf]
  %v406 = vld [vmem:[%s0 + $0x604] sm:$0xf]
  %v407 = vld [vmem:[%s0 + $0x608] sm:$0xf]
  %v408 = vld [vmem:[%s0 + $0x60c] sm:$0xf]
  %v409 = vld [vmem:[%s0 + $0x610] sm:$0xf]
  %v410 = vld [vmem:[%s0 + $0x614] sm:$0xf]
  %v411 = vld [vmem:[%s0 + $0x618] sm:$0xf]
  %v412 = vld [vmem:[%s0 + $0x61c] sm:$0xf]
  %v413 = vld [vmem:[%s0 + $0x620] sm:$0xf]
  %v414 = vld [vmem:[%s0 + $0x624] sm:$0xf]
  %v415 = vld [vmem:[%s0 + $0x628] sm:$0xf]
  %v416 = vld [vmem:[%s0 + $0x62c] sm:$0xf]
  %v417 = vld [vmem:[%s0 + $0x630] sm:$0xf]
  %v418 = vld [vmem:[%s0 + $0x634] sm:$0xf]
  %v419 = vld [vmem:[%s0 + $0x638] sm:$0xf]
  %v420 = vld [vmem:[%s0 + $0x63c] sm:$0xf]
  %v421 = vld [vmem:[%s0 + $0x640] sm:$0xf]
  %v422 = vld [vmem:[%s0 + $0x644] sm:$0xf]
  %v423 = vld [vmem:[%s0 + $0x648] sm:$0xf]
  %v424 = vld [vmem:[%s0 + $0x64c] sm:$0xf]
  %v425 = vld [vmem:[%s0 + $0x650] sm:$0xf]
  %v426 = vld [vmem:[%s0 + $0x654] sm:$0xf]
  %v427 = vld [vmem:[%s0 + $0x658] sm:$0xf]
  %v428 = vld [vmem:[%s0 + $0x65c] sm:$0xf]
  %v429 = vld [vmem:[%s0 + $0x660] sm:$0xf]
  %v430 = vld [vmem:[%s0 + $0x664] sm:$0xf]
  %v431 = vld [vmem:[%s0 + $0x668] sm:$0xf]
  %v432 = vld [vmem:[%s0 + $0x66c] sm:$0xf]
  %v433 = vld [vmem:[%s0 + $0x670] sm:$0xf]
  %v434 = vld [vmem:[%s0 + $0x674] sm:$0xf]
  %v435 = vld [vmem:[%s0 + $0x678] sm:$0xf]
  %v436 = vld [vmem:[%s0 + $0x67c] sm:$0xf]
  %v437 = vld [vmem:[%s0 + $0x680] sm:$0xf]
  %v438 = vld [vmem:[%s0 + $0x684] sm:$0xf]
  %v439 = vld [vmem:[%s0 + $0x688] sm:$0xf]
  %v440 = vld [vmem:[%s0 + $0x68c] sm:$0xf]
  %v441 = vld [vmem:[%s0 + $0x690] sm:$0xf]
  %v442 = vld [vmem:[%s0 + $0x694] sm:$0xf]
  %v443 = vld [vmem:[%s0 + $0x698] sm:$0xf]
  %v444 = vld [vmem:[%s0 + $0x69c] sm:$0xf]
  %v445 = vld [vmem:[%s0 + $0x6a0] sm:$0xf]
  %v446 = vld [vmem:[%s0 + $0x6a4] sm:$0xf]
  %v447 = vld [vmem:[%s0 + $0x6a8] sm:$0xf]
  %v448 = vld [vmem:[%s0 + $0x6ac] sm:$0xf]
  %v449 = vld [vmem:[%s0 + $0x6b0] sm:$0xf]
  %v450 = vld [vmem:[%s0 + $0x6b4] sm:$0xf]
  %v451 = vld [vmem:[%s0 + $0x6b8] sm:$0xf]
  %v452 = vld [vmem:[%s0 + $0x6bc] sm:$0xf]
  %v453 = vld [vmem:[%s0 + $0x6c0] sm:$0xf]
  %v454 = vld [vmem:[%s0 + $0x6c4] sm:$0xf]
  %v455 = vld [vmem:[%s0 + $0x6c8] sm:$0xf]
  %v456 = vld [vmem:[%s0 + $0x6cc] sm:$0xf]
  %v457 = vld [vmem:[%s0 + $0x6d0] sm:$0xf]
  %v458 = vld [vmem:[%s0 + $0x6d4] sm:$0xf]
  %v459 = vld [vmem:[%s0 + $0x6d8] sm:$0xf]
  %v460 = vld [vmem:[%s0 + $0x6dc] sm:$0xf]
  %v461 = vld [vmem:[%s0 + $0x6e0] sm:$0xf]
  %v462 = vld [vmem:[%s0 + $0x6e4] sm:$0xf]
  %v463 = vld [vmem:[%s0 + $0x6e8] sm:$0xf]
  %v464 = vld [vmem:[%s0 + $0x6ec] sm:$0xf]
  %v465 = vld [vmem:[%s0 + $0x6f0] sm:$0xf]
  %v466 = vld [vmem:[%s0 + $0x6f4] sm:$0xf]
  %v467 = vld [vmem:[%s0 + $0x6f8] sm:$0xf]
  %v468 = vld [vmem:[%s0 + $0x6fc] sm:$0xf]
  %v469 = vld [vmem:[%s0 + $0x700] sm:$0xf]
  %v470 = vld [vmem:[%s0 + $0x704] sm:$0xf]
  %v471 = vld [vmem:[%s0 + $0x708] sm:$0xf]
  %v472 = vld [vmem:[%s0 + $0x70c] sm:$0xf]
  %v473 = vld [vmem:[%s0 + $0x710] sm:$0xf]
  %v474 = vld [vmem:[%s0 + $0x714] sm:$0xf]
  %v475 = vld [vmem:[%s0 + $0x718] sm:$0xf]
  %v476 = vld [vmem:[%s0 + $0x71c] sm:$0xf]
  %v477 = vld [vmem:[%s0 + $0x720] sm:$0xf]
  %v478 = vld [vmem:[%s0 + $0x724] sm:$0xf]
  %v479 = vld [vmem:[%s0 + $0x728] sm:$0xf]
  %v480 = vld [vmem:[%s0 + $0x72c] sm:$0xf]
  %v481 = vld [vmem:[%s0 + $0x730] sm:$0xf]
  %v482 = vld [vmem:[%s0 + $0x734] sm:$0xf]
  %v483 = vld [vmem:[%s0 + $0x738] sm:$0xf]
  %v484 = vld [vmem:[%s0 + $0x73c] sm:$0xf]
  %v485 = vld [vmem:[%s0 + $0x740] sm:$0xf]
  %v486 = vld [vmem:[%s0 + $0x744] sm:$0xf]
  %v487 = vld [vmem:[%s0 + $0x748] sm:$0xf]
  %v488 = vld [vmem:[%s0 + $0x74c] sm:$0xf]
  %v489 = vld [vmem:[%s0 + $0x750] sm:$0xf]
  %v490 = vld [vmem:[%s0 + $0x754] sm:$0xf]
  %v491 = vld [vmem:[%s0 + $0x758] sm:$0xf]
  %v492 = vld [vmem:[%s0 + $0x75c] sm:$0xf]
  %v493 = vld [vmem:[%s0 + $0x760] sm:$0xf]
  %v494 = vld [vmem:[%s0 + $0x764] sm:$0xf]
  %v495 = vld [vmem:[%s0 + $0x768] sm:$0xf]
  %v496 = vld [vmem:[%s0 + $0x76c] sm:$0xf]
  %v497 = vld [vmem:[%s0 + $0x770] sm:$0xf]
  %v498 = vld [vmem:[%s0 + $0x774] sm:$0xf]
  %v499 = vld [vmem:[%s0 + $0x778] sm:$0xf]
  %v500 = vld [vmem:[%s0 + $0x77c] sm:$0xf]
  %v501 = vld [vmem:[%s0 + $0x780] sm:$0xf]
  %v502 = vld [vmem:[%s0 + $0x784] sm:$0xf]
  %v503 = vld [vmem:[%s0 + $0x788] sm:$0xf]
  %v504 = vld [vmem:[%s0 + $0x78c] sm:$0xf]
  %v505 = vld [vmem:[%s0 + $0x790] sm:$0xf]
  %v506 = vld [vmem:[%s0 + $0x794] sm:$0xf]
  %v507 = vld [vmem:[%s0 + $0x798] sm:$0xf]
  %v508 = vld [vmem:[%s0 + $0x79c] sm:$0xf]
  %v509 = vld [vmem:[%s0 + $0x7a0] sm:$0xf]
  %v510 = vld [vmem:[%s0 + $0x7a4] sm:$0xf]
  %v511 = vld [vmem:[%s0 + $0x7a8] sm:$0xf]
  %v512 = vld [vmem:[%s0 + $0x7ac] sm:$0xf]
  %v513 = vld [vmem:[%s0 + $0x7b0] sm:$0xf]
  %v514 = vld [vmem:[%s0 + $0x7b4] sm:$0xf]
  %v515 = vld [vmem:[%s0 + $0x7b8] sm:$0xf]
  %v516 = vld [vmem:[%s0 + $0x7bc] sm:$0xf]
  %v517 = vld [vmem:[%s0 + $0x7c0] sm:$0xf]
  %v518 = vld [vmem:[%s0 + $0x7c4] sm:$0xf]
  %v519 = vld [vmem:[%s0 + $0x7c8] sm:$0xf]
  %v520 = vld [vmem:[%s0 + $0x7cc] sm:$0xf]
  %v521 = vld [vmem:[%s0 + $0x7d0] sm:$0xf]
  %v522 = vld [vmem:[%s0 + $0x7d4] sm:$0xf]
  %v523 = vld [vmem:[%s0 + $0x7d8] sm:$0xf]
  %v524 = vld [vmem:[%s0 + $0x7dc] sm:$0xf]
  %v525 = vld [vmem:[%s0 + $0x7e0] sm:$0xf]
  %v526 = vld [vmem:[%s0 + $0x7e4] sm:$0xf]
  %v527 = vld [vmem:[%s0 + $0x7e8] sm:$0xf]
  %v528 = vld [vmem:[%s0 + $0x7ec] sm:$0xf]
  %v529 = vld [vmem:[%s0 + $0x7f0] sm:$0xf]
  %v530 = vld [vmem:[%s0 + $0x7f4] sm:$0xf]
  %v531 = vld [vmem:[%s0 + $0x7f8] sm:$0xf]
  %v532 = vld [vmem:[%s0 + $0x7fc] sm:$0xf]
  %v533 = vld [vmem:[%s0 + $0x800] sm:$0xf]
  %v534 = vld [vmem:[%s0 + $0x804] sm:$0xf]
  %v535 = vld [vmem:[%s0 + $0x808] sm:$0xf]
  %v536 = vld [vmem:[%s0 + $0x80c] sm:$0xf]
  %v537 = vld [vmem:[%s0 + $0x810] sm:$0xf]
  %v538 = vld [vmem:[%s0 + $0x814] sm:$0xf]
  %v539 = vld [vmem:[%s0 + $0x818] sm:$0xf]
  %v540 = vld [vmem:[%s0 + $0x81c] sm:$0xf]
  %v541 = vld [vmem:[%s0 + $0x820] sm:$0xf]
  %v542 = vld [vmem:[%s0 + $0x824] sm:$0xf]
  %v543 = vld [vmem:[%s0 + $0x828] sm:$0xf]
  %v544 = vld [vmem:[%s0 + $0x82c] sm:$0xf]
  %v545 = vld [vmem:[%s0 + $0x830] sm:$0xf]
  %v546 = vld [vmem:[%s0 + $0x834] sm:$0xf]
  %v547 = vld [vmem:[%s0 + $0x838] sm:$0xf]
  %v548 = vld [vmem:[%s0 + $0x83c] sm:$0xf]
  %v549 = vld [vmem:[%s0 + $0x840] sm:$0xf]
  %v550 = vld [vmem:[%s0 + $0x844] sm:$0xf]
  %v551 = vld [vmem:[%s0 + $0x848] sm:$0xf]
  %v552 = vld [vmem:[%s0 + $0x84c] sm:$0xf]
  %v553 = vld [vmem:[%s0 + $0x850] sm:$0xf]
  %v554 = vld [vmem:[%s0 + $0x854] sm:$0xf]
  %v555 = vld [vmem:[%s0 + $0x858] sm:$0xf]
  %v556 = vld [vmem:[%s0 + $0x85c] sm:$0xf]
  %v557 = vld [vmem:[%s0 + $0x860] sm:$0xf]
  %v558 = vld [vmem:[%s0 + $0x864] sm:$0xf]
  %v559 = vld [vmem:[%s0 + $0x868] sm:$0xf]
  %v560 = vld [vmem:[%s0 + $0x86c] sm:$0xf]
  %v561 = vld [vmem:[%s0 + $0x870] sm:$0xf]
  %v562 = vld [vmem:[%s0 + $0x874] sm:$0xf]
  %v563 = vld [vmem:[%s0 + $0x878] sm:$0xf]
  %v564 = vld [vmem:[%s0 + $0x87c] sm:$0xf]
  %v565 = vld [vmem:[%s0 + $0x880] sm:$0xf]
  %v566 = vld [vmem:[%s0 + $0x884] sm:$0xf]
  %v567 = vld [vmem:[%s0 + $0x888] sm:$0xf]
  %v568 = vld [vmem:[%s0 + $0x88c] sm:$0xf]
  %v569 = vld [vmem:[%s0 + $0x890] sm:$0xf]
  %v570 = vld [vmem:[%s0 + $0x894] sm:$0xf]
  %v571 = vld [vmem:[%s0 + $0x898] sm:$0xf]
  %v572 = vld [vmem:[%s0 + $0x89c] sm:$0xf]
  %v573 = vld [vmem:[%s0 + $0x8a0] sm:$0xf]
  %v574 = vld [vmem:[%s0 + $0x8a4] sm:$0xf]
  %v575 = vld [vmem:[%s0 + $0x8a8] sm:$0xf]
  %v576 = vld [vmem:[%s0 + $0x8ac] sm:$0xf]
  %v577 = vld [vmem:[%s0 + $0x8b0] sm:$0xf]
  %v578 = vld [vmem:[%s0 + $0x8b4] sm:$0xf]
  %v579 = vld [vmem:[%s0 + $0x8b8] sm:$0xf]
  %v580 = vld [vmem:[%s0 + $0x8bc] sm:$0xf]
  %v581 = vld [vmem:[%s0 + $0x8c0] sm:$0xf]
  %v582 = vld [vmem:[%s0 + $0x8c4] sm:$0xf]
  %v583 = vld [vmem:[%s0 + $0x8c8] sm:$0xf]
  %v584 = vld [vmem:[%s0 + $0x8cc] sm:$0xf]
  %v585 = vld [vmem:[%s0 + $0x8d0] sm:$0xf]
  %v586 = vld [vmem:[%s0 + $0x8d4] sm:$0xf]
  %v587 = vld [vmem:[%s0 + $0x8d8] sm:$0xf]
  %v588 = vld [vmem:[%s0 + $0x8dc] sm:$0xf]
  %v589 = vld [vmem:[%s0 + $0x8e0] sm:$0xf]
  %v590 = vld [vmem:[%s0 + $0x8e4] sm:$0xf]
  %v591 = vld [vmem:[%s0 + $0x8e8] sm:$0xf]
  %v592 = vld [vmem:[%s0 + $0x8ec] sm:$0xf]
  %v593 = vld [vmem:[%s0 + $0x8f0] sm:$0xf]
  %v594 = vld [vmem:[%s0 + $0x8f4] sm:$0xf]
  %v595 = vld [vmem:[%s0 + $0x8f8] sm:$0xf]
  %v596 = vld [vmem:[%s0 + $0x8fc] sm:$0xf]
  %v597 = vld [vmem:[%s0 + $0x900] sm:$0xf]
  %v598 = vld [vmem:[%s0 + $0x904] sm:$0xf]
  %v599 = vld [vmem:[%s0 + $0x908] sm:$0xf]
  %v600 = vld [vmem:[%s0 + $0x90c] sm:$0xf]
  %v601 = vld [vmem:[%s0 + $0x910] sm:$0xf]
  %v602 = vld [vmem:[%s0 + $0x914] sm:$0xf]
  %v603 = vld [vmem:[%s0 + $0x918] sm:$0xf]
  %v604 = vld [vmem:[%s0 + $0x91c] sm:$0xf]
  %v605 = vld [vmem:[%s0 + $0x920] sm:$0xf]
  %v606 = vld [vmem:[%s0 + $0x924] sm:$0xf]
  %v607 = vld [vmem:[%s0 + $0x928] sm:$0xf]
  %v608 = vld [vmem:[%s0 + $0x92c] sm:$0xf]
  %v609 = vld [vmem:[%s0 + $0x930] sm:$0xf]
  %v610 = vld [vmem:[%s0 + $0x934] sm:$0xf]
  %v611 = vld [vmem:[%s0 + $0x938] sm:$0xf]
  %v612 = vld [vmem:[%s0 + $0x93c] sm:$0xf]
  %v613 = vld [vmem:[%s0 + $0x940] sm:$0xf]
  %v614 = vld [vmem:[%s0 + $0x944] sm:$0xf]
  %v615 = vld [vmem:[%s0 + $0x948] sm:$0xf]
  %v616 = vld [vmem:[%s0 + $0x94c] sm:$0xf]
  %v617 = vld [vmem:[%s0 + $0x950] sm:$0xf]
  %v618 = vld [vmem:[%s0 + $0x954] sm:$0xf]
  %v619 = vld [vmem:[%s0 + $0x958] sm:$0xf]
  %v620 = vld [vmem:[%s0 + $0x95c] sm:$0xf]
  %v621 = vld [vmem:[%s0 + $0x960] sm:$0xf]
  %v622 = vld [vmem:[%s0 + $0x964] sm:$0xf]
  %v623 = vld [vmem:[%s0 + $0x968] sm:$0xf]
  %v624 = vld [vmem:[%s0 + $0x96c] sm:$0xf]
  %v625 = vld [vmem:[%s0 + $0x970] sm:$0xf]
  %v626 = vld [vmem:[%s0 + $0x974] sm:$0xf]
  %v627 = vld [vmem:[%s0 + $0x978] sm:$0xf]
  %v628 = vld [vmem:[%s0 + $0x97c] sm:$0xf]
  %v629 = vld [vmem:[%s0 + $0x980] sm:$0xf]
  %v630 = vld [vmem:[%s0 + $0x984] sm:$0xf]
  %v631 = vld [vmem:[%s0 + $0x988] sm:$0xf]
  %v632 = vld [vmem:[%s0 + $0x98c] sm:$0xf]
  %v633 = vld [vmem:[%s0 + $0x990] sm:$0xf]
  %v634 = vld [vmem:[%s0 + $0x994] sm:$0xf]
  %v635 = vld [vmem:[%s0 + $0x998] sm:$0xf]
  %v636 = vld [vmem:[%s0 + $0x99c] sm:$0xf]
  %v637 = vld [vmem:[%s0 + $0x9a0] sm:$0xf]
  %v638 = vld [vmem:[%s0 + $0x9a4] sm:$0xf]
  %v639 = vld [vmem:[%s0 + $0x9a8] sm:$0xf]
  %v640 = vld [vmem:[%s0 + $0x9ac] sm:$0xf]
  %v641 = vld [vmem:[%s0 + $0x9b0] sm:$0xf]
  %v642 = vld [vmem:[%s0 + $0x9b4] sm:$0xf]
  %v643 = vld [vmem:[%s0 + $0x9b8] sm:$0xf]
  %v644 = vld [vmem:[%s0 + $0x9bc] sm:$0xf]
  %v645 = vld [vmem:[%s0 + $0x9c0] sm:$0xf]
  %v646 = vld [vmem:[%s0 + $0x9c4] sm:$0xf]
  %v647 = vld [vmem:[%s0 + $0x9c8] sm:$0xf]
  %v648 = vld [vmem:[%s0 + $0x9cc] sm:$0xf]
  %v649 = vld [vmem:[%s0 + $0x9d0] sm:$0xf]
  %v650 = vld [vmem:[%s0 + $0x9d4] sm:$0xf]
  %v651 = vld [vmem:[%s0 + $0x9d8] sm:$0xf]
  %v652 = vld [vmem:[%s0 + $0x9dc] sm:$0xf]
  %v653 = vld [vmem:[%s0 + $0x9e0] sm:$0xf]
  %v654 = vld [vmem:[%s0 + $0x9e4] sm:$0xf]
  %v655 = vld [vmem:[%s0 + $0x9e8] sm:$0xf]
  %v656 = vld [vmem:[%s0 + $0x9ec] sm:$0xf]
  %v657 = vld [vmem:[%s0 + $0x9f0] sm:$0xf]
  %v658 = vld [vmem:[%s0 + $0x9f4] sm:$0xf]
  %v659 = vld [vmem:[%s0 + $0x9f8] sm:$0xf]
  %v660 = vld [vmem:[%s0 + $0x9fc] sm:$0xf]
  %v661 = vld [vmem:[%s0 + $0xa00] sm:$0xf]
  %v662 = vld [vmem:[%s0 + $0xa04] sm:$0xf]
  %v663 = vld [vmem:[%s0 + $0xa08] sm:$0xf]
  %v664 = vld [vmem:[%s0 + $0xa0c] sm:$0xf]
  %v665 = vld [vmem:[%s0 + $0xa10] sm:$0xf]
  %v666 = vld [vmem:[%s0 + $0xa14] sm:$0xf]
  %v667 = vld [vmem:[%s0 + $0xa18] sm:$0xf]
  %v668 = vld [vmem:[%s0 + $0xa1c] sm:$0xf]
  %v669 = vunpack.c.l.bf16 %v21
  %v670 = vunpack.c.l.bf16 %v22
  %v671 = vunpack.c.l.bf16 %v23
  %v672 = vunpack.c.l.bf16 %v24
  %v673 = vunpack.c.l.bf16 %v25
  %v674 = vunpack.c.l.bf16 %v26
  %v675 = vunpack.c.l.bf16 %v27
  %v676 = vunpack.c.l.bf16 %v28
  %v677 = vunpack.c.l.bf16 %v29
  %v678 = vunpack.c.l.bf16 %v48
  %v679 = vunpack.c.l.bf16 %v49
  %v680 = vunpack.c.l.bf16 %v50
  %v681 = vunpack.c.l.bf16 %v51
  %v682 = vunpack.c.l.bf16 %v52
  %v683 = vunpack.c.l.bf16 %v53
  %v684 = vunpack.c.l.bf16 %v54
  %v685 = vunpack.c.l.bf16 %v55
  %v686 = vunpack.c.l.bf16 %v56
  %v687 = vunpack.c.l.bf16 %v75
  %v688 = vunpack.c.l.bf16 %v76
  %v689 = vunpack.c.l.bf16 %v77
  %v690 = vunpack.c.l.bf16 %v78
  %v691 = vunpack.c.l.bf16 %v79
  %v692 = vunpack.c.l.bf16 %v80
  %v693 = vunpack.c.l.bf16 %v81
  %v694 = vunpack.c.l.bf16 %v82
  %v695 = vunpack.c.l.bf16 %v83
  %v696 = vunpack.c.l.bf16 %v102
  %v697 = vunpack.c.l.bf16 %v103
  %v698 = vunpack.c.l.bf16 %v104
  %v699 = vunpack.c.l.bf16 %v105
  %v700 = vunpack.c.l.bf16 %v106
  %v701 = vunpack.c.l.bf16 %v107
  %v702 = vunpack.c.l.bf16 %v108
  %v703 = vunpack.c.l.bf16 %v109
  %v704 = vunpack.c.l.bf16 %v110
  %v705 = vunpack.c.l.bf16 %v129
  %v706 = vunpack.c.l.bf16 %v130
  %v707 = vunpack.c.l.bf16 %v131
  %v708 = vunpack.c.l.bf16 %v132
  %v709 = vunpack.c.l.bf16 %v133
  %v710 = vunpack.c.l.bf16 %v134
  %v711 = vunpack.c.l.bf16 %v135
  %v712 = vunpack.c.l.bf16 %v136
  %v713 = vunpack.c.l.bf16 %v137
  %v714 = vunpack.c.l.bf16 %v156
  %v715 = vunpack.c.l.bf16 %v157
  %v716 = vunpack.c.l.bf16 %v158
  %v717 = vunpack.c.l.bf16 %v159
  %v718 = vunpack.c.l.bf16 %v160
  %v719 = vunpack.c.l.bf16 %v161
  %v720 = vunpack.c.l.bf16 %v162
  %v721 = vunpack.c.l.bf16 %v163
  %v722 = vunpack.c.l.bf16 %v164
  %v723 = vunpack.c.l.bf16 %v183
  %v724 = vunpack.c.l.bf16 %v184
  %v725 = vunpack.c.l.bf16 %v185
  %v726 = vunpack.c.l.bf16 %v186
  %v727 = vunpack.c.l.bf16 %v187
  %v728 = vunpack.c.l.bf16 %v188
  %v729 = vunpack.c.l.bf16 %v189
  %v730 = vunpack.c.l.bf16 %v190
  %v731 = vunpack.c.l.bf16 %v191
  %v732 = vunpack.c.l.bf16 %v210
  %v733 = vunpack.c.l.bf16 %v211
  %v734 = vunpack.c.l.bf16 %v212
  %v735 = vunpack.c.l.bf16 %v213
  %v736 = vunpack.c.l.bf16 %v214
  %v737 = vunpack.c.l.bf16 %v215
  %v738 = vunpack.c.l.bf16 %v216
  %v739 = vunpack.c.l.bf16 %v217
  %v740 = vunpack.c.l.bf16 %v218
  %v741 = vunpack.c.l.bf16 %v237
  %v742 = vunpack.c.l.bf16 %v238
  %v743 = vunpack.c.l.bf16 %v239
  %v744 = vunpack.c.l.bf16 %v240
  %v745 = vunpack.c.l.bf16 %v241
  %v746 = vunpack.c.l.bf16 %v242
  %v747 = vunpack.c.l.bf16 %v243
  %v748 = vunpack.c.l.bf16 %v244
  %v749 = vunpack.c.l.bf16 %v245
  %v750 = vunpack.c.l.bf16 %v264
  %v751 = vunpack.c.l.bf16 %v265
  %v752 = vunpack.c.l.bf16 %v266
  %v753 = vunpack.c.l.bf16 %v267
  %v754 = vunpack.c.l.bf16 %v268
  %v755 = vunpack.c.l.bf16 %v269
  %v756 = vunpack.c.l.bf16 %v270
  %v757 = vunpack.c.l.bf16 %v271
  %v758 = vunpack.c.l.bf16 %v272
  %v759 = vunpack.c.l.bf16 %v291
  %v760 = vunpack.c.l.bf16 %v292
  %v761 = vunpack.c.l.bf16 %v293
  %v762 = vunpack.c.l.bf16 %v294
  %v763 = vunpack.c.l.bf16 %v295
  %v764 = vunpack.c.l.bf16 %v296
  %v765 = vunpack.c.l.bf16 %v297
  %v766 = vunpack.c.l.bf16 %v298
  %v767 = vunpack.c.l.bf16 %v299
  %v768 = vunpack.c.l.bf16 %v318
  %v769 = vunpack.c.l.bf16 %v319
  %v770 = vunpack.c.l.bf16 %v320
  %v771 = vunpack.c.l.bf16 %v321
  %v772 = vunpack.c.l.bf16 %v322
  %v773 = vunpack.c.l.bf16 %v323
  %v774 = vunpack.c.l.bf16 %v324
  %v775 = vunpack.c.l.bf16 %v325
  %v776 = vunpack.c.l.bf16 %v326
  %v777 = vunpack.c.l.bf16 %v345
  %v778 = vunpack.c.l.bf16 %v346
  %v779 = vunpack.c.l.bf16 %v347
  %v780 = vunpack.c.l.bf16 %v348
  %v781 = vunpack.c.l.bf16 %v349
  %v782 = vunpack.c.l.bf16 %v350
  %v783 = vunpack.c.l.bf16 %v351
  %v784 = vunpack.c.l.bf16 %v352
  %v785 = vunpack.c.l.bf16 %v353
  %v786 = vunpack.c.l.bf16 %v372
  %v787 = vunpack.c.l.bf16 %v373
  %v788 = vunpack.c.l.bf16 %v374
  %v789 = vunpack.c.l.bf16 %v375
  %v790 = vunpack.c.l.bf16 %v376
  %v791 = vunpack.c.l.bf16 %v377
  %v792 = vunpack.c.l.bf16 %v378
  %v793 = vunpack.c.l.bf16 %v379
  %v794 = vunpack.c.l.bf16 %v380
  %v795 = vunpack.c.l.bf16 %v399
  %v796 = vunpack.c.l.bf16 %v400
  %v797 = vunpack.c.l.bf16 %v401
  %v798 = vunpack.c.l.bf16 %v402
  %v799 = vunpack.c.l.bf16 %v403
  %v800 = vunpack.c.l.bf16 %v404
  %v801 = vunpack.c.l.bf16 %v405
  %v802 = vunpack.c.l.bf16 %v406
  %v803 = vunpack.c.l.bf16 %v407
  %v804 = vunpack.c.l.bf16 %v426
  %v805 = vunpack.c.l.bf16 %v427
  %v806 = vunpack.c.l.bf16 %v428
  %v807 = vunpack.c.l.bf16 %v429
  %v808 = vunpack.c.l.bf16 %v430
  %v809 = vunpack.c.l.bf16 %v431
  %v810 = vunpack.c.l.bf16 %v432
  %v811 = vunpack.c.l.bf16 %v433
  %v812 = vunpack.c.l.bf16 %v434
  %v813 = vunpack.c.l.bf16 %v453
  %v814 = vunpack.c.l.bf16 %v454
  %v815 = vunpack.c.l.bf16 %v455
  %v816 = vunpack.c.l.bf16 %v456
  %v817 = vunpack.c.l.bf16 %v457
  %v818 = vunpack.c.l.bf16 %v458
  %v819 = vunpack.c.l.bf16 %v459
  %v820 = vunpack.c.l.bf16 %v460
  %v821 = vunpack.c.l.bf16 %v461
  %v822 = vunpack.c.l.bf16 %v480
  %v823 = vunpack.c.l.bf16 %v481
  %v824 = vunpack.c.l.bf16 %v482
  %v825 = vunpack.c.l.bf16 %v483
  %v826 = vunpack.c.l.bf16 %v484
  %v827 = vunpack.c.l.bf16 %v485
  %v828 = vunpack.c.l.bf16 %v486
  %v829 = vunpack.c.l.bf16 %v487
  %v830 = vunpack.c.l.bf16 %v488
  %v831 = vunpack.c.l.bf16 %v507
  %v832 = vunpack.c.l.bf16 %v508
  %v833 = vunpack.c.l.bf16 %v509
  %v834 = vunpack.c.l.bf16 %v510
  %v835 = vunpack.c.l.bf16 %v511
  %v836 = vunpack.c.l.bf16 %v512
  %v837 = vunpack.c.l.bf16 %v513
  %v838 = vunpack.c.l.bf16 %v514
  %v839 = vunpack.c.l.bf16 %v515
  %v840 = vunpack.c.l.bf16 %v534
  %v841 = vunpack.c.l.bf16 %v535
  %v842 = vunpack.c.l.bf16 %v536
  %v843 = vunpack.c.l.bf16 %v537
  %v844 = vunpack.c.l.bf16 %v538
  %v845 = vunpack.c.l.bf16 %v539
  %v846 = vunpack.c.l.bf16 %v540
  %v847 = vunpack.c.l.bf16 %v541
  %v848 = vunpack.c.l.bf16 %v542
  %v849 = vunpack.c.l.bf16 %v561
  %v850 = vunpack.c.l.bf16 %v562
  %v851 = vunpack.c.l.bf16 %v563
  %v852 = vunpack.c.l.bf16 %v564
  %v853 = vunpack.c.l.bf16 %v565
  %v854 = vunpack.c.l.bf16 %v566
  %v855 = vunpack.c.l.bf16 %v567
  %v856 = vunpack.c.l.bf16 %v568
  %v857 = vunpack.c.l.bf16 %v569
  %v858 = vunpack.c.l.bf16 %v588
  %v859 = vunpack.c.l.bf16 %v589
  %v860 = vunpack.c.l.bf16 %v590
  %v861 = vunpack.c.l.bf16 %v591
  %v862 = vunpack.c.l.bf16 %v592
  %v863 = vunpack.c.l.bf16 %v593
  %v864 = vunpack.c.l.bf16 %v594
  %v865 = vunpack.c.l.bf16 %v595
  %v866 = vunpack.c.l.bf16 %v596
  %v867 = vunpack.c.l.bf16 %v615
  %v868 = vunpack.c.l.bf16 %v616
  %v869 = vunpack.c.l.bf16 %v617
  %v870 = vunpack.c.l.bf16 %v618
  %v871 = vunpack.c.l.bf16 %v619
  %v872 = vunpack.c.l.bf16 %v620
  %v873 = vunpack.c.l.bf16 %v621
  %v874 = vunpack.c.l.bf16 %v622
  %v875 = vunpack.c.l.bf16 %v623
  %v876 = vunpack.c.l.bf16 %v642
  %v877 = vunpack.c.l.bf16 %v643
  %v878 = vunpack.c.l.bf16 %v644
  %v879 = vunpack.c.l.bf16 %v645
  %v880 = vunpack.c.l.bf16 %v646
  %v881 = vunpack.c.l.bf16 %v647
  %v882 = vunpack.c.l.bf16 %v648
  %v883 = vunpack.c.l.bf16 %v649
  %v884 = vunpack.c.l.bf16 %v650
  %v885 = vunpack.c.l.bf16 %v30
  %v886 = vunpack.c.l.bf16 %v31
  %v887 = vunpack.c.l.bf16 %v32
  %v888 = vunpack.c.l.bf16 %v33
  %v889 = vunpack.c.l.bf16 %v34
  %v890 = vunpack.c.l.bf16 %v35
  %v891 = vunpack.c.l.bf16 %v36
  %v892 = vunpack.c.l.bf16 %v37
  %v893 = vunpack.c.l.bf16 %v38
  %v894 = vunpack.c.l.bf16 %v57
  %v895 = vunpack.c.l.bf16 %v58
  %v896 = vunpack.c.l.bf16 %v59
  %v897 = vunpack.c.l.bf16 %v60
  %v898 = vunpack.c.l.bf16 %v61
  %v899 = vunpack.c.l.bf16 %v62
  %v900 = vunpack.c.l.bf16 %v63
  %v901 = vunpack.c.l.bf16 %v64
  %v902 = vunpack.c.l.bf16 %v65
  %v903 = vunpack.c.l.bf16 %v84
  %v904 = vunpack.c.l.bf16 %v85
  %v905 = vunpack.c.l.bf16 %v86
  %v906 = vunpack.c.l.bf16 %v87
  %v907 = vunpack.c.l.bf16 %v88
  %v908 = vunpack.c.l.bf16 %v89
  %v909 = vunpack.c.l.bf16 %v90
  %v910 = vunpack.c.l.bf16 %v91
  %v911 = vunpack.c.l.bf16 %v92
  %v912 = vunpack.c.l.bf16 %v111
  %v913 = vunpack.c.l.bf16 %v112
  %v914 = vunpack.c.l.bf16 %v113
  %v915 = vunpack.c.l.bf16 %v114
  %v916 = vunpack.c.l.bf16 %v115
  %v917 = vunpack.c.l.bf16 %v116
  %v918 = vunpack.c.l.bf16 %v117
  %v919 = vunpack.c.l.bf16 %v118
  %v920 = vunpack.c.l.bf16 %v119
  %v921 = vunpack.c.l.bf16 %v138
  %v922 = vunpack.c.l.bf16 %v139
  %v923 = vunpack.c.l.bf16 %v140
  %v924 = vunpack.c.l.bf16 %v141
  %v925 = vunpack.c.l.bf16 %v142
  %v926 = vunpack.c.l.bf16 %v143
  %v927 = vunpack.c.l.bf16 %v144
  %v928 = vunpack.c.l.bf16 %v145
  %v929 = vunpack.c.l.bf16 %v146
  %v930 = vunpack.c.l.bf16 %v165
  %v931 = vunpack.c.l.bf16 %v166
  %v932 = vunpack.c.l.bf16 %v167
  %v933 = vunpack.c.l.bf16 %v168
  %v934 = vunpack.c.l.bf16 %v169
  %v935 = vunpack.c.l.bf16 %v170
  %v936 = vunpack.c.l.bf16 %v171
  %v937 = vunpack.c.l.bf16 %v172
  %v938 = vunpack.c.l.bf16 %v173
  %v939 = vunpack.c.l.bf16 %v192
  %v940 = vunpack.c.l.bf16 %v193
  %v941 = vunpack.c.l.bf16 %v194
  %v942 = vunpack.c.l.bf16 %v195
  %v943 = vunpack.c.l.bf16 %v196
  %v944 = vunpack.c.l.bf16 %v197
  %v945 = vunpack.c.l.bf16 %v198
  %v946 = vunpack.c.l.bf16 %v199
  %v947 = vunpack.c.l.bf16 %v200
  %v948 = vunpack.c.l.bf16 %v219
  %v949 = vunpack.c.l.bf16 %v220
  %v950 = vunpack.c.l.bf16 %v221
  %v951 = vunpack.c.l.bf16 %v222
  %v952 = vunpack.c.l.bf16 %v223
  %v953 = vunpack.c.l.bf16 %v224
  %v954 = vunpack.c.l.bf16 %v225
  %v955 = vunpack.c.l.bf16 %v226
  %v956 = vunpack.c.l.bf16 %v227
  %v957 = vunpack.c.l.bf16 %v246
  %v958 = vunpack.c.l.bf16 %v247
  %v959 = vunpack.c.l.bf16 %v248
  %v960 = vunpack.c.l.bf16 %v249
  %v961 = vunpack.c.l.bf16 %v250
  %v962 = vunpack.c.l.bf16 %v251
  %v963 = vunpack.c.l.bf16 %v252
  %v964 = vunpack.c.l.bf16 %v253
  %v965 = vunpack.c.l.bf16 %v254
  %v966 = vunpack.c.l.bf16 %v273
  %v967 = vunpack.c.l.bf16 %v274
  %v968 = vunpack.c.l.bf16 %v275
  %v969 = vunpack.c.l.bf16 %v276
  %v970 = vunpack.c.l.bf16 %v277
  %v971 = vunpack.c.l.bf16 %v278
  %v972 = vunpack.c.l.bf16 %v279
  %v973 = vunpack.c.l.bf16 %v280
  %v974 = vunpack.c.l.bf16 %v281
  %v975 = vunpack.c.l.bf16 %v300
  %v976 = vunpack.c.l.bf16 %v301
  %v977 = vunpack.c.l.bf16 %v302
  %v978 = vunpack.c.l.bf16 %v303
  %v979 = vunpack.c.l.bf16 %v304
  %v980 = vunpack.c.l.bf16 %v305
  %v981 = vunpack.c.l.bf16 %v306
  %v982 = vunpack.c.l.bf16 %v307
  %v983 = vunpack.c.l.bf16 %v308
  %v984 = vunpack.c.l.bf16 %v327
  %v985 = vunpack.c.l.bf16 %v328
  %v986 = vunpack.c.l.bf16 %v329
  %v987 = vunpack.c.l.bf16 %v330
  %v988 = vunpack.c.l.bf16 %v331
  %v989 = vunpack.c.l.bf16 %v332
  %v990 = vunpack.c.l.bf16 %v333
  %v991 = vunpack.c.l.bf16 %v334
  %v992 = vunpack.c.l.bf16 %v335
  %v993 = vunpack.c.l.bf16 %v354
  %v994 = vunpack.c.l.bf16 %v355
  %v995 = vunpack.c.l.bf16 %v356
  %v996 = vunpack.c.l.bf16 %v357
  %v997 = vunpack.c.l.bf16 %v358
  %v998 = vunpack.c.l.bf16 %v359
  %v999 = vunpack.c.l.bf16 %v360
  %v1000 = vunpack.c.l.bf16 %v361
  %v1001 = vunpack.c.l.bf16 %v362
  %v1002 = vunpack.c.l.bf16 %v381
  %v1003 = vunpack.c.l.bf16 %v382
  %v1004 = vunpack.c.l.bf16 %v383
  %v1005 = vunpack.c.l.bf16 %v384
  %v1006 = vunpack.c.l.bf16 %v385
  %v1007 = vunpack.c.l.bf16 %v386
  %v1008 = vunpack.c.l.bf16 %v387
  %v1009 = vunpack.c.l.bf16 %v388
  %v1010 = vunpack.c.l.bf16 %v389
  %v1011 = vunpack.c.l.bf16 %v408
  %v1012 = vunpack.c.l.bf16 %v409
  %v1013 = vunpack.c.l.bf16 %v410
  %v1014 = vunpack.c.l.bf16 %v411
  %v1015 = vunpack.c.l.bf16 %v412
  %v1016 = vunpack.c.l.bf16 %v413
  %v1017 = vunpack.c.l.bf16 %v414
  %v1018 = vunpack.c.l.bf16 %v415
  %v1019 = vunpack.c.l.bf16 %v416
  %v1020 = vunpack.c.l.bf16 %v435
  %v1021 = vunpack.c.l.bf16 %v436
  %v1022 = vunpack.c.l.bf16 %v437
  %v1023 = vunpack.c.l.bf16 %v438
  %v1024 = vunpack.c.l.bf16 %v439
  %v1025 = vunpack.c.l.bf16 %v440
  %v1026 = vunpack.c.l.bf16 %v441
  %v1027 = vunpack.c.l.bf16 %v442
  %v1028 = vunpack.c.l.bf16 %v443
  %v1029 = vunpack.c.l.bf16 %v462
  %v1030 = vunpack.c.l.bf16 %v463
  %v1031 = vunpack.c.l.bf16 %v464
  %v1032 = vunpack.c.l.bf16 %v465
  %v1033 = vunpack.c.l.bf16 %v466
  %v1034 = vunpack.c.l.bf16 %v467
  %v1035 = vunpack.c.l.bf16 %v468
  %v1036 = vunpack.c.l.bf16 %v469
  %v1037 = vunpack.c.l.bf16 %v470
  %v1038 = vunpack.c.l.bf16 %v489
  %v1039 = vunpack.c.l.bf16 %v490
  %v1040 = vunpack.c.l.bf16 %v491
  %v1041 = vunpack.c.l.bf16 %v492
  %v1042 = vunpack.c.l.bf16 %v493
  %v1043 = vunpack.c.l.bf16 %v494
  %v1044 = vunpack.c.l.bf16 %v495
  %v1045 = vunpack.c.l.bf16 %v496
  %v1046 = vunpack.c.l.bf16 %v497
  %v1047 = vunpack.c.l.bf16 %v516
  %v1048 = vunpack.c.l.bf16 %v517
  %v1049 = vunpack.c.l.bf16 %v518
  %v1050 = vunpack.c.l.bf16 %v519
  %v1051 = vunpack.c.l.bf16 %v520
  %v1052 = vunpack.c.l.bf16 %v521
  %v1053 = vunpack.c.l.bf16 %v522
  %v1054 = vunpack.c.l.bf16 %v523
  %v1055 = vunpack.c.l.bf16 %v524
  %v1056 = vunpack.c.l.bf16 %v543
  %v1057 = vunpack.c.l.bf16 %v544
  %v1058 = vunpack.c.l.bf16 %v545
  %v1059 = vunpack.c.l.bf16 %v546
  %v1060 = vunpack.c.l.bf16 %v547
  %v1061 = vunpack.c.l.bf16 %v548
  %v1062 = vunpack.c.l.bf16 %v549
  %v1063 = vunpack.c.l.bf16 %v550
  %v1064 = vunpack.c.l.bf16 %v551
  %v1065 = vunpack.c.l.bf16 %v570
  %v1066 = vunpack.c.l.bf16 %v571
  %v1067 = vunpack.c.l.bf16 %v572
  %v1068 = vunpack.c.l.bf16 %v573
  %v1069 = vunpack.c.l.bf16 %v574
  %v1070 = vunpack.c.l.bf16 %v575
  %v1071 = vunpack.c.l.bf16 %v576
  %v1072 = vunpack.c.l.bf16 %v577
  %v1073 = vunpack.c.l.bf16 %v578
  %v1074 = vunpack.c.l.bf16 %v597
  %v1075 = vunpack.c.l.bf16 %v598
  %v1076 = vunpack.c.l.bf16 %v599
  %v1077 = vunpack.c.l.bf16 %v600
  %v1078 = vunpack.c.l.bf16 %v601
  %v1079 = vunpack.c.l.bf16 %v602
  %v1080 = vunpack.c.l.bf16 %v603
  %v1081 = vunpack.c.l.bf16 %v604
  %v1082 = vunpack.c.l.bf16 %v605
  %v1083 = vunpack.c.l.bf16 %v624
  %v1084 = vunpack.c.l.bf16 %v625
  %v1085 = vunpack.c.l.bf16 %v626
  %v1086 = vunpack.c.l.bf16 %v627
  %v1087 = vunpack.c.l.bf16 %v628
  %v1088 = vunpack.c.l.bf16 %v629
  %v1089 = vunpack.c.l.bf16 %v630
  %v1090 = vunpack.c.l.bf16 %v631
  %v1091 = vunpack.c.l.bf16 %v632
  %v1092 = vunpack.c.l.bf16 %v651
  %v1093 = vunpack.c.l.bf16 %v652
  %v1094 = vunpack.c.l.bf16 %v653
  %v1095 = vunpack.c.l.bf16 %v654
  %v1096 = vunpack.c.l.bf16 %v655
  %v1097 = vunpack.c.l.bf16 %v656
  %v1098 = vunpack.c.l.bf16 %v657
  %v1099 = vunpack.c.l.bf16 %v658
  %v1100 = vunpack.c.l.bf16 %v659
  %v1101 = vadd.f32 %v669, %v885
  %v1102 = vadd.f32 %v670, %v886
  %v1103 = vadd.f32 %v671, %v887
  %v1104 = vadd.f32 %v672, %v888
  %v1105 = vadd.f32 %v673, %v889
  %v1106 = vadd.f32 %v674, %v890
  %v1107 = vadd.f32 %v675, %v891
  %v1108 = vadd.f32 %v676, %v892
  %v1109 = vadd.f32 %v677, %v893
  %v1110 = vadd.f32 %v678, %v894
  %v1111 = vadd.f32 %v679, %v895
  %v1112 = vadd.f32 %v680, %v896
  %v1113 = vadd.f32 %v681, %v897
  %v1114 = vadd.f32 %v682, %v898
  %v1115 = vadd.f32 %v683, %v899
  %v1116 = vadd.f32 %v684, %v900
  %v1117 = vadd.f32 %v685, %v901
  %v1118 = vadd.f32 %v686, %v902
  %v1119 = vadd.f32 %v687, %v903
  %v1120 = vadd.f32 %v688, %v904
  %v1121 = vadd.f32 %v689, %v905
  %v1122 = vadd.f32 %v690, %v906
  %v1123 = vadd.f32 %v691, %v907
  %v1124 = vadd.f32 %v692, %v908
  %v1125 = vadd.f32 %v693, %v909
  %v1126 = vadd.f32 %v694, %v910
  %v1127 = vadd.f32 %v695, %v911
  %v1128 = vadd.f32 %v696, %v912
  %v1129 = vadd.f32 %v697, %v913
  %v1130 = vadd.f32 %v698, %v914
  %v1131 = vadd.f32 %v699, %v915
  %v1132 = vadd.f32 %v700, %v916
  %v1133 = vadd.f32 %v701, %v917
  %v1134 = vadd.f32 %v702, %v918
  %v1135 = vadd.f32 %v703, %v919
  %v1136 = vadd.f32 %v704, %v920
  %v1137 = vadd.f32 %v705, %v921
  %v1138 = vadd.f32 %v706, %v922
  %v1139 = vadd.f32 %v707, %v923
  %v1140 = vadd.f32 %v708, %v924
  %v1141 = vadd.f32 %v709, %v925
  %v1142 = vadd.f32 %v710, %v926
  %v1143 = vadd.f32 %v711, %v927
  %v1144 = vadd.f32 %v712, %v928
  %v1145 = vadd.f32 %v713, %v929
  %v1146 = vadd.f32 %v714, %v930
  %v1147 = vadd.f32 %v715, %v931
  %v1148 = vadd.f32 %v716, %v932
  %v1149 = vadd.f32 %v717, %v933
  %v1150 = vadd.f32 %v718, %v934
  %v1151 = vadd.f32 %v719, %v935
  %v1152 = vadd.f32 %v720, %v936
  %v1153 = vadd.f32 %v721, %v937
  %v1154 = vadd.f32 %v722, %v938
  %v1155 = vadd.f32 %v723, %v939
  %v1156 = vadd.f32 %v724, %v940
  %v1157 = vadd.f32 %v725, %v941
  %v1158 = vadd.f32 %v726, %v942
  %v1159 = vadd.f32 %v727, %v943
  %v1160 = vadd.f32 %v728, %v944
  %v1161 = vadd.f32 %v729, %v945
  %v1162 = vadd.f32 %v730, %v946
  %v1163 = vadd.f32 %v731, %v947
  %v1164 = vadd.f32 %v732, %v948
  %v1165 = vadd.f32 %v733, %v949
  %v1166 = vadd.f32 %v734, %v950
  %v1167 = vadd.f32 %v735, %v951
  %v1168 = vadd.f32 %v736, %v952
  %v1169 = vadd.f32 %v737, %v953
  %v1170 = vadd.f32 %v738, %v954
  %v1171 = vadd.f32 %v739, %v955
  %v1172 = vadd.f32 %v740, %v956
  %v1173 = vadd.f32 %v741, %v957
  %v1174 = vadd.f32 %v742, %v958
  %v1175 = vadd.f32 %v743, %v959
  %v1176 = vadd.f32 %v744, %v960
  %v1177 = vadd.f32 %v745, %v961
  %v1178 = vadd.f32 %v746, %v962
  %v1179 = vadd.f32 %v747, %v963
  %v1180 = vadd.f32 %v748, %v964
  %v1181 = vadd.f32 %v749, %v965
  %v1182 = vadd.f32 %v750, %v966
  %v1183 = vadd.f32 %v751, %v967
  %v1184 = vadd.f32 %v752, %v968
  %v1185 = vadd.f32 %v753, %v969
  %v1186 = vadd.f32 %v754, %v970
  %v1187 = vadd.f32 %v755, %v971
  %v1188 = vadd.f32 %v756, %v972
  %v1189 = vadd.f32 %v757, %v973
  %v1190 = vadd.f32 %v758, %v974
  %v1191 = vadd.f32 %v759, %v975
  %v1192 = vadd.f32 %v760, %v976
  %v1193 = vadd.f32 %v761, %v977
  %v1194 = vadd.f32 %v762, %v978
  %v1195 = vadd.f32 %v763, %v979
  %v1196 = vadd.f32 %v764, %v980
  %v1197 = vadd.f32 %v765, %v981
  %v1198 = vadd.f32 %v766, %v982
  %v1199 = vadd.f32 %v767, %v983
  %v1200 = vadd.f32 %v768, %v984
  %v1201 = vadd.f32 %v769, %v985
  %v1202 = vadd.f32 %v770, %v986
  %v1203 = vadd.f32 %v771, %v987
  %v1204 = vadd.f32 %v772, %v988
  %v1205 = vadd.f32 %v773, %v989
  %v1206 = vadd.f32 %v774, %v990
  %v1207 = vadd.f32 %v775, %v991
  %v1208 = vadd.f32 %v776, %v992
  %v1209 = vadd.f32 %v777, %v993
  %v1210 = vadd.f32 %v778, %v994
  %v1211 = vadd.f32 %v779, %v995
  %v1212 = vadd.f32 %v780, %v996
  %v1213 = vadd.f32 %v781, %v997
  %v1214 = vadd.f32 %v782, %v998
  %v1215 = vadd.f32 %v783, %v999
  %v1216 = vadd.f32 %v784, %v1000
  %v1217 = vadd.f32 %v785, %v1001
  %v1218 = vadd.f32 %v786, %v1002
  %v1219 = vadd.f32 %v787, %v1003
  %v1220 = vadd.f32 %v788, %v1004
  %v1221 = vadd.f32 %v789, %v1005
  %v1222 = vadd.f32 %v790, %v1006
  %v1223 = vadd.f32 %v791, %v1007
  %v1224 = vadd.f32 %v792, %v1008
  %v1225 = vadd.f32 %v793, %v1009
  %v1226 = vadd.f32 %v794, %v1010
  %v1227 = vadd.f32 %v795, %v1011
  %v1228 = vadd.f32 %v796, %v1012
  %v1229 = vadd.f32 %v797, %v1013
  %v1230 = vadd.f32 %v798, %v1014
  %v1231 = vadd.f32 %v799, %v1015
  %v1232 = vadd.f32 %v800, %v1016
  %v1233 = vadd.f32 %v801, %v1017
  %v1234 = vadd.f32 %v802, %v1018
  %v1235 = vadd.f32 %v803, %v1019
  %v1236 = vadd.f32 %v804, %v1020
  %v1237 = vadd.f32 %v805, %v1021
  %v1238 = vadd.f32 %v806, %v1022
  %v1239 = vadd.f32 %v807, %v1023
  %v1240 = vadd.f32 %v808, %v1024
  %v1241 = vadd.f32 %v809, %v1025
  %v1242 = vadd.f32 %v810, %v1026
  %v1243 = vadd.f32 %v811, %v1027
  %v1244 = vadd.f32 %v812, %v1028
  %v1245 = vadd.f32 %v813, %v1029
  %v1246 = vadd.f32 %v814, %v1030
  %v1247 = vadd.f32 %v815, %v1031
  %v1248 = vadd.f32 %v816, %v1032
  %v1249 = vadd.f32 %v817, %v1033
  %v1250 = vadd.f32 %v818, %v1034
  %v1251 = vadd.f32 %v819, %v1035
  %v1252 = vadd.f32 %v820, %v1036
  %v1253 = vadd.f32 %v821, %v1037
  %v1254 = vadd.f32 %v822, %v1038
  %v1255 = vadd.f32 %v823, %v1039
  %v1256 = vadd.f32 %v824, %v1040
  %v1257 = vadd.f32 %v825, %v1041
  %v1258 = vadd.f32 %v826, %v1042
  %v1259 = vadd.f32 %v827, %v1043
  %v1260 = vadd.f32 %v828, %v1044
  %v1261 = vadd.f32 %v829, %v1045
  %v1262 = vadd.f32 %v830, %v1046
  %v1263 = vadd.f32 %v831, %v1047
  %v1264 = vadd.f32 %v832, %v1048
  %v1265 = vadd.f32 %v833, %v1049
  %v1266 = vadd.f32 %v834, %v1050
  %v1267 = vadd.f32 %v835, %v1051
  %v1268 = vadd.f32 %v836, %v1052
  %v1269 = vadd.f32 %v837, %v1053
  %v1270 = vadd.f32 %v838, %v1054
  %v1271 = vadd.f32 %v839, %v1055
  %v1272 = vadd.f32 %v840, %v1056
  %v1273 = vadd.f32 %v841, %v1057
  %v1274 = vadd.f32 %v842, %v1058
  %v1275 = vadd.f32 %v843, %v1059
  %v1276 = vadd.f32 %v844, %v1060
  %v1277 = vadd.f32 %v845, %v1061
  %v1278 = vadd.f32 %v846, %v1062
  %v1279 = vadd.f32 %v847, %v1063
  %v1280 = vadd.f32 %v848, %v1064
  %v1281 = vadd.f32 %v849, %v1065
  %v1282 = vadd.f32 %v850, %v1066
  %v1283 = vadd.f32 %v851, %v1067
  %v1284 = vadd.f32 %v852, %v1068
  %v1285 = vadd.f32 %v853, %v1069
  %v1286 = vadd.f32 %v854, %v1070
  %v1287 = vadd.f32 %v855, %v1071
  %v1288 = vadd.f32 %v856, %v1072
  %v1289 = vadd.f32 %v857, %v1073
  %v1290 = vadd.f32 %v858, %v1074
  %v1291 = vadd.f32 %v859, %v1075
  %v1292 = vadd.f32 %v860, %v1076
  %v1293 = vadd.f32 %v861, %v1077
  %v1294 = vadd.f32 %v862, %v1078
  %v1295 = vadd.f32 %v863, %v1079
  %v1296 = vadd.f32 %v864, %v1080
  %v1297 = vadd.f32 %v865, %v1081
  %v1298 = vadd.f32 %v866, %v1082
  %v1299 = vadd.f32 %v867, %v1083
  %v1300 = vadd.f32 %v868, %v1084
  %v1301 = vadd.f32 %v869, %v1085
  %v1302 = vadd.f32 %v870, %v1086
  %v1303 = vadd.f32 %v871, %v1087
  %v1304 = vadd.f32 %v872, %v1088
  %v1305 = vadd.f32 %v873, %v1089
  %v1306 = vadd.f32 %v874, %v1090
  %v1307 = vadd.f32 %v875, %v1091
  %v1308 = vadd.f32 %v876, %v1092
  %v1309 = vadd.f32 %v877, %v1093
  %v1310 = vadd.f32 %v878, %v1094
  %v1311 = vadd.f32 %v879, %v1095
  %v1312 = vadd.f32 %v880, %v1096
  %v1313 = vadd.f32 %v881, %v1097
  %v1314 = vadd.f32 %v882, %v1098
  %v1315 = vadd.f32 %v883, %v1099
  %v1316 = vadd.f32 %v884, %v1100
  %v1317 = vpack.c.bf16 %v1101, %v1101
  %v1318 = vpack.c.bf16 %v1102, %v1102
  %v1319 = vpack.c.bf16 %v1103, %v1103
  %v1320 = vpack.c.bf16 %v1104, %v1104
  %v1321 = vpack.c.bf16 %v1105, %v1105
  %v1322 = vpack.c.bf16 %v1106, %v1106
  %v1323 = vpack.c.bf16 %v1107, %v1107
  %v1324 = vpack.c.bf16 %v1108, %v1108
  %v1325 = vpack.c.bf16 %v1109, %v1109
  %v1326 = vpack.c.bf16 %v1110, %v1110
  %v1327 = vpack.c.bf16 %v1111, %v1111
  %v1328 = vpack.c.bf16 %v1112, %v1112
  %v1329 = vpack.c.bf16 %v1113, %v1113
  %v1330 = vpack.c.bf16 %v1114, %v1114
  %v1331 = vpack.c.bf16 %v1115, %v1115
  %v1332 = vpack.c.bf16 %v1116, %v1116
  %v1333 = vpack.c.bf16 %v1117, %v1117
  %v1334 = vpack.c.bf16 %v1118, %v1118
  %v1335 = vpack.c.bf16 %v1119, %v1119
  %v1336 = vpack.c.bf16 %v1120, %v1120
  %v1337 = vpack.c.bf16 %v1121, %v1121
  %v1338 = vpack.c.bf16 %v1122, %v1122
  %v1339 = vpack.c.bf16 %v1123, %v1123
  %v1340 = vpack.c.bf16 %v1124, %v1124
  %v1341 = vpack.c.bf16 %v1125, %v1125
  %v1342 = vpack.c.bf16 %v1126, %v1126
  %v1343 = vpack.c.bf16 %v1127, %v1127
  %v1344 = vpack.c.bf16 %v1128, %v1128
  %v1345 = vpack.c.bf16 %v1129, %v1129
  %v1346 = vpack.c.bf16 %v1130, %v1130
  %v1347 = vpack.c.bf16 %v1131, %v1131
  %v1348 = vpack.c.bf16 %v1132, %v1132
  %v1349 = vpack.c.bf16 %v1133, %v1133
  %v1350 = vpack.c.bf16 %v1134, %v1134
  %v1351 = vpack.c.bf16 %v1135, %v1135
  %v1352 = vpack.c.bf16 %v1136, %v1136
  %v1353 = vpack.c.bf16 %v1137, %v1137
  %v1354 = vpack.c.bf16 %v1138, %v1138
  %v1355 = vpack.c.bf16 %v1139, %v1139
  %v1356 = vpack.c.bf16 %v1140, %v1140
  %v1357 = vpack.c.bf16 %v1141, %v1141
  %v1358 = vpack.c.bf16 %v1142, %v1142
  %v1359 = vpack.c.bf16 %v1143, %v1143
  %v1360 = vpack.c.bf16 %v1144, %v1144
  %v1361 = vpack.c.bf16 %v1145, %v1145
  %v1362 = vpack.c.bf16 %v1146, %v1146
  %v1363 = vpack.c.bf16 %v1147, %v1147
  %v1364 = vpack.c.bf16 %v1148, %v1148
  %v1365 = vpack.c.bf16 %v1149, %v1149
  %v1366 = vpack.c.bf16 %v1150, %v1150
  %v1367 = vpack.c.bf16 %v1151, %v1151
  %v1368 = vpack.c.bf16 %v1152, %v1152
  %v1369 = vpack.c.bf16 %v1153, %v1153
  %v1370 = vpack.c.bf16 %v1154, %v1154
  %v1371 = vpack.c.bf16 %v1155, %v1155
  %v1372 = vpack.c.bf16 %v1156, %v1156
  %v1373 = vpack.c.bf16 %v1157, %v1157
  %v1374 = vpack.c.bf16 %v1158, %v1158
  %v1375 = vpack.c.bf16 %v1159, %v1159
  %v1376 = vpack.c.bf16 %v1160, %v1160
  %v1377 = vpack.c.bf16 %v1161, %v1161
  %v1378 = vpack.c.bf16 %v1162, %v1162
  %v1379 = vpack.c.bf16 %v1163, %v1163
  %v1380 = vpack.c.bf16 %v1164, %v1164
  %v1381 = vpack.c.bf16 %v1165, %v1165
  %v1382 = vpack.c.bf16 %v1166, %v1166
  %v1383 = vpack.c.bf16 %v1167, %v1167
  %v1384 = vpack.c.bf16 %v1168, %v1168
  %v1385 = vpack.c.bf16 %v1169, %v1169
  %v1386 = vpack.c.bf16 %v1170, %v1170
  %v1387 = vpack.c.bf16 %v1171, %v1171
  %v1388 = vpack.c.bf16 %v1172, %v1172
  %v1389 = vpack.c.bf16 %v1173, %v1173
  %v1390 = vpack.c.bf16 %v1174, %v1174
  %v1391 = vpack.c.bf16 %v1175, %v1175
  %v1392 = vpack.c.bf16 %v1176, %v1176
  %v1393 = vpack.c.bf16 %v1177, %v1177
  %v1394 = vpack.c.bf16 %v1178, %v1178
  %v1395 = vpack.c.bf16 %v1179, %v1179
  %v1396 = vpack.c.bf16 %v1180, %v1180
  %v1397 = vpack.c.bf16 %v1181, %v1181
  %v1398 = vpack.c.bf16 %v1182, %v1182
  %v1399 = vpack.c.bf16 %v1183, %v1183
  %v1400 = vpack.c.bf16 %v1184, %v1184
  %v1401 = vpack.c.bf16 %v1185, %v1185
  %v1402 = vpack.c.bf16 %v1186, %v1186
  %v1403 = vpack.c.bf16 %v1187, %v1187
  %v1404 = vpack.c.bf16 %v1188, %v1188
  %v1405 = vpack.c.bf16 %v1189, %v1189
  %v1406 = vpack.c.bf16 %v1190, %v1190
  %v1407 = vpack.c.bf16 %v1191, %v1191
  %v1408 = vpack.c.bf16 %v1192, %v1192
  %v1409 = vpack.c.bf16 %v1193, %v1193
  %v1410 = vpack.c.bf16 %v1194, %v1194
  %v1411 = vpack.c.bf16 %v1195, %v1195
  %v1412 = vpack.c.bf16 %v1196, %v1196
  %v1413 = vpack.c.bf16 %v1197, %v1197
  %v1414 = vpack.c.bf16 %v1198, %v1198
  %v1415 = vpack.c.bf16 %v1199, %v1199
  %v1416 = vpack.c.bf16 %v1200, %v1200
  %v1417 = vpack.c.bf16 %v1201, %v1201
  %v1418 = vpack.c.bf16 %v1202, %v1202
  %v1419 = vpack.c.bf16 %v1203, %v1203
  %v1420 = vpack.c.bf16 %v1204, %v1204
  %v1421 = vpack.c.bf16 %v1205, %v1205
  %v1422 = vpack.c.bf16 %v1206, %v1206
  %v1423 = vpack.c.bf16 %v1207, %v1207
  %v1424 = vpack.c.bf16 %v1208, %v1208
  %v1425 = vpack.c.bf16 %v1209, %v1209
  %v1426 = vpack.c.bf16 %v1210, %v1210
  %v1427 = vpack.c.bf16 %v1211, %v1211
  %v1428 = vpack.c.bf16 %v1212, %v1212
  %v1429 = vpack.c.bf16 %v1213, %v1213
  %v1430 = vpack.c.bf16 %v1214, %v1214
  %v1431 = vpack.c.bf16 %v1215, %v1215
  %v1432 = vpack.c.bf16 %v1216, %v1216
  %v1433 = vpack.c.bf16 %v1217, %v1217
  %v1434 = vpack.c.bf16 %v1218, %v1218
  %v1435 = vpack.c.bf16 %v1219, %v1219
  %v1436 = vpack.c.bf16 %v1220, %v1220
  %v1437 = vpack.c.bf16 %v1221, %v1221
  %v1438 = vpack.c.bf16 %v1222, %v1222
  %v1439 = vpack.c.bf16 %v1223, %v1223
  %v1440 = vpack.c.bf16 %v1224, %v1224
  %v1441 = vpack.c.bf16 %v1225, %v1225
  %v1442 = vpack.c.bf16 %v1226, %v1226
  %v1443 = vpack.c.bf16 %v1227, %v1227
  %v1444 = vpack.c.bf16 %v1228, %v1228
  %v1445 = vpack.c.bf16 %v1229, %v1229
  %v1446 = vpack.c.bf16 %v1230, %v1230
  %v1447 = vpack.c.bf16 %v1231, %v1231
  %v1448 = vpack.c.bf16 %v1232, %v1232
  %v1449 = vpack.c.bf16 %v1233, %v1233
  %v1450 = vpack.c.bf16 %v1234, %v1234
  %v1451 = vpack.c.bf16 %v1235, %v1235
  %v1452 = vpack.c.bf16 %v1236, %v1236
  %v1453 = vpack.c.bf16 %v1237, %v1237
  %v1454 = vpack.c.bf16 %v1238, %v1238
  %v1455 = vpack.c.bf16 %v1239, %v1239
  %v1456 = vpack.c.bf16 %v1240, %v1240
  %v1457 = vpack.c.bf16 %v1241, %v1241
  %v1458 = vpack.c.bf16 %v1242, %v1242
  %v1459 = vpack.c.bf16 %v1243, %v1243
  %v1460 = vpack.c.bf16 %v1244, %v1244
  %v1461 = vpack.c.bf16 %v1245, %v1245
  %v1462 = vpack.c.bf16 %v1246, %v1246
  %v1463 = vpack.c.bf16 %v1247, %v1247
  %v1464 = vpack.c.bf16 %v1248, %v1248
  %v1465 = vpack.c.bf16 %v1249, %v1249
  %v1466 = vpack.c.bf16 %v1250, %v1250
  %v1467 = vpack.c.bf16 %v1251, %v1251
  %v1468 = vpack.c.bf16 %v1252, %v1252
  %v1469 = vpack.c.bf16 %v1253, %v1253
  %v1470 = vpack.c.bf16 %v1254, %v1254
  %v1471 = vpack.c.bf16 %v1255, %v1255
  %v1472 = vpack.c.bf16 %v1256, %v1256
  %v1473 = vpack.c.bf16 %v1257, %v1257
  %v1474 = vpack.c.bf16 %v1258, %v1258
  %v1475 = vpack.c.bf16 %v1259, %v1259
  %v1476 = vpack.c.bf16 %v1260, %v1260
  %v1477 = vpack.c.bf16 %v1261, %v1261
  %v1478 = vpack.c.bf16 %v1262, %v1262
  %v1479 = vpack.c.bf16 %v1263, %v1263
  %v1480 = vpack.c.bf16 %v1264, %v1264
  %v1481 = vpack.c.bf16 %v1265, %v1265
  %v1482 = vpack.c.bf16 %v1266, %v1266
  %v1483 = vpack.c.bf16 %v1267, %v1267
  %v1484 = vpack.c.bf16 %v1268, %v1268
  %v1485 = vpack.c.bf16 %v1269, %v1269
  %v1486 = vpack.c.bf16 %v1270, %v1270
  %v1487 = vpack.c.bf16 %v1271, %v1271
  %v1488 = vpack.c.bf16 %v1272, %v1272
  %v1489 = vpack.c.bf16 %v1273, %v1273
  %v1490 = vpack.c.bf16 %v1274, %v1274
  %v1491 = vpack.c.bf16 %v1275, %v1275
  %v1492 = vpack.c.bf16 %v1276, %v1276
  %v1493 = vpack.c.bf16 %v1277, %v1277
  %v1494 = vpack.c.bf16 %v1278, %v1278
  %v1495 = vpack.c.bf16 %v1279, %v1279
  %v1496 = vpack.c.bf16 %v1280, %v1280
  %v1497 = vpack.c.bf16 %v1281, %v1281
  %v1498 = vpack.c.bf16 %v1282, %v1282
  %v1499 = vpack.c.bf16 %v1283, %v1283
  %v1500 = vpack.c.bf16 %v1284, %v1284
  %v1501 = vpack.c.bf16 %v1285, %v1285
  %v1502 = vpack.c.bf16 %v1286, %v1286
  %v1503 = vpack.c.bf16 %v1287, %v1287
  %v1504 = vpack.c.bf16 %v1288, %v1288
  %v1505 = vpack.c.bf16 %v1289, %v1289
  %v1506 = vpack.c.bf16 %v1290, %v1290
  %v1507 = vpack.c.bf16 %v1291, %v1291
  %v1508 = vpack.c.bf16 %v1292, %v1292
  %v1509 = vpack.c.bf16 %v1293, %v1293
  %v1510 = vpack.c.bf16 %v1294, %v1294
  %v1511 = vpack.c.bf16 %v1295, %v1295
  %v1512 = vpack.c.bf16 %v1296, %v1296
  %v1513 = vpack.c.bf16 %v1297, %v1297
  %v1514 = vpack.c.bf16 %v1298, %v1298
  %v1515 = vpack.c.bf16 %v1299, %v1299
  %v1516 = vpack.c.bf16 %v1300, %v1300
  %v1517 = vpack.c.bf16 %v1301, %v1301
  %v1518 = vpack.c.bf16 %v1302, %v1302
  %v1519 = vpack.c.bf16 %v1303, %v1303
  %v1520 = vpack.c.bf16 %v1304, %v1304
  %v1521 = vpack.c.bf16 %v1305, %v1305
  %v1522 = vpack.c.bf16 %v1306, %v1306
  %v1523 = vpack.c.bf16 %v1307, %v1307
  %v1524 = vpack.c.bf16 %v1308, %v1308
  %v1525 = vpack.c.bf16 %v1309, %v1309
  %v1526 = vpack.c.bf16 %v1310, %v1310
  %v1527 = vpack.c.bf16 %v1311, %v1311
  %v1528 = vpack.c.bf16 %v1312, %v1312
  %v1529 = vpack.c.bf16 %v1313, %v1313
  %v1530 = vpack.c.bf16 %v1314, %v1314
  %v1531 = vpack.c.bf16 %v1315, %v1315
  %v1532 = vpack.c.bf16 %v1316, %v1316
  %v1533 = vunpack.c.l.bf16 %v1317
  %v1534 = vunpack.c.l.bf16 %v1318
  %v1535 = vunpack.c.l.bf16 %v1319
  %v1536 = vunpack.c.l.bf16 %v1320
  %v1537 = vunpack.c.l.bf16 %v1321
  %v1538 = vunpack.c.l.bf16 %v1322
  %v1539 = vunpack.c.l.bf16 %v1323
  %v1540 = vunpack.c.l.bf16 %v1324
  %v1541 = vunpack.c.l.bf16 %v1325
  %v1542 = vunpack.c.l.bf16 %v1326
  %v1543 = vunpack.c.l.bf16 %v1327
  %v1544 = vunpack.c.l.bf16 %v1328
  %v1545 = vunpack.c.l.bf16 %v1329
  %v1546 = vunpack.c.l.bf16 %v1330
  %v1547 = vunpack.c.l.bf16 %v1331
  %v1548 = vunpack.c.l.bf16 %v1332
  %v1549 = vunpack.c.l.bf16 %v1333
  %v1550 = vunpack.c.l.bf16 %v1334
  %v1551 = vunpack.c.l.bf16 %v1335
  %v1552 = vunpack.c.l.bf16 %v1336
  %v1553 = vunpack.c.l.bf16 %v1337
  %v1554 = vunpack.c.l.bf16 %v1338
  %v1555 = vunpack.c.l.bf16 %v1339
  %v1556 = vunpack.c.l.bf16 %v1340
  %v1557 = vunpack.c.l.bf16 %v1341
  %v1558 = vunpack.c.l.bf16 %v1342
  %v1559 = vunpack.c.l.bf16 %v1343
  %v1560 = vunpack.c.l.bf16 %v1344
  %v1561 = vunpack.c.l.bf16 %v1345
  %v1562 = vunpack.c.l.bf16 %v1346
  %v1563 = vunpack.c.l.bf16 %v1347
  %v1564 = vunpack.c.l.bf16 %v1348
  %v1565 = vunpack.c.l.bf16 %v1349
  %v1566 = vunpack.c.l.bf16 %v1350
  %v1567 = vunpack.c.l.bf16 %v1351
  %v1568 = vunpack.c.l.bf16 %v1352
  %v1569 = vunpack.c.l.bf16 %v1353
  %v1570 = vunpack.c.l.bf16 %v1354
  %v1571 = vunpack.c.l.bf16 %v1355
  %v1572 = vunpack.c.l.bf16 %v1356
  %v1573 = vunpack.c.l.bf16 %v1357
  %v1574 = vunpack.c.l.bf16 %v1358
  %v1575 = vunpack.c.l.bf16 %v1359
  %v1576 = vunpack.c.l.bf16 %v1360
  %v1577 = vunpack.c.l.bf16 %v1361
  %v1578 = vunpack.c.l.bf16 %v1362
  %v1579 = vunpack.c.l.bf16 %v1363
  %v1580 = vunpack.c.l.bf16 %v1364
  %v1581 = vunpack.c.l.bf16 %v1365
  %v1582 = vunpack.c.l.bf16 %v1366
  %v1583 = vunpack.c.l.bf16 %v1367
  %v1584 = vunpack.c.l.bf16 %v1368
  %v1585 = vunpack.c.l.bf16 %v1369
  %v1586 = vunpack.c.l.bf16 %v1370
  %v1587 = vunpack.c.l.bf16 %v1371
  %v1588 = vunpack.c.l.bf16 %v1372
  %v1589 = vunpack.c.l.bf16 %v1373
  %v1590 = vunpack.c.l.bf16 %v1374
  %v1591 = vunpack.c.l.bf16 %v1375
  %v1592 = vunpack.c.l.bf16 %v1376
  %v1593 = vunpack.c.l.bf16 %v1377
  %v1594 = vunpack.c.l.bf16 %v1378
  %v1595 = vunpack.c.l.bf16 %v1379
  %v1596 = vunpack.c.l.bf16 %v1380
  %v1597 = vunpack.c.l.bf16 %v1381
  %v1598 = vunpack.c.l.bf16 %v1382
  %v1599 = vunpack.c.l.bf16 %v1383
  %v1600 = vunpack.c.l.bf16 %v1384
  %v1601 = vunpack.c.l.bf16 %v1385
  %v1602 = vunpack.c.l.bf16 %v1386
  %v1603 = vunpack.c.l.bf16 %v1387
  %v1604 = vunpack.c.l.bf16 %v1388
  %v1605 = vunpack.c.l.bf16 %v1389
  %v1606 = vunpack.c.l.bf16 %v1390
  %v1607 = vunpack.c.l.bf16 %v1391
  %v1608 = vunpack.c.l.bf16 %v1392
  %v1609 = vunpack.c.l.bf16 %v1393
  %v1610 = vunpack.c.l.bf16 %v1394
  %v1611 = vunpack.c.l.bf16 %v1395
  %v1612 = vunpack.c.l.bf16 %v1396
  %v1613 = vunpack.c.l.bf16 %v1397
  %v1614 = vunpack.c.l.bf16 %v1398
  %v1615 = vunpack.c.l.bf16 %v1399
  %v1616 = vunpack.c.l.bf16 %v1400
  %v1617 = vunpack.c.l.bf16 %v1401
  %v1618 = vunpack.c.l.bf16 %v1402
  %v1619 = vunpack.c.l.bf16 %v1403
  %v1620 = vunpack.c.l.bf16 %v1404
  %v1621 = vunpack.c.l.bf16 %v1405
  %v1622 = vunpack.c.l.bf16 %v1406
  %v1623 = vunpack.c.l.bf16 %v1407
  %v1624 = vunpack.c.l.bf16 %v1408
  %v1625 = vunpack.c.l.bf16 %v1409
  %v1626 = vunpack.c.l.bf16 %v1410
  %v1627 = vunpack.c.l.bf16 %v1411
  %v1628 = vunpack.c.l.bf16 %v1412
  %v1629 = vunpack.c.l.bf16 %v1413
  %v1630 = vunpack.c.l.bf16 %v1414
  %v1631 = vunpack.c.l.bf16 %v1415
  %v1632 = vunpack.c.l.bf16 %v1416
  %v1633 = vunpack.c.l.bf16 %v1417
  %v1634 = vunpack.c.l.bf16 %v1418
  %v1635 = vunpack.c.l.bf16 %v1419
  %v1636 = vunpack.c.l.bf16 %v1420
  %v1637 = vunpack.c.l.bf16 %v1421
  %v1638 = vunpack.c.l.bf16 %v1422
  %v1639 = vunpack.c.l.bf16 %v1423
  %v1640 = vunpack.c.l.bf16 %v1424
  %v1641 = vunpack.c.l.bf16 %v1425
  %v1642 = vunpack.c.l.bf16 %v1426
  %v1643 = vunpack.c.l.bf16 %v1427
  %v1644 = vunpack.c.l.bf16 %v1428
  %v1645 = vunpack.c.l.bf16 %v1429
  %v1646 = vunpack.c.l.bf16 %v1430
  %v1647 = vunpack.c.l.bf16 %v1431
  %v1648 = vunpack.c.l.bf16 %v1432
  %v1649 = vunpack.c.l.bf16 %v1433
  %v1650 = vunpack.c.l.bf16 %v1434
  %v1651 = vunpack.c.l.bf16 %v1435
  %v1652 = vunpack.c.l.bf16 %v1436
  %v1653 = vunpack.c.l.bf16 %v1437
  %v1654 = vunpack.c.l.bf16 %v1438
  %v1655 = vunpack.c.l.bf16 %v1439
  %v1656 = vunpack.c.l.bf16 %v1440
  %v1657 = vunpack.c.l.bf16 %v1441
  %v1658 = vunpack.c.l.bf16 %v1442
  %v1659 = vunpack.c.l.bf16 %v1443
  %v1660 = vunpack.c.l.bf16 %v1444
  %v1661 = vunpack.c.l.bf16 %v1445
  %v1662 = vunpack.c.l.bf16 %v1446
  %v1663 = vunpack.c.l.bf16 %v1447
  %v1664 = vunpack.c.l.bf16 %v1448
  %v1665 = vunpack.c.l.bf16 %v1449
  %v1666 = vunpack.c.l.bf16 %v1450
  %v1667 = vunpack.c.l.bf16 %v1451
  %v1668 = vunpack.c.l.bf16 %v1452
  %v1669 = vunpack.c.l.bf16 %v1453
  %v1670 = vunpack.c.l.bf16 %v1454
  %v1671 = vunpack.c.l.bf16 %v1455
  %v1672 = vunpack.c.l.bf16 %v1456
  %v1673 = vunpack.c.l.bf16 %v1457
  %v1674 = vunpack.c.l.bf16 %v1458
  %v1675 = vunpack.c.l.bf16 %v1459
  %v1676 = vunpack.c.l.bf16 %v1460
  %v1677 = vunpack.c.l.bf16 %v1461
  %v1678 = vunpack.c.l.bf16 %v1462
  %v1679 = vunpack.c.l.bf16 %v1463
  %v1680 = vunpack.c.l.bf16 %v1464
  %v1681 = vunpack.c.l.bf16 %v1465
  %v1682 = vunpack.c.l.bf16 %v1466
  %v1683 = vunpack.c.l.bf16 %v1467
  %v1684 = vunpack.c.l.bf16 %v1468
  %v1685 = vunpack.c.l.bf16 %v1469
  %v1686 = vunpack.c.l.bf16 %v1470
  %v1687 = vunpack.c.l.bf16 %v1471
  %v1688 = vunpack.c.l.bf16 %v1472
  %v1689 = vunpack.c.l.bf16 %v1473
  %v1690 = vunpack.c.l.bf16 %v1474
  %v1691 = vunpack.c.l.bf16 %v1475
  %v1692 = vunpack.c.l.bf16 %v1476
  %v1693 = vunpack.c.l.bf16 %v1477
  %v1694 = vunpack.c.l.bf16 %v1478
  %v1695 = vunpack.c.l.bf16 %v1479
  %v1696 = vunpack.c.l.bf16 %v1480
  %v1697 = vunpack.c.l.bf16 %v1481
  %v1698 = vunpack.c.l.bf16 %v1482
  %v1699 = vunpack.c.l.bf16 %v1483
  %v1700 = vunpack.c.l.bf16 %v1484
  %v1701 = vunpack.c.l.bf16 %v1485
  %v1702 = vunpack.c.l.bf16 %v1486
  %v1703 = vunpack.c.l.bf16 %v1487
  %v1704 = vunpack.c.l.bf16 %v1488
  %v1705 = vunpack.c.l.bf16 %v1489
  %v1706 = vunpack.c.l.bf16 %v1490
  %v1707 = vunpack.c.l.bf16 %v1491
  %v1708 = vunpack.c.l.bf16 %v1492
  %v1709 = vunpack.c.l.bf16 %v1493
  %v1710 = vunpack.c.l.bf16 %v1494
  %v1711 = vunpack.c.l.bf16 %v1495
  %v1712 = vunpack.c.l.bf16 %v1496
  %v1713 = vunpack.c.l.bf16 %v1497
  %v1714 = vunpack.c.l.bf16 %v1498
  %v1715 = vunpack.c.l.bf16 %v1499
  %v1716 = vunpack.c.l.bf16 %v1500
  %v1717 = vunpack.c.l.bf16 %v1501
  %v1718 = vunpack.c.l.bf16 %v1502
  %v1719 = vunpack.c.l.bf16 %v1503
  %v1720 = vunpack.c.l.bf16 %v1504
  %v1721 = vunpack.c.l.bf16 %v1505
  %v1722 = vunpack.c.l.bf16 %v1506
  %v1723 = vunpack.c.l.bf16 %v1507
  %v1724 = vunpack.c.l.bf16 %v1508
  %v1725 = vunpack.c.l.bf16 %v1509
  %v1726 = vunpack.c.l.bf16 %v1510
  %v1727 = vunpack.c.l.bf16 %v1511
  %v1728 = vunpack.c.l.bf16 %v1512
  %v1729 = vunpack.c.l.bf16 %v1513
  %v1730 = vunpack.c.l.bf16 %v1514
  %v1731 = vunpack.c.l.bf16 %v1515
  %v1732 = vunpack.c.l.bf16 %v1516
  %v1733 = vunpack.c.l.bf16 %v1517
  %v1734 = vunpack.c.l.bf16 %v1518
  %v1735 = vunpack.c.l.bf16 %v1519
  %v1736 = vunpack.c.l.bf16 %v1520
  %v1737 = vunpack.c.l.bf16 %v1521
  %v1738 = vunpack.c.l.bf16 %v1522
  %v1739 = vunpack.c.l.bf16 %v1523
  %v1740 = vunpack.c.l.bf16 %v1524
  %v1741 = vunpack.c.l.bf16 %v1525
  %v1742 = vunpack.c.l.bf16 %v1526
  %v1743 = vunpack.c.l.bf16 %v1527
  %v1744 = vunpack.c.l.bf16 %v1528
  %v1745 = vunpack.c.l.bf16 %v1529
  %v1746 = vunpack.c.l.bf16 %v1530
  %v1747 = vunpack.c.l.bf16 %v1531
  %v1748 = vunpack.c.l.bf16 %v1532
  %v1749 = vunpack.c.l.bf16 %v39
  %v1750 = vunpack.c.l.bf16 %v40
  %v1751 = vunpack.c.l.bf16 %v41
  %v1752 = vunpack.c.l.bf16 %v42
  %v1753 = vunpack.c.l.bf16 %v43
  %v1754 = vunpack.c.l.bf16 %v44
  %v1755 = vunpack.c.l.bf16 %v45
  %v1756 = vunpack.c.l.bf16 %v46
  %v1757 = vunpack.c.l.bf16 %v47
  %v1758 = vunpack.c.l.bf16 %v66
  %v1759 = vunpack.c.l.bf16 %v67
  %v1760 = vunpack.c.l.bf16 %v68
  %v1761 = vunpack.c.l.bf16 %v69
  %v1762 = vunpack.c.l.bf16 %v70
  %v1763 = vunpack.c.l.bf16 %v71
  %v1764 = vunpack.c.l.bf16 %v72
  %v1765 = vunpack.c.l.bf16 %v73
  %v1766 = vunpack.c.l.bf16 %v74
  %v1767 = vunpack.c.l.bf16 %v93
  %v1768 = vunpack.c.l.bf16 %v94
  %v1769 = vunpack.c.l.bf16 %v95
  %v1770 = vunpack.c.l.bf16 %v96
  %v1771 = vunpack.c.l.bf16 %v97
  %v1772 = vunpack.c.l.bf16 %v98
  %v1773 = vunpack.c.l.bf16 %v99
  %v1774 = vunpack.c.l.bf16 %v100
  %v1775 = vunpack.c.l.bf16 %v101
  %v1776 = vunpack.c.l.bf16 %v120
  %v1777 = vunpack.c.l.bf16 %v121
  %v1778 = vunpack.c.l.bf16 %v122
  %v1779 = vunpack.c.l.bf16 %v123
  %v1780 = vunpack.c.l.bf16 %v124
  %v1781 = vunpack.c.l.bf16 %v125
  %v1782 = vunpack.c.l.bf16 %v126
  %v1783 = vunpack.c.l.bf16 %v127
  %v1784 = vunpack.c.l.bf16 %v128
  %v1785 = vunpack.c.l.bf16 %v147
  %v1786 = vunpack.c.l.bf16 %v148
  %v1787 = vunpack.c.l.bf16 %v149
  %v1788 = vunpack.c.l.bf16 %v150
  %v1789 = vunpack.c.l.bf16 %v151
  %v1790 = vunpack.c.l.bf16 %v152
  %v1791 = vunpack.c.l.bf16 %v153
  %v1792 = vunpack.c.l.bf16 %v154
  %v1793 = vunpack.c.l.bf16 %v155
  %v1794 = vunpack.c.l.bf16 %v174
  %v1795 = vunpack.c.l.bf16 %v175
  %v1796 = vunpack.c.l.bf16 %v176
  %v1797 = vunpack.c.l.bf16 %v177
  %v1798 = vunpack.c.l.bf16 %v178
  %v1799 = vunpack.c.l.bf16 %v179
  %v1800 = vunpack.c.l.bf16 %v180
  %v1801 = vunpack.c.l.bf16 %v181
  %v1802 = vunpack.c.l.bf16 %v182
  %v1803 = vunpack.c.l.bf16 %v201
  %v1804 = vunpack.c.l.bf16 %v202
  %v1805 = vunpack.c.l.bf16 %v203
  %v1806 = vunpack.c.l.bf16 %v204
  %v1807 = vunpack.c.l.bf16 %v205
  %v1808 = vunpack.c.l.bf16 %v206
  %v1809 = vunpack.c.l.bf16 %v207
  %v1810 = vunpack.c.l.bf16 %v208
  %v1811 = vunpack.c.l.bf16 %v209
  %v1812 = vunpack.c.l.bf16 %v228
  %v1813 = vunpack.c.l.bf16 %v229
  %v1814 = vunpack.c.l.bf16 %v230
  %v1815 = vunpack.c.l.bf16 %v231
  %v1816 = vunpack.c.l.bf16 %v232
  %v1817 = vunpack.c.l.bf16 %v233
  %v1818 = vunpack.c.l.bf16 %v234
  %v1819 = vunpack.c.l.bf16 %v235
  %v1820 = vunpack.c.l.bf16 %v236
  %v1821 = vunpack.c.l.bf16 %v255
  %v1822 = vunpack.c.l.bf16 %v256
  %v1823 = vunpack.c.l.bf16 %v257
  %v1824 = vunpack.c.l.bf16 %v258
  %v1825 = vunpack.c.l.bf16 %v259
  %v1826 = vunpack.c.l.bf16 %v260
  %v1827 = vunpack.c.l.bf16 %v261
  %v1828 = vunpack.c.l.bf16 %v262
  %v1829 = vunpack.c.l.bf16 %v263
  %v1830 = vunpack.c.l.bf16 %v282
  %v1831 = vunpack.c.l.bf16 %v283
  %v1832 = vunpack.c.l.bf16 %v284
  %v1833 = vunpack.c.l.bf16 %v285
  %v1834 = vunpack.c.l.bf16 %v286
  %v1835 = vunpack.c.l.bf16 %v287
  %v1836 = vunpack.c.l.bf16 %v288
  %v1837 = vunpack.c.l.bf16 %v289
  %v1838 = vunpack.c.l.bf16 %v290
  %v1839 = vunpack.c.l.bf16 %v309
  %v1840 = vunpack.c.l.bf16 %v310
  %v1841 = vunpack.c.l.bf16 %v311
  %v1842 = vunpack.c.l.bf16 %v312
  %v1843 = vunpack.c.l.bf16 %v313
  %v1844 = vunpack.c.l.bf16 %v314
  %v1845 = vunpack.c.l.bf16 %v315
  %v1846 = vunpack.c.l.bf16 %v316
  %v1847 = vunpack.c.l.bf16 %v317
  %v1848 = vunpack.c.l.bf16 %v336
  %v1849 = vunpack.c.l.bf16 %v337
  %v1850 = vunpack.c.l.bf16 %v338
  %v1851 = vunpack.c.l.bf16 %v339
  %v1852 = vunpack.c.l.bf16 %v340
  %v1853 = vunpack.c.l.bf16 %v341
  %v1854 = vunpack.c.l.bf16 %v342
  %v1855 = vunpack.c.l.bf16 %v343
  %v1856 = vunpack.c.l.bf16 %v344
  %v1857 = vunpack.c.l.bf16 %v363
  %v1858 = vunpack.c.l.bf16 %v364
  %v1859 = vunpack.c.l.bf16 %v365
  %v1860 = vunpack.c.l.bf16 %v366
  %v1861 = vunpack.c.l.bf16 %v367
  %v1862 = vunpack.c.l.bf16 %v368
  %v1863 = vunpack.c.l.bf16 %v369
  %v1864 = vunpack.c.l.bf16 %v370
  %v1865 = vunpack.c.l.bf16 %v371
  %v1866 = vunpack.c.l.bf16 %v390
  %v1867 = vunpack.c.l.bf16 %v391
  %v1868 = vunpack.c.l.bf16 %v392
  %v1869 = vunpack.c.l.bf16 %v393
  %v1870 = vunpack.c.l.bf16 %v394
  %v1871 = vunpack.c.l.bf16 %v395
  %v1872 = vunpack.c.l.bf16 %v396
  %v1873 = vunpack.c.l.bf16 %v397
  %v1874 = vunpack.c.l.bf16 %v398
  %v1875 = vunpack.c.l.bf16 %v417
  %v1876 = vunpack.c.l.bf16 %v418
  %v1877 = vunpack.c.l.bf16 %v419
  %v1878 = vunpack.c.l.bf16 %v420
  %v1879 = vunpack.c.l.bf16 %v421
  %v1880 = vunpack.c.l.bf16 %v422
  %v1881 = vunpack.c.l.bf16 %v423
  %v1882 = vunpack.c.l.bf16 %v424
  %v1883 = vunpack.c.l.bf16 %v425
  %v1884 = vunpack.c.l.bf16 %v444
  %v1885 = vunpack.c.l.bf16 %v445
  %v1886 = vunpack.c.l.bf16 %v446
  %v1887 = vunpack.c.l.bf16 %v447
  %v1888 = vunpack.c.l.bf16 %v448
  %v1889 = vunpack.c.l.bf16 %v449
  %v1890 = vunpack.c.l.bf16 %v450
  %v1891 = vunpack.c.l.bf16 %v451
  %v1892 = vunpack.c.l.bf16 %v452
  %v1893 = vunpack.c.l.bf16 %v471
  %v1894 = vunpack.c.l.bf16 %v472
  %v1895 = vunpack.c.l.bf16 %v473
  %v1896 = vunpack.c.l.bf16 %v474
  %v1897 = vunpack.c.l.bf16 %v475
  %v1898 = vunpack.c.l.bf16 %v476
  %v1899 = vunpack.c.l.bf16 %v477
  %v1900 = vunpack.c.l.bf16 %v478
  %v1901 = vunpack.c.l.bf16 %v479
  %v1902 = vunpack.c.l.bf16 %v498
  %v1903 = vunpack.c.l.bf16 %v499
  %v1904 = vunpack.c.l.bf16 %v500
  %v1905 = vunpack.c.l.bf16 %v501
  %v1906 = vunpack.c.l.bf16 %v502
  %v1907 = vunpack.c.l.bf16 %v503
  %v1908 = vunpack.c.l.bf16 %v504
  %v1909 = vunpack.c.l.bf16 %v505
  %v1910 = vunpack.c.l.bf16 %v506
  %v1911 = vunpack.c.l.bf16 %v525
  %v1912 = vunpack.c.l.bf16 %v526
  %v1913 = vunpack.c.l.bf16 %v527
  %v1914 = vunpack.c.l.bf16 %v528
  %v1915 = vunpack.c.l.bf16 %v529
  %v1916 = vunpack.c.l.bf16 %v530
  %v1917 = vunpack.c.l.bf16 %v531
  %v1918 = vunpack.c.l.bf16 %v532
  %v1919 = vunpack.c.l.bf16 %v533
  %v1920 = vunpack.c.l.bf16 %v552
  %v1921 = vunpack.c.l.bf16 %v553
  %v1922 = vunpack.c.l.bf16 %v554
  %v1923 = vunpack.c.l.bf16 %v555
  %v1924 = vunpack.c.l.bf16 %v556
  %v1925 = vunpack.c.l.bf16 %v557
  %v1926 = vunpack.c.l.bf16 %v558
  %v1927 = vunpack.c.l.bf16 %v559
  %v1928 = vunpack.c.l.bf16 %v560
  %v1929 = vunpack.c.l.bf16 %v579
  %v1930 = vunpack.c.l.bf16 %v580
  %v1931 = vunpack.c.l.bf16 %v581
  %v1932 = vunpack.c.l.bf16 %v582
  %v1933 = vunpack.c.l.bf16 %v583
  %v1934 = vunpack.c.l.bf16 %v584
  %v1935 = vunpack.c.l.bf16 %v585
  %v1936 = vunpack.c.l.bf16 %v586
  %v1937 = vunpack.c.l.bf16 %v587
  %v1938 = vunpack.c.l.bf16 %v606
  %v1939 = vunpack.c.l.bf16 %v607
  %v1940 = vunpack.c.l.bf16 %v608
  %v1941 = vunpack.c.l.bf16 %v609
  %v1942 = vunpack.c.l.bf16 %v610
  %v1943 = vunpack.c.l.bf16 %v611
  %v1944 = vunpack.c.l.bf16 %v612
  %v1945 = vunpack.c.l.bf16 %v613
  %v1946 = vunpack.c.l.bf16 %v614
  %v1947 = vunpack.c.l.bf16 %v633
  %v1948 = vunpack.c.l.bf16 %v634
  %v1949 = vunpack.c.l.bf16 %v635
  %v1950 = vunpack.c.l.bf16 %v636
  %v1951 = vunpack.c.l.bf16 %v637
  %v1952 = vunpack.c.l.bf16 %v638
  %v1953 = vunpack.c.l.bf16 %v639
  %v1954 = vunpack.c.l.bf16 %v640
  %v1955 = vunpack.c.l.bf16 %v641
  %v1956 = vunpack.c.l.bf16 %v660
  %v1957 = vunpack.c.l.bf16 %v661
  %v1958 = vunpack.c.l.bf16 %v662
  %v1959 = vunpack.c.l.bf16 %v663
  %v1960 = vunpack.c.l.bf16 %v664
  %v1961 = vunpack.c.l.bf16 %v665
  %v1962 = vunpack.c.l.bf16 %v666
  %v1963 = vunpack.c.l.bf16 %v667
  %v1964 = vunpack.c.l.bf16 %v668
  %v1965 = vadd.f32 %v1533, %v1749
  %v1966 = vadd.f32 %v1534, %v1750
  %v1967 = vadd.f32 %v1535, %v1751
  %v1968 = vadd.f32 %v1536, %v1752
  %v1969 = vadd.f32 %v1537, %v1753
  %v1970 = vadd.f32 %v1538, %v1754
  %v1971 = vadd.f32 %v1539, %v1755
  %v1972 = vadd.f32 %v1540, %v1756
  %v1973 = vadd.f32 %v1541, %v1757
  %v1974 = vadd.f32 %v1542, %v1758
  %v1975 = vadd.f32 %v1543, %v1759
  %v1976 = vadd.f32 %v1544, %v1760
  %v1977 = vadd.f32 %v1545, %v1761
  %v1978 = vadd.f32 %v1546, %v1762
  %v1979 = vadd.f32 %v1547, %v1763
  %v1980 = vadd.f32 %v1548, %v1764
  %v1981 = vadd.f32 %v1549, %v1765
  %v1982 = vadd.f32 %v1550, %v1766
  %v1983 = vadd.f32 %v1551, %v1767
  %v1984 = vadd.f32 %v1552, %v1768
  %v1985 = vadd.f32 %v1553, %v1769
  %v1986 = vadd.f32 %v1554, %v1770
  %v1987 = vadd.f32 %v1555, %v1771
  %v1988 = vadd.f32 %v1556, %v1772
  %v1989 = vadd.f32 %v1557, %v1773
  %v1990 = vadd.f32 %v1558, %v1774
  %v1991 = vadd.f32 %v1559, %v1775
  %v1992 = vadd.f32 %v1560, %v1776
  %v1993 = vadd.f32 %v1561, %v1777
  %v1994 = vadd.f32 %v1562, %v1778
  %v1995 = vadd.f32 %v1563, %v1779
  %v1996 = vadd.f32 %v1564, %v1780
  %v1997 = vadd.f32 %v1565, %v1781
  %v1998 = vadd.f32 %v1566, %v1782
  %v1999 = vadd.f32 %v1567, %v1783
  %v2000 = vadd.f32 %v1568, %v1784
  %v2001 = vadd.f32 %v1569, %v1785
  %v2002 = vadd.f32 %v1570, %v1786
  %v2003 = vadd.f32 %v1571, %v1787
  %v2004 = vadd.f32 %v1572, %v1788
  %v2005 = vadd.f32 %v1573, %v1789
  %v2006 = vadd.f32 %v1574, %v1790
  %v2007 = vadd.f32 %v1575, %v1791
  %v2008 = vadd.f32 %v1576, %v1792
  %v2009 = vadd.f32 %v1577, %v1793
  %v2010 = vadd.f32 %v1578, %v1794
  %v2011 = vadd.f32 %v1579, %v1795
  %v2012 = vadd.f32 %v1580, %v1796
  %v2013 = vadd.f32 %v1581, %v1797
  %v2014 = vadd.f32 %v1582, %v1798
  %v2015 = vadd.f32 %v1583, %v1799
  %v2016 = vadd.f32 %v1584, %v1800
  %v2017 = vadd.f32 %v1585, %v1801
  %v2018 = vadd.f32 %v1586, %v1802
  %v2019 = vadd.f32 %v1587, %v1803
  %v2020 = vadd.f32 %v1588, %v1804
  %v2021 = vadd.f32 %v1589, %v1805
  %v2022 = vadd.f32 %v1590, %v1806
  %v2023 = vadd.f32 %v1591, %v1807
  %v2024 = vadd.f32 %v1592, %v1808
  %v2025 = vadd.f32 %v1593, %v1809
  %v2026 = vadd.f32 %v1594, %v1810
  %v2027 = vadd.f32 %v1595, %v1811
  %v2028 = vadd.f32 %v1596, %v1812
  %v2029 = vadd.f32 %v1597, %v1813
  %v2030 = vadd.f32 %v1598, %v1814
  %v2031 = vadd.f32 %v1599, %v1815
  %v2032 = vadd.f32 %v1600, %v1816
  %v2033 = vadd.f32 %v1601, %v1817
  %v2034 = vadd.f32 %v1602, %v1818
  %v2035 = vadd.f32 %v1603, %v1819
  %v2036 = vadd.f32 %v1604, %v1820
  %v2037 = vadd.f32 %v1605, %v1821
  %v2038 = vadd.f32 %v1606, %v1822
  %v2039 = vadd.f32 %v1607, %v1823
  %v2040 = vadd.f32 %v1608, %v1824
  %v2041 = vadd.f32 %v1609, %v1825
  %v2042 = vadd.f32 %v1610, %v1826
  %v2043 = vadd.f32 %v1611, %v1827
  %v2044 = vadd.f32 %v1612, %v1828
  %v2045 = vadd.f32 %v1613, %v1829
  %v2046 = vadd.f32 %v1614, %v1830
  %v2047 = vadd.f32 %v1615, %v1831
  %v2048 = vadd.f32 %v1616, %v1832
  %v2049 = vadd.f32 %v1617, %v1833
  %v2050 = vadd.f32 %v1618, %v1834
  %v2051 = vadd.f32 %v1619, %v1835
  %v2052 = vadd.f32 %v1620, %v1836
  %v2053 = vadd.f32 %v1621, %v1837
  %v2054 = vadd.f32 %v1622, %v1838
  %v2055 = vadd.f32 %v1623, %v1839
  %v2056 = vadd.f32 %v1624, %v1840
  %v2057 = vadd.f32 %v1625, %v1841
  %v2058 = vadd.f32 %v1626, %v1842
  %v2059 = vadd.f32 %v1627, %v1843
  %v2060 = vadd.f32 %v1628, %v1844
  %v2061 = vadd.f32 %v1629, %v1845
  %v2062 = vadd.f32 %v1630, %v1846
  %v2063 = vadd.f32 %v1631, %v1847
  %v2064 = vadd.f32 %v1632, %v1848
  %v2065 = vadd.f32 %v1633, %v1849
  %v2066 = vadd.f32 %v1634, %v1850
  %v2067 = vadd.f32 %v1635, %v1851
  %v2068 = vadd.f32 %v1636, %v1852
  %v2069 = vadd.f32 %v1637, %v1853
  %v2070 = vadd.f32 %v1638, %v1854
  %v2071 = vadd.f32 %v1639, %v1855
  %v2072 = vadd.f32 %v1640, %v1856
  %v2073 = vadd.f32 %v1641, %v1857
  %v2074 = vadd.f32 %v1642, %v1858
  %v2075 = vadd.f32 %v1643, %v1859
  %v2076 = vadd.f32 %v1644, %v1860
  %v2077 = vadd.f32 %v1645, %v1861
  %v2078 = vadd.f32 %v1646, %v1862
  %v2079 = vadd.f32 %v1647, %v1863
  %v2080 = vadd.f32 %v1648, %v1864
  %v2081 = vadd.f32 %v1649, %v1865
  %v2082 = vadd.f32 %v1650, %v1866
  %v2083 = vadd.f32 %v1651, %v1867
  %v2084 = vadd.f32 %v1652, %v1868
  %v2085 = vadd.f32 %v1653, %v1869
  %v2086 = vadd.f32 %v1654, %v1870
  %v2087 = vadd.f32 %v1655, %v1871
  %v2088 = vadd.f32 %v1656, %v1872
  %v2089 = vadd.f32 %v1657, %v1873
  %v2090 = vadd.f32 %v1658, %v1874
  %v2091 = vadd.f32 %v1659, %v1875
  %v2092 = vadd.f32 %v1660, %v1876
  %v2093 = vadd.f32 %v1661, %v1877
  %v2094 = vadd.f32 %v1662, %v1878
  %v2095 = vadd.f32 %v1663, %v1879
  %v2096 = vadd.f32 %v1664, %v1880
  %v2097 = vadd.f32 %v1665, %v1881
  %v2098 = vadd.f32 %v1666, %v1882
  %v2099 = vadd.f32 %v1667, %v1883
  %v2100 = vadd.f32 %v1668, %v1884
  %v2101 = vadd.f32 %v1669, %v1885
  %v2102 = vadd.f32 %v1670, %v1886
  %v2103 = vadd.f32 %v1671, %v1887
  %v2104 = vadd.f32 %v1672, %v1888
  %v2105 = vadd.f32 %v1673, %v1889
  %v2106 = vadd.f32 %v1674, %v1890
  %v2107 = vadd.f32 %v1675, %v1891
  %v2108 = vadd.f32 %v1676, %v1892
  %v2109 = vadd.f32 %v1677, %v1893
  %v2110 = vadd.f32 %v1678, %v1894
  %v2111 = vadd.f32 %v1679, %v1895
  %v2112 = vadd.f32 %v1680, %v1896
  %v2113 = vadd.f32 %v1681, %v1897
  %v2114 = vadd.f32 %v1682, %v1898
  %v2115 = vadd.f32 %v1683, %v1899
  %v2116 = vadd.f32 %v1684, %v1900
  %v2117 = vadd.f32 %v1685, %v1901
  %v2118 = vadd.f32 %v1686, %v1902
  %v2119 = vadd.f32 %v1687, %v1903
  %v2120 = vadd.f32 %v1688, %v1904
  %v2121 = vadd.f32 %v1689, %v1905
  %v2122 = vadd.f32 %v1690, %v1906
  %v2123 = vadd.f32 %v1691, %v1907
  %v2124 = vadd.f32 %v1692, %v1908
  %v2125 = vadd.f32 %v1693, %v1909
  %v2126 = vadd.f32 %v1694, %v1910
  %v2127 = vadd.f32 %v1695, %v1911
  %v2128 = vadd.f32 %v1696, %v1912
  %v2129 = vadd.f32 %v1697, %v1913
  %v2130 = vadd.f32 %v1698, %v1914
  %v2131 = vadd.f32 %v1699, %v1915
  %v2132 = vadd.f32 %v1700, %v1916
  %v2133 = vadd.f32 %v1701, %v1917
  %v2134 = vadd.f32 %v1702, %v1918
  %v2135 = vadd.f32 %v1703, %v1919
  %v2136 = vadd.f32 %v1704, %v1920
  %v2137 = vadd.f32 %v1705, %v1921
  %v2138 = vadd.f32 %v1706, %v1922
  %v2139 = vadd.f32 %v1707, %v1923
  %v2140 = vadd.f32 %v1708, %v1924
  %v2141 = vadd.f32 %v1709, %v1925
  %v2142 = vadd.f32 %v1710, %v1926
  %v2143 = vadd.f32 %v1711, %v1927
  %v2144 = vadd.f32 %v1712, %v1928
  %v2145 = vadd.f32 %v1713, %v1929
  %v2146 = vadd.f32 %v1714, %v1930
  %v2147 = vadd.f32 %v1715, %v1931
  %v2148 = vadd.f32 %v1716, %v1932
  %v2149 = vadd.f32 %v1717, %v1933
  %v2150 = vadd.f32 %v1718, %v1934
  %v2151 = vadd.f32 %v1719, %v1935
  %v2152 = vadd.f32 %v1720, %v1936
  %v2153 = vadd.f32 %v1721, %v1937
  %v2154 = vadd.f32 %v1722, %v1938
  %v2155 = vadd.f32 %v1723, %v1939
  %v2156 = vadd.f32 %v1724, %v1940
  %v2157 = vadd.f32 %v1725, %v1941
  %v2158 = vadd.f32 %v1726, %v1942
  %v2159 = vadd.f32 %v1727, %v1943
  %v2160 = vadd.f32 %v1728, %v1944
  %v2161 = vadd.f32 %v1729, %v1945
  %v2162 = vadd.f32 %v1730, %v1946
  %v2163 = vadd.f32 %v1731, %v1947
  %v2164 = vadd.f32 %v1732, %v1948
  %v2165 = vadd.f32 %v1733, %v1949
  %v2166 = vadd.f32 %v1734, %v1950
  %v2167 = vadd.f32 %v1735, %v1951
  %v2168 = vadd.f32 %v1736, %v1952
  %v2169 = vadd.f32 %v1737, %v1953
  %v2170 = vadd.f32 %v1738, %v1954
  %v2171 = vadd.f32 %v1739, %v1955
  %v2172 = vadd.f32 %v1740, %v1956
  %v2173 = vadd.f32 %v1741, %v1957
  %v2174 = vadd.f32 %v1742, %v1958
  %v2175 = vadd.f32 %v1743, %v1959
  %v2176 = vadd.f32 %v1744, %v1960
  %v2177 = vadd.f32 %v1745, %v1961
  %v2178 = vadd.f32 %v1746, %v1962
  %v2179 = vadd.f32 %v1747, %v1963
  %v2180 = vadd.f32 %v1748, %v1964
  %v2181 = vpack.c.bf16 %v1965, %v1965
  %v2182 = vpack.c.bf16 %v1966, %v1966
  %v2183 = vpack.c.bf16 %v1967, %v1967
  %v2184 = vpack.c.bf16 %v1968, %v1968
  %v2185 = vpack.c.bf16 %v1969, %v1969
  %v2186 = vpack.c.bf16 %v1970, %v1970
  %v2187 = vpack.c.bf16 %v1971, %v1971
  %v2188 = vpack.c.bf16 %v1972, %v1972
  %v2189 = vpack.c.bf16 %v1973, %v1973
  %v2190 = vpack.c.bf16 %v1974, %v1974
  %v2191 = vpack.c.bf16 %v1975, %v1975
  %v2192 = vpack.c.bf16 %v1976, %v1976
  %v2193 = vpack.c.bf16 %v1977, %v1977
  %v2194 = vpack.c.bf16 %v1978, %v1978
  %v2195 = vpack.c.bf16 %v1979, %v1979
  %v2196 = vpack.c.bf16 %v1980, %v1980
  %v2197 = vpack.c.bf16 %v1981, %v1981
  %v2198 = vpack.c.bf16 %v1982, %v1982
  %v2199 = vpack.c.bf16 %v1983, %v1983
  %v2200 = vpack.c.bf16 %v1984, %v1984
  %v2201 = vpack.c.bf16 %v1985, %v1985
  %v2202 = vpack.c.bf16 %v1986, %v1986
  %v2203 = vpack.c.bf16 %v1987, %v1987
  %v2204 = vpack.c.bf16 %v1988, %v1988
  %v2205 = vpack.c.bf16 %v1989, %v1989
  %v2206 = vpack.c.bf16 %v1990, %v1990
  %v2207 = vpack.c.bf16 %v1991, %v1991
  %v2208 = vpack.c.bf16 %v1992, %v1992
  %v2209 = vpack.c.bf16 %v1993, %v1993
  %v2210 = vpack.c.bf16 %v1994, %v1994
  %v2211 = vpack.c.bf16 %v1995, %v1995
  %v2212 = vpack.c.bf16 %v1996, %v1996
  %v2213 = vpack.c.bf16 %v1997, %v1997
  %v2214 = vpack.c.bf16 %v1998, %v1998
  %v2215 = vpack.c.bf16 %v1999, %v1999
  %v2216 = vpack.c.bf16 %v2000, %v2000
  %v2217 = vpack.c.bf16 %v2001, %v2001
  %v2218 = vpack.c.bf16 %v2002, %v2002
  %v2219 = vpack.c.bf16 %v2003, %v2003
  %v2220 = vpack.c.bf16 %v2004, %v2004
  %v2221 = vpack.c.bf16 %v2005, %v2005
  %v2222 = vpack.c.bf16 %v2006, %v2006
  %v2223 = vpack.c.bf16 %v2007, %v2007
  %v2224 = vpack.c.bf16 %v2008, %v2008
  %v2225 = vpack.c.bf16 %v2009, %v2009
  %v2226 = vpack.c.bf16 %v2010, %v2010
  %v2227 = vpack.c.bf16 %v2011, %v2011
  %v2228 = vpack.c.bf16 %v2012, %v2012
  %v2229 = vpack.c.bf16 %v2013, %v2013
  %v2230 = vpack.c.bf16 %v2014, %v2014
  %v2231 = vpack.c.bf16 %v2015, %v2015
  %v2232 = vpack.c.bf16 %v2016, %v2016
  %v2233 = vpack.c.bf16 %v2017, %v2017
  %v2234 = vpack.c.bf16 %v2018, %v2018
  %v2235 = vpack.c.bf16 %v2019, %v2019
  %v2236 = vpack.c.bf16 %v2020, %v2020
  %v2237 = vpack.c.bf16 %v2021, %v2021
  %v2238 = vpack.c.bf16 %v2022, %v2022
  %v2239 = vpack.c.bf16 %v2023, %v2023
  %v2240 = vpack.c.bf16 %v2024, %v2024
  %v2241 = vpack.c.bf16 %v2025, %v2025
  %v2242 = vpack.c.bf16 %v2026, %v2026
  %v2243 = vpack.c.bf16 %v2027, %v2027
  %v2244 = vpack.c.bf16 %v2028, %v2028
  %v2245 = vpack.c.bf16 %v2029, %v2029
  %v2246 = vpack.c.bf16 %v2030, %v2030
  %v2247 = vpack.c.bf16 %v2031, %v2031
  %v2248 = vpack.c.bf16 %v2032, %v2032
  %v2249 = vpack.c.bf16 %v2033, %v2033
  %v2250 = vpack.c.bf16 %v2034, %v2034
  %v2251 = vpack.c.bf16 %v2035, %v2035
  %v2252 = vpack.c.bf16 %v2036, %v2036
  %v2253 = vpack.c.bf16 %v2037, %v2037
  %v2254 = vpack.c.bf16 %v2038, %v2038
  %v2255 = vpack.c.bf16 %v2039, %v2039
  %v2256 = vpack.c.bf16 %v2040, %v2040
  %v2257 = vpack.c.bf16 %v2041, %v2041
  %v2258 = vpack.c.bf16 %v2042, %v2042
  %v2259 = vpack.c.bf16 %v2043, %v2043
  %v2260 = vpack.c.bf16 %v2044, %v2044
  %v2261 = vpack.c.bf16 %v2045, %v2045
  %v2262 = vpack.c.bf16 %v2046, %v2046
  %v2263 = vpack.c.bf16 %v2047, %v2047
  %v2264 = vpack.c.bf16 %v2048, %v2048
  %v2265 = vpack.c.bf16 %v2049, %v2049
  %v2266 = vpack.c.bf16 %v2050, %v2050
  %v2267 = vpack.c.bf16 %v2051, %v2051
  %v2268 = vpack.c.bf16 %v2052, %v2052
  %v2269 = vpack.c.bf16 %v2053, %v2053
  %v2270 = vpack.c.bf16 %v2054, %v2054
  %v2271 = vpack.c.bf16 %v2055, %v2055
  %v2272 = vpack.c.bf16 %v2056, %v2056
  %v2273 = vpack.c.bf16 %v2057, %v2057
  %v2274 = vpack.c.bf16 %v2058, %v2058
  %v2275 = vpack.c.bf16 %v2059, %v2059
  %v2276 = vpack.c.bf16 %v2060, %v2060
  %v2277 = vpack.c.bf16 %v2061, %v2061
  %v2278 = vpack.c.bf16 %v2062, %v2062
  %v2279 = vpack.c.bf16 %v2063, %v2063
  %v2280 = vpack.c.bf16 %v2064, %v2064
  %v2281 = vpack.c.bf16 %v2065, %v2065
  %v2282 = vpack.c.bf16 %v2066, %v2066
  %v2283 = vpack.c.bf16 %v2067, %v2067
  %v2284 = vpack.c.bf16 %v2068, %v2068
  %v2285 = vpack.c.bf16 %v2069, %v2069
  %v2286 = vpack.c.bf16 %v2070, %v2070
  %v2287 = vpack.c.bf16 %v2071, %v2071
  %v2288 = vpack.c.bf16 %v2072, %v2072
  %v2289 = vpack.c.bf16 %v2073, %v2073
  %v2290 = vpack.c.bf16 %v2074, %v2074
  %v2291 = vpack.c.bf16 %v2075, %v2075
  %v2292 = vpack.c.bf16 %v2076, %v2076
  %v2293 = vpack.c.bf16 %v2077, %v2077
  %v2294 = vpack.c.bf16 %v2078, %v2078
  %v2295 = vpack.c.bf16 %v2079, %v2079
  %v2296 = vpack.c.bf16 %v2080, %v2080
  %v2297 = vpack.c.bf16 %v2081, %v2081
  %v2298 = vpack.c.bf16 %v2082, %v2082
  %v2299 = vpack.c.bf16 %v2083, %v2083
  %v2300 = vpack.c.bf16 %v2084, %v2084
  %v2301 = vpack.c.bf16 %v2085, %v2085
  %v2302 = vpack.c.bf16 %v2086, %v2086
  %v2303 = vpack.c.bf16 %v2087, %v2087
  %v2304 = vpack.c.bf16 %v2088, %v2088
  %v2305 = vpack.c.bf16 %v2089, %v2089
  %v2306 = vpack.c.bf16 %v2090, %v2090
  %v2307 = vpack.c.bf16 %v2091, %v2091
  %v2308 = vpack.c.bf16 %v2092, %v2092
  %v2309 = vpack.c.bf16 %v2093, %v2093
  %v2310 = vpack.c.bf16 %v2094, %v2094
  %v2311 = vpack.c.bf16 %v2095, %v2095
  %v2312 = vpack.c.bf16 %v2096, %v2096
  %v2313 = vpack.c.bf16 %v2097, %v2097
  %v2314 = vpack.c.bf16 %v2098, %v2098
  %v2315 = vpack.c.bf16 %v2099, %v2099
  %v2316 = vpack.c.bf16 %v2100, %v2100
  %v2317 = vpack.c.bf16 %v2101, %v2101
  %v2318 = vpack.c.bf16 %v2102, %v2102
  %v2319 = vpack.c.bf16 %v2103, %v2103
  %v2320 = vpack.c.bf16 %v2104, %v2104
  %v2321 = vpack.c.bf16 %v2105, %v2105
  %v2322 = vpack.c.bf16 %v2106, %v2106
  %v2323 = vpack.c.bf16 %v2107, %v2107
  %v2324 = vpack.c.bf16 %v2108, %v2108
  %v2325 = vpack.c.bf16 %v2109, %v2109
  %v2326 = vpack.c.bf16 %v2110, %v2110
  %v2327 = vpack.c.bf16 %v2111, %v2111
  %v2328 = vpack.c.bf16 %v2112, %v2112
  %v2329 = vpack.c.bf16 %v2113, %v2113
  %v2330 = vpack.c.bf16 %v2114, %v2114
  %v2331 = vpack.c.bf16 %v2115, %v2115
  %v2332 = vpack.c.bf16 %v2116, %v2116
  %v2333 = vpack.c.bf16 %v2117, %v2117
  %v2334 = vpack.c.bf16 %v2118, %v2118
  %v2335 = vpack.c.bf16 %v2119, %v2119
  %v2336 = vpack.c.bf16 %v2120, %v2120
  %v2337 = vpack.c.bf16 %v2121, %v2121
  %v2338 = vpack.c.bf16 %v2122, %v2122
  %v2339 = vpack.c.bf16 %v2123, %v2123
  %v2340 = vpack.c.bf16 %v2124, %v2124
  %v2341 = vpack.c.bf16 %v2125, %v2125
  %v2342 = vpack.c.bf16 %v2126, %v2126
  %v2343 = vpack.c.bf16 %v2127, %v2127
  %v2344 = vpack.c.bf16 %v2128, %v2128
  %v2345 = vpack.c.bf16 %v2129, %v2129
  %v2346 = vpack.c.bf16 %v2130, %v2130
  %v2347 = vpack.c.bf16 %v2131, %v2131
  %v2348 = vpack.c.bf16 %v2132, %v2132
  %v2349 = vpack.c.bf16 %v2133, %v2133
  %v2350 = vpack.c.bf16 %v2134, %v2134
  %v2351 = vpack.c.bf16 %v2135, %v2135
  %v2352 = vpack.c.bf16 %v2136, %v2136
  %v2353 = vpack.c.bf16 %v2137, %v2137
  %v2354 = vpack.c.bf16 %v2138, %v2138
  %v2355 = vpack.c.bf16 %v2139, %v2139
  %v2356 = vpack.c.bf16 %v2140, %v2140
  %v2357 = vpack.c.bf16 %v2141, %v2141
  %v2358 = vpack.c.bf16 %v2142, %v2142
  %v2359 = vpack.c.bf16 %v2143, %v2143
  %v2360 = vpack.c.bf16 %v2144, %v2144
  %v2361 = vpack.c.bf16 %v2145, %v2145
  %v2362 = vpack.c.bf16 %v2146, %v2146
  %v2363 = vpack.c.bf16 %v2147, %v2147
  %v2364 = vpack.c.bf16 %v2148, %v2148
  %v2365 = vpack.c.bf16 %v2149, %v2149
  %v2366 = vpack.c.bf16 %v2150, %v2150
  %v2367 = vpack.c.bf16 %v2151, %v2151
  %v2368 = vpack.c.bf16 %v2152, %v2152
  %v2369 = vpack.c.bf16 %v2153, %v2153
  %v2370 = vpack.c.bf16 %v2154, %v2154
  %v2371 = vpack.c.bf16 %v2155, %v2155
  %v2372 = vpack.c.bf16 %v2156, %v2156
  %v2373 = vpack.c.bf16 %v2157, %v2157
  %v2374 = vpack.c.bf16 %v2158, %v2158
  %v2375 = vpack.c.bf16 %v2159, %v2159
  %v2376 = vpack.c.bf16 %v2160, %v2160
  %v2377 = vpack.c.bf16 %v2161, %v2161
  %v2378 = vpack.c.bf16 %v2162, %v2162
  %v2379 = vpack.c.bf16 %v2163, %v2163
  %v2380 = vpack.c.bf16 %v2164, %v2164
  %v2381 = vpack.c.bf16 %v2165, %v2165
  %v2382 = vpack.c.bf16 %v2166, %v2166
  %v2383 = vpack.c.bf16 %v2167, %v2167
  %v2384 = vpack.c.bf16 %v2168, %v2168
  %v2385 = vpack.c.bf16 %v2169, %v2169
  %v2386 = vpack.c.bf16 %v2170, %v2170
  %v2387 = vpack.c.bf16 %v2171, %v2171
  %v2388 = vpack.c.bf16 %v2172, %v2172
  %v2389 = vpack.c.bf16 %v2173, %v2173
  %v2390 = vpack.c.bf16 %v2174, %v2174
  %v2391 = vpack.c.bf16 %v2175, %v2175
  %v2392 = vpack.c.bf16 %v2176, %v2176
  %v2393 = vpack.c.bf16 %v2177, %v2177
  %v2394 = vpack.c.bf16 %v2178, %v2178
  %v2395 = vpack.c.bf16 %v2179, %v2179
  %v2396 = vpack.c.bf16 %v2180, %v2180
  %v2595 = vunpack.c.l.b16 %v2181
  %v2596 = vunpack.c.l.b16 %v2182
  %v2597 = vunpack.c.l.b16 %v2183
  %v2598 = vunpack.c.l.b16 %v2184
  %v2599 = vunpack.c.l.b16 %v2185
  %v2600 = vunpack.c.l.b16 %v2186
  %v2601 = vunpack.c.l.b16 %v2187
  %v2602 = vunpack.c.l.b16 %v2188
  %v2603 = vunpack.c.l.b16 %v2189
  %v2604 = vunpack.c.l.b16 %v2190
  %v2605 = vunpack.c.l.b16 %v2191
  %v2606 = vunpack.c.l.b16 %v2192
  %v2607 = vunpack.c.l.b16 %v2193
  %v2608 = vunpack.c.l.b16 %v2194
  %v2609 = vunpack.c.l.b16 %v2195
  %v2610 = vunpack.c.l.b16 %v2196
  %v2611 = vunpack.c.l.b16 %v2197
  %v2612 = vunpack.c.l.b16 %v2198
  %v2613 = vunpack.c.l.b16 %v2199
  %v2614 = vunpack.c.l.b16 %v2200
  %v2615 = vunpack.c.l.b16 %v2201
  %v2616 = vunpack.c.l.b16 %v2202
  %v2617 = vunpack.c.l.b16 %v2203
  %v2618 = vunpack.c.l.b16 %v2204
  %v2619 = vunpack.c.l.b16 %v2205
  %v2620 = vunpack.c.l.b16 %v2206
  %v2621 = vunpack.c.l.b16 %v2207
  %v2622 = vunpack.c.l.b16 %v2208
  %v2623 = vunpack.c.l.b16 %v2209
  %v2624 = vunpack.c.l.b16 %v2210
  %v2625 = vunpack.c.l.b16 %v2211
  %v2626 = vunpack.c.l.b16 %v2212
  %v2627 = vunpack.c.l.b16 %v2213
  %v2628 = vunpack.c.l.b16 %v2214
  %v2629 = vunpack.c.l.b16 %v2215
  %v2630 = vunpack.c.l.b16 %v2216
  %v2631 = vunpack.c.l.b16 %v2217
  %v2632 = vunpack.c.l.b16 %v2218
  %v2633 = vunpack.c.l.b16 %v2219
  %v2634 = vunpack.c.l.b16 %v2220
  %v2635 = vunpack.c.l.b16 %v2221
  %v2636 = vunpack.c.l.b16 %v2222
  %v2637 = vunpack.c.l.b16 %v2223
  %v2638 = vunpack.c.l.b16 %v2224
  %v2639 = vunpack.c.l.b16 %v2225
  %v2640 = vunpack.c.l.b16 %v2226
  %v2641 = vunpack.c.l.b16 %v2227
  %v2642 = vunpack.c.l.b16 %v2228
  %v2643 = vunpack.c.l.b16 %v2229
  %v2644 = vunpack.c.l.b16 %v2230
  %v2645 = vunpack.c.l.b16 %v2231
  %v2646 = vunpack.c.l.b16 %v2232
  %v2647 = vunpack.c.l.b16 %v2233
  %v2648 = vunpack.c.l.b16 %v2234
  %v2649 = vunpack.c.l.b16 %v2235
  %v2650 = vunpack.c.l.b16 %v2236
  %v2651 = vunpack.c.l.b16 %v2237
  %v2652 = vunpack.c.l.b16 %v2238
  %v2653 = vunpack.c.l.b16 %v2239
  %v2654 = vunpack.c.l.b16 %v2240
  %v2655 = vunpack.c.l.b16 %v2241
  %v2656 = vunpack.c.l.b16 %v2242
  %v2657 = vunpack.c.l.b16 %v2243
  %v2658 = vunpack.c.l.b16 %v2244
  %v2659 = vunpack.c.l.b16 %v2245
  %v2660 = vunpack.c.l.b16 %v2246
  %v2661 = vunpack.c.l.b16 %v2247
  %v2662 = vunpack.c.l.b16 %v2248
  %v2663 = vunpack.c.l.b16 %v2249
  %v2664 = vunpack.c.l.b16 %v2250
  %v2665 = vunpack.c.l.b16 %v2251
  %v2666 = vunpack.c.l.b16 %v2252
  %v2667 = vunpack.c.l.b16 %v2253
  %v2668 = vunpack.c.l.b16 %v2254
  %v2669 = vunpack.c.l.b16 %v2255
  %v2670 = vunpack.c.l.b16 %v2256
  %v2671 = vunpack.c.l.b16 %v2257
  %v2672 = vunpack.c.l.b16 %v2258
  %v2673 = vunpack.c.l.b16 %v2259
  %v2674 = vunpack.c.l.b16 %v2260
  %v2675 = vunpack.c.l.b16 %v2261
  %v2676 = vunpack.c.l.b16 %v2262
  %v2677 = vunpack.c.l.b16 %v2263
  %v2678 = vunpack.c.l.b16 %v2264
  %v2679 = vunpack.c.l.b16 %v2265
  %v2680 = vunpack.c.l.b16 %v2266
  %v2681 = vunpack.c.l.b16 %v2267
  %v2682 = vunpack.c.l.b16 %v2268
  %v2683 = vunpack.c.l.b16 %v2269
  %v2684 = vunpack.c.l.b16 %v2270
  %v2685 = vunpack.c.l.b16 %v2271
  %v2686 = vunpack.c.l.b16 %v2272
  %v2687 = vunpack.c.l.b16 %v2273
  %v2688 = vunpack.c.l.b16 %v2274
  %v2689 = vunpack.c.l.b16 %v2275
  %v2690 = vunpack.c.l.b16 %v2276
  %v2691 = vunpack.c.l.b16 %v2277
  %v2692 = vunpack.c.l.b16 %v2278
  %v2693 = vunpack.c.l.b16 %v2279
  %v2694 = vunpack.c.l.b16 %v2280
  %v2695 = vunpack.c.l.b16 %v2281
  %v2696 = vunpack.c.l.b16 %v2282
  %v2697 = vunpack.c.l.b16 %v2283
  %v2698 = vunpack.c.l.b16 %v2284
  %v2699 = vunpack.c.l.b16 %v2285
  %v2700 = vunpack.c.l.b16 %v2286
  %v2701 = vunpack.c.l.b16 %v2287
  %v2702 = vunpack.c.l.b16 %v2288
  %v2703 = vunpack.c.l.b16 %v2289
  %v2704 = vunpack.c.l.b16 %v2290
  %v2705 = vunpack.c.l.b16 %v2291
  %v2706 = vunpack.c.l.b16 %v2292
  %v2707 = vunpack.c.l.b16 %v2293
  %v2708 = vunpack.c.l.b16 %v2294
  %v2709 = vunpack.c.l.b16 %v2295
  %v2710 = vunpack.c.l.b16 %v2296
  %v2711 = vunpack.c.l.b16 %v2297
  %v2712 = vunpack.c.l.b16 %v2298
  %v2713 = vunpack.c.l.b16 %v2299
  %v2714 = vunpack.c.l.b16 %v2300
  %v2715 = vunpack.c.l.b16 %v2301
  %v2716 = vunpack.c.l.b16 %v2302
  %v2717 = vunpack.c.l.b16 %v2303
  %v2718 = vunpack.c.l.b16 %v2304
  %v2719 = vunpack.c.l.b16 %v2305
  %v2720 = vunpack.c.l.b16 %v2306
  %v2721 = vunpack.c.l.b16 %v2307
  %v2722 = vunpack.c.l.b16 %v2308
  %v2723 = vunpack.c.l.b16 %v2309
  %v2724 = vunpack.c.l.b16 %v2310
  %v2725 = vunpack.c.l.b16 %v2311
  %v2726 = vunpack.c.l.b16 %v2312
  %v2727 = vunpack.c.l.b16 %v2313
  %v2728 = vunpack.c.l.b16 %v2314
  %v2729 = vunpack.c.l.b16 %v2315
  %v2730 = vunpack.c.l.b16 %v2316
  %v2731 = vunpack.c.l.b16 %v2317
  %v2732 = vunpack.c.l.b16 %v2318
  %v2733 = vunpack.c.l.b16 %v2319
  %v2734 = vunpack.c.l.b16 %v2320
  %v2735 = vunpack.c.l.b16 %v2321
  %v2736 = vunpack.c.l.b16 %v2322
  %v2737 = vunpack.c.l.b16 %v2323
  %v2738 = vunpack.c.l.b16 %v2324
  %v2739 = vunpack.c.l.b16 %v2325
  %v2740 = vunpack.c.l.b16 %v2326
  %v2741 = vunpack.c.l.b16 %v2327
  %v2742 = vunpack.c.l.b16 %v2328
  %v2743 = vunpack.c.l.b16 %v2329
  %v2744 = vunpack.c.l.b16 %v2330
  %v2745 = vunpack.c.l.b16 %v2331
  %v2746 = vunpack.c.l.b16 %v2332
  %v2747 = vunpack.c.l.b16 %v2333
  %v2748 = vunpack.c.l.b16 %v2334
  %v2749 = vunpack.c.l.b16 %v2335
  %v2750 = vunpack.c.l.b16 %v2336
  %v2751 = vunpack.c.l.b16 %v2337
  %v2752 = vunpack.c.l.b16 %v2338
  %v2753 = vunpack.c.l.b16 %v2339
  %v2754 = vunpack.c.l.b16 %v2340
  %v2755 = vunpack.c.l.b16 %v2341
  %v2756 = vunpack.c.l.b16 %v2342
  %v2757 = vunpack.c.l.b16 %v2343
  %v2758 = vunpack.c.l.b16 %v2344
  %v2759 = vunpack.c.l.b16 %v2345
  %v2760 = vunpack.c.l.b16 %v2346
  %v2761 = vunpack.c.l.b16 %v2347
  %v2762 = vunpack.c.l.b16 %v2348
  %v2763 = vunpack.c.l.b16 %v2349
  %v2764 = vunpack.c.l.b16 %v2350
  %v2765 = vunpack.c.l.b16 %v2351
  %v2766 = vunpack.c.l.b16 %v2352
  %v2767 = vunpack.c.l.b16 %v2353
  %v2768 = vunpack.c.l.b16 %v2354
  %v2769 = vunpack.c.l.b16 %v2355
  %v2770 = vunpack.c.l.b16 %v2356
  %v2771 = vunpack.c.l.b16 %v2357
  %v2772 = vunpack.c.l.b16 %v2358
  %v2773 = vunpack.c.l.b16 %v2359
  %v2774 = vunpack.c.l.b16 %v2360
  %v2775 = vunpack.c.l.b16 %v2361
  %v2776 = vunpack.c.l.b16 %v2362
  %v2777 = vunpack.c.l.b16 %v2363
  %v2778 = vunpack.c.l.b16 %v2364
  %v2779 = vunpack.c.l.b16 %v2365
  %v2780 = vunpack.c.l.b16 %v2366
  %v2781 = vunpack.c.l.b16 %v2367
  %v2782 = vunpack.c.l.b16 %v2368
  %v2783 = vunpack.c.l.b16 %v2369
  %v2784 = vunpack.c.l.b16 %v2370
  %v2785 = vunpack.c.l.b16 %v2371
  %v2786 = vunpack.c.l.b16 %v2372
  %v2787 = vunpack.c.l.b16 %v2373
  %v2788 = vunpack.c.l.b16 %v2374
  %v2789 = vunpack.c.l.b16 %v2375
  %v2790 = vunpack.c.l.b16 %v2376
  %v2791 = vunpack.c.l.b16 %v2377
  %v2792 = vunpack.c.l.b16 %v2378
  %v2793 = vpack.c.b16 %v2596, %v2595
  %v2794 = vpack.c.b16 %v2598, %v2597
  %v2795 = vpack.c.b16 %v2600, %v2599
  %v2796 = vpack.c.b16 %v2602, %v2601
  %v2797 = vpack.c.b16 %v2603, %v2603
  %v2798 = vpack.c.b16 %v2605, %v2604
  %v2799 = vpack.c.b16 %v2607, %v2606
  %v2800 = vpack.c.b16 %v2609, %v2608
  %v2801 = vpack.c.b16 %v2611, %v2610
  %v2802 = vpack.c.b16 %v2612, %v2612
  %v2803 = vpack.c.b16 %v2614, %v2613
  %v2804 = vpack.c.b16 %v2616, %v2615
  %v2805 = vpack.c.b16 %v2618, %v2617
  %v2806 = vpack.c.b16 %v2620, %v2619
  %v2807 = vpack.c.b16 %v2621, %v2621
  %v2808 = vpack.c.b16 %v2623, %v2622
  %v2809 = vpack.c.b16 %v2625, %v2624
  %v2810 = vpack.c.b16 %v2627, %v2626
  %v2811 = vpack.c.b16 %v2629, %v2628
  %v2812 = vpack.c.b16 %v2630, %v2630
  %v2813 = vpack.c.b16 %v2632, %v2631
  %v2814 = vpack.c.b16 %v2634, %v2633
  %v2815 = vpack.c.b16 %v2636, %v2635
  %v2816 = vpack.c.b16 %v2638, %v2637
  %v2817 = vpack.c.b16 %v2639, %v2639
  %v2818 = vpack.c.b16 %v2641, %v2640
  %v2819 = vpack.c.b16 %v2643, %v2642
  %v2820 = vpack.c.b16 %v2645, %v2644
  %v2821 = vpack.c.b16 %v2647, %v2646
  %v2822 = vpack.c.b16 %v2648, %v2648
  %v2823 = vpack.c.b16 %v2650, %v2649
  %v2824 = vpack.c.b16 %v2652, %v2651
  %v2825 = vpack.c.b16 %v2654, %v2653
  %v2826 = vpack.c.b16 %v2656, %v2655
  %v2827 = vpack.c.b16 %v2657, %v2657
  %v2828 = vpack.c.b16 %v2659, %v2658
  %v2829 = vpack.c.b16 %v2661, %v2660
  %v2830 = vpack.c.b16 %v2663, %v2662
  %v2831 = vpack.c.b16 %v2665, %v2664
  %v2832 = vpack.c.b16 %v2666, %v2666
  %v2833 = vpack.c.b16 %v2668, %v2667
  %v2834 = vpack.c.b16 %v2670, %v2669
  %v2835 = vpack.c.b16 %v2672, %v2671
  %v2836 = vpack.c.b16 %v2674, %v2673
  %v2837 = vpack.c.b16 %v2675, %v2675
  %v2838 = vpack.c.b16 %v2677, %v2676
  %v2839 = vpack.c.b16 %v2679, %v2678
  %v2840 = vpack.c.b16 %v2681, %v2680
  %v2841 = vpack.c.b16 %v2683, %v2682
  %v2842 = vpack.c.b16 %v2684, %v2684
  %v2843 = vpack.c.b16 %v2686, %v2685
  %v2844 = vpack.c.b16 %v2688, %v2687
  %v2845 = vpack.c.b16 %v2690, %v2689
  %v2846 = vpack.c.b16 %v2692, %v2691
  %v2847 = vpack.c.b16 %v2693, %v2693
  %v2848 = vpack.c.b16 %v2695, %v2694
  %v2849 = vpack.c.b16 %v2697, %v2696
  %v2850 = vpack.c.b16 %v2699, %v2698
  %v2851 = vpack.c.b16 %v2701, %v2700
  %v2852 = vpack.c.b16 %v2702, %v2702
  %v2853 = vpack.c.b16 %v2704, %v2703
  %v2854 = vpack.c.b16 %v2706, %v2705
  %v2855 = vpack.c.b16 %v2708, %v2707
  %v2856 = vpack.c.b16 %v2710, %v2709
  %v2857 = vpack.c.b16 %v2711, %v2711
  %v2858 = vpack.c.b16 %v2713, %v2712
  %v2859 = vpack.c.b16 %v2715, %v2714
  %v2860 = vpack.c.b16 %v2717, %v2716
  %v2861 = vpack.c.b16 %v2719, %v2718
  %v2862 = vpack.c.b16 %v2720, %v2720
  %v2863 = vpack.c.b16 %v2722, %v2721
  %v2864 = vpack.c.b16 %v2724, %v2723
  %v2865 = vpack.c.b16 %v2726, %v2725
  %v2866 = vpack.c.b16 %v2728, %v2727
  %v2867 = vpack.c.b16 %v2729, %v2729
  %v2868 = vpack.c.b16 %v2731, %v2730
  %v2869 = vpack.c.b16 %v2733, %v2732
  %v2870 = vpack.c.b16 %v2735, %v2734
  %v2871 = vpack.c.b16 %v2737, %v2736
  %v2872 = vpack.c.b16 %v2738, %v2738
  %v2873 = vpack.c.b16 %v2740, %v2739
  %v2874 = vpack.c.b16 %v2742, %v2741
  %v2875 = vpack.c.b16 %v2744, %v2743
  %v2876 = vpack.c.b16 %v2746, %v2745
  %v2877 = vpack.c.b16 %v2747, %v2747
  %v2878 = vpack.c.b16 %v2749, %v2748
  %v2879 = vpack.c.b16 %v2751, %v2750
  %v2880 = vpack.c.b16 %v2753, %v2752
  %v2881 = vpack.c.b16 %v2755, %v2754
  %v2882 = vpack.c.b16 %v2756, %v2756
  %v2883 = vpack.c.b16 %v2758, %v2757
  %v2884 = vpack.c.b16 %v2760, %v2759
  %v2885 = vpack.c.b16 %v2762, %v2761
  %v2886 = vpack.c.b16 %v2764, %v2763
  %v2887 = vpack.c.b16 %v2765, %v2765
  %v2888 = vpack.c.b16 %v2767, %v2766
  %v2889 = vpack.c.b16 %v2769, %v2768
  %v2890 = vpack.c.b16 %v2771, %v2770
  %v2891 = vpack.c.b16 %v2773, %v2772
  %v2892 = vpack.c.b16 %v2774, %v2774
  %v2893 = vpack.c.b16 %v2776, %v2775
  %v2894 = vpack.c.b16 %v2778, %v2777
  %v2895 = vpack.c.b16 %v2780, %v2779
  %v2896 = vpack.c.b16 %v2782, %v2781
  %v2897 = vpack.c.b16 %v2783, %v2783
  %v2898 = vpack.c.b16 %v2785, %v2784
  %v2899 = vpack.c.b16 %v2787, %v2786
  %v2900 = vpack.c.b16 %v2789, %v2788
  %v2901 = vpack.c.b16 %v2791, %v2790
  %v2902 = vpack.c.b16 %v2792, %v2792
  %v3000 = vunpack.c.l.b16 %v2379
  %v3001 = vunpack.c.l.b16 %v2380
  %v3002 = vunpack.c.l.b16 %v2381
  %v3003 = vunpack.c.l.b16 %v2382
  %v3004 = vunpack.c.l.b16 %v2383
  %v3005 = vunpack.c.l.b16 %v2384
  %v3006 = vunpack.c.l.b16 %v2385
  %v3007 = vunpack.c.l.b16 %v2386
  %v3008 = vunpack.c.l.b16 %v2387
  %v3009 = vpack.c.b16 %v2604, %v2604
  %v3010 = vpack.c.b16 %v2606, %v2605
  %v3011 = vpack.c.b16 %v2608, %v2607
  %v3012 = vpack.c.b16 %v2610, %v2609
  %v3013 = vpack.c.b16 %v2612, %v2611
  %v3014 = vpack.c.b16 %v2613, %v2613
  %v3015 = vpack.c.b16 %v2615, %v2614
  %v3016 = vpack.c.b16 %v2617, %v2616
  %v3017 = vpack.c.b16 %v2619, %v2618
  %v3018 = vpack.c.b16 %v2621, %v2620
  %v3019 = vpack.c.b16 %v2622, %v2622
  %v3020 = vpack.c.b16 %v2624, %v2623
  %v3021 = vpack.c.b16 %v2626, %v2625
  %v3022 = vpack.c.b16 %v2628, %v2627
  %v3023 = vpack.c.b16 %v2630, %v2629
  %v3024 = vpack.c.b16 %v2631, %v2631
  %v3025 = vpack.c.b16 %v2633, %v2632
  %v3026 = vpack.c.b16 %v2635, %v2634
  %v3027 = vpack.c.b16 %v2637, %v2636
  %v3028 = vpack.c.b16 %v2639, %v2638
  %v3029 = vpack.c.b16 %v2640, %v2640
  %v3030 = vpack.c.b16 %v2642, %v2641
  %v3031 = vpack.c.b16 %v2644, %v2643
  %v3032 = vpack.c.b16 %v2646, %v2645
  %v3033 = vpack.c.b16 %v2648, %v2647
  %v3034 = vpack.c.b16 %v2649, %v2649
  %v3035 = vpack.c.b16 %v2651, %v2650
  %v3036 = vpack.c.b16 %v2653, %v2652
  %v3037 = vpack.c.b16 %v2655, %v2654
  %v3038 = vpack.c.b16 %v2657, %v2656
  %v3039 = vpack.c.b16 %v2658, %v2658
  %v3040 = vpack.c.b16 %v2660, %v2659
  %v3041 = vpack.c.b16 %v2662, %v2661
  %v3042 = vpack.c.b16 %v2664, %v2663
  %v3043 = vpack.c.b16 %v2666, %v2665
  %v3044 = vpack.c.b16 %v2667, %v2667
  %v3045 = vpack.c.b16 %v2669, %v2668
  %v3046 = vpack.c.b16 %v2671, %v2670
  %v3047 = vpack.c.b16 %v2673, %v2672
  %v3048 = vpack.c.b16 %v2675, %v2674
  %v3049 = vpack.c.b16 %v2676, %v2676
  %v3050 = vpack.c.b16 %v2678, %v2677
  %v3051 = vpack.c.b16 %v2680, %v2679
  %v3052 = vpack.c.b16 %v2682, %v2681
  %v3053 = vpack.c.b16 %v2684, %v2683
  %v3054 = vpack.c.b16 %v2685, %v2685
  %v3055 = vpack.c.b16 %v2687, %v2686
  %v3056 = vpack.c.b16 %v2689, %v2688
  %v3057 = vpack.c.b16 %v2691, %v2690
  %v3058 = vpack.c.b16 %v2693, %v2692
  %v3059 = vpack.c.b16 %v2694, %v2694
  %v3060 = vpack.c.b16 %v2696, %v2695
  %v3061 = vpack.c.b16 %v2698, %v2697
  %v3062 = vpack.c.b16 %v2700, %v2699
  %v3063 = vpack.c.b16 %v2702, %v2701
  %v3064 = vpack.c.b16 %v2703, %v2703
  %v3065 = vpack.c.b16 %v2705, %v2704
  %v3066 = vpack.c.b16 %v2707, %v2706
  %v3067 = vpack.c.b16 %v2709, %v2708
  %v3068 = vpack.c.b16 %v2711, %v2710
  %v3069 = vpack.c.b16 %v2712, %v2712
  %v3070 = vpack.c.b16 %v2714, %v2713
  %v3071 = vpack.c.b16 %v2716, %v2715
  %v3072 = vpack.c.b16 %v2718, %v2717
  %v3073 = vpack.c.b16 %v2720, %v2719
  %v3074 = vpack.c.b16 %v2721, %v2721
  %v3075 = vpack.c.b16 %v2723, %v2722
  %v3076 = vpack.c.b16 %v2725, %v2724
  %v3077 = vpack.c.b16 %v2727, %v2726
  %v3078 = vpack.c.b16 %v2729, %v2728
  %v3079 = vpack.c.b16 %v2730, %v2730
  %v3080 = vpack.c.b16 %v2732, %v2731
  %v3081 = vpack.c.b16 %v2734, %v2733
  %v3082 = vpack.c.b16 %v2736, %v2735
  %v3083 = vpack.c.b16 %v2738, %v2737
  %v3084 = vpack.c.b16 %v2739, %v2739
  %v3085 = vpack.c.b16 %v2741, %v2740
  %v3086 = vpack.c.b16 %v2743, %v2742
  %v3087 = vpack.c.b16 %v2745, %v2744
  %v3088 = vpack.c.b16 %v2747, %v2746
  %v3089 = vpack.c.b16 %v2748, %v2748
  %v3090 = vpack.c.b16 %v2750, %v2749
  %v3091 = vpack.c.b16 %v2752, %v2751
  %v3092 = vpack.c.b16 %v2754, %v2753
  %v3093 = vpack.c.b16 %v2756, %v2755
  %v3094 = vpack.c.b16 %v2757, %v2757
  %v3095 = vpack.c.b16 %v2759, %v2758
  %v3096 = vpack.c.b16 %v2761, %v2760
  %v3097 = vpack.c.b16 %v2763, %v2762
  %v3098 = vpack.c.b16 %v2765, %v2764
  %v3099 = vpack.c.b16 %v2766, %v2766
  %v3100 = vpack.c.b16 %v2768, %v2767
  %v3101 = vpack.c.b16 %v2770, %v2769
  %v3102 = vpack.c.b16 %v2772, %v2771
  %v3103 = vpack.c.b16 %v2774, %v2773
  %v3104 = vpack.c.b16 %v2775, %v2775
  %v3105 = vpack.c.b16 %v2777, %v2776
  %v3106 = vpack.c.b16 %v2779, %v2778
  %v3107 = vpack.c.b16 %v2781, %v2780
  %v3108 = vpack.c.b16 %v2783, %v2782
  %v3109 = vpack.c.b16 %v2784, %v2784
  %v3110 = vpack.c.b16 %v2786, %v2785
  %v3111 = vpack.c.b16 %v2788, %v2787
  %v3112 = vpack.c.b16 %v2790, %v2789
  %v3113 = vpack.c.b16 %v2792, %v2791
  %v3114 = vpack.c.b16 %v3000, %v3000
  %v3115 = vpack.c.b16 %v3002, %v3001
  %v3116 = vpack.c.b16 %v3004, %v3003
  %v3117 = vpack.c.b16 %v3006, %v3005
  %v3118 = vpack.c.b16 %v3008, %v3007
  %v3216 = vunpack.c.l.b16 %v2388
  %v3217 = vunpack.c.l.b16 %v2389
  %v3218 = vunpack.c.l.b16 %v2390
  %v3219 = vunpack.c.l.b16 %v2391
  %v3220 = vunpack.c.l.b16 %v2392
  %v3221 = vunpack.c.l.b16 %v2393
  %v3222 = vunpack.c.l.b16 %v2394
  %v3223 = vunpack.c.l.b16 %v2395
  %v3224 = vunpack.c.l.b16 %v2396
  %v3225 = vpack.c.b16 %v3001, %v3000
  %v3226 = vpack.c.b16 %v3003, %v3002
  %v3227 = vpack.c.b16 %v3005, %v3004
  %v3228 = vpack.c.b16 %v3007, %v3006
  %v3229 = vpack.c.b16 %v3008, %v3008
  %v3230 = vpack.c.b16 %v3217, %v3216
  %v3231 = vpack.c.b16 %v3219, %v3218
  %v3232 = vpack.c.b16 %v3221, %v3220
  %v3233 = vpack.c.b16 %v3223, %v3222
  %v3234 = vpack.c.b16 %v3224, %v3224
  %vm3243 = vcmask 1043456
  %v3246 = vsel %vm3243, %v2797, %v3009
  %v3250 = vsel %vm3243, %v2802, %v3014
  %v3254 = vsel %vm3243, %v2807, %v3019
  %v3258 = vsel %vm3243, %v2812, %v3024
  %v3262 = vsel %vm3243, %v2817, %v3029
  %v3266 = vsel %vm3243, %v2822, %v3034
  %v3270 = vsel %vm3243, %v2827, %v3039
  %v3274 = vsel %vm3243, %v2832, %v3044
  %v3278 = vsel %vm3243, %v2837, %v3049
  %v3282 = vsel %vm3243, %v2842, %v3054
  %v3286 = vsel %vm3243, %v2847, %v3059
  %v3290 = vsel %vm3243, %v2852, %v3064
  %v3294 = vsel %vm3243, %v2857, %v3069
  %v3298 = vsel %vm3243, %v2862, %v3074
  %v3302 = vsel %vm3243, %v2867, %v3079
  %v3306 = vsel %vm3243, %v2872, %v3084
  %v3310 = vsel %vm3243, %v2877, %v3089
  %v3314 = vsel %vm3243, %v2882, %v3094
  %v3318 = vsel %vm3243, %v2887, %v3099
  %v3322 = vsel %vm3243, %v2892, %v3104
  %v3326 = vsel %vm3243, %v2897, %v3109
  %v3330 = vsel %vm3243, %v2902, %v3114
  %v3332 = vld [vmem:[%s1] sm:$0xff]
  %v3333 = vld [vmem:[%s1 + $0x8] sm:$0xff]
  %v3334 = vld [vmem:[%s1 + $0x10] sm:$0xff]
  %v3335 = vld [vmem:[%s1 + $0x18] sm:$0xff]
  %v3336 = vld [vmem:[%s1 + $0x20] sm:$0xff]
  %v3337 = vld [vmem:[%s1 + $0x28] sm:$0xff]
  %v3338 = vld [vmem:[%s1 + $0x30] sm:$0xff]
  %v3339 = vld [vmem:[%s1 + $0x38] sm:$0xff]
  %v3340 = vld [vmem:[%s1 + $0x40] sm:$0xff]
  %v3341 = vld [vmem:[%s1 + $0x48] sm:$0xff]
  %v3342 = vld [vmem:[%s1 + $0x50] sm:$0xff]
  %v3343 = vld [vmem:[%s1 + $0x58] sm:$0xff]
  %v3344 = vld [vmem:[%s1 + $0x60] sm:$0xff]
  %v3345 = vld [vmem:[%s1 + $0x68] sm:$0xff]
  %v3346 = vld [vmem:[%s1 + $0x70] sm:$0xff]
  %v3347 = vld [vmem:[%s1 + $0x78] sm:$0xff]
  %v3348 = vld [vmem:[%s1 + $0x80] sm:$0xff]
  %v3349 = vld [vmem:[%s1 + $0x88] sm:$0xff]
  %v3350 = vld [vmem:[%s1 + $0x90] sm:$0xff]
  %v3351 = vld [vmem:[%s1 + $0x98] sm:$0xff]
  %v3352 = vld [vmem:[%s1 + $0xa0] sm:$0xff]
  %v3353 = vld [vmem:[%s1 + $0xa8] sm:$0xff]
  %v3354 = vld [vmem:[%s1 + $0xb0] sm:$0xff]
  %v3355 = vld [vmem:[%s1 + $0xb8] sm:$0xff]
  %v3356 = vld [vmem:[%s1 + $0xc0] sm:$0xff]
  %v3357 = vld [vmem:[%s1 + $0xc8] sm:$0xff]
  %v3358 = vld [vmem:[%s1 + $0xd0] sm:$0xff]
  %v3359 = vld [vmem:[%s1 + $0xd8] sm:$0xff]
  %v3360 = vld [vmem:[%s1 + $0xe0] sm:$0xff]
  %v3361 = vld [vmem:[%s1 + $0xe8] sm:$0xff]
  %v3362 = vld [vmem:[%s1 + $0xf0] sm:$0xff]
  %v3363 = vld [vmem:[%s1 + $0xf8] sm:$0xff]
  %v3364 = vld [vmem:[%s1 + $0x100] sm:$0xff]
  %v3365 = vld [vmem:[%s1 + $0x108] sm:$0xff]
  %v3366 = vld [vmem:[%s1 + $0x110] sm:$0xff]
  %v3367 = vld [vmem:[%s1 + $0x118] sm:$0xff]
  %v3368 = vld [vmem:[%s1 + $0x120] sm:$0xff]
  %v3369 = vld [vmem:[%s1 + $0x128] sm:$0xff]
  %v3370 = vld [vmem:[%s1 + $0x130] sm:$0xff]
  %v3371 = vld [vmem:[%s1 + $0x138] sm:$0xff]
  %v3372 = vld [vmem:[%s1 + $0x140] sm:$0xff]
  %v3373 = vld [vmem:[%s1 + $0x148] sm:$0xff]
  %v3374 = vld [vmem:[%s1 + $0x150] sm:$0xff]
  %v3375 = vld [vmem:[%s1 + $0x158] sm:$0xff]
  %v3376 = vld [vmem:[%s1 + $0x160] sm:$0xff]
  %v3377 = vld [vmem:[%s1 + $0x168] sm:$0xff]
  %v3378 = vld [vmem:[%s1 + $0x170] sm:$0xff]
  %v3379 = vld [vmem:[%s1 + $0x178] sm:$0xff]
  %v3380 = vld [vmem:[%s1 + $0x180] sm:$0xff]
  %v3381 = vld [vmem:[%s1 + $0x188] sm:$0xff]
  %v3382 = vld [vmem:[%s1 + $0x190] sm:$0xff]
  %v3383 = vld [vmem:[%s1 + $0x198] sm:$0xff]
  %v3384 = vld [vmem:[%s1 + $0x1a0] sm:$0xff]
  %v3385 = vld [vmem:[%s1 + $0x1a8] sm:$0xff]
  %v3386 = vld [vmem:[%s1 + $0x1b0] sm:$0xff]
  %v3387 = vld [vmem:[%s1 + $0x1b8] sm:$0xff]
  %v3388 = vld [vmem:[%s1 + $0x1c0] sm:$0xff]
  %v3389 = vld [vmem:[%s1 + $0x1c8] sm:$0xff]
  %v3390 = vld [vmem:[%s1 + $0x1d0] sm:$0xff]
  %v3391 = vld [vmem:[%s1 + $0x1d8] sm:$0xff]
  %v3392 = vld [vmem:[%s1 + $0x1e0] sm:$0xff]
  %v3393 = vld [vmem:[%s1 + $0x1e8] sm:$0xff]
  %v3394 = vld [vmem:[%s1 + $0x1f0] sm:$0xff]
  %v3395 = vld [vmem:[%s1 + $0x1f8] sm:$0xff]
  %v3396 = vld [vmem:[%s1 + $0x200] sm:$0xff]
  %v3397 = vld [vmem:[%s1 + $0x208] sm:$0xff]
  %v3398 = vld [vmem:[%s1 + $0x210] sm:$0xff]
  %v3399 = vld [vmem:[%s1 + $0x218] sm:$0xff]
  %v3400 = vld [vmem:[%s1 + $0x220] sm:$0xff]
  %v3401 = vld [vmem:[%s1 + $0x228] sm:$0xff]
  %v3402 = vld [vmem:[%s1 + $0x230] sm:$0xff]
  %v3403 = vld [vmem:[%s1 + $0x238] sm:$0xff]
  %v3404 = vld [vmem:[%s1 + $0x240] sm:$0xff]
  %v3405 = vld [vmem:[%s1 + $0x248] sm:$0xff]
  %v3406 = vld [vmem:[%s1 + $0x250] sm:$0xff]
  %v3407 = vld [vmem:[%s1 + $0x258] sm:$0xff]
  %v3408 = vld [vmem:[%s1 + $0x260] sm:$0xff]
  %v3409 = vld [vmem:[%s1 + $0x268] sm:$0xff]
  %v3410 = vld [vmem:[%s1 + $0x270] sm:$0xff]
  %v3411 = vld [vmem:[%s1 + $0x278] sm:$0xff]
  %v3412 = vld [vmem:[%s1 + $0x280] sm:$0xff]
  %v3413 = vld [vmem:[%s1 + $0x288] sm:$0xff]
  %v3414 = vld [vmem:[%s1 + $0x290] sm:$0xff]
  %v3415 = vld [vmem:[%s1 + $0x298] sm:$0xff]
  %v3416 = vld [vmem:[%s1 + $0x2a0] sm:$0xff]
  %v3417 = vld [vmem:[%s1 + $0x2a8] sm:$0xff]
  %v3418 = vld [vmem:[%s1 + $0x2b0] sm:$0xff]
  %v3419 = vld [vmem:[%s1 + $0x2b8] sm:$0xff]
  %v3420 = vld [vmem:[%s1 + $0x2c0] sm:$0xff]
  %v3421 = vld [vmem:[%s1 + $0x2c8] sm:$0xff]
  %v3422 = vld [vmem:[%s1 + $0x2d0] sm:$0xff]
  %v3423 = vld [vmem:[%s1 + $0x2d8] sm:$0xff]
  %v3424 = vld [vmem:[%s1 + $0x2e0] sm:$0xff]
  %v3425 = vld [vmem:[%s1 + $0x2e8] sm:$0xff]
  %v3426 = vld [vmem:[%s1 + $0x2f0] sm:$0xff]
  %v3427 = vld [vmem:[%s1 + $0x2f8] sm:$0xff]
  %v3428 = vld [vmem:[%s1 + $0x300] sm:$0xff]
  %v3429 = vld [vmem:[%s1 + $0x308] sm:$0xff]
  %v3430 = vld [vmem:[%s1 + $0x310] sm:$0xff]
  %v3431 = vld [vmem:[%s1 + $0x318] sm:$0xff]
  %v3432 = vld [vmem:[%s1 + $0x320] sm:$0xff]
  %v3433 = vld [vmem:[%s1 + $0x328] sm:$0xff]
  %v3434 = vld [vmem:[%s1 + $0x330] sm:$0xff]
  %v3435 = vld [vmem:[%s1 + $0x338] sm:$0xff]
  %v3436 = vld [vmem:[%s1 + $0x340] sm:$0xff]
  %v3437 = vld [vmem:[%s1 + $0x348] sm:$0xff]
  %v3438 = vld [vmem:[%s1 + $0x350] sm:$0xff]
  %v3439 = vld [vmem:[%s1 + $0x358] sm:$0xff]
  %v3440 = vld [vmem:[%s1 + $0x360] sm:$0xff]
  %v3441 = vld [vmem:[%s1 + $0x368] sm:$0xff]
  %v3442 = vld [vmem:[%s1 + $0x370] sm:$0xff]
  %v3443 = vld [vmem:[%s1 + $0x378] sm:$0xff]
  %v3444 = vld [vmem:[%s1 + $0x380] sm:$0xff]
  %v3445 = vld [vmem:[%s1 + $0x388] sm:$0xff]
  %v3446 = vld [vmem:[%s1 + $0x390] sm:$0xff]
  %v3447 = vld [vmem:[%s1 + $0x398] sm:$0xff]
  %v3448 = vld [vmem:[%s1 + $0x3a0] sm:$0xff]
  %v3449 = vld [vmem:[%s1 + $0x3a8] sm:$0xff]
  %v3450 = vld [vmem:[%s1 + $0x3b0] sm:$0xff]
  %v3451 = vld [vmem:[%s1 + $0x3b8] sm:$0xff]
  %v3452 = vld [vmem:[%s1 + $0x3c0] sm:$0xff]
  %v3453 = vld [vmem:[%s1 + $0x3c8] sm:$0xff]
  %v3454 = vld [vmem:[%s1 + $0x3d0] sm:$0xff]
  %v3455 = vld [vmem:[%s1 + $0x3d8] sm:$0xff]
  %v3456 = vld [vmem:[%s1 + $0x3e0] sm:$0xff]
  %v3457 = vld [vmem:[%s1 + $0x3e8] sm:$0xff]
  %v3458 = vld [vmem:[%s1 + $0x3f0] sm:$0xff]
  %v3459 = vld [vmem:[%s1 + $0x3f8] sm:$0xff]
  %v3460 = vld [vmem:[%s1 + $0x400] sm:$0xff]
  %v3461 = vld [vmem:[%s1 + $0x408] sm:$0xff]
  %v3462 = vld [vmem:[%s1 + $0x410] sm:$0xff]
  %v3463 = vld [vmem:[%s1 + $0x418] sm:$0xff]
  %v3464 = vld [vmem:[%s1 + $0x420] sm:$0xff]
  %v3465 = vld [vmem:[%s1 + $0x428] sm:$0xff]
  %v3466 = vld [vmem:[%s1 + $0x430] sm:$0xff]
  %v3467 = vld [vmem:[%s1 + $0x438] sm:$0xff]
  %v3468 = vld [vmem:[%s1 + $0x440] sm:$0xff]
  %v3469 = vld [vmem:[%s1 + $0x448] sm:$0xff]
  %v3470 = vld [vmem:[%s1 + $0x450] sm:$0xff]
  %v3471 = vld [vmem:[%s1 + $0x458] sm:$0xff]
  %v3472 = vld [vmem:[%s1 + $0x460] sm:$0xff]
  %v3473 = vld [vmem:[%s1 + $0x468] sm:$0xff]
  %v3474 = vld [vmem:[%s1 + $0x470] sm:$0xff]
  %v3475 = vld [vmem:[%s1 + $0x478] sm:$0xff]
  %v3476 = vld [vmem:[%s1 + $0x480] sm:$0xff]
  %v3477 = vld [vmem:[%s1 + $0x488] sm:$0xff]
  %v3478 = vld [vmem:[%s1 + $0x490] sm:$0xff]
  %v3479 = vld [vmem:[%s1 + $0x498] sm:$0xff]
  %v3480 = vld [vmem:[%s1 + $0x4a0] sm:$0xff]
  %v3481 = vld [vmem:[%s1 + $0x4a8] sm:$0xff]
  %v3482 = vld [vmem:[%s1 + $0x4b0] sm:$0xff]
  %v3483 = vld [vmem:[%s1 + $0x4b8] sm:$0xff]
  %v3484 = vld [vmem:[%s1 + $0x4c0] sm:$0xff]
  %v3485 = vld [vmem:[%s1 + $0x4c8] sm:$0xff]
  %v3486 = vld [vmem:[%s1 + $0x4d0] sm:$0xff]
  %v3487 = vld [vmem:[%s1 + $0x4d8] sm:$0xff]
  %v3488 = vld [vmem:[%s1 + $0x4e0] sm:$0xff]
  %v3489 = vld [vmem:[%s1 + $0x4e8] sm:$0xff]
  %v3490 = vld [vmem:[%s1 + $0x4f0] sm:$0xff]
  %v3491 = vld [vmem:[%s1 + $0x4f8] sm:$0xff]
  %v3492 = vld [vmem:[%s1 + $0x500] sm:$0xff]
  %v3493 = vld [vmem:[%s1 + $0x508] sm:$0xff]
  %v3494 = vld [vmem:[%s1 + $0x510] sm:$0xff]
  %v3495 = vld [vmem:[%s1 + $0x518] sm:$0xff]
  %v3496 = vld [vmem:[%s1 + $0x520] sm:$0xff]
  %v3497 = vld [vmem:[%s1 + $0x528] sm:$0xff]
  %v3498 = vld [vmem:[%s1 + $0x530] sm:$0xff]
  %v3499 = vld [vmem:[%s1 + $0x538] sm:$0xff]
  %v3500 = vld [vmem:[%s1 + $0x540] sm:$0xff]
  %v3501 = vld [vmem:[%s1 + $0x548] sm:$0xff]
  %v3502 = vld [vmem:[%s1 + $0x550] sm:$0xff]
  %v3503 = vld [vmem:[%s1 + $0x558] sm:$0xff]
  %v3504 = vld [vmem:[%s1 + $0x560] sm:$0xff]
  %v3505 = vld [vmem:[%s1 + $0x568] sm:$0xff]
  %v3506 = vld [vmem:[%s1 + $0x570] sm:$0xff]
  %v3507 = vld [vmem:[%s1 + $0x578] sm:$0xff]
  %v3508 = vld [vmem:[%s1 + $0x580] sm:$0xff]
  %v3509 = vld [vmem:[%s1 + $0x588] sm:$0xff]
  %v3510 = vld [vmem:[%s1 + $0x590] sm:$0xff]
  %v3511 = vld [vmem:[%s1 + $0x598] sm:$0xff]
  %v3512 = vld [vmem:[%s1 + $0x5a0] sm:$0xff]
  %v3513 = vld [vmem:[%s1 + $0x5a8] sm:$0xff]
  %v3514 = vld [vmem:[%s1 + $0x5b0] sm:$0xff]
  %v3515 = vld [vmem:[%s1 + $0x5b8] sm:$0xff]
  %v3516 = vld [vmem:[%s1 + $0x5c0] sm:$0xff]
  %v3517 = vld [vmem:[%s1 + $0x5c8] sm:$0xff]
  %v3518 = vld [vmem:[%s1 + $0x5d0] sm:$0xff]
  %v3519 = vld [vmem:[%s1 + $0x5d8] sm:$0xff]
  %v3520 = vld [vmem:[%s1 + $0x5e0] sm:$0xff]
  %v3521 = vld [vmem:[%s1 + $0x5e8] sm:$0xff]
  %v3522 = vld [vmem:[%s1 + $0x5f0] sm:$0xff]
  %v3523 = vld [vmem:[%s1 + $0x5f8] sm:$0xff]
  %v3524 = vld [vmem:[%s1 + $0x600] sm:$0xff]
  %v3525 = vld [vmem:[%s1 + $0x608] sm:$0xff]
  %v3526 = vld [vmem:[%s1 + $0x610] sm:$0xff]
  %v3527 = vld [vmem:[%s1 + $0x618] sm:$0xff]
  %v3528 = vld [vmem:[%s1 + $0x620] sm:$0xff]
  %v3529 = vld [vmem:[%s1 + $0x628] sm:$0xff]
  %v3530 = vld [vmem:[%s1 + $0x630] sm:$0xff]
  %v3531 = vld [vmem:[%s1 + $0x638] sm:$0xff]
  %v3532 = vld [vmem:[%s1 + $0x640] sm:$0xff]
  %v3533 = vld [vmem:[%s1 + $0x648] sm:$0xff]
  %v3534 = vld [vmem:[%s1 + $0x650] sm:$0xff]
  %v3535 = vld [vmem:[%s1 + $0x658] sm:$0xff]
  %v3536 = vld [vmem:[%s1 + $0x660] sm:$0xff]
  %v3537 = vld [vmem:[%s1 + $0x668] sm:$0xff]
  %v3538 = vld [vmem:[%s1 + $0x670] sm:$0xff]
  %v3539 = vld [vmem:[%s1 + $0x678] sm:$0xff]
  %v3540 = vld [vmem:[%s1 + $0x680] sm:$0xff]
  %v3541 = vld [vmem:[%s1 + $0x688] sm:$0xff]
  %v3542 = vld [vmem:[%s1 + $0x690] sm:$0xff]
  %v3543 = vld [vmem:[%s1 + $0x698] sm:$0xff]
  %v3544 = vld [vmem:[%s1 + $0x6a0] sm:$0xff]
  %v3545 = vld [vmem:[%s1 + $0x6a8] sm:$0xff]
  %v3546 = vld [vmem:[%s1 + $0x6b0] sm:$0xff]
  %v3547 = vld [vmem:[%s1 + $0x6b8] sm:$0xff]
  %v3548 = vld [vmem:[%s1 + $0x6c0] sm:$0xff]
  %v3549 = vld [vmem:[%s1 + $0x6c8] sm:$0xff]
  %v3550 = vld [vmem:[%s1 + $0x6d0] sm:$0xff]
  %v3551 = vld [vmem:[%s1 + $0x6d8] sm:$0xff]
  %v3552 = vld [vmem:[%s1 + $0x6e0] sm:$0xff]
  %v3553 = vld [vmem:[%s1 + $0x6e8] sm:$0xff]
  %v3554 = vld [vmem:[%s1 + $0x6f0] sm:$0xff]
  %v3555 = vld [vmem:[%s1 + $0x6f8] sm:$0xff]
  %v3556 = vld [vmem:[%s1 + $0x700] sm:$0xff]
  %v3557 = vld [vmem:[%s1 + $0x708] sm:$0xff]
  %v3558 = vld [vmem:[%s1 + $0x710] sm:$0xff]
  %v3559 = vld [vmem:[%s1 + $0x718] sm:$0xff]
  %v3560 = vld [vmem:[%s1 + $0x720] sm:$0xff]
  %v3561 = vld [vmem:[%s1 + $0x728] sm:$0xff]
  %v3562 = vld [vmem:[%s1 + $0x730] sm:$0xff]
  %v3563 = vld [vmem:[%s1 + $0x738] sm:$0xff]
  %v3564 = vld [vmem:[%s1 + $0x740] sm:$0xff]
  %v3565 = vld [vmem:[%s1 + $0x748] sm:$0xff]
  %v3566 = vld [vmem:[%s1 + $0x750] sm:$0xff]
  %v3567 = vld [vmem:[%s1 + $0x758] sm:$0xff]
  %v3568 = vld [vmem:[%s1 + $0x760] sm:$0xff]
  %v3569 = vld [vmem:[%s1 + $0x768] sm:$0xff]
  %v3570 = vld [vmem:[%s1 + $0x770] sm:$0xff]
  %v3571 = vld [vmem:[%s1 + $0x778] sm:$0xff]
  %v3572 = vld [vmem:[%s1 + $0x780] sm:$0xff]
  %v3573 = vld [vmem:[%s1 + $0x788] sm:$0xff]
  %v3574 = vld [vmem:[%s1 + $0x790] sm:$0xff]
  %v3575 = vld [vmem:[%s1 + $0x798] sm:$0xff]
  %v3576 = vld [vmem:[%s1 + $0x7a0] sm:$0xff]
  %v3577 = vld [vmem:[%s1 + $0x7a8] sm:$0xff]
  %v3578 = vld [vmem:[%s1 + $0x7b0] sm:$0xff]
  %v3579 = vld [vmem:[%s1 + $0x7b8] sm:$0xff]
  %v3580 = vld [vmem:[%s1 + $0x7c0] sm:$0xff]
  %v3581 = vld [vmem:[%s1 + $0x7c8] sm:$0xff]
  %v3582 = vld [vmem:[%s1 + $0x7d0] sm:$0xff]
  %v3583 = vld [vmem:[%s1 + $0x7d8] sm:$0xff]
  %v3584 = vld [vmem:[%s1 + $0x7e0] sm:$0xff]
  %v3585 = vld [vmem:[%s1 + $0x7e8] sm:$0xff]
  %v3586 = vld [vmem:[%s1 + $0x7f0] sm:$0xff]
  %v3587 = vld [vmem:[%s1 + $0x7f8] sm:$0xff]
  %v3588 = vld [vmem:[%s1 + $0x800] sm:$0xff]
  %v3589 = vld [vmem:[%s1 + $0x808] sm:$0xff]
  %v3590 = vld [vmem:[%s1 + $0x810] sm:$0xff]
  %v3591 = vld [vmem:[%s1 + $0x818] sm:$0xff]
  %v3592 = vld [vmem:[%s1 + $0x820] sm:$0xff]
  %v3593 = vld [vmem:[%s1 + $0x828] sm:$0xff]
  %v3594 = vld [vmem:[%s1 + $0x830] sm:$0xff]
  %v3595 = vld [vmem:[%s1 + $0x838] sm:$0xff]
  %v3596 = vld [vmem:[%s1 + $0x840] sm:$0xff]
  %v3597 = vld [vmem:[%s1 + $0x848] sm:$0xff]
  %v3598 = vld [vmem:[%s1 + $0x850] sm:$0xff]
  %v3599 = vld [vmem:[%s1 + $0x858] sm:$0xff]
  %v3600 = vld [vmem:[%s1 + $0x860] sm:$0xff]
  %v3601 = vld [vmem:[%s1 + $0x868] sm:$0xff]
  %v3602 = vld [vmem:[%s1 + $0x870] sm:$0xff]
  %v3603 = vld [vmem:[%s1 + $0x878] sm:$0xff]
  %v3604 = vld [vmem:[%s1 + $0x880] sm:$0xff]
  %v3605 = vld [vmem:[%s1 + $0x888] sm:$0xff]
  %v3606 = vld [vmem:[%s1 + $0x890] sm:$0xff]
  %v3607 = vld [vmem:[%s1 + $0x898] sm:$0xff]
  %v3608 = vld [vmem:[%s1 + $0x8a0] sm:$0xff]
  %v3609 = vld [vmem:[%s1 + $0x8a8] sm:$0xff]
  %v3610 = vld [vmem:[%s1 + $0x8b0] sm:$0xff]
  %v3611 = vld [vmem:[%s1 + $0x8b8] sm:$0xff]
  %v3612 = vld [vmem:[%s1 + $0x8c0] sm:$0xff]
  %v3613 = vld [vmem:[%s1 + $0x8c8] sm:$0xff]
  %v3614 = vld [vmem:[%s1 + $0x8d0] sm:$0xff]
  %v3615 = vld [vmem:[%s1 + $0x8d8] sm:$0xff]
  %v3616 = vld [vmem:[%s1 + $0x8e0] sm:$0xff]
  %v3617 = vld [vmem:[%s1 + $0x8e8] sm:$0xff]
  %v3618 = vld [vmem:[%s1 + $0x8f0] sm:$0xff]
  %v3619 = vld [vmem:[%s1 + $0x8f8] sm:$0xff]
  %v3620 = vld [vmem:[%s1 + $0x900] sm:$0xff]
  %v3621 = vld [vmem:[%s1 + $0x908] sm:$0xff]
  %v3622 = vld [vmem:[%s1 + $0x910] sm:$0xff]
  %v3623 = vld [vmem:[%s1 + $0x918] sm:$0xff]
  %v3624 = vld [vmem:[%s1 + $0x920] sm:$0xff]
  %v3625 = vld [vmem:[%s1 + $0x928] sm:$0xff]
  %v3626 = vld [vmem:[%s1 + $0x930] sm:$0xff]
  %v3627 = vld [vmem:[%s1 + $0x938] sm:$0xff]
  %v3628 = vld [vmem:[%s1 + $0x940] sm:$0xff]
  %v3629 = vld [vmem:[%s1 + $0x948] sm:$0xff]
  %v3630 = vld [vmem:[%s1 + $0x950] sm:$0xff]
  %v3631 = vld [vmem:[%s1 + $0x958] sm:$0xff]
  %v3632 = vld [vmem:[%s1 + $0x960] sm:$0xff]
  %v3633 = vld [vmem:[%s1 + $0x968] sm:$0xff]
  %v3634 = vld [vmem:[%s1 + $0x970] sm:$0xff]
  %v3635 = vld [vmem:[%s1 + $0x978] sm:$0xff]
  %v3636 = vld [vmem:[%s1 + $0x980] sm:$0xff]
  %v3637 = vld [vmem:[%s1 + $0x988] sm:$0xff]
  %v3638 = vld [vmem:[%s1 + $0x990] sm:$0xff]
  %v3639 = vld [vmem:[%s1 + $0x998] sm:$0xff]
  %v3640 = vld [vmem:[%s1 + $0x9a0] sm:$0xff]
  %v3641 = vld [vmem:[%s1 + $0x9a8] sm:$0xff]
  %v3642 = vld [vmem:[%s1 + $0x9b0] sm:$0xff]
  %v3643 = vld [vmem:[%s1 + $0x9b8] sm:$0xff]
  %v3644 = vld [vmem:[%s1 + $0x9c0] sm:$0xff]
  %v3645 = vld [vmem:[%s1 + $0x9c8] sm:$0xff]
  %v3646 = vld [vmem:[%s1 + $0x9d0] sm:$0xff]
  %v3647 = vld [vmem:[%s1 + $0x9d8] sm:$0xff]
  %v3648 = vld [vmem:[%s1 + $0x9e0] sm:$0xff]
  %v3649 = vld [vmem:[%s1 + $0x9e8] sm:$0xff]
  %v3650 = vld [vmem:[%s1 + $0x9f0] sm:$0xff]
  %v3651 = vld [vmem:[%s1 + $0x9f8] sm:$0xff]
  %v3652 = vld [vmem:[%s1 + $0xa00] sm:$0xff]
  %v3653 = vld [vmem:[%s1 + $0xa08] sm:$0xff]
  %v3654 = vld [vmem:[%s1 + $0xa10] sm:$0xff]
  %v3655 = vld [vmem:[%s1 + $0xa18] sm:$0xff]
  %v3656 = vld [vmem:[%s1 + $0xa20] sm:$0xff]
  %v3657 = vld [vmem:[%s1 + $0xa28] sm:$0xff]
  %v3658 = vld [vmem:[%s1 + $0xa30] sm:$0xff]
  %v3659 = vld [vmem:[%s1 + $0xa38] sm:$0xff]
  %v3660 = vld [vmem:[%s1 + $0xa40] sm:$0xff]
  %v3661 = vld [vmem:[%s1 + $0xa48] sm:$0xff]
  %v3662 = vld [vmem:[%s1 + $0xa50] sm:$0xff]
  %v3663 = vld [vmem:[%s1 + $0xa58] sm:$0xff]
  %v3664 = vld [vmem:[%s1 + $0xa60] sm:$0xff]
  %v3665 = vld [vmem:[%s1 + $0xa68] sm:$0xff]
  %v3666 = vld [vmem:[%s1 + $0xa70] sm:$0xff]
  %v3667 = vld [vmem:[%s1 + $0xa78] sm:$0xff]
  %v3668 = vld [vmem:[%s1 + $0xa80] sm:$0xff]
  %v3669 = vld [vmem:[%s1 + $0xa88] sm:$0xff]
  %v3670 = vld [vmem:[%s1 + $0xa90] sm:$0xff]
  %v3671 = vld [vmem:[%s1 + $0xa98] sm:$0xff]
  %v3672 = vld [vmem:[%s1 + $0xaa0] sm:$0xff]
  %v3673 = vld [vmem:[%s1 + $0xaa8] sm:$0xff]
  %v3674 = vld [vmem:[%s1 + $0xab0] sm:$0xff]
  %v3675 = vld [vmem:[%s1 + $0xab8] sm:$0xff]
  %v3676 = vld [vmem:[%s1 + $0xac0] sm:$0xff]
  %v3677 = vld [vmem:[%s1 + $0xac8] sm:$0xff]
  %v3678 = vld [vmem:[%s1 + $0xad0] sm:$0xff]
  %v3679 = vld [vmem:[%s1 + $0xad8] sm:$0xff]
  %v3680 = vld [vmem:[%s1 + $0xae0] sm:$0xff]
  %v3681 = vld [vmem:[%s1 + $0xae8] sm:$0xff]
  %v3682 = vld [vmem:[%s1 + $0xaf0] sm:$0xff]
  %v3683 = vld [vmem:[%s1 + $0xaf8] sm:$0xff]
  %v3684 = vld [vmem:[%s3] sm:$0xff]
  %v3685 = vld [vmem:[%s3 + $0x8] sm:$0xff]
  %v3686 = vld [vmem:[%s3 + $0x10] sm:$0xff]
  %v3687 = vld [vmem:[%s3 + $0x18] sm:$0xff]
  %v3688 = vld [vmem:[%s3 + $0x20] sm:$0xff]
  %v3689 = vld [vmem:[%s3 + $0x28] sm:$0xff]
  %v3690 = vld [vmem:[%s3 + $0x30] sm:$0xff]
  %v3691 = vld [vmem:[%s3 + $0x38] sm:$0xff]
  %v3692 = vld [vmem:[%s3 + $0x40] sm:$0xff]
  %v3693 = vld [vmem:[%s3 + $0x48] sm:$0xff]
  %v3694 = vld [vmem:[%s3 + $0x50] sm:$0xff]
  %v3695 = vld [vmem:[%s3 + $0x58] sm:$0xff]
  %v3696 = vld [vmem:[%s3 + $0x60] sm:$0xff]
  %v3697 = vld [vmem:[%s3 + $0x68] sm:$0xff]
  %v3698 = vld [vmem:[%s3 + $0x70] sm:$0xff]
  %v3699 = vld [vmem:[%s3 + $0x78] sm:$0xff]
  %3701 = vset.pattern.permute.xlu0 0
  %3702 = vperm.xlu0 %3701, %v3684
  %v3703 = vpop.permute.xlu0 %3702
  %3706 = vset.pattern.permute.xlu0 0
  %3707 = vperm.xlu0 %3706, %v3685
  %v3708 = vpop.permute.xlu0 %3707
  %3711 = vset.pattern.permute.xlu0 0
  %3712 = vperm.xlu0 %3711, %v3686
  %v3713 = vpop.permute.xlu0 %3712
  %3716 = vset.pattern.permute.xlu0 0
  %3717 = vperm.xlu0 %3716, %v3687
  %v3718 = vpop.permute.xlu0 %3717
  %3721 = vset.pattern.permute.xlu0 0
  %3722 = vperm.xlu0 %3721, %v3688
  %v3723 = vpop.permute.xlu0 %3722
  %3726 = vset.pattern.permute.xlu0 0
  %3727 = vperm.xlu0 %3726, %v3689
  %v3728 = vpop.permute.xlu0 %3727
  %3731 = vset.pattern.permute.xlu0 0
  %3732 = vperm.xlu0 %3731, %v3690
  %v3733 = vpop.permute.xlu0 %3732
  %3736 = vset.pattern.permute.xlu0 0
  %3737 = vperm.xlu0 %3736, %v3691
  %v3738 = vpop.permute.xlu0 %3737
  %3741 = vset.pattern.permute.xlu0 0
  %3742 = vperm.xlu0 %3741, %v3692
  %v3743 = vpop.permute.xlu0 %3742
  %3746 = vset.pattern.permute.xlu0 0
  %3747 = vperm.xlu0 %3746, %v3693
  %v3748 = vpop.permute.xlu0 %3747
  %3751 = vset.pattern.permute.xlu0 0
  %3752 = vperm.xlu0 %3751, %v3694
  %v3753 = vpop.permute.xlu0 %3752
  %3756 = vset.pattern.permute.xlu0 0
  %3757 = vperm.xlu0 %3756, %v3695
  %v3758 = vpop.permute.xlu0 %3757
  %3761 = vset.pattern.permute.xlu0 0
  %3762 = vperm.xlu0 %3761, %v3696
  %v3763 = vpop.permute.xlu0 %3762
  %3766 = vset.pattern.permute.xlu0 0
  %3767 = vperm.xlu0 %3766, %v3697
  %v3768 = vpop.permute.xlu0 %3767
  %3771 = vset.pattern.permute.xlu0 0
  %3772 = vperm.xlu0 %3771, %v3698
  %v3773 = vpop.permute.xlu0 %3772
  %3776 = vset.pattern.permute.xlu0 0
  %3777 = vperm.xlu0 %3776, %v3699
  %v3778 = vpop.permute.xlu0 %3777
  %v3796 = vunpack.c.l.b16 %v3332
  %v3797 = vunpack.c.h.b16 %v3332
  %v3798 = vunpack.c.l.b16 %v3333
  %v3799 = vunpack.c.h.b16 %v3333
  %v3800 = vunpack.c.l.b16 %v3334
  %v3801 = vunpack.c.h.b16 %v3334
  %v3802 = vunpack.c.l.b16 %v3335
  %v3803 = vunpack.c.h.b16 %v3335
  %v3804 = vunpack.c.l.b16 %v3336
  %v3805 = vunpack.c.h.b16 %v3336
  %v3806 = vunpack.c.l.b16 %v3337
  %v3807 = vunpack.c.h.b16 %v3337
  %v3808 = vunpack.c.l.b16 %v3338
  %v3809 = vunpack.c.h.b16 %v3338
  %v3810 = vunpack.c.l.b16 %v3339
  %v3811 = vunpack.c.h.b16 %v3339
  %v3812 = vunpack.c.l.b16 %v3340
  %v3813 = vunpack.c.h.b16 %v3340
  %v3814 = vunpack.c.l.b16 %v3341
  %v3815 = vunpack.c.h.b16 %v3341
  %v3816 = vunpack.c.l.b16 %v3342
  %v3817 = vunpack.c.h.b16 %v3342
  %v3818 = vunpack.c.l.b16 %v3343
  %v3819 = vunpack.c.h.b16 %v3343
  %v3820 = vunpack.c.l.b16 %v3344
  %v3821 = vunpack.c.h.b16 %v3344
  %v3822 = vunpack.c.l.b16 %v3345
  %v3823 = vunpack.c.h.b16 %v3345
  %v3824 = vunpack.c.l.b16 %v3346
  %v3825 = vunpack.c.h.b16 %v3346
  %v3826 = vunpack.c.l.b16 %v3347
  %v3827 = vunpack.c.h.b16 %v3347
  %v3828 = vpack.c.b16 %v3798, %v3796
  %v3829 = vpack.c.b16 %v3799, %v3797
  %v3830 = vpack.c.b16 %v3802, %v3800
  %v3831 = vpack.c.b16 %v3803, %v3801
  %v3832 = vpack.c.b16 %v3806, %v3804
  %v3833 = vpack.c.b16 %v3807, %v3805
  %v3834 = vpack.c.b16 %v3810, %v3808
  %v3835 = vpack.c.b16 %v3811, %v3809
  %v3836 = vpack.c.b16 %v3814, %v3812
  %v3837 = vpack.c.b16 %v3815, %v3813
  %v3838 = vpack.c.b16 %v3818, %v3816
  %v3839 = vpack.c.b16 %v3819, %v3817
  %v3840 = vpack.c.b16 %v3822, %v3820
  %v3841 = vpack.c.b16 %v3823, %v3821
  %v3842 = vpack.c.b16 %v3826, %v3824
  %v3843 = vpack.c.b16 %v3827, %v3825
  %vm3852 = vcmask 719872
  %v3854 = vsel %vm3852, %v3829, 0
  %v3857 = vsel %vm3852, %v3831, 0
  %v3860 = vsel %vm3852, %v3833, 0
  %v3863 = vsel %vm3852, %v3835, 0
  %v3866 = vsel %vm3852, %v3837, 0
  %v3869 = vsel %vm3852, %v3839, 0
  %v3872 = vsel %vm3852, %v3841, 0
  %v3875 = vsel %vm3852, %v3843, 0
  %v3877 = vsel %vm3243, %v2807, 0
  %3879 = vmatpush.bf16.msra.mxu0 %v3012
  %3880 = vmatpush.bf16.msra.mxu0 %v3011
  %3881 = vmatpush.bf16.msra.mxu0 %v3010
  %3882 = vmatpush.bf16.msra.mxu0 %v3246
  %3883 = vmatpush.bf16.msra.mxu0 %v2796
  %3884 = vmatpush.bf16.msra.mxu0 %v2795
  %3885 = vmatpush.bf16.msra.mxu0 %v2794
  %3886 = vmatpush.bf16.msra.mxu0 %v2793
  %3887 = vmatmul.bf16.gmra.mxu0 %v3828
  %v3888 = vpop.f32.mrf.mxu0
  %v3889 = vadd.f32 %v3703, %v3888
  %v3890 = vpop.f32.mrf.mxu0
  %v3891 = vadd.f32 %v3708, %v3890
  %3892 = vmatmul.bf16.gmra.mxu0 %v3830
  %v3893 = vpop.f32.mrf.mxu0
  %v3894 = vadd.f32 %v3713, %v3893
  %v3895 = vpop.f32.mrf.mxu0
  %v3896 = vadd.f32 %v3718, %v3895
  %3897 = vmatmul.bf16.gmra.mxu0 %v3832
  %v3898 = vpop.f32.mrf.mxu0
  %v3899 = vadd.f32 %v3723, %v3898
  %v3900 = vpop.f32.mrf.mxu0
  %v3901 = vadd.f32 %v3728, %v3900
  %3902 = vmatmul.bf16.gmra.mxu0 %v3834
  %v3903 = vpop.f32.mrf.mxu0
  %v3904 = vadd.f32 %v3733, %v3903
  %v3905 = vpop.f32.mrf.mxu0
  %v3906 = vadd.f32 %v3738, %v3905
  %3907 = vmatmul.bf16.gmra.mxu0 %v3836
  %v3908 = vpop.f32.mrf.mxu0
  %v3909 = vadd.f32 %v3743, %v3908
  %v3910 = vpop.f32.mrf.mxu0
  %v3911 = vadd.f32 %v3748, %v3910
  %3912 = vmatmul.bf16.gmra.mxu0 %v3838
  %v3913 = vpop.f32.mrf.mxu0
  %v3914 = vadd.f32 %v3753, %v3913
  %v3915 = vpop.f32.mrf.mxu0
  %v3916 = vadd.f32 %v3758, %v3915
  %3917 = vmatmul.bf16.gmra.mxu0 %v3840
  %v3918 = vpop.f32.mrf.mxu0
  %v3919 = vadd.f32 %v3763, %v3918
  %v3920 = vpop.f32.mrf.mxu0
  %v3921 = vadd.f32 %v3768, %v3920
  %3922 = vmatmul.bf16.gmra.mxu0 %v3842
  %v3923 = vpop.f32.mrf.mxu0
  %v3924 = vadd.f32 %v3773, %v3923
  %v3925 = vpop.f32.mrf.mxu0
  %v3926 = vadd.f32 %v3778, %v3925
  %3927 = vdwg.mxu0
  %3928 = vmatpush.bf16.msra.mxu0 0
  %3929 = vmatpush.bf16.msra.mxu0 0
  %3930 = vmatpush.bf16.msra.mxu0 %v3877
  %3931 = vmatpush.bf16.msra.mxu0 %v2806
  %3932 = vmatpush.bf16.msra.mxu0 %v2805
  %3933 = vmatpush.bf16.msra.mxu0 %v2804
  %3934 = vmatpush.bf16.msra.mxu0 %v2803
  %3935 = vmatpush.bf16.msra.mxu0 %v3013
  %3936 = vmatmul.bf16.gmra.mxu0 %v3854
  %v3937 = vpop.f32.mrf.mxu0
  %v3938 = vadd.f32 %v3889, %v3937
  %v3939 = vpop.f32.mrf.mxu0
  %v3940 = vadd.f32 %v3891, %v3939
  %3941 = vmatmul.bf16.gmra.mxu0 %v3857
  %v3942 = vpop.f32.mrf.mxu0
  %v3943 = vadd.f32 %v3894, %v3942
  %v3944 = vpop.f32.mrf.mxu0
  %v3945 = vadd.f32 %v3896, %v3944
  %3946 = vmatmul.bf16.gmra.mxu0 %v3860
  %v3947 = vpop.f32.mrf.mxu0
  %v3948 = vadd.f32 %v3899, %v3947
  %v3949 = vpop.f32.mrf.mxu0
  %v3950 = vadd.f32 %v3901, %v3949
  %3951 = vmatmul.bf16.gmra.mxu0 %v3863
  %v3952 = vpop.f32.mrf.mxu0
  %v3953 = vadd.f32 %v3904, %v3952
  %v3954 = vpop.f32.mrf.mxu0
  %v3955 = vadd.f32 %v3906, %v3954
  %3956 = vmatmul.bf16.gmra.mxu0 %v3866
  %v3957 = vpop.f32.mrf.mxu0
  %v3958 = vadd.f32 %v3909, %v3957
  %v3959 = vpop.f32.mrf.mxu0
  %v3960 = vadd.f32 %v3911, %v3959
  %3961 = vmatmul.bf16.gmra.mxu0 %v3869
  %v3962 = vpop.f32.mrf.mxu0
  %v3963 = vadd.f32 %v3914, %v3962
  %v3964 = vpop.f32.mrf.mxu0
  %v3965 = vadd.f32 %v3916, %v3964
  %3966 = vmatmul.bf16.gmra.mxu0 %v3872
  %v3967 = vpop.f32.mrf.mxu0
  %v3968 = vadd.f32 %v3919, %v3967
  %v3969 = vpop.f32.mrf.mxu0
  %v3970 = vadd.f32 %v3921, %v3969
  %3971 = vmatmul.bf16.gmra.mxu0 %v3875
  %v3972 = vpop.f32.mrf.mxu0
  %v3973 = vadd.f32 %v3924, %v3972
  %v3974 = vpop.f32.mrf.mxu0
  %v3975 = vadd.f32 %v3926, %v3974
  %3976 = vdwg.mxu0
  %v3993 = vunpack.c.l.b16 %v3348
  %v3994 = vunpack.c.h.b16 %v3348
  %v3995 = vunpack.c.l.b16 %v3349
  %v3996 = vunpack.c.h.b16 %v3349
  %v3997 = vunpack.c.l.b16 %v3350
  %v3998 = vunpack.c.h.b16 %v3350
  %v3999 = vunpack.c.l.b16 %v3351
  %v4000 = vunpack.c.h.b16 %v3351
  %v4001 = vunpack.c.l.b16 %v3352
  %v4002 = vunpack.c.h.b16 %v3352
  %v4003 = vunpack.c.l.b16 %v3353
  %v4004 = vunpack.c.h.b16 %v3353
  %v4005 = vunpack.c.l.b16 %v3354
  %v4006 = vunpack.c.h.b16 %v3354
  %v4007 = vunpack.c.l.b16 %v3355
  %v4008 = vunpack.c.h.b16 %v3355
  %v4009 = vunpack.c.l.b16 %v3356
  %v4010 = vunpack.c.h.b16 %v3356
  %v4011 = vunpack.c.l.b16 %v3357
  %v4012 = vunpack.c.h.b16 %v3357
  %v4013 = vunpack.c.l.b16 %v3358
  %v4014 = vunpack.c.h.b16 %v3358
  %v4015 = vunpack.c.l.b16 %v3359
  %v4016 = vunpack.c.h.b16 %v3359
  %v4017 = vunpack.c.l.b16 %v3360
  %v4018 = vunpack.c.h.b16 %v3360
  %v4019 = vunpack.c.l.b16 %v3361
  %v4020 = vunpack.c.h.b16 %v3361
  %v4021 = vunpack.c.l.b16 %v3362
  %v4022 = vunpack.c.h.b16 %v3362
  %v4023 = vunpack.c.l.b16 %v3363
  %v4024 = vunpack.c.h.b16 %v3363
  %v4025 = vpack.c.b16 %v3995, %v3993
  %v4026 = vpack.c.b16 %v3996, %v3994
  %v4027 = vpack.c.b16 %v3999, %v3997
  %v4028 = vpack.c.b16 %v4000, %v3998
  %v4029 = vpack.c.b16 %v4003, %v4001
  %v4030 = vpack.c.b16 %v4004, %v4002
  %v4031 = vpack.c.b16 %v4007, %v4005
  %v4032 = vpack.c.b16 %v4008, %v4006
  %v4033 = vpack.c.b16 %v4011, %v4009
  %v4034 = vpack.c.b16 %v4012, %v4010
  %v4035 = vpack.c.b16 %v4015, %v4013
  %v4036 = vpack.c.b16 %v4016, %v4014
  %v4037 = vpack.c.b16 %v4019, %v4017
  %v4038 = vpack.c.b16 %v4020, %v4018
  %v4039 = vpack.c.b16 %v4023, %v4021
  %v4040 = vpack.c.b16 %v4024, %v4022
  %v4050 = vsel %vm3852, %v4026, 0
  %v4053 = vsel %vm3852, %v4028, 0
  %v4056 = vsel %vm3852, %v4030, 0
  %v4059 = vsel %vm3852, %v4032, 0
  %v4062 = vsel %vm3852, %v4034, 0
  %v4065 = vsel %vm3852, %v4036, 0
  %v4068 = vsel %vm3852, %v4038, 0
  %v4071 = vsel %vm3852, %v4040, 0
  %v4073 = vsel %vm3243, %v2812, 0
  %4075 = vmatpush.bf16.msra.mxu0 %v3017
  %4076 = vmatpush.bf16.msra.mxu0 %v3016
  %4077 = vmatpush.bf16.msra.mxu0 %v3015
  %4078 = vmatpush.bf16.msra.mxu0 %v3250
  %4079 = vmatpush.bf16.msra.mxu0 %v2801
  %4080 = vmatpush.bf16.msra.mxu0 %v2800
  %4081 = vmatpush.bf16.msra.mxu0 %v2799
  %4082 = vmatpush.bf16.msra.mxu0 %v2798
  %4083 = vmatmul.bf16.gmra.mxu0 %v4025
  %v4084 = vpop.f32.mrf.mxu0
  %v4085 = vadd.f32 %v3703, %v4084
  %v4086 = vpop.f32.mrf.mxu0
  %v4087 = vadd.f32 %v3708, %v4086
  %4088 = vmatmul.bf16.gmra.mxu0 %v4027
  %v4089 = vpop.f32.mrf.mxu0
  %v4090 = vadd.f32 %v3713, %v4089
  %v4091 = vpop.f32.mrf.mxu0
  %v4092 = vadd.f32 %v3718, %v4091
  %4093 = vmatmul.bf16.gmra.mxu0 %v4029
  %v4094 = vpop.f32.mrf.mxu0
  %v4095 = vadd.f32 %v3723, %v4094
  %v4096 = vpop.f32.mrf.mxu0
  %v4097 = vadd.f32 %v3728, %v4096
  %4098 = vmatmul.bf16.gmra.mxu0 %v4031
  %v4099 = vpop.f32.mrf.mxu0
  %v4100 = vadd.f32 %v3733, %v4099
  %v4101 = vpop.f32.mrf.mxu0
  %v4102 = vadd.f32 %v3738, %v4101
  %4103 = vmatmul.bf16.gmra.mxu0 %v4033
  %v4104 = vpop.f32.mrf.mxu0
  %v4105 = vadd.f32 %v3743, %v4104
  %v4106 = vpop.f32.mrf.mxu0
  %v4107 = vadd.f32 %v3748, %v4106
  %4108 = vmatmul.bf16.gmra.mxu0 %v4035
  %v4109 = vpop.f32.mrf.mxu0
  %v4110 = vadd.f32 %v3753, %v4109
  %v4111 = vpop.f32.mrf.mxu0
  %v4112 = vadd.f32 %v3758, %v4111
  %4113 = vmatmul.bf16.gmra.mxu0 %v4037
  %v4114 = vpop.f32.mrf.mxu0
  %v4115 = vadd.f32 %v3763, %v4114
  %v4116 = vpop.f32.mrf.mxu0
  %v4117 = vadd.f32 %v3768, %v4116
  %4118 = vmatmul.bf16.gmra.mxu0 %v4039
  %v4119 = vpop.f32.mrf.mxu0
  %v4120 = vadd.f32 %v3773, %v4119
  %v4121 = vpop.f32.mrf.mxu0
  %v4122 = vadd.f32 %v3778, %v4121
  %4123 = vdwg.mxu0
  %4124 = vmatpush.bf16.msra.mxu0 0
  %4125 = vmatpush.bf16.msra.mxu0 0
  %4126 = vmatpush.bf16.msra.mxu0 %v4073
  %4127 = vmatpush.bf16.msra.mxu0 %v2811
  %4128 = vmatpush.bf16.msra.mxu0 %v2810
  %4129 = vmatpush.bf16.msra.mxu0 %v2809
  %4130 = vmatpush.bf16.msra.mxu0 %v2808
  %4131 = vmatpush.bf16.msra.mxu0 %v3018
  %4132 = vmatmul.bf16.gmra.mxu0 %v4050
  %v4133 = vpop.f32.mrf.mxu0
  %v4134 = vadd.f32 %v4085, %v4133
  %v4135 = vpop.f32.mrf.mxu0
  %v4136 = vadd.f32 %v4087, %v4135
  %4137 = vmatmul.bf16.gmra.mxu0 %v4053
  %v4138 = vpop.f32.mrf.mxu0
  %v4139 = vadd.f32 %v4090, %v4138
  %v4140 = vpop.f32.mrf.mxu0
  %v4141 = vadd.f32 %v4092, %v4140
  %4142 = vmatmul.bf16.gmra.mxu0 %v4056
  %v4143 = vpop.f32.mrf.mxu0
  %v4144 = vadd.f32 %v4095, %v4143
  %v4145 = vpop.f32.mrf.mxu0
  %v4146 = vadd.f32 %v4097, %v4145
  %4147 = vmatmul.bf16.gmra.mxu0 %v4059
  %v4148 = vpop.f32.mrf.mxu0
  %v4149 = vadd.f32 %v4100, %v4148
  %v4150 = vpop.f32.mrf.mxu0
  %v4151 = vadd.f32 %v4102, %v4150
  %4152 = vmatmul.bf16.gmra.mxu0 %v4062
  %v4153 = vpop.f32.mrf.mxu0
  %v4154 = vadd.f32 %v4105, %v4153
  %v4155 = vpop.f32.mrf.mxu0
  %v4156 = vadd.f32 %v4107, %v4155
  %4157 = vmatmul.bf16.gmra.mxu0 %v4065
  %v4158 = vpop.f32.mrf.mxu0
  %v4159 = vadd.f32 %v4110, %v4158
  %v4160 = vpop.f32.mrf.mxu0
  %v4161 = vadd.f32 %v4112, %v4160
  %4162 = vmatmul.bf16.gmra.mxu0 %v4068
  %v4163 = vpop.f32.mrf.mxu0
  %v4164 = vadd.f32 %v4115, %v4163
  %v4165 = vpop.f32.mrf.mxu0
  %v4166 = vadd.f32 %v4117, %v4165
  %4167 = vmatmul.bf16.gmra.mxu0 %v4071
  %v4168 = vpop.f32.mrf.mxu0
  %v4169 = vadd.f32 %v4120, %v4168
  %v4170 = vpop.f32.mrf.mxu0
  %v4171 = vadd.f32 %v4122, %v4170
  %4172 = vdwg.mxu0
  %v4189 = vunpack.c.l.b16 %v3364
  %v4190 = vunpack.c.h.b16 %v3364
  %v4191 = vunpack.c.l.b16 %v3365
  %v4192 = vunpack.c.h.b16 %v3365
  %v4193 = vunpack.c.l.b16 %v3366
  %v4194 = vunpack.c.h.b16 %v3366
  %v4195 = vunpack.c.l.b16 %v3367
  %v4196 = vunpack.c.h.b16 %v3367
  %v4197 = vunpack.c.l.b16 %v3368
  %v4198 = vunpack.c.h.b16 %v3368
  %v4199 = vunpack.c.l.b16 %v3369
  %v4200 = vunpack.c.h.b16 %v3369
  %v4201 = vunpack.c.l.b16 %v3370
  %v4202 = vunpack.c.h.b16 %v3370
  %v4203 = vunpack.c.l.b16 %v3371
  %v4204 = vunpack.c.h.b16 %v3371
  %v4205 = vunpack.c.l.b16 %v3372
  %v4206 = vunpack.c.h.b16 %v3372
  %v4207 = vunpack.c.l.b16 %v3373
  %v4208 = vunpack.c.h.b16 %v3373
  %v4209 = vunpack.c.l.b16 %v3374
  %v4210 = vunpack.c.h.b16 %v3374
  %v4211 = vunpack.c.l.b16 %v3375
  %v4212 = vunpack.c.h.b16 %v3375
  %v4213 = vunpack.c.l.b16 %v3376
  %v4214 = vunpack.c.h.b16 %v3376
  %v4215 = vunpack.c.l.b16 %v3377
  %v4216 = vunpack.c.h.b16 %v3377
  %v4217 = vunpack.c.l.b16 %v3378
  %v4218 = vunpack.c.h.b16 %v3378
  %v4219 = vunpack.c.l.b16 %v3379
  %v4220 = vunpack.c.h.b16 %v3379
  %v4221 = vpack.c.b16 %v4191, %v4189
  %v4222 = vpack.c.b16 %v4192, %v4190
  %v4223 = vpack.c.b16 %v4195, %v4193
  %v4224 = vpack.c.b16 %v4196, %v4194
  %v4225 = vpack.c.b16 %v4199, %v4197
  %v4226 = vpack.c.b16 %v4200, %v4198
  %v4227 = vpack.c.b16 %v4203, %v4201
  %v4228 = vpack.c.b16 %v4204, %v4202
  %v4229 = vpack.c.b16 %v4207, %v4205
  %v4230 = vpack.c.b16 %v4208, %v4206
  %v4231 = vpack.c.b16 %v4211, %v4209
  %v4232 = vpack.c.b16 %v4212, %v4210
  %v4233 = vpack.c.b16 %v4215, %v4213
  %v4234 = vpack.c.b16 %v4216, %v4214
  %v4235 = vpack.c.b16 %v4219, %v4217
  %v4236 = vpack.c.b16 %v4220, %v4218
  %v4246 = vsel %vm3852, %v4222, 0
  %v4249 = vsel %vm3852, %v4224, 0
  %v4252 = vsel %vm3852, %v4226, 0
  %v4255 = vsel %vm3852, %v4228, 0
  %v4258 = vsel %vm3852, %v4230, 0
  %v4261 = vsel %vm3852, %v4232, 0
  %v4264 = vsel %vm3852, %v4234, 0
  %v4267 = vsel %vm3852, %v4236, 0
  %v4269 = vsel %vm3243, %v2817, 0
  %4271 = vmatpush.bf16.msra.mxu0 %v3022
  %4272 = vmatpush.bf16.msra.mxu0 %v3021
  %4273 = vmatpush.bf16.msra.mxu0 %v3020
  %4274 = vmatpush.bf16.msra.mxu0 %v3254
  %4275 = vmatpush.bf16.msra.mxu0 %v2806
  %4276 = vmatpush.bf16.msra.mxu0 %v2805
  %4277 = vmatpush.bf16.msra.mxu0 %v2804
  %4278 = vmatpush.bf16.msra.mxu0 %v2803
  %4279 = vmatmul.bf16.gmra.mxu0 %v4221
  %v4280 = vpop.f32.mrf.mxu0
  %v4281 = vadd.f32 %v3703, %v4280
  %v4282 = vpop.f32.mrf.mxu0
  %v4283 = vadd.f32 %v3708, %v4282
  %4284 = vmatmul.bf16.gmra.mxu0 %v4223
  %v4285 = vpop.f32.mrf.mxu0
  %v4286 = vadd.f32 %v3713, %v4285
  %v4287 = vpop.f32.mrf.mxu0
  %v4288 = vadd.f32 %v3718, %v4287
  %4289 = vmatmul.bf16.gmra.mxu0 %v4225
  %v4290 = vpop.f32.mrf.mxu0
  %v4291 = vadd.f32 %v3723, %v4290
  %v4292 = vpop.f32.mrf.mxu0
  %v4293 = vadd.f32 %v3728, %v4292
  %4294 = vmatmul.bf16.gmra.mxu0 %v4227
  %v4295 = vpop.f32.mrf.mxu0
  %v4296 = vadd.f32 %v3733, %v4295
  %v4297 = vpop.f32.mrf.mxu0
  %v4298 = vadd.f32 %v3738, %v4297
  %4299 = vmatmul.bf16.gmra.mxu0 %v4229
  %v4300 = vpop.f32.mrf.mxu0
  %v4301 = vadd.f32 %v3743, %v4300
  %v4302 = vpop.f32.mrf.mxu0
  %v4303 = vadd.f32 %v3748, %v4302
  %4304 = vmatmul.bf16.gmra.mxu0 %v4231
  %v4305 = vpop.f32.mrf.mxu0
  %v4306 = vadd.f32 %v3753, %v4305
  %v4307 = vpop.f32.mrf.mxu0
  %v4308 = vadd.f32 %v3758, %v4307
  %4309 = vmatmul.bf16.gmra.mxu0 %v4233
  %v4310 = vpop.f32.mrf.mxu0
  %v4311 = vadd.f32 %v3763, %v4310
  %v4312 = vpop.f32.mrf.mxu0
  %v4313 = vadd.f32 %v3768, %v4312
  %4314 = vmatmul.bf16.gmra.mxu0 %v4235
  %v4315 = vpop.f32.mrf.mxu0
  %v4316 = vadd.f32 %v3773, %v4315
  %v4317 = vpop.f32.mrf.mxu0
  %v4318 = vadd.f32 %v3778, %v4317
  %4319 = vdwg.mxu0
  %4320 = vmatpush.bf16.msra.mxu0 0
  %4321 = vmatpush.bf16.msra.mxu0 0
  %4322 = vmatpush.bf16.msra.mxu0 %v4269
  %4323 = vmatpush.bf16.msra.mxu0 %v2816
  %4324 = vmatpush.bf16.msra.mxu0 %v2815
  %4325 = vmatpush.bf16.msra.mxu0 %v2814
  %4326 = vmatpush.bf16.msra.mxu0 %v2813
  %4327 = vmatpush.bf16.msra.mxu0 %v3023
  %4328 = vmatmul.bf16.gmra.mxu0 %v4246
  %v4329 = vpop.f32.mrf.mxu0
  %v4330 = vadd.f32 %v4281, %v4329
  %v4331 = vpop.f32.mrf.mxu0
  %v4332 = vadd.f32 %v4283, %v4331
  %4333 = vmatmul.bf16.gmra.mxu0 %v4249
  %v4334 = vpop.f32.mrf.mxu0
  %v4335 = vadd.f32 %v4286, %v4334
  %v4336 = vpop.f32.mrf.mxu0
  %v4337 = vadd.f32 %v4288, %v4336
  %4338 = vmatmul.bf16.gmra.mxu0 %v4252
  %v4339 = vpop.f32.mrf.mxu0
  %v4340 = vadd.f32 %v4291, %v4339
  %v4341 = vpop.f32.mrf.mxu0
  %v4342 = vadd.f32 %v4293, %v4341
  %4343 = vmatmul.bf16.gmra.mxu0 %v4255
  %v4344 = vpop.f32.mrf.mxu0
  %v4345 = vadd.f32 %v4296, %v4344
  %v4346 = vpop.f32.mrf.mxu0
  %v4347 = vadd.f32 %v4298, %v4346
  %4348 = vmatmul.bf16.gmra.mxu0 %v4258
  %v4349 = vpop.f32.mrf.mxu0
  %v4350 = vadd.f32 %v4301, %v4349
  %v4351 = vpop.f32.mrf.mxu0
  %v4352 = vadd.f32 %v4303, %v4351
  %4353 = vmatmul.bf16.gmra.mxu0 %v4261
  %v4354 = vpop.f32.mrf.mxu0
  %v4355 = vadd.f32 %v4306, %v4354
  %v4356 = vpop.f32.mrf.mxu0
  %v4357 = vadd.f32 %v4308, %v4356
  %4358 = vmatmul.bf16.gmra.mxu0 %v4264
  %v4359 = vpop.f32.mrf.mxu0
  %v4360 = vadd.f32 %v4311, %v4359
  %v4361 = vpop.f32.mrf.mxu0
  %v4362 = vadd.f32 %v4313, %v4361
  %4363 = vmatmul.bf16.gmra.mxu0 %v4267
  %v4364 = vpop.f32.mrf.mxu0
  %v4365 = vadd.f32 %v4316, %v4364
  %v4366 = vpop.f32.mrf.mxu0
  %v4367 = vadd.f32 %v4318, %v4366
  %4368 = vdwg.mxu0
  %v4385 = vunpack.c.l.b16 %v3380
  %v4386 = vunpack.c.h.b16 %v3380
  %v4387 = vunpack.c.l.b16 %v3381
  %v4388 = vunpack.c.h.b16 %v3381
  %v4389 = vunpack.c.l.b16 %v3382
  %v4390 = vunpack.c.h.b16 %v3382
  %v4391 = vunpack.c.l.b16 %v3383
  %v4392 = vunpack.c.h.b16 %v3383
  %v4393 = vunpack.c.l.b16 %v3384
  %v4394 = vunpack.c.h.b16 %v3384
  %v4395 = vunpack.c.l.b16 %v3385
  %v4396 = vunpack.c.h.b16 %v3385
  %v4397 = vunpack.c.l.b16 %v3386
  %v4398 = vunpack.c.h.b16 %v3386
  %v4399 = vunpack.c.l.b16 %v3387
  %v4400 = vunpack.c.h.b16 %v3387
  %v4401 = vunpack.c.l.b16 %v3388
  %v4402 = vunpack.c.h.b16 %v3388
  %v4403 = vunpack.c.l.b16 %v3389
  %v4404 = vunpack.c.h.b16 %v3389
  %v4405 = vunpack.c.l.b16 %v3390
  %v4406 = vunpack.c.h.b16 %v3390
  %v4407 = vunpack.c.l.b16 %v3391
  %v4408 = vunpack.c.h.b16 %v3391
  %v4409 = vunpack.c.l.b16 %v3392
  %v4410 = vunpack.c.h.b16 %v3392
  %v4411 = vunpack.c.l.b16 %v3393
  %v4412 = vunpack.c.h.b16 %v3393
  %v4413 = vunpack.c.l.b16 %v3394
  %v4414 = vunpack.c.h.b16 %v3394
  %v4415 = vunpack.c.l.b16 %v3395
  %v4416 = vunpack.c.h.b16 %v3395
  %v4417 = vpack.c.b16 %v4387, %v4385
  %v4418 = vpack.c.b16 %v4388, %v4386
  %v4419 = vpack.c.b16 %v4391, %v4389
  %v4420 = vpack.c.b16 %v4392, %v4390
  %v4421 = vpack.c.b16 %v4395, %v4393
  %v4422 = vpack.c.b16 %v4396, %v4394
  %v4423 = vpack.c.b16 %v4399, %v4397
  %v4424 = vpack.c.b16 %v4400, %v4398
  %v4425 = vpack.c.b16 %v4403, %v4401
  %v4426 = vpack.c.b16 %v4404, %v4402
  %v4427 = vpack.c.b16 %v4407, %v4405
  %v4428 = vpack.c.b16 %v4408, %v4406
  %v4429 = vpack.c.b16 %v4411, %v4409
  %v4430 = vpack.c.b16 %v4412, %v4410
  %v4431 = vpack.c.b16 %v4415, %v4413
  %v4432 = vpack.c.b16 %v4416, %v4414
  %v4442 = vsel %vm3852, %v4418, 0
  %v4445 = vsel %vm3852, %v4420, 0
  %v4448 = vsel %vm3852, %v4422, 0
  %v4451 = vsel %vm3852, %v4424, 0
  %v4454 = vsel %vm3852, %v4426, 0
  %v4457 = vsel %vm3852, %v4428, 0
  %v4460 = vsel %vm3852, %v4430, 0
  %v4463 = vsel %vm3852, %v4432, 0
  %v4465 = vsel %vm3243, %v2822, 0
  %4467 = vmatpush.bf16.msra.mxu0 %v3027
  %4468 = vmatpush.bf16.msra.mxu0 %v3026
  %4469 = vmatpush.bf16.msra.mxu0 %v3025
  %4470 = vmatpush.bf16.msra.mxu0 %v3258
  %4471 = vmatpush.bf16.msra.mxu0 %v2811
  %4472 = vmatpush.bf16.msra.mxu0 %v2810
  %4473 = vmatpush.bf16.msra.mxu0 %v2809
  %4474 = vmatpush.bf16.msra.mxu0 %v2808
  %4475 = vmatmul.bf16.gmra.mxu0 %v4417
  %v4476 = vpop.f32.mrf.mxu0
  %v4477 = vadd.f32 %v3703, %v4476
  %v4478 = vpop.f32.mrf.mxu0
  %v4479 = vadd.f32 %v3708, %v4478
  %4480 = vmatmul.bf16.gmra.mxu0 %v4419
  %v4481 = vpop.f32.mrf.mxu0
  %v4482 = vadd.f32 %v3713, %v4481
  %v4483 = vpop.f32.mrf.mxu0
  %v4484 = vadd.f32 %v3718, %v4483
  %4485 = vmatmul.bf16.gmra.mxu0 %v4421
  %v4486 = vpop.f32.mrf.mxu0
  %v4487 = vadd.f32 %v3723, %v4486
  %v4488 = vpop.f32.mrf.mxu0
  %v4489 = vadd.f32 %v3728, %v4488
  %4490 = vmatmul.bf16.gmra.mxu0 %v4423
  %v4491 = vpop.f32.mrf.mxu0
  %v4492 = vadd.f32 %v3733, %v4491
  %v4493 = vpop.f32.mrf.mxu0
  %v4494 = vadd.f32 %v3738, %v4493
  %4495 = vmatmul.bf16.gmra.mxu0 %v4425
  %v4496 = vpop.f32.mrf.mxu0
  %v4497 = vadd.f32 %v3743, %v4496
  %v4498 = vpop.f32.mrf.mxu0
  %v4499 = vadd.f32 %v3748, %v4498
  %4500 = vmatmul.bf16.gmra.mxu0 %v4427
  %v4501 = vpop.f32.mrf.mxu0
  %v4502 = vadd.f32 %v3753, %v4501
  %v4503 = vpop.f32.mrf.mxu0
  %v4504 = vadd.f32 %v3758, %v4503
  %4505 = vmatmul.bf16.gmra.mxu0 %v4429
  %v4506 = vpop.f32.mrf.mxu0
  %v4507 = vadd.f32 %v3763, %v4506
  %v4508 = vpop.f32.mrf.mxu0
  %v4509 = vadd.f32 %v3768, %v4508
  %4510 = vmatmul.bf16.gmra.mxu0 %v4431
  %v4511 = vpop.f32.mrf.mxu0
  %v4512 = vadd.f32 %v3773, %v4511
  %v4513 = vpop.f32.mrf.mxu0
  %v4514 = vadd.f32 %v3778, %v4513
  %4515 = vdwg.mxu0
  %4516 = vmatpush.bf16.msra.mxu0 0
  %4517 = vmatpush.bf16.msra.mxu0 0
  %4518 = vmatpush.bf16.msra.mxu0 %v4465
  %4519 = vmatpush.bf16.msra.mxu0 %v2821
  %4520 = vmatpush.bf16.msra.mxu0 %v2820
  %4521 = vmatpush.bf16.msra.mxu0 %v2819
  %4522 = vmatpush.bf16.msra.mxu0 %v2818
  %4523 = vmatpush.bf16.msra.mxu0 %v3028
  %4524 = vmatmul.bf16.gmra.mxu0 %v4442
  %v4525 = vpop.f32.mrf.mxu0
  %v4526 = vadd.f32 %v4477, %v4525
  %v4527 = vpop.f32.mrf.mxu0
  %v4528 = vadd.f32 %v4479, %v4527
  %4529 = vmatmul.bf16.gmra.mxu0 %v4445
  %v4530 = vpop.f32.mrf.mxu0
  %v4531 = vadd.f32 %v4482, %v4530
  %v4532 = vpop.f32.mrf.mxu0
  %v4533 = vadd.f32 %v4484, %v4532
  %4534 = vmatmul.bf16.gmra.mxu0 %v4448
  %v4535 = vpop.f32.mrf.mxu0
  %v4536 = vadd.f32 %v4487, %v4535
  %v4537 = vpop.f32.mrf.mxu0
  %v4538 = vadd.f32 %v4489, %v4537
  %4539 = vmatmul.bf16.gmra.mxu0 %v4451
  %v4540 = vpop.f32.mrf.mxu0
  %v4541 = vadd.f32 %v4492, %v4540
  %v4542 = vpop.f32.mrf.mxu0
  %v4543 = vadd.f32 %v4494, %v4542
  %4544 = vmatmul.bf16.gmra.mxu0 %v4454
  %v4545 = vpop.f32.mrf.mxu0
  %v4546 = vadd.f32 %v4497, %v4545
  %v4547 = vpop.f32.mrf.mxu0
  %v4548 = vadd.f32 %v4499, %v4547
  %4549 = vmatmul.bf16.gmra.mxu0 %v4457
  %v4550 = vpop.f32.mrf.mxu0
  %v4551 = vadd.f32 %v4502, %v4550
  %v4552 = vpop.f32.mrf.mxu0
  %v4553 = vadd.f32 %v4504, %v4552
  %4554 = vmatmul.bf16.gmra.mxu0 %v4460
  %v4555 = vpop.f32.mrf.mxu0
  %v4556 = vadd.f32 %v4507, %v4555
  %v4557 = vpop.f32.mrf.mxu0
  %v4558 = vadd.f32 %v4509, %v4557
  %4559 = vmatmul.bf16.gmra.mxu0 %v4463
  %v4560 = vpop.f32.mrf.mxu0
  %v4561 = vadd.f32 %v4512, %v4560
  %v4562 = vpop.f32.mrf.mxu0
  %v4563 = vadd.f32 %v4514, %v4562
  %4564 = vdwg.mxu0
  %v4581 = vunpack.c.l.b16 %v3396
  %v4582 = vunpack.c.h.b16 %v3396
  %v4583 = vunpack.c.l.b16 %v3397
  %v4584 = vunpack.c.h.b16 %v3397
  %v4585 = vunpack.c.l.b16 %v3398
  %v4586 = vunpack.c.h.b16 %v3398
  %v4587 = vunpack.c.l.b16 %v3399
  %v4588 = vunpack.c.h.b16 %v3399
  %v4589 = vunpack.c.l.b16 %v3400
  %v4590 = vunpack.c.h.b16 %v3400
  %v4591 = vunpack.c.l.b16 %v3401
  %v4592 = vunpack.c.h.b16 %v3401
  %v4593 = vunpack.c.l.b16 %v3402
  %v4594 = vunpack.c.h.b16 %v3402
  %v4595 = vunpack.c.l.b16 %v3403
  %v4596 = vunpack.c.h.b16 %v3403
  %v4597 = vunpack.c.l.b16 %v3404
  %v4598 = vunpack.c.h.b16 %v3404
  %v4599 = vunpack.c.l.b16 %v3405
  %v4600 = vunpack.c.h.b16 %v3405
  %v4601 = vunpack.c.l.b16 %v3406
  %v4602 = vunpack.c.h.b16 %v3406
  %v4603 = vunpack.c.l.b16 %v3407
  %v4604 = vunpack.c.h.b16 %v3407
  %v4605 = vunpack.c.l.b16 %v3408
  %v4606 = vunpack.c.h.b16 %v3408
  %v4607 = vunpack.c.l.b16 %v3409
  %v4608 = vunpack.c.h.b16 %v3409
  %v4609 = vunpack.c.l.b16 %v3410
  %v4610 = vunpack.c.h.b16 %v3410
  %v4611 = vunpack.c.l.b16 %v3411
  %v4612 = vunpack.c.h.b16 %v3411
  %v4613 = vpack.c.b16 %v4583, %v4581
  %v4614 = vpack.c.b16 %v4584, %v4582
  %v4615 = vpack.c.b16 %v4587, %v4585
  %v4616 = vpack.c.b16 %v4588, %v4586
  %v4617 = vpack.c.b16 %v4591, %v4589
  %v4618 = vpack.c.b16 %v4592, %v4590
  %v4619 = vpack.c.b16 %v4595, %v4593
  %v4620 = vpack.c.b16 %v4596, %v4594
  %v4621 = vpack.c.b16 %v4599, %v4597
  %v4622 = vpack.c.b16 %v4600, %v4598
  %v4623 = vpack.c.b16 %v4603, %v4601
  %v4624 = vpack.c.b16 %v4604, %v4602
  %v4625 = vpack.c.b16 %v4607, %v4605
  %v4626 = vpack.c.b16 %v4608, %v4606
  %v4627 = vpack.c.b16 %v4611, %v4609
  %v4628 = vpack.c.b16 %v4612, %v4610
  %v4638 = vsel %vm3852, %v4614, 0
  %v4641 = vsel %vm3852, %v4616, 0
  %v4644 = vsel %vm3852, %v4618, 0
  %v4647 = vsel %vm3852, %v4620, 0
  %v4650 = vsel %vm3852, %v4622, 0
  %v4653 = vsel %vm3852, %v4624, 0
  %v4656 = vsel %vm3852, %v4626, 0
  %v4659 = vsel %vm3852, %v4628, 0
  %v4661 = vsel %vm3243, %v2827, 0
  %4663 = vmatpush.bf16.msra.mxu0 %v3032
  %4664 = vmatpush.bf16.msra.mxu0 %v3031
  %4665 = vmatpush.bf16.msra.mxu0 %v3030
  %4666 = vmatpush.bf16.msra.mxu0 %v3262
  %4667 = vmatpush.bf16.msra.mxu0 %v2816
  %4668 = vmatpush.bf16.msra.mxu0 %v2815
  %4669 = vmatpush.bf16.msra.mxu0 %v2814
  %4670 = vmatpush.bf16.msra.mxu0 %v2813
  %4671 = vmatmul.bf16.gmra.mxu0 %v4613
  %v4672 = vpop.f32.mrf.mxu0
  %v4673 = vadd.f32 %v3703, %v4672
  %v4674 = vpop.f32.mrf.mxu0
  %v4675 = vadd.f32 %v3708, %v4674
  %4676 = vmatmul.bf16.gmra.mxu0 %v4615
  %v4677 = vpop.f32.mrf.mxu0
  %v4678 = vadd.f32 %v3713, %v4677
  %v4679 = vpop.f32.mrf.mxu0
  %v4680 = vadd.f32 %v3718, %v4679
  %4681 = vmatmul.bf16.gmra.mxu0 %v4617
  %v4682 = vpop.f32.mrf.mxu0
  %v4683 = vadd.f32 %v3723, %v4682
  %v4684 = vpop.f32.mrf.mxu0
  %v4685 = vadd.f32 %v3728, %v4684
  %4686 = vmatmul.bf16.gmra.mxu0 %v4619
  %v4687 = vpop.f32.mrf.mxu0
  %v4688 = vadd.f32 %v3733, %v4687
  %v4689 = vpop.f32.mrf.mxu0
  %v4690 = vadd.f32 %v3738, %v4689
  %4691 = vmatmul.bf16.gmra.mxu0 %v4621
  %v4692 = vpop.f32.mrf.mxu0
  %v4693 = vadd.f32 %v3743, %v4692
  %v4694 = vpop.f32.mrf.mxu0
  %v4695 = vadd.f32 %v3748, %v4694
  %4696 = vmatmul.bf16.gmra.mxu0 %v4623
  %v4697 = vpop.f32.mrf.mxu0
  %v4698 = vadd.f32 %v3753, %v4697
  %v4699 = vpop.f32.mrf.mxu0
  %v4700 = vadd.f32 %v3758, %v4699
  %4701 = vmatmul.bf16.gmra.mxu0 %v4625
  %v4702 = vpop.f32.mrf.mxu0
  %v4703 = vadd.f32 %v3763, %v4702
  %v4704 = vpop.f32.mrf.mxu0
  %v4705 = vadd.f32 %v3768, %v4704
  %4706 = vmatmul.bf16.gmra.mxu0 %v4627
  %v4707 = vpop.f32.mrf.mxu0
  %v4708 = vadd.f32 %v3773, %v4707
  %v4709 = vpop.f32.mrf.mxu0
  %v4710 = vadd.f32 %v3778, %v4709
  %4711 = vdwg.mxu0
  %4712 = vmatpush.bf16.msra.mxu0 0
  %4713 = vmatpush.bf16.msra.mxu0 0
  %4714 = vmatpush.bf16.msra.mxu0 %v4661
  %4715 = vmatpush.bf16.msra.mxu0 %v2826
  %4716 = vmatpush.bf16.msra.mxu0 %v2825
  %4717 = vmatpush.bf16.msra.mxu0 %v2824
  %4718 = vmatpush.bf16.msra.mxu0 %v2823
  %4719 = vmatpush.bf16.msra.mxu0 %v3033
  %4720 = vmatmul.bf16.gmra.mxu0 %v4638
  %v4721 = vpop.f32.mrf.mxu0
  %v4722 = vadd.f32 %v4673, %v4721
  %v4723 = vpop.f32.mrf.mxu0
  %v4724 = vadd.f32 %v4675, %v4723
  %4725 = vmatmul.bf16.gmra.mxu0 %v4641
  %v4726 = vpop.f32.mrf.mxu0
  %v4727 = vadd.f32 %v4678, %v4726
  %v4728 = vpop.f32.mrf.mxu0
  %v4729 = vadd.f32 %v4680, %v4728
  %4730 = vmatmul.bf16.gmra.mxu0 %v4644
  %v4731 = vpop.f32.mrf.mxu0
  %v4732 = vadd.f32 %v4683, %v4731
  %v4733 = vpop.f32.mrf.mxu0
  %v4734 = vadd.f32 %v4685, %v4733
  %4735 = vmatmul.bf16.gmra.mxu0 %v4647
  %v4736 = vpop.f32.mrf.mxu0
  %v4737 = vadd.f32 %v4688, %v4736
  %v4738 = vpop.f32.mrf.mxu0
  %v4739 = vadd.f32 %v4690, %v4738
  %4740 = vmatmul.bf16.gmra.mxu0 %v4650
  %v4741 = vpop.f32.mrf.mxu0
  %v4742 = vadd.f32 %v4693, %v4741
  %v4743 = vpop.f32.mrf.mxu0
  %v4744 = vadd.f32 %v4695, %v4743
  %4745 = vmatmul.bf16.gmra.mxu0 %v4653
  %v4746 = vpop.f32.mrf.mxu0
  %v4747 = vadd.f32 %v4698, %v4746
  %v4748 = vpop.f32.mrf.mxu0
  %v4749 = vadd.f32 %v4700, %v4748
  %4750 = vmatmul.bf16.gmra.mxu0 %v4656
  %v4751 = vpop.f32.mrf.mxu0
  %v4752 = vadd.f32 %v4703, %v4751
  %v4753 = vpop.f32.mrf.mxu0
  %v4754 = vadd.f32 %v4705, %v4753
  %4755 = vmatmul.bf16.gmra.mxu0 %v4659
  %v4756 = vpop.f32.mrf.mxu0
  %v4757 = vadd.f32 %v4708, %v4756
  %v4758 = vpop.f32.mrf.mxu0
  %v4759 = vadd.f32 %v4710, %v4758
  %4760 = vdwg.mxu0
  %v4777 = vunpack.c.l.b16 %v3412
  %v4778 = vunpack.c.h.b16 %v3412
  %v4779 = vunpack.c.l.b16 %v3413
  %v4780 = vunpack.c.h.b16 %v3413
  %v4781 = vunpack.c.l.b16 %v3414
  %v4782 = vunpack.c.h.b16 %v3414
  %v4783 = vunpack.c.l.b16 %v3415
  %v4784 = vunpack.c.h.b16 %v3415
  %v4785 = vunpack.c.l.b16 %v3416
  %v4786 = vunpack.c.h.b16 %v3416
  %v4787 = vunpack.c.l.b16 %v3417
  %v4788 = vunpack.c.h.b16 %v3417
  %v4789 = vunpack.c.l.b16 %v3418
  %v4790 = vunpack.c.h.b16 %v3418
  %v4791 = vunpack.c.l.b16 %v3419
  %v4792 = vunpack.c.h.b16 %v3419
  %v4793 = vunpack.c.l.b16 %v3420
  %v4794 = vunpack.c.h.b16 %v3420
  %v4795 = vunpack.c.l.b16 %v3421
  %v4796 = vunpack.c.h.b16 %v3421
  %v4797 = vunpack.c.l.b16 %v3422
  %v4798 = vunpack.c.h.b16 %v3422
  %v4799 = vunpack.c.l.b16 %v3423
  %v4800 = vunpack.c.h.b16 %v3423
  %v4801 = vunpack.c.l.b16 %v3424
  %v4802 = vunpack.c.h.b16 %v3424
  %v4803 = vunpack.c.l.b16 %v3425
  %v4804 = vunpack.c.h.b16 %v3425
  %v4805 = vunpack.c.l.b16 %v3426
  %v4806 = vunpack.c.h.b16 %v3426
  %v4807 = vunpack.c.l.b16 %v3427
  %v4808 = vunpack.c.h.b16 %v3427
  %v4809 = vpack.c.b16 %v4779, %v4777
  %v4810 = vpack.c.b16 %v4780, %v4778
  %v4811 = vpack.c.b16 %v4783, %v4781
  %v4812 = vpack.c.b16 %v4784, %v4782
  %v4813 = vpack.c.b16 %v4787, %v4785
  %v4814 = vpack.c.b16 %v4788, %v4786
  %v4815 = vpack.c.b16 %v4791, %v4789
  %v4816 = vpack.c.b16 %v4792, %v4790
  %v4817 = vpack.c.b16 %v4795, %v4793
  %v4818 = vpack.c.b16 %v4796, %v4794
  %v4819 = vpack.c.b16 %v4799, %v4797
  %v4820 = vpack.c.b16 %v4800, %v4798
  %v4821 = vpack.c.b16 %v4803, %v4801
  %v4822 = vpack.c.b16 %v4804, %v4802
  %v4823 = vpack.c.b16 %v4807, %v4805
  %v4824 = vpack.c.b16 %v4808, %v4806
  %v4834 = vsel %vm3852, %v4810, 0
  %v4837 = vsel %vm3852, %v4812, 0
  %v4840 = vsel %vm3852, %v4814, 0
  %v4843 = vsel %vm3852, %v4816, 0
  %v4846 = vsel %vm3852, %v4818, 0
  %v4849 = vsel %vm3852, %v4820, 0
  %v4852 = vsel %vm3852, %v4822, 0
  %v4855 = vsel %vm3852, %v4824, 0
  %v4857 = vsel %vm3243, %v2832, 0
  %4859 = vmatpush.bf16.msra.mxu0 %v3037
  %4860 = vmatpush.bf16.msra.mxu0 %v3036
  %4861 = vmatpush.bf16.msra.mxu0 %v3035
  %4862 = vmatpush.bf16.msra.mxu0 %v3266
  %4863 = vmatpush.bf16.msra.mxu0 %v2821
  %4864 = vmatpush.bf16.msra.mxu0 %v2820
  %4865 = vmatpush.bf16.msra.mxu0 %v2819
  %4866 = vmatpush.bf16.msra.mxu0 %v2818
  %4867 = vmatmul.bf16.gmra.mxu0 %v4809
  %v4868 = vpop.f32.mrf.mxu0
  %v4869 = vadd.f32 %v3703, %v4868
  %v4870 = vpop.f32.mrf.mxu0
  %v4871 = vadd.f32 %v3708, %v4870
  %4872 = vmatmul.bf16.gmra.mxu0 %v4811
  %v4873 = vpop.f32.mrf.mxu0
  %v4874 = vadd.f32 %v3713, %v4873
  %v4875 = vpop.f32.mrf.mxu0
  %v4876 = vadd.f32 %v3718, %v4875
  %4877 = vmatmul.bf16.gmra.mxu0 %v4813
  %v4878 = vpop.f32.mrf.mxu0
  %v4879 = vadd.f32 %v3723, %v4878
  %v4880 = vpop.f32.mrf.mxu0
  %v4881 = vadd.f32 %v3728, %v4880
  %4882 = vmatmul.bf16.gmra.mxu0 %v4815
  %v4883 = vpop.f32.mrf.mxu0
  %v4884 = vadd.f32 %v3733, %v4883
  %v4885 = vpop.f32.mrf.mxu0
  %v4886 = vadd.f32 %v3738, %v4885
  %4887 = vmatmul.bf16.gmra.mxu0 %v4817
  %v4888 = vpop.f32.mrf.mxu0
  %v4889 = vadd.f32 %v3743, %v4888
  %v4890 = vpop.f32.mrf.mxu0
  %v4891 = vadd.f32 %v3748, %v4890
  %4892 = vmatmul.bf16.gmra.mxu0 %v4819
  %v4893 = vpop.f32.mrf.mxu0
  %v4894 = vadd.f32 %v3753, %v4893
  %v4895 = vpop.f32.mrf.mxu0
  %v4896 = vadd.f32 %v3758, %v4895
  %4897 = vmatmul.bf16.gmra.mxu0 %v4821
  %v4898 = vpop.f32.mrf.mxu0
  %v4899 = vadd.f32 %v3763, %v4898
  %v4900 = vpop.f32.mrf.mxu0
  %v4901 = vadd.f32 %v3768, %v4900
  %4902 = vmatmul.bf16.gmra.mxu0 %v4823
  %v4903 = vpop.f32.mrf.mxu0
  %v4904 = vadd.f32 %v3773, %v4903
  %v4905 = vpop.f32.mrf.mxu0
  %v4906 = vadd.f32 %v3778, %v4905
  %4907 = vdwg.mxu0
  %4908 = vmatpush.bf16.msra.mxu0 0
  %4909 = vmatpush.bf16.msra.mxu0 0
  %4910 = vmatpush.bf16.msra.mxu0 %v4857
  %4911 = vmatpush.bf16.msra.mxu0 %v2831
  %4912 = vmatpush.bf16.msra.mxu0 %v2830
  %4913 = vmatpush.bf16.msra.mxu0 %v2829
  %4914 = vmatpush.bf16.msra.mxu0 %v2828
  %4915 = vmatpush.bf16.msra.mxu0 %v3038
  %4916 = vmatmul.bf16.gmra.mxu0 %v4834
  %v4917 = vpop.f32.mrf.mxu0
  %v4918 = vadd.f32 %v4869, %v4917
  %v4919 = vpop.f32.mrf.mxu0
  %v4920 = vadd.f32 %v4871, %v4919
  %4921 = vmatmul.bf16.gmra.mxu0 %v4837
  %v4922 = vpop.f32.mrf.mxu0
  %v4923 = vadd.f32 %v4874, %v4922
  %v4924 = vpop.f32.mrf.mxu0
  %v4925 = vadd.f32 %v4876, %v4924
  %4926 = vmatmul.bf16.gmra.mxu0 %v4840
  %v4927 = vpop.f32.mrf.mxu0
  %v4928 = vadd.f32 %v4879, %v4927
  %v4929 = vpop.f32.mrf.mxu0
  %v4930 = vadd.f32 %v4881, %v4929
  %4931 = vmatmul.bf16.gmra.mxu0 %v4843
  %v4932 = vpop.f32.mrf.mxu0
  %v4933 = vadd.f32 %v4884, %v4932
  %v4934 = vpop.f32.mrf.mxu0
  %v4935 = vadd.f32 %v4886, %v4934
  %4936 = vmatmul.bf16.gmra.mxu0 %v4846
  %v4937 = vpop.f32.mrf.mxu0
  %v4938 = vadd.f32 %v4889, %v4937
  %v4939 = vpop.f32.mrf.mxu0
  %v4940 = vadd.f32 %v4891, %v4939
  %4941 = vmatmul.bf16.gmra.mxu0 %v4849
  %v4942 = vpop.f32.mrf.mxu0
  %v4943 = vadd.f32 %v4894, %v4942
  %v4944 = vpop.f32.mrf.mxu0
  %v4945 = vadd.f32 %v4896, %v4944
  %4946 = vmatmul.bf16.gmra.mxu0 %v4852
  %v4947 = vpop.f32.mrf.mxu0
  %v4948 = vadd.f32 %v4899, %v4947
  %v4949 = vpop.f32.mrf.mxu0
  %v4950 = vadd.f32 %v4901, %v4949
  %4951 = vmatmul.bf16.gmra.mxu0 %v4855
  %v4952 = vpop.f32.mrf.mxu0
  %v4953 = vadd.f32 %v4904, %v4952
  %v4954 = vpop.f32.mrf.mxu0
  %v4955 = vadd.f32 %v4906, %v4954
  %4956 = vdwg.mxu0
  %v4973 = vunpack.c.l.b16 %v3428
  %v4974 = vunpack.c.h.b16 %v3428
  %v4975 = vunpack.c.l.b16 %v3429
  %v4976 = vunpack.c.h.b16 %v3429
  %v4977 = vunpack.c.l.b16 %v3430
  %v4978 = vunpack.c.h.b16 %v3430
  %v4979 = vunpack.c.l.b16 %v3431
  %v4980 = vunpack.c.h.b16 %v3431
  %v4981 = vunpack.c.l.b16 %v3432
  %v4982 = vunpack.c.h.b16 %v3432
  %v4983 = vunpack.c.l.b16 %v3433
  %v4984 = vunpack.c.h.b16 %v3433
  %v4985 = vunpack.c.l.b16 %v3434
  %v4986 = vunpack.c.h.b16 %v3434
  %v4987 = vunpack.c.l.b16 %v3435
  %v4988 = vunpack.c.h.b16 %v3435
  %v4989 = vunpack.c.l.b16 %v3436
  %v4990 = vunpack.c.h.b16 %v3436
  %v4991 = vunpack.c.l.b16 %v3437
  %v4992 = vunpack.c.h.b16 %v3437
  %v4993 = vunpack.c.l.b16 %v3438
  %v4994 = vunpack.c.h.b16 %v3438
  %v4995 = vunpack.c.l.b16 %v3439
  %v4996 = vunpack.c.h.b16 %v3439
  %v4997 = vunpack.c.l.b16 %v3440
  %v4998 = vunpack.c.h.b16 %v3440
  %v4999 = vunpack.c.l.b16 %v3441
  %v5000 = vunpack.c.h.b16 %v3441
  %v5001 = vunpack.c.l.b16 %v3442
  %v5002 = vunpack.c.h.b16 %v3442
  %v5003 = vunpack.c.l.b16 %v3443
  %v5004 = vunpack.c.h.b16 %v3443
  %v5005 = vpack.c.b16 %v4975, %v4973
  %v5006 = vpack.c.b16 %v4976, %v4974
  %v5007 = vpack.c.b16 %v4979, %v4977
  %v5008 = vpack.c.b16 %v4980, %v4978
  %v5009 = vpack.c.b16 %v4983, %v4981
  %v5010 = vpack.c.b16 %v4984, %v4982
  %v5011 = vpack.c.b16 %v4987, %v4985
  %v5012 = vpack.c.b16 %v4988, %v4986
  %v5013 = vpack.c.b16 %v4991, %v4989
  %v5014 = vpack.c.b16 %v4992, %v4990
  %v5015 = vpack.c.b16 %v4995, %v4993
  %v5016 = vpack.c.b16 %v4996, %v4994
  %v5017 = vpack.c.b16 %v4999, %v4997
  %v5018 = vpack.c.b16 %v5000, %v4998
  %v5019 = vpack.c.b16 %v5003, %v5001
  %v5020 = vpack.c.b16 %v5004, %v5002
  %v5030 = vsel %vm3852, %v5006, 0
  %v5033 = vsel %vm3852, %v5008, 0
  %v5036 = vsel %vm3852, %v5010, 0
  %v5039 = vsel %vm3852, %v5012, 0
  %v5042 = vsel %vm3852, %v5014, 0
  %v5045 = vsel %vm3852, %v5016, 0
  %v5048 = vsel %vm3852, %v5018, 0
  %v5051 = vsel %vm3852, %v5020, 0
  %v5053 = vsel %vm3243, %v2837, 0
  %5055 = vmatpush.bf16.msra.mxu0 %v3042
  %5056 = vmatpush.bf16.msra.mxu0 %v3041
  %5057 = vmatpush.bf16.msra.mxu0 %v3040
  %5058 = vmatpush.bf16.msra.mxu0 %v3270
  %5059 = vmatpush.bf16.msra.mxu0 %v2826
  %5060 = vmatpush.bf16.msra.mxu0 %v2825
  %5061 = vmatpush.bf16.msra.mxu0 %v2824
  %5062 = vmatpush.bf16.msra.mxu0 %v2823
  %5063 = vmatmul.bf16.gmra.mxu0 %v5005
  %v5064 = vpop.f32.mrf.mxu0
  %v5065 = vadd.f32 %v3703, %v5064
  %v5066 = vpop.f32.mrf.mxu0
  %v5067 = vadd.f32 %v3708, %v5066
  %5068 = vmatmul.bf16.gmra.mxu0 %v5007
  %v5069 = vpop.f32.mrf.mxu0
  %v5070 = vadd.f32 %v3713, %v5069
  %v5071 = vpop.f32.mrf.mxu0
  %v5072 = vadd.f32 %v3718, %v5071
  %5073 = vmatmul.bf16.gmra.mxu0 %v5009
  %v5074 = vpop.f32.mrf.mxu0
  %v5075 = vadd.f32 %v3723, %v5074
  %v5076 = vpop.f32.mrf.mxu0
  %v5077 = vadd.f32 %v3728, %v5076
  %5078 = vmatmul.bf16.gmra.mxu0 %v5011
  %v5079 = vpop.f32.mrf.mxu0
  %v5080 = vadd.f32 %v3733, %v5079
  %v5081 = vpop.f32.mrf.mxu0
  %v5082 = vadd.f32 %v3738, %v5081
  %5083 = vmatmul.bf16.gmra.mxu0 %v5013
  %v5084 = vpop.f32.mrf.mxu0
  %v5085 = vadd.f32 %v3743, %v5084
  %v5086 = vpop.f32.mrf.mxu0
  %v5087 = vadd.f32 %v3748, %v5086
  %5088 = vmatmul.bf16.gmra.mxu0 %v5015
  %v5089 = vpop.f32.mrf.mxu0
  %v5090 = vadd.f32 %v3753, %v5089
  %v5091 = vpop.f32.mrf.mxu0
  %v5092 = vadd.f32 %v3758, %v5091
  %5093 = vmatmul.bf16.gmra.mxu0 %v5017
  %v5094 = vpop.f32.mrf.mxu0
  %v5095 = vadd.f32 %v3763, %v5094
  %v5096 = vpop.f32.mrf.mxu0
  %v5097 = vadd.f32 %v3768, %v5096
  %5098 = vmatmul.bf16.gmra.mxu0 %v5019
  %v5099 = vpop.f32.mrf.mxu0
  %v5100 = vadd.f32 %v3773, %v5099
  %v5101 = vpop.f32.mrf.mxu0
  %v5102 = vadd.f32 %v3778, %v5101
  %5103 = vdwg.mxu0
  %5104 = vmatpush.bf16.msra.mxu0 0
  %5105 = vmatpush.bf16.msra.mxu0 0
  %5106 = vmatpush.bf16.msra.mxu0 %v5053
  %5107 = vmatpush.bf16.msra.mxu0 %v2836
  %5108 = vmatpush.bf16.msra.mxu0 %v2835
  %5109 = vmatpush.bf16.msra.mxu0 %v2834
  %5110 = vmatpush.bf16.msra.mxu0 %v2833
  %5111 = vmatpush.bf16.msra.mxu0 %v3043
  %5112 = vmatmul.bf16.gmra.mxu0 %v5030
  %v5113 = vpop.f32.mrf.mxu0
  %v5114 = vadd.f32 %v5065, %v5113
  %v5115 = vpop.f32.mrf.mxu0
  %v5116 = vadd.f32 %v5067, %v5115
  %5117 = vmatmul.bf16.gmra.mxu0 %v5033
  %v5118 = vpop.f32.mrf.mxu0
  %v5119 = vadd.f32 %v5070, %v5118
  %v5120 = vpop.f32.mrf.mxu0
  %v5121 = vadd.f32 %v5072, %v5120
  %5122 = vmatmul.bf16.gmra.mxu0 %v5036
  %v5123 = vpop.f32.mrf.mxu0
  %v5124 = vadd.f32 %v5075, %v5123
  %v5125 = vpop.f32.mrf.mxu0
  %v5126 = vadd.f32 %v5077, %v5125
  %5127 = vmatmul.bf16.gmra.mxu0 %v5039
  %v5128 = vpop.f32.mrf.mxu0
  %v5129 = vadd.f32 %v5080, %v5128
  %v5130 = vpop.f32.mrf.mxu0
  %v5131 = vadd.f32 %v5082, %v5130
  %5132 = vmatmul.bf16.gmra.mxu0 %v5042
  %v5133 = vpop.f32.mrf.mxu0
  %v5134 = vadd.f32 %v5085, %v5133
  %v5135 = vpop.f32.mrf.mxu0
  %v5136 = vadd.f32 %v5087, %v5135
  %5137 = vmatmul.bf16.gmra.mxu0 %v5045
  %v5138 = vpop.f32.mrf.mxu0
  %v5139 = vadd.f32 %v5090, %v5138
  %v5140 = vpop.f32.mrf.mxu0
  %v5141 = vadd.f32 %v5092, %v5140
  %5142 = vmatmul.bf16.gmra.mxu0 %v5048
  %v5143 = vpop.f32.mrf.mxu0
  %v5144 = vadd.f32 %v5095, %v5143
  %v5145 = vpop.f32.mrf.mxu0
  %v5146 = vadd.f32 %v5097, %v5145
  %5147 = vmatmul.bf16.gmra.mxu0 %v5051
  %v5148 = vpop.f32.mrf.mxu0
  %v5149 = vadd.f32 %v5100, %v5148
  %v5150 = vpop.f32.mrf.mxu0
  %v5151 = vadd.f32 %v5102, %v5150
  %5152 = vdwg.mxu0
  %v5169 = vunpack.c.l.b16 %v3444
  %v5170 = vunpack.c.h.b16 %v3444
  %v5171 = vunpack.c.l.b16 %v3445
  %v5172 = vunpack.c.h.b16 %v3445
  %v5173 = vunpack.c.l.b16 %v3446
  %v5174 = vunpack.c.h.b16 %v3446
  %v5175 = vunpack.c.l.b16 %v3447
  %v5176 = vunpack.c.h.b16 %v3447
  %v5177 = vunpack.c.l.b16 %v3448
  %v5178 = vunpack.c.h.b16 %v3448
  %v5179 = vunpack.c.l.b16 %v3449
  %v5180 = vunpack.c.h.b16 %v3449
  %v5181 = vunpack.c.l.b16 %v3450
  %v5182 = vunpack.c.h.b16 %v3450
  %v5183 = vunpack.c.l.b16 %v3451
  %v5184 = vunpack.c.h.b16 %v3451
  %v5185 = vunpack.c.l.b16 %v3452
  %v5186 = vunpack.c.h.b16 %v3452
  %v5187 = vunpack.c.l.b16 %v3453
  %v5188 = vunpack.c.h.b16 %v3453
  %v5189 = vunpack.c.l.b16 %v3454
  %v5190 = vunpack.c.h.b16 %v3454
  %v5191 = vunpack.c.l.b16 %v3455
  %v5192 = vunpack.c.h.b16 %v3455
  %v5193 = vunpack.c.l.b16 %v3456
  %v5194 = vunpack.c.h.b16 %v3456
  %v5195 = vunpack.c.l.b16 %v3457
  %v5196 = vunpack.c.h.b16 %v3457
  %v5197 = vunpack.c.l.b16 %v3458
  %v5198 = vunpack.c.h.b16 %v3458
  %v5199 = vunpack.c.l.b16 %v3459
  %v5200 = vunpack.c.h.b16 %v3459
  %v5201 = vpack.c.b16 %v5171, %v5169
  %v5202 = vpack.c.b16 %v5172, %v5170
  %v5203 = vpack.c.b16 %v5175, %v5173
  %v5204 = vpack.c.b16 %v5176, %v5174
  %v5205 = vpack.c.b16 %v5179, %v5177
  %v5206 = vpack.c.b16 %v5180, %v5178
  %v5207 = vpack.c.b16 %v5183, %v5181
  %v5208 = vpack.c.b16 %v5184, %v5182
  %v5209 = vpack.c.b16 %v5187, %v5185
  %v5210 = vpack.c.b16 %v5188, %v5186
  %v5211 = vpack.c.b16 %v5191, %v5189
  %v5212 = vpack.c.b16 %v5192, %v5190
  %v5213 = vpack.c.b16 %v5195, %v5193
  %v5214 = vpack.c.b16 %v5196, %v5194
  %v5215 = vpack.c.b16 %v5199, %v5197
  %v5216 = vpack.c.b16 %v5200, %v5198
  %v5226 = vsel %vm3852, %v5202, 0
  %v5229 = vsel %vm3852, %v5204, 0
  %v5232 = vsel %vm3852, %v5206, 0
  %v5235 = vsel %vm3852, %v5208, 0
  %v5238 = vsel %vm3852, %v5210, 0
  %v5241 = vsel %vm3852, %v5212, 0
  %v5244 = vsel %vm3852, %v5214, 0
  %v5247 = vsel %vm3852, %v5216, 0
  %v5249 = vsel %vm3243, %v2842, 0
  %5251 = vmatpush.bf16.msra.mxu0 %v3047
  %5252 = vmatpush.bf16.msra.mxu0 %v3046
  %5253 = vmatpush.bf16.msra.mxu0 %v3045
  %5254 = vmatpush.bf16.msra.mxu0 %v3274
  %5255 = vmatpush.bf16.msra.mxu0 %v2831
  %5256 = vmatpush.bf16.msra.mxu0 %v2830
  %5257 = vmatpush.bf16.msra.mxu0 %v2829
  %5258 = vmatpush.bf16.msra.mxu0 %v2828
  %5259 = vmatmul.bf16.gmra.mxu0 %v5201
  %v5260 = vpop.f32.mrf.mxu0
  %v5261 = vadd.f32 %v3703, %v5260
  %v5262 = vpop.f32.mrf.mxu0
  %v5263 = vadd.f32 %v3708, %v5262
  %5264 = vmatmul.bf16.gmra.mxu0 %v5203
  %v5265 = vpop.f32.mrf.mxu0
  %v5266 = vadd.f32 %v3713, %v5265
  %v5267 = vpop.f32.mrf.mxu0
  %v5268 = vadd.f32 %v3718, %v5267
  %5269 = vmatmul.bf16.gmra.mxu0 %v5205
  %v5270 = vpop.f32.mrf.mxu0
  %v5271 = vadd.f32 %v3723, %v5270
  %v5272 = vpop.f32.mrf.mxu0
  %v5273 = vadd.f32 %v3728, %v5272
  %5274 = vmatmul.bf16.gmra.mxu0 %v5207
  %v5275 = vpop.f32.mrf.mxu0
  %v5276 = vadd.f32 %v3733, %v5275
  %v5277 = vpop.f32.mrf.mxu0
  %v5278 = vadd.f32 %v3738, %v5277
  %5279 = vmatmul.bf16.gmra.mxu0 %v5209
  %v5280 = vpop.f32.mrf.mxu0
  %v5281 = vadd.f32 %v3743, %v5280
  %v5282 = vpop.f32.mrf.mxu0
  %v5283 = vadd.f32 %v3748, %v5282
  %5284 = vmatmul.bf16.gmra.mxu0 %v5211
  %v5285 = vpop.f32.mrf.mxu0
  %v5286 = vadd.f32 %v3753, %v5285
  %v5287 = vpop.f32.mrf.mxu0
  %v5288 = vadd.f32 %v3758, %v5287
  %5289 = vmatmul.bf16.gmra.mxu0 %v5213
  %v5290 = vpop.f32.mrf.mxu0
  %v5291 = vadd.f32 %v3763, %v5290
  %v5292 = vpop.f32.mrf.mxu0
  %v5293 = vadd.f32 %v3768, %v5292
  %5294 = vmatmul.bf16.gmra.mxu0 %v5215
  %v5295 = vpop.f32.mrf.mxu0
  %v5296 = vadd.f32 %v3773, %v5295
  %v5297 = vpop.f32.mrf.mxu0
  %v5298 = vadd.f32 %v3778, %v5297
  %5299 = vdwg.mxu0
  %5300 = vmatpush.bf16.msra.mxu0 0
  %5301 = vmatpush.bf16.msra.mxu0 0
  %5302 = vmatpush.bf16.msra.mxu0 %v5249
  %5303 = vmatpush.bf16.msra.mxu0 %v2841
  %5304 = vmatpush.bf16.msra.mxu0 %v2840
  %5305 = vmatpush.bf16.msra.mxu0 %v2839
  %5306 = vmatpush.bf16.msra.mxu0 %v2838
  %5307 = vmatpush.bf16.msra.mxu0 %v3048
  %5308 = vmatmul.bf16.gmra.mxu0 %v5226
  %v5309 = vpop.f32.mrf.mxu0
  %v5310 = vadd.f32 %v5261, %v5309
  %v5311 = vpop.f32.mrf.mxu0
  %v5312 = vadd.f32 %v5263, %v5311
  %5313 = vmatmul.bf16.gmra.mxu0 %v5229
  %v5314 = vpop.f32.mrf.mxu0
  %v5315 = vadd.f32 %v5266, %v5314
  %v5316 = vpop.f32.mrf.mxu0
  %v5317 = vadd.f32 %v5268, %v5316
  %5318 = vmatmul.bf16.gmra.mxu0 %v5232
  %v5319 = vpop.f32.mrf.mxu0
  %v5320 = vadd.f32 %v5271, %v5319
  %v5321 = vpop.f32.mrf.mxu0
  %v5322 = vadd.f32 %v5273, %v5321
  %5323 = vmatmul.bf16.gmra.mxu0 %v5235
  %v5324 = vpop.f32.mrf.mxu0
  %v5325 = vadd.f32 %v5276, %v5324
  %v5326 = vpop.f32.mrf.mxu0
  %v5327 = vadd.f32 %v5278, %v5326
  %5328 = vmatmul.bf16.gmra.mxu0 %v5238
  %v5329 = vpop.f32.mrf.mxu0
  %v5330 = vadd.f32 %v5281, %v5329
  %v5331 = vpop.f32.mrf.mxu0
  %v5332 = vadd.f32 %v5283, %v5331
  %5333 = vmatmul.bf16.gmra.mxu0 %v5241
  %v5334 = vpop.f32.mrf.mxu0
  %v5335 = vadd.f32 %v5286, %v5334
  %v5336 = vpop.f32.mrf.mxu0
  %v5337 = vadd.f32 %v5288, %v5336
  %5338 = vmatmul.bf16.gmra.mxu0 %v5244
  %v5339 = vpop.f32.mrf.mxu0
  %v5340 = vadd.f32 %v5291, %v5339
  %v5341 = vpop.f32.mrf.mxu0
  %v5342 = vadd.f32 %v5293, %v5341
  %5343 = vmatmul.bf16.gmra.mxu0 %v5247
  %v5344 = vpop.f32.mrf.mxu0
  %v5345 = vadd.f32 %v5296, %v5344
  %v5346 = vpop.f32.mrf.mxu0
  %v5347 = vadd.f32 %v5298, %v5346
  %5348 = vdwg.mxu0
  %v5365 = vunpack.c.l.b16 %v3460
  %v5366 = vunpack.c.h.b16 %v3460
  %v5367 = vunpack.c.l.b16 %v3461
  %v5368 = vunpack.c.h.b16 %v3461
  %v5369 = vunpack.c.l.b16 %v3462
  %v5370 = vunpack.c.h.b16 %v3462
  %v5371 = vunpack.c.l.b16 %v3463
  %v5372 = vunpack.c.h.b16 %v3463
  %v5373 = vunpack.c.l.b16 %v3464
  %v5374 = vunpack.c.h.b16 %v3464
  %v5375 = vunpack.c.l.b16 %v3465
  %v5376 = vunpack.c.h.b16 %v3465
  %v5377 = vunpack.c.l.b16 %v3466
  %v5378 = vunpack.c.h.b16 %v3466
  %v5379 = vunpack.c.l.b16 %v3467
  %v5380 = vunpack.c.h.b16 %v3467
  %v5381 = vunpack.c.l.b16 %v3468
  %v5382 = vunpack.c.h.b16 %v3468
  %v5383 = vunpack.c.l.b16 %v3469
  %v5384 = vunpack.c.h.b16 %v3469
  %v5385 = vunpack.c.l.b16 %v3470
  %v5386 = vunpack.c.h.b16 %v3470
  %v5387 = vunpack.c.l.b16 %v3471
  %v5388 = vunpack.c.h.b16 %v3471
  %v5389 = vunpack.c.l.b16 %v3472
  %v5390 = vunpack.c.h.b16 %v3472
  %v5391 = vunpack.c.l.b16 %v3473
  %v5392 = vunpack.c.h.b16 %v3473
  %v5393 = vunpack.c.l.b16 %v3474
  %v5394 = vunpack.c.h.b16 %v3474
  %v5395 = vunpack.c.l.b16 %v3475
  %v5396 = vunpack.c.h.b16 %v3475
  %v5397 = vpack.c.b16 %v5367, %v5365
  %v5398 = vpack.c.b16 %v5368, %v5366
  %v5399 = vpack.c.b16 %v5371, %v5369
  %v5400 = vpack.c.b16 %v5372, %v5370
  %v5401 = vpack.c.b16 %v5375, %v5373
  %v5402 = vpack.c.b16 %v5376, %v5374
  %v5403 = vpack.c.b16 %v5379, %v5377
  %v5404 = vpack.c.b16 %v5380, %v5378
  %v5405 = vpack.c.b16 %v5383, %v5381
  %v5406 = vpack.c.b16 %v5384, %v5382
  %v5407 = vpack.c.b16 %v5387, %v5385
  %v5408 = vpack.c.b16 %v5388, %v5386
  %v5409 = vpack.c.b16 %v5391, %v5389
  %v5410 = vpack.c.b16 %v5392, %v5390
  %v5411 = vpack.c.b16 %v5395, %v5393
  %v5412 = vpack.c.b16 %v5396, %v5394
  %v5422 = vsel %vm3852, %v5398, 0
  %v5425 = vsel %vm3852, %v5400, 0
  %v5428 = vsel %vm3852, %v5402, 0
  %v5431 = vsel %vm3852, %v5404, 0
  %v5434 = vsel %vm3852, %v5406, 0
  %v5437 = vsel %vm3852, %v5408, 0
  %v5440 = vsel %vm3852, %v5410, 0
  %v5443 = vsel %vm3852, %v5412, 0
  %v5445 = vsel %vm3243, %v2847, 0
  %5447 = vmatpush.bf16.msra.mxu0 %v3052
  %5448 = vmatpush.bf16.msra.mxu0 %v3051
  %5449 = vmatpush.bf16.msra.mxu0 %v3050
  %5450 = vmatpush.bf16.msra.mxu0 %v3278
  %5451 = vmatpush.bf16.msra.mxu0 %v2836
  %5452 = vmatpush.bf16.msra.mxu0 %v2835
  %5453 = vmatpush.bf16.msra.mxu0 %v2834
  %5454 = vmatpush.bf16.msra.mxu0 %v2833
  %5455 = vmatmul.bf16.gmra.mxu0 %v5397
  %v5456 = vpop.f32.mrf.mxu0
  %v5457 = vadd.f32 %v3703, %v5456
  %v5458 = vpop.f32.mrf.mxu0
  %v5459 = vadd.f32 %v3708, %v5458
  %5460 = vmatmul.bf16.gmra.mxu0 %v5399
  %v5461 = vpop.f32.mrf.mxu0
  %v5462 = vadd.f32 %v3713, %v5461
  %v5463 = vpop.f32.mrf.mxu0
  %v5464 = vadd.f32 %v3718, %v5463
  %5465 = vmatmul.bf16.gmra.mxu0 %v5401
  %v5466 = vpop.f32.mrf.mxu0
  %v5467 = vadd.f32 %v3723, %v5466
  %v5468 = vpop.f32.mrf.mxu0
  %v5469 = vadd.f32 %v3728, %v5468
  %5470 = vmatmul.bf16.gmra.mxu0 %v5403
  %v5471 = vpop.f32.mrf.mxu0
  %v5472 = vadd.f32 %v3733, %v5471
  %v5473 = vpop.f32.mrf.mxu0
  %v5474 = vadd.f32 %v3738, %v5473
  %5475 = vmatmul.bf16.gmra.mxu0 %v5405
  %v5476 = vpop.f32.mrf.mxu0
  %v5477 = vadd.f32 %v3743, %v5476
  %v5478 = vpop.f32.mrf.mxu0
  %v5479 = vadd.f32 %v3748, %v5478
  %5480 = vmatmul.bf16.gmra.mxu0 %v5407
  %v5481 = vpop.f32.mrf.mxu0
  %v5482 = vadd.f32 %v3753, %v5481
  %v5483 = vpop.f32.mrf.mxu0
  %v5484 = vadd.f32 %v3758, %v5483
  %5485 = vmatmul.bf16.gmra.mxu0 %v5409
  %v5486 = vpop.f32.mrf.mxu0
  %v5487 = vadd.f32 %v3763, %v5486
  %v5488 = vpop.f32.mrf.mxu0
  %v5489 = vadd.f32 %v3768, %v5488
  %5490 = vmatmul.bf16.gmra.mxu0 %v5411
  %v5491 = vpop.f32.mrf.mxu0
  %v5492 = vadd.f32 %v3773, %v5491
  %v5493 = vpop.f32.mrf.mxu0
  %v5494 = vadd.f32 %v3778, %v5493
  %5495 = vdwg.mxu0
  %5496 = vmatpush.bf16.msra.mxu0 0
  %5497 = vmatpush.bf16.msra.mxu0 0
  %5498 = vmatpush.bf16.msra.mxu0 %v5445
  %5499 = vmatpush.bf16.msra.mxu0 %v2846
  %5500 = vmatpush.bf16.msra.mxu0 %v2845
  %5501 = vmatpush.bf16.msra.mxu0 %v2844
  %5502 = vmatpush.bf16.msra.mxu0 %v2843
  %5503 = vmatpush.bf16.msra.mxu0 %v3053
  %5504 = vmatmul.bf16.gmra.mxu0 %v5422
  %v5505 = vpop.f32.mrf.mxu0
  %v5506 = vadd.f32 %v5457, %v5505
  %v5507 = vpop.f32.mrf.mxu0
  %v5508 = vadd.f32 %v5459, %v5507
  %5509 = vmatmul.bf16.gmra.mxu0 %v5425
  %v5510 = vpop.f32.mrf.mxu0
  %v5511 = vadd.f32 %v5462, %v5510
  %v5512 = vpop.f32.mrf.mxu0
  %v5513 = vadd.f32 %v5464, %v5512
  %5514 = vmatmul.bf16.gmra.mxu0 %v5428
  %v5515 = vpop.f32.mrf.mxu0
  %v5516 = vadd.f32 %v5467, %v5515
  %v5517 = vpop.f32.mrf.mxu0
  %v5518 = vadd.f32 %v5469, %v5517
  %5519 = vmatmul.bf16.gmra.mxu0 %v5431
  %v5520 = vpop.f32.mrf.mxu0
  %v5521 = vadd.f32 %v5472, %v5520
  %v5522 = vpop.f32.mrf.mxu0
  %v5523 = vadd.f32 %v5474, %v5522
  %5524 = vmatmul.bf16.gmra.mxu0 %v5434
  %v5525 = vpop.f32.mrf.mxu0
  %v5526 = vadd.f32 %v5477, %v5525
  %v5527 = vpop.f32.mrf.mxu0
  %v5528 = vadd.f32 %v5479, %v5527
  %5529 = vmatmul.bf16.gmra.mxu0 %v5437
  %v5530 = vpop.f32.mrf.mxu0
  %v5531 = vadd.f32 %v5482, %v5530
  %v5532 = vpop.f32.mrf.mxu0
  %v5533 = vadd.f32 %v5484, %v5532
  %5534 = vmatmul.bf16.gmra.mxu0 %v5440
  %v5535 = vpop.f32.mrf.mxu0
  %v5536 = vadd.f32 %v5487, %v5535
  %v5537 = vpop.f32.mrf.mxu0
  %v5538 = vadd.f32 %v5489, %v5537
  %5539 = vmatmul.bf16.gmra.mxu0 %v5443
  %v5540 = vpop.f32.mrf.mxu0
  %v5541 = vadd.f32 %v5492, %v5540
  %v5542 = vpop.f32.mrf.mxu0
  %v5543 = vadd.f32 %v5494, %v5542
  %5544 = vdwg.mxu0
  %v5561 = vunpack.c.l.b16 %v3476
  %v5562 = vunpack.c.h.b16 %v3476
  %v5563 = vunpack.c.l.b16 %v3477
  %v5564 = vunpack.c.h.b16 %v3477
  %v5565 = vunpack.c.l.b16 %v3478
  %v5566 = vunpack.c.h.b16 %v3478
  %v5567 = vunpack.c.l.b16 %v3479
  %v5568 = vunpack.c.h.b16 %v3479
  %v5569 = vunpack.c.l.b16 %v3480
  %v5570 = vunpack.c.h.b16 %v3480
  %v5571 = vunpack.c.l.b16 %v3481
  %v5572 = vunpack.c.h.b16 %v3481
  %v5573 = vunpack.c.l.b16 %v3482
  %v5574 = vunpack.c.h.b16 %v3482
  %v5575 = vunpack.c.l.b16 %v3483
  %v5576 = vunpack.c.h.b16 %v3483
  %v5577 = vunpack.c.l.b16 %v3484
  %v5578 = vunpack.c.h.b16 %v3484
  %v5579 = vunpack.c.l.b16 %v3485
  %v5580 = vunpack.c.h.b16 %v3485
  %v5581 = vunpack.c.l.b16 %v3486
  %v5582 = vunpack.c.h.b16 %v3486
  %v5583 = vunpack.c.l.b16 %v3487
  %v5584 = vunpack.c.h.b16 %v3487
  %v5585 = vunpack.c.l.b16 %v3488
  %v5586 = vunpack.c.h.b16 %v3488
  %v5587 = vunpack.c.l.b16 %v3489
  %v5588 = vunpack.c.h.b16 %v3489
  %v5589 = vunpack.c.l.b16 %v3490
  %v5590 = vunpack.c.h.b16 %v3490
  %v5591 = vunpack.c.l.b16 %v3491
  %v5592 = vunpack.c.h.b16 %v3491
  %v5593 = vpack.c.b16 %v5563, %v5561
  %v5594 = vpack.c.b16 %v5564, %v5562
  %v5595 = vpack.c.b16 %v5567, %v5565
  %v5596 = vpack.c.b16 %v5568, %v5566
  %v5597 = vpack.c.b16 %v5571, %v5569
  %v5598 = vpack.c.b16 %v5572, %v5570
  %v5599 = vpack.c.b16 %v5575, %v5573
  %v5600 = vpack.c.b16 %v5576, %v5574
  %v5601 = vpack.c.b16 %v5579, %v5577
  %v5602 = vpack.c.b16 %v5580, %v5578
  %v5603 = vpack.c.b16 %v5583, %v5581
  %v5604 = vpack.c.b16 %v5584, %v5582
  %v5605 = vpack.c.b16 %v5587, %v5585
  %v5606 = vpack.c.b16 %v5588, %v5586
  %v5607 = vpack.c.b16 %v5591, %v5589
  %v5608 = vpack.c.b16 %v5592, %v5590
  %v5618 = vsel %vm3852, %v5594, 0
  %v5621 = vsel %vm3852, %v5596, 0
  %v5624 = vsel %vm3852, %v5598, 0
  %v5627 = vsel %vm3852, %v5600, 0
  %v5630 = vsel %vm3852, %v5602, 0
  %v5633 = vsel %vm3852, %v5604, 0
  %v5636 = vsel %vm3852, %v5606, 0
  %v5639 = vsel %vm3852, %v5608, 0
  %v5641 = vsel %vm3243, %v2852, 0
  %5643 = vmatpush.bf16.msra.mxu0 %v3057
  %5644 = vmatpush.bf16.msra.mxu0 %v3056
  %5645 = vmatpush.bf16.msra.mxu0 %v3055
  %5646 = vmatpush.bf16.msra.mxu0 %v3282
  %5647 = vmatpush.bf16.msra.mxu0 %v2841
  %5648 = vmatpush.bf16.msra.mxu0 %v2840
  %5649 = vmatpush.bf16.msra.mxu0 %v2839
  %5650 = vmatpush.bf16.msra.mxu0 %v2838
  %5651 = vmatmul.bf16.gmra.mxu0 %v5593
  %v5652 = vpop.f32.mrf.mxu0
  %v5653 = vadd.f32 %v3703, %v5652
  %v5654 = vpop.f32.mrf.mxu0
  %v5655 = vadd.f32 %v3708, %v5654
  %5656 = vmatmul.bf16.gmra.mxu0 %v5595
  %v5657 = vpop.f32.mrf.mxu0
  %v5658 = vadd.f32 %v3713, %v5657
  %v5659 = vpop.f32.mrf.mxu0
  %v5660 = vadd.f32 %v3718, %v5659
  %5661 = vmatmul.bf16.gmra.mxu0 %v5597
  %v5662 = vpop.f32.mrf.mxu0
  %v5663 = vadd.f32 %v3723, %v5662
  %v5664 = vpop.f32.mrf.mxu0
  %v5665 = vadd.f32 %v3728, %v5664
  %5666 = vmatmul.bf16.gmra.mxu0 %v5599
  %v5667 = vpop.f32.mrf.mxu0
  %v5668 = vadd.f32 %v3733, %v5667
  %v5669 = vpop.f32.mrf.mxu0
  %v5670 = vadd.f32 %v3738, %v5669
  %5671 = vmatmul.bf16.gmra.mxu0 %v5601
  %v5672 = vpop.f32.mrf.mxu0
  %v5673 = vadd.f32 %v3743, %v5672
  %v5674 = vpop.f32.mrf.mxu0
  %v5675 = vadd.f32 %v3748, %v5674
  %5676 = vmatmul.bf16.gmra.mxu0 %v5603
  %v5677 = vpop.f32.mrf.mxu0
  %v5678 = vadd.f32 %v3753, %v5677
  %v5679 = vpop.f32.mrf.mxu0
  %v5680 = vadd.f32 %v3758, %v5679
  %5681 = vmatmul.bf16.gmra.mxu0 %v5605
  %v5682 = vpop.f32.mrf.mxu0
  %v5683 = vadd.f32 %v3763, %v5682
  %v5684 = vpop.f32.mrf.mxu0
  %v5685 = vadd.f32 %v3768, %v5684
  %5686 = vmatmul.bf16.gmra.mxu0 %v5607
  %v5687 = vpop.f32.mrf.mxu0
  %v5688 = vadd.f32 %v3773, %v5687
  %v5689 = vpop.f32.mrf.mxu0
  %v5690 = vadd.f32 %v3778, %v5689
  %5691 = vdwg.mxu0
  %5692 = vmatpush.bf16.msra.mxu0 0
  %5693 = vmatpush.bf16.msra.mxu0 0
  %5694 = vmatpush.bf16.msra.mxu0 %v5641
  %5695 = vmatpush.bf16.msra.mxu0 %v2851
  %5696 = vmatpush.bf16.msra.mxu0 %v2850
  %5697 = vmatpush.bf16.msra.mxu0 %v2849
  %5698 = vmatpush.bf16.msra.mxu0 %v2848
  %5699 = vmatpush.bf16.msra.mxu0 %v3058
  %5700 = vmatmul.bf16.gmra.mxu0 %v5618
  %v5701 = vpop.f32.mrf.mxu0
  %v5702 = vadd.f32 %v5653, %v5701
  %v5703 = vpop.f32.mrf.mxu0
  %v5704 = vadd.f32 %v5655, %v5703
  %5705 = vmatmul.bf16.gmra.mxu0 %v5621
  %v5706 = vpop.f32.mrf.mxu0
  %v5707 = vadd.f32 %v5658, %v5706
  %v5708 = vpop.f32.mrf.mxu0
  %v5709 = vadd.f32 %v5660, %v5708
  %5710 = vmatmul.bf16.gmra.mxu0 %v5624
  %v5711 = vpop.f32.mrf.mxu0
  %v5712 = vadd.f32 %v5663, %v5711
  %v5713 = vpop.f32.mrf.mxu0
  %v5714 = vadd.f32 %v5665, %v5713
  %5715 = vmatmul.bf16.gmra.mxu0 %v5627
  %v5716 = vpop.f32.mrf.mxu0
  %v5717 = vadd.f32 %v5668, %v5716
  %v5718 = vpop.f32.mrf.mxu0
  %v5719 = vadd.f32 %v5670, %v5718
  %5720 = vmatmul.bf16.gmra.mxu0 %v5630
  %v5721 = vpop.f32.mrf.mxu0
  %v5722 = vadd.f32 %v5673, %v5721
  %v5723 = vpop.f32.mrf.mxu0
  %v5724 = vadd.f32 %v5675, %v5723
  %5725 = vmatmul.bf16.gmra.mxu0 %v5633
  %v5726 = vpop.f32.mrf.mxu0
  %v5727 = vadd.f32 %v5678, %v5726
  %v5728 = vpop.f32.mrf.mxu0
  %v5729 = vadd.f32 %v5680, %v5728
  %5730 = vmatmul.bf16.gmra.mxu0 %v5636
  %v5731 = vpop.f32.mrf.mxu0
  %v5732 = vadd.f32 %v5683, %v5731
  %v5733 = vpop.f32.mrf.mxu0
  %v5734 = vadd.f32 %v5685, %v5733
  %5735 = vmatmul.bf16.gmra.mxu0 %v5639
  %v5736 = vpop.f32.mrf.mxu0
  %v5737 = vadd.f32 %v5688, %v5736
  %v5738 = vpop.f32.mrf.mxu0
  %v5739 = vadd.f32 %v5690, %v5738
  %5740 = vdwg.mxu0
  %v5757 = vunpack.c.l.b16 %v3492
  %v5758 = vunpack.c.h.b16 %v3492
  %v5759 = vunpack.c.l.b16 %v3493
  %v5760 = vunpack.c.h.b16 %v3493
  %v5761 = vunpack.c.l.b16 %v3494
  %v5762 = vunpack.c.h.b16 %v3494
  %v5763 = vunpack.c.l.b16 %v3495
  %v5764 = vunpack.c.h.b16 %v3495
  %v5765 = vunpack.c.l.b16 %v3496
  %v5766 = vunpack.c.h.b16 %v3496
  %v5767 = vunpack.c.l.b16 %v3497
  %v5768 = vunpack.c.h.b16 %v3497
  %v5769 = vunpack.c.l.b16 %v3498
  %v5770 = vunpack.c.h.b16 %v3498
  %v5771 = vunpack.c.l.b16 %v3499
  %v5772 = vunpack.c.h.b16 %v3499
  %v5773 = vunpack.c.l.b16 %v3500
  %v5774 = vunpack.c.h.b16 %v3500
  %v5775 = vunpack.c.l.b16 %v3501
  %v5776 = vunpack.c.h.b16 %v3501
  %v5777 = vunpack.c.l.b16 %v3502
  %v5778 = vunpack.c.h.b16 %v3502
  %v5779 = vunpack.c.l.b16 %v3503
  %v5780 = vunpack.c.h.b16 %v3503
  %v5781 = vunpack.c.l.b16 %v3504
  %v5782 = vunpack.c.h.b16 %v3504
  %v5783 = vunpack.c.l.b16 %v3505
  %v5784 = vunpack.c.h.b16 %v3505
  %v5785 = vunpack.c.l.b16 %v3506
  %v5786 = vunpack.c.h.b16 %v3506
  %v5787 = vunpack.c.l.b16 %v3507
  %v5788 = vunpack.c.h.b16 %v3507
  %v5789 = vpack.c.b16 %v5759, %v5757
  %v5790 = vpack.c.b16 %v5760, %v5758
  %v5791 = vpack.c.b16 %v5763, %v5761
  %v5792 = vpack.c.b16 %v5764, %v5762
  %v5793 = vpack.c.b16 %v5767, %v5765
  %v5794 = vpack.c.b16 %v5768, %v5766
  %v5795 = vpack.c.b16 %v5771, %v5769
  %v5796 = vpack.c.b16 %v5772, %v5770
  %v5797 = vpack.c.b16 %v5775, %v5773
  %v5798 = vpack.c.b16 %v5776, %v5774
  %v5799 = vpack.c.b16 %v5779, %v5777
  %v5800 = vpack.c.b16 %v5780, %v5778
  %v5801 = vpack.c.b16 %v5783, %v5781
  %v5802 = vpack.c.b16 %v5784, %v5782
  %v5803 = vpack.c.b16 %v5787, %v5785
  %v5804 = vpack.c.b16 %v5788, %v5786
  %v5814 = vsel %vm3852, %v5790, 0
  %v5817 = vsel %vm3852, %v5792, 0
  %v5820 = vsel %vm3852, %v5794, 0
  %v5823 = vsel %vm3852, %v5796, 0
  %v5826 = vsel %vm3852, %v5798, 0
  %v5829 = vsel %vm3852, %v5800, 0
  %v5832 = vsel %vm3852, %v5802, 0
  %v5835 = vsel %vm3852, %v5804, 0
  %v5837 = vsel %vm3243, %v2857, 0
  %5839 = vmatpush.bf16.msra.mxu0 %v3062
  %5840 = vmatpush.bf16.msra.mxu0 %v3061
  %5841 = vmatpush.bf16.msra.mxu0 %v3060
  %5842 = vmatpush.bf16.msra.mxu0 %v3286
  %5843 = vmatpush.bf16.msra.mxu0 %v2846
  %5844 = vmatpush.bf16.msra.mxu0 %v2845
  %5845 = vmatpush.bf16.msra.mxu0 %v2844
  %5846 = vmatpush.bf16.msra.mxu0 %v2843
  %5847 = vmatmul.bf16.gmra.mxu0 %v5789
  %v5848 = vpop.f32.mrf.mxu0
  %v5849 = vadd.f32 %v3703, %v5848
  %v5850 = vpop.f32.mrf.mxu0
  %v5851 = vadd.f32 %v3708, %v5850
  %5852 = vmatmul.bf16.gmra.mxu0 %v5791
  %v5853 = vpop.f32.mrf.mxu0
  %v5854 = vadd.f32 %v3713, %v5853
  %v5855 = vpop.f32.mrf.mxu0
  %v5856 = vadd.f32 %v3718, %v5855
  %5857 = vmatmul.bf16.gmra.mxu0 %v5793
  %v5858 = vpop.f32.mrf.mxu0
  %v5859 = vadd.f32 %v3723, %v5858
  %v5860 = vpop.f32.mrf.mxu0
  %v5861 = vadd.f32 %v3728, %v5860
  %5862 = vmatmul.bf16.gmra.mxu0 %v5795
  %v5863 = vpop.f32.mrf.mxu0
  %v5864 = vadd.f32 %v3733, %v5863
  %v5865 = vpop.f32.mrf.mxu0
  %v5866 = vadd.f32 %v3738, %v5865
  %5867 = vmatmul.bf16.gmra.mxu0 %v5797
  %v5868 = vpop.f32.mrf.mxu0
  %v5869 = vadd.f32 %v3743, %v5868
  %v5870 = vpop.f32.mrf.mxu0
  %v5871 = vadd.f32 %v3748, %v5870
  %5872 = vmatmul.bf16.gmra.mxu0 %v5799
  %v5873 = vpop.f32.mrf.mxu0
  %v5874 = vadd.f32 %v3753, %v5873
  %v5875 = vpop.f32.mrf.mxu0
  %v5876 = vadd.f32 %v3758, %v5875
  %5877 = vmatmul.bf16.gmra.mxu0 %v5801
  %v5878 = vpop.f32.mrf.mxu0
  %v5879 = vadd.f32 %v3763, %v5878
  %v5880 = vpop.f32.mrf.mxu0
  %v5881 = vadd.f32 %v3768, %v5880
  %5882 = vmatmul.bf16.gmra.mxu0 %v5803
  %v5883 = vpop.f32.mrf.mxu0
  %v5884 = vadd.f32 %v3773, %v5883
  %v5885 = vpop.f32.mrf.mxu0
  %v5886 = vadd.f32 %v3778, %v5885
  %5887 = vdwg.mxu0
  %5888 = vmatpush.bf16.msra.mxu0 0
  %5889 = vmatpush.bf16.msra.mxu0 0
  %5890 = vmatpush.bf16.msra.mxu0 %v5837
  %5891 = vmatpush.bf16.msra.mxu0 %v2856
  %5892 = vmatpush.bf16.msra.mxu0 %v2855
  %5893 = vmatpush.bf16.msra.mxu0 %v2854
  %5894 = vmatpush.bf16.msra.mxu0 %v2853
  %5895 = vmatpush.bf16.msra.mxu0 %v3063
  %5896 = vmatmul.bf16.gmra.mxu0 %v5814
  %v5897 = vpop.f32.mrf.mxu0
  %v5898 = vadd.f32 %v5849, %v5897
  %v5899 = vpop.f32.mrf.mxu0
  %v5900 = vadd.f32 %v5851, %v5899
  %5901 = vmatmul.bf16.gmra.mxu0 %v5817
  %v5902 = vpop.f32.mrf.mxu0
  %v5903 = vadd.f32 %v5854, %v5902
  %v5904 = vpop.f32.mrf.mxu0
  %v5905 = vadd.f32 %v5856, %v5904
  %5906 = vmatmul.bf16.gmra.mxu0 %v5820
  %v5907 = vpop.f32.mrf.mxu0
  %v5908 = vadd.f32 %v5859, %v5907
  %v5909 = vpop.f32.mrf.mxu0
  %v5910 = vadd.f32 %v5861, %v5909
  %5911 = vmatmul.bf16.gmra.mxu0 %v5823
  %v5912 = vpop.f32.mrf.mxu0
  %v5913 = vadd.f32 %v5864, %v5912
  %v5914 = vpop.f32.mrf.mxu0
  %v5915 = vadd.f32 %v5866, %v5914
  %5916 = vmatmul.bf16.gmra.mxu0 %v5826
  %v5917 = vpop.f32.mrf.mxu0
  %v5918 = vadd.f32 %v5869, %v5917
  %v5919 = vpop.f32.mrf.mxu0
  %v5920 = vadd.f32 %v5871, %v5919
  %5921 = vmatmul.bf16.gmra.mxu0 %v5829
  %v5922 = vpop.f32.mrf.mxu0
  %v5923 = vadd.f32 %v5874, %v5922
  %v5924 = vpop.f32.mrf.mxu0
  %v5925 = vadd.f32 %v5876, %v5924
  %5926 = vmatmul.bf16.gmra.mxu0 %v5832
  %v5927 = vpop.f32.mrf.mxu0
  %v5928 = vadd.f32 %v5879, %v5927
  %v5929 = vpop.f32.mrf.mxu0
  %v5930 = vadd.f32 %v5881, %v5929
  %5931 = vmatmul.bf16.gmra.mxu0 %v5835
  %v5932 = vpop.f32.mrf.mxu0
  %v5933 = vadd.f32 %v5884, %v5932
  %v5934 = vpop.f32.mrf.mxu0
  %v5935 = vadd.f32 %v5886, %v5934
  %5936 = vdwg.mxu0
  %v5953 = vunpack.c.l.b16 %v3508
  %v5954 = vunpack.c.h.b16 %v3508
  %v5955 = vunpack.c.l.b16 %v3509
  %v5956 = vunpack.c.h.b16 %v3509
  %v5957 = vunpack.c.l.b16 %v3510
  %v5958 = vunpack.c.h.b16 %v3510
  %v5959 = vunpack.c.l.b16 %v3511
  %v5960 = vunpack.c.h.b16 %v3511
  %v5961 = vunpack.c.l.b16 %v3512
  %v5962 = vunpack.c.h.b16 %v3512
  %v5963 = vunpack.c.l.b16 %v3513
  %v5964 = vunpack.c.h.b16 %v3513
  %v5965 = vunpack.c.l.b16 %v3514
  %v5966 = vunpack.c.h.b16 %v3514
  %v5967 = vunpack.c.l.b16 %v3515
  %v5968 = vunpack.c.h.b16 %v3515
  %v5969 = vunpack.c.l.b16 %v3516
  %v5970 = vunpack.c.h.b16 %v3516
  %v5971 = vunpack.c.l.b16 %v3517
  %v5972 = vunpack.c.h.b16 %v3517
  %v5973 = vunpack.c.l.b16 %v3518
  %v5974 = vunpack.c.h.b16 %v3518
  %v5975 = vunpack.c.l.b16 %v3519
  %v5976 = vunpack.c.h.b16 %v3519
  %v5977 = vunpack.c.l.b16 %v3520
  %v5978 = vunpack.c.h.b16 %v3520
  %v5979 = vunpack.c.l.b16 %v3521
  %v5980 = vunpack.c.h.b16 %v3521
  %v5981 = vunpack.c.l.b16 %v3522
  %v5982 = vunpack.c.h.b16 %v3522
  %v5983 = vunpack.c.l.b16 %v3523
  %v5984 = vunpack.c.h.b16 %v3523
  %v5985 = vpack.c.b16 %v5955, %v5953
  %v5986 = vpack.c.b16 %v5956, %v5954
  %v5987 = vpack.c.b16 %v5959, %v5957
  %v5988 = vpack.c.b16 %v5960, %v5958
  %v5989 = vpack.c.b16 %v5963, %v5961
  %v5990 = vpack.c.b16 %v5964, %v5962
  %v5991 = vpack.c.b16 %v5967, %v5965
  %v5992 = vpack.c.b16 %v5968, %v5966
  %v5993 = vpack.c.b16 %v5971, %v5969
  %v5994 = vpack.c.b16 %v5972, %v5970
  %v5995 = vpack.c.b16 %v5975, %v5973
  %v5996 = vpack.c.b16 %v5976, %v5974
  %v5997 = vpack.c.b16 %v5979, %v5977
  %v5998 = vpack.c.b16 %v5980, %v5978
  %v5999 = vpack.c.b16 %v5983, %v5981
  %v6000 = vpack.c.b16 %v5984, %v5982
  %v6010 = vsel %vm3852, %v5986, 0
  %v6013 = vsel %vm3852, %v5988, 0
  %v6016 = vsel %vm3852, %v5990, 0
  %v6019 = vsel %vm3852, %v5992, 0
  %v6022 = vsel %vm3852, %v5994, 0
  %v6025 = vsel %vm3852, %v5996, 0
  %v6028 = vsel %vm3852, %v5998, 0
  %v6031 = vsel %vm3852, %v6000, 0
  %v6033 = vsel %vm3243, %v2862, 0
  %6035 = vmatpush.bf16.msra.mxu0 %v3067
  %6036 = vmatpush.bf16.msra.mxu0 %v3066
  %6037 = vmatpush.bf16.msra.mxu0 %v3065
  %6038 = vmatpush.bf16.msra.mxu0 %v3290
  %6039 = vmatpush.bf16.msra.mxu0 %v2851
  %6040 = vmatpush.bf16.msra.mxu0 %v2850
  %6041 = vmatpush.bf16.msra.mxu0 %v2849
  %6042 = vmatpush.bf16.msra.mxu0 %v2848
  %6043 = vmatmul.bf16.gmra.mxu0 %v5985
  %v6044 = vpop.f32.mrf.mxu0
  %v6045 = vadd.f32 %v3703, %v6044
  %v6046 = vpop.f32.mrf.mxu0
  %v6047 = vadd.f32 %v3708, %v6046
  %6048 = vmatmul.bf16.gmra.mxu0 %v5987
  %v6049 = vpop.f32.mrf.mxu0
  %v6050 = vadd.f32 %v3713, %v6049
  %v6051 = vpop.f32.mrf.mxu0
  %v6052 = vadd.f32 %v3718, %v6051
  %6053 = vmatmul.bf16.gmra.mxu0 %v5989
  %v6054 = vpop.f32.mrf.mxu0
  %v6055 = vadd.f32 %v3723, %v6054
  %v6056 = vpop.f32.mrf.mxu0
  %v6057 = vadd.f32 %v3728, %v6056
  %6058 = vmatmul.bf16.gmra.mxu0 %v5991
  %v6059 = vpop.f32.mrf.mxu0
  %v6060 = vadd.f32 %v3733, %v6059
  %v6061 = vpop.f32.mrf.mxu0
  %v6062 = vadd.f32 %v3738, %v6061
  %6063 = vmatmul.bf16.gmra.mxu0 %v5993
  %v6064 = vpop.f32.mrf.mxu0
  %v6065 = vadd.f32 %v3743, %v6064
  %v6066 = vpop.f32.mrf.mxu0
  %v6067 = vadd.f32 %v3748, %v6066
  %6068 = vmatmul.bf16.gmra.mxu0 %v5995
  %v6069 = vpop.f32.mrf.mxu0
  %v6070 = vadd.f32 %v3753, %v6069
  %v6071 = vpop.f32.mrf.mxu0
  %v6072 = vadd.f32 %v3758, %v6071
  %6073 = vmatmul.bf16.gmra.mxu0 %v5997
  %v6074 = vpop.f32.mrf.mxu0
  %v6075 = vadd.f32 %v3763, %v6074
  %v6076 = vpop.f32.mrf.mxu0
  %v6077 = vadd.f32 %v3768, %v6076
  %6078 = vmatmul.bf16.gmra.mxu0 %v5999
  %v6079 = vpop.f32.mrf.mxu0
  %v6080 = vadd.f32 %v3773, %v6079
  %v6081 = vpop.f32.mrf.mxu0
  %v6082 = vadd.f32 %v3778, %v6081
  %6083 = vdwg.mxu0
  %6084 = vmatpush.bf16.msra.mxu0 0
  %6085 = vmatpush.bf16.msra.mxu0 0
  %6086 = vmatpush.bf16.msra.mxu0 %v6033
  %6087 = vmatpush.bf16.msra.mxu0 %v2861
  %6088 = vmatpush.bf16.msra.mxu0 %v2860
  %6089 = vmatpush.bf16.msra.mxu0 %v2859
  %6090 = vmatpush.bf16.msra.mxu0 %v2858
  %6091 = vmatpush.bf16.msra.mxu0 %v3068
  %6092 = vmatmul.bf16.gmra.mxu0 %v6010
  %v6093 = vpop.f32.mrf.mxu0
  %v6094 = vadd.f32 %v6045, %v6093
  %v6095 = vpop.f32.mrf.mxu0
  %v6096 = vadd.f32 %v6047, %v6095
  %6097 = vmatmul.bf16.gmra.mxu0 %v6013
  %v6098 = vpop.f32.mrf.mxu0
  %v6099 = vadd.f32 %v6050, %v6098
  %v6100 = vpop.f32.mrf.mxu0
  %v6101 = vadd.f32 %v6052, %v6100
  %6102 = vmatmul.bf16.gmra.mxu0 %v6016
  %v6103 = vpop.f32.mrf.mxu0
  %v6104 = vadd.f32 %v6055, %v6103
  %v6105 = vpop.f32.mrf.mxu0
  %v6106 = vadd.f32 %v6057, %v6105
  %6107 = vmatmul.bf16.gmra.mxu0 %v6019
  %v6108 = vpop.f32.mrf.mxu0
  %v6109 = vadd.f32 %v6060, %v6108
  %v6110 = vpop.f32.mrf.mxu0
  %v6111 = vadd.f32 %v6062, %v6110
  %6112 = vmatmul.bf16.gmra.mxu0 %v6022
  %v6113 = vpop.f32.mrf.mxu0
  %v6114 = vadd.f32 %v6065, %v6113
  %v6115 = vpop.f32.mrf.mxu0
  %v6116 = vadd.f32 %v6067, %v6115
  %6117 = vmatmul.bf16.gmra.mxu0 %v6025
  %v6118 = vpop.f32.mrf.mxu0
  %v6119 = vadd.f32 %v6070, %v6118
  %v6120 = vpop.f32.mrf.mxu0
  %v6121 = vadd.f32 %v6072, %v6120
  %6122 = vmatmul.bf16.gmra.mxu0 %v6028
  %v6123 = vpop.f32.mrf.mxu0
  %v6124 = vadd.f32 %v6075, %v6123
  %v6125 = vpop.f32.mrf.mxu0
  %v6126 = vadd.f32 %v6077, %v6125
  %6127 = vmatmul.bf16.gmra.mxu0 %v6031
  %v6128 = vpop.f32.mrf.mxu0
  %v6129 = vadd.f32 %v6080, %v6128
  %v6130 = vpop.f32.mrf.mxu0
  %v6131 = vadd.f32 %v6082, %v6130
  %6132 = vdwg.mxu0
  %v6149 = vunpack.c.l.b16 %v3524
  %v6150 = vunpack.c.h.b16 %v3524
  %v6151 = vunpack.c.l.b16 %v3525
  %v6152 = vunpack.c.h.b16 %v3525
  %v6153 = vunpack.c.l.b16 %v3526
  %v6154 = vunpack.c.h.b16 %v3526
  %v6155 = vunpack.c.l.b16 %v3527
  %v6156 = vunpack.c.h.b16 %v3527
  %v6157 = vunpack.c.l.b16 %v3528
  %v6158 = vunpack.c.h.b16 %v3528
  %v6159 = vunpack.c.l.b16 %v3529
  %v6160 = vunpack.c.h.b16 %v3529
  %v6161 = vunpack.c.l.b16 %v3530
  %v6162 = vunpack.c.h.b16 %v3530
  %v6163 = vunpack.c.l.b16 %v3531
  %v6164 = vunpack.c.h.b16 %v3531
  %v6165 = vunpack.c.l.b16 %v3532
  %v6166 = vunpack.c.h.b16 %v3532
  %v6167 = vunpack.c.l.b16 %v3533
  %v6168 = vunpack.c.h.b16 %v3533
  %v6169 = vunpack.c.l.b16 %v3534
  %v6170 = vunpack.c.h.b16 %v3534
  %v6171 = vunpack.c.l.b16 %v3535
  %v6172 = vunpack.c.h.b16 %v3535
  %v6173 = vunpack.c.l.b16 %v3536
  %v6174 = vunpack.c.h.b16 %v3536
  %v6175 = vunpack.c.l.b16 %v3537
  %v6176 = vunpack.c.h.b16 %v3537
  %v6177 = vunpack.c.l.b16 %v3538
  %v6178 = vunpack.c.h.b16 %v3538
  %v6179 = vunpack.c.l.b16 %v3539
  %v6180 = vunpack.c.h.b16 %v3539
  %v6181 = vpack.c.b16 %v6151, %v6149
  %v6182 = vpack.c.b16 %v6152, %v6150
  %v6183 = vpack.c.b16 %v6155, %v6153
  %v6184 = vpack.c.b16 %v6156, %v6154
  %v6185 = vpack.c.b16 %v6159, %v6157
  %v6186 = vpack.c.b16 %v6160, %v6158
  %v6187 = vpack.c.b16 %v6163, %v6161
  %v6188 = vpack.c.b16 %v6164, %v6162
  %v6189 = vpack.c.b16 %v6167, %v6165
  %v6190 = vpack.c.b16 %v6168, %v6166
  %v6191 = vpack.c.b16 %v6171, %v6169
  %v6192 = vpack.c.b16 %v6172, %v6170
  %v6193 = vpack.c.b16 %v6175, %v6173
  %v6194 = vpack.c.b16 %v6176, %v6174
  %v6195 = vpack.c.b16 %v6179, %v6177
  %v6196 = vpack.c.b16 %v6180, %v6178
  %v6206 = vsel %vm3852, %v6182, 0
  %v6209 = vsel %vm3852, %v6184, 0
  %v6212 = vsel %vm3852, %v6186, 0
  %v6215 = vsel %vm3852, %v6188, 0
  %v6218 = vsel %vm3852, %v6190, 0
  %v6221 = vsel %vm3852, %v6192, 0
  %v6224 = vsel %vm3852, %v6194, 0
  %v6227 = vsel %vm3852, %v6196, 0
  %v6229 = vsel %vm3243, %v2867, 0
  %6231 = vmatpush.bf16.msra.mxu0 %v3072
  %6232 = vmatpush.bf16.msra.mxu0 %v3071
  %6233 = vmatpush.bf16.msra.mxu0 %v3070
  %6234 = vmatpush.bf16.msra.mxu0 %v3294
  %6235 = vmatpush.bf16.msra.mxu0 %v2856
  %6236 = vmatpush.bf16.msra.mxu0 %v2855
  %6237 = vmatpush.bf16.msra.mxu0 %v2854
  %6238 = vmatpush.bf16.msra.mxu0 %v2853
  %6239 = vmatmul.bf16.gmra.mxu0 %v6181
  %v6240 = vpop.f32.mrf.mxu0
  %v6241 = vadd.f32 %v3703, %v6240
  %v6242 = vpop.f32.mrf.mxu0
  %v6243 = vadd.f32 %v3708, %v6242
  %6244 = vmatmul.bf16.gmra.mxu0 %v6183
  %v6245 = vpop.f32.mrf.mxu0
  %v6246 = vadd.f32 %v3713, %v6245
  %v6247 = vpop.f32.mrf.mxu0
  %v6248 = vadd.f32 %v3718, %v6247
  %6249 = vmatmul.bf16.gmra.mxu0 %v6185
  %v6250 = vpop.f32.mrf.mxu0
  %v6251 = vadd.f32 %v3723, %v6250
  %v6252 = vpop.f32.mrf.mxu0
  %v6253 = vadd.f32 %v3728, %v6252
  %6254 = vmatmul.bf16.gmra.mxu0 %v6187
  %v6255 = vpop.f32.mrf.mxu0
  %v6256 = vadd.f32 %v3733, %v6255
  %v6257 = vpop.f32.mrf.mxu0
  %v6258 = vadd.f32 %v3738, %v6257
  %6259 = vmatmul.bf16.gmra.mxu0 %v6189
  %v6260 = vpop.f32.mrf.mxu0
  %v6261 = vadd.f32 %v3743, %v6260
  %v6262 = vpop.f32.mrf.mxu0
  %v6263 = vadd.f32 %v3748, %v6262
  %6264 = vmatmul.bf16.gmra.mxu0 %v6191
  %v6265 = vpop.f32.mrf.mxu0
  %v6266 = vadd.f32 %v3753, %v6265
  %v6267 = vpop.f32.mrf.mxu0
  %v6268 = vadd.f32 %v3758, %v6267
  %6269 = vmatmul.bf16.gmra.mxu0 %v6193
  %v6270 = vpop.f32.mrf.mxu0
  %v6271 = vadd.f32 %v3763, %v6270
  %v6272 = vpop.f32.mrf.mxu0
  %v6273 = vadd.f32 %v3768, %v6272
  %6274 = vmatmul.bf16.gmra.mxu0 %v6195
  %v6275 = vpop.f32.mrf.mxu0
  %v6276 = vadd.f32 %v3773, %v6275
  %v6277 = vpop.f32.mrf.mxu0
  %v6278 = vadd.f32 %v3778, %v6277
  %6279 = vdwg.mxu0
  %6280 = vmatpush.bf16.msra.mxu0 0
  %6281 = vmatpush.bf16.msra.mxu0 0
  %6282 = vmatpush.bf16.msra.mxu0 %v6229
  %6283 = vmatpush.bf16.msra.mxu0 %v2866
  %6284 = vmatpush.bf16.msra.mxu0 %v2865
  %6285 = vmatpush.bf16.msra.mxu0 %v2864
  %6286 = vmatpush.bf16.msra.mxu0 %v2863
  %6287 = vmatpush.bf16.msra.mxu0 %v3073
  %6288 = vmatmul.bf16.gmra.mxu0 %v6206
  %v6289 = vpop.f32.mrf.mxu0
  %v6290 = vadd.f32 %v6241, %v6289
  %v6291 = vpop.f32.mrf.mxu0
  %v6292 = vadd.f32 %v6243, %v6291
  %6293 = vmatmul.bf16.gmra.mxu0 %v6209
  %v6294 = vpop.f32.mrf.mxu0
  %v6295 = vadd.f32 %v6246, %v6294
  %v6296 = vpop.f32.mrf.mxu0
  %v6297 = vadd.f32 %v6248, %v6296
  %6298 = vmatmul.bf16.gmra.mxu0 %v6212
  %v6299 = vpop.f32.mrf.mxu0
  %v6300 = vadd.f32 %v6251, %v6299
  %v6301 = vpop.f32.mrf.mxu0
  %v6302 = vadd.f32 %v6253, %v6301
  %6303 = vmatmul.bf16.gmra.mxu0 %v6215
  %v6304 = vpop.f32.mrf.mxu0
  %v6305 = vadd.f32 %v6256, %v6304
  %v6306 = vpop.f32.mrf.mxu0
  %v6307 = vadd.f32 %v6258, %v6306
  %6308 = vmatmul.bf16.gmra.mxu0 %v6218
  %v6309 = vpop.f32.mrf.mxu0
  %v6310 = vadd.f32 %v6261, %v6309
  %v6311 = vpop.f32.mrf.mxu0
  %v6312 = vadd.f32 %v6263, %v6311
  %6313 = vmatmul.bf16.gmra.mxu0 %v6221
  %v6314 = vpop.f32.mrf.mxu0
  %v6315 = vadd.f32 %v6266, %v6314
  %v6316 = vpop.f32.mrf.mxu0
  %v6317 = vadd.f32 %v6268, %v6316
  %6318 = vmatmul.bf16.gmra.mxu0 %v6224
  %v6319 = vpop.f32.mrf.mxu0
  %v6320 = vadd.f32 %v6271, %v6319
  %v6321 = vpop.f32.mrf.mxu0
  %v6322 = vadd.f32 %v6273, %v6321
  %6323 = vmatmul.bf16.gmra.mxu0 %v6227
  %v6324 = vpop.f32.mrf.mxu0
  %v6325 = vadd.f32 %v6276, %v6324
  %v6326 = vpop.f32.mrf.mxu0
  %v6327 = vadd.f32 %v6278, %v6326
  %6328 = vdwg.mxu0
  %v6345 = vunpack.c.l.b16 %v3540
  %v6346 = vunpack.c.h.b16 %v3540
  %v6347 = vunpack.c.l.b16 %v3541
  %v6348 = vunpack.c.h.b16 %v3541
  %v6349 = vunpack.c.l.b16 %v3542
  %v6350 = vunpack.c.h.b16 %v3542
  %v6351 = vunpack.c.l.b16 %v3543
  %v6352 = vunpack.c.h.b16 %v3543
  %v6353 = vunpack.c.l.b16 %v3544
  %v6354 = vunpack.c.h.b16 %v3544
  %v6355 = vunpack.c.l.b16 %v3545
  %v6356 = vunpack.c.h.b16 %v3545
  %v6357 = vunpack.c.l.b16 %v3546
  %v6358 = vunpack.c.h.b16 %v3546
  %v6359 = vunpack.c.l.b16 %v3547
  %v6360 = vunpack.c.h.b16 %v3547
  %v6361 = vunpack.c.l.b16 %v3548
  %v6362 = vunpack.c.h.b16 %v3548
  %v6363 = vunpack.c.l.b16 %v3549
  %v6364 = vunpack.c.h.b16 %v3549
  %v6365 = vunpack.c.l.b16 %v3550
  %v6366 = vunpack.c.h.b16 %v3550
  %v6367 = vunpack.c.l.b16 %v3551
  %v6368 = vunpack.c.h.b16 %v3551
  %v6369 = vunpack.c.l.b16 %v3552
  %v6370 = vunpack.c.h.b16 %v3552
  %v6371 = vunpack.c.l.b16 %v3553
  %v6372 = vunpack.c.h.b16 %v3553
  %v6373 = vunpack.c.l.b16 %v3554
  %v6374 = vunpack.c.h.b16 %v3554
  %v6375 = vunpack.c.l.b16 %v3555
  %v6376 = vunpack.c.h.b16 %v3555
  %v6377 = vpack.c.b16 %v6347, %v6345
  %v6378 = vpack.c.b16 %v6348, %v6346
  %v6379 = vpack.c.b16 %v6351, %v6349
  %v6380 = vpack.c.b16 %v6352, %v6350
  %v6381 = vpack.c.b16 %v6355, %v6353
  %v6382 = vpack.c.b16 %v6356, %v6354
  %v6383 = vpack.c.b16 %v6359, %v6357
  %v6384 = vpack.c.b16 %v6360, %v6358
  %v6385 = vpack.c.b16 %v6363, %v6361
  %v6386 = vpack.c.b16 %v6364, %v6362
  %v6387 = vpack.c.b16 %v6367, %v6365
  %v6388 = vpack.c.b16 %v6368, %v6366
  %v6389 = vpack.c.b16 %v6371, %v6369
  %v6390 = vpack.c.b16 %v6372, %v6370
  %v6391 = vpack.c.b16 %v6375, %v6373
  %v6392 = vpack.c.b16 %v6376, %v6374
  %v6402 = vsel %vm3852, %v6378, 0
  %v6405 = vsel %vm3852, %v6380, 0
  %v6408 = vsel %vm3852, %v6382, 0
  %v6411 = vsel %vm3852, %v6384, 0
  %v6414 = vsel %vm3852, %v6386, 0
  %v6417 = vsel %vm3852, %v6388, 0
  %v6420 = vsel %vm3852, %v6390, 0
  %v6423 = vsel %vm3852, %v6392, 0
  %v6425 = vsel %vm3243, %v2872, 0
  %6427 = vmatpush.bf16.msra.mxu0 %v3077
  %6428 = vmatpush.bf16.msra.mxu0 %v3076
  %6429 = vmatpush.bf16.msra.mxu0 %v3075
  %6430 = vmatpush.bf16.msra.mxu0 %v3298
  %6431 = vmatpush.bf16.msra.mxu0 %v2861
  %6432 = vmatpush.bf16.msra.mxu0 %v2860
  %6433 = vmatpush.bf16.msra.mxu0 %v2859
  %6434 = vmatpush.bf16.msra.mxu0 %v2858
  %6435 = vmatmul.bf16.gmra.mxu0 %v6377
  %v6436 = vpop.f32.mrf.mxu0
  %v6437 = vadd.f32 %v3703, %v6436
  %v6438 = vpop.f32.mrf.mxu0
  %v6439 = vadd.f32 %v3708, %v6438
  %6440 = vmatmul.bf16.gmra.mxu0 %v6379
  %v6441 = vpop.f32.mrf.mxu0
  %v6442 = vadd.f32 %v3713, %v6441
  %v6443 = vpop.f32.mrf.mxu0
  %v6444 = vadd.f32 %v3718, %v6443
  %6445 = vmatmul.bf16.gmra.mxu0 %v6381
  %v6446 = vpop.f32.mrf.mxu0
  %v6447 = vadd.f32 %v3723, %v6446
  %v6448 = vpop.f32.mrf.mxu0
  %v6449 = vadd.f32 %v3728, %v6448
  %6450 = vmatmul.bf16.gmra.mxu0 %v6383
  %v6451 = vpop.f32.mrf.mxu0
  %v6452 = vadd.f32 %v3733, %v6451
  %v6453 = vpop.f32.mrf.mxu0
  %v6454 = vadd.f32 %v3738, %v6453
  %6455 = vmatmul.bf16.gmra.mxu0 %v6385
  %v6456 = vpop.f32.mrf.mxu0
  %v6457 = vadd.f32 %v3743, %v6456
  %v6458 = vpop.f32.mrf.mxu0
  %v6459 = vadd.f32 %v3748, %v6458
  %6460 = vmatmul.bf16.gmra.mxu0 %v6387
  %v6461 = vpop.f32.mrf.mxu0
  %v6462 = vadd.f32 %v3753, %v6461
  %v6463 = vpop.f32.mrf.mxu0
  %v6464 = vadd.f32 %v3758, %v6463
  %6465 = vmatmul.bf16.gmra.mxu0 %v6389
  %v6466 = vpop.f32.mrf.mxu0
  %v6467 = vadd.f32 %v3763, %v6466
  %v6468 = vpop.f32.mrf.mxu0
  %v6469 = vadd.f32 %v3768, %v6468
  %6470 = vmatmul.bf16.gmra.mxu0 %v6391
  %v6471 = vpop.f32.mrf.mxu0
  %v6472 = vadd.f32 %v3773, %v6471
  %v6473 = vpop.f32.mrf.mxu0
  %v6474 = vadd.f32 %v3778, %v6473
  %6475 = vdwg.mxu0
  %6476 = vmatpush.bf16.msra.mxu0 0
  %6477 = vmatpush.bf16.msra.mxu0 0
  %6478 = vmatpush.bf16.msra.mxu0 %v6425
  %6479 = vmatpush.bf16.msra.mxu0 %v2871
  %6480 = vmatpush.bf16.msra.mxu0 %v2870
  %6481 = vmatpush.bf16.msra.mxu0 %v2869
  %6482 = vmatpush.bf16.msra.mxu0 %v2868
  %6483 = vmatpush.bf16.msra.mxu0 %v3078
  %6484 = vmatmul.bf16.gmra.mxu0 %v6402
  %v6485 = vpop.f32.mrf.mxu0
  %v6486 = vadd.f32 %v6437, %v6485
  %v6487 = vpop.f32.mrf.mxu0
  %v6488 = vadd.f32 %v6439, %v6487
  %6489 = vmatmul.bf16.gmra.mxu0 %v6405
  %v6490 = vpop.f32.mrf.mxu0
  %v6491 = vadd.f32 %v6442, %v6490
  %v6492 = vpop.f32.mrf.mxu0
  %v6493 = vadd.f32 %v6444, %v6492
  %6494 = vmatmul.bf16.gmra.mxu0 %v6408
  %v6495 = vpop.f32.mrf.mxu0
  %v6496 = vadd.f32 %v6447, %v6495
  %v6497 = vpop.f32.mrf.mxu0
  %v6498 = vadd.f32 %v6449, %v6497
  %6499 = vmatmul.bf16.gmra.mxu0 %v6411
  %v6500 = vpop.f32.mrf.mxu0
  %v6501 = vadd.f32 %v6452, %v6500
  %v6502 = vpop.f32.mrf.mxu0
  %v6503 = vadd.f32 %v6454, %v6502
  %6504 = vmatmul.bf16.gmra.mxu0 %v6414
  %v6505 = vpop.f32.mrf.mxu0
  %v6506 = vadd.f32 %v6457, %v6505
  %v6507 = vpop.f32.mrf.mxu0
  %v6508 = vadd.f32 %v6459, %v6507
  %6509 = vmatmul.bf16.gmra.mxu0 %v6417
  %v6510 = vpop.f32.mrf.mxu0
  %v6511 = vadd.f32 %v6462, %v6510
  %v6512 = vpop.f32.mrf.mxu0
  %v6513 = vadd.f32 %v6464, %v6512
  %6514 = vmatmul.bf16.gmra.mxu0 %v6420
  %v6515 = vpop.f32.mrf.mxu0
  %v6516 = vadd.f32 %v6467, %v6515
  %v6517 = vpop.f32.mrf.mxu0
  %v6518 = vadd.f32 %v6469, %v6517
  %6519 = vmatmul.bf16.gmra.mxu0 %v6423
  %v6520 = vpop.f32.mrf.mxu0
  %v6521 = vadd.f32 %v6472, %v6520
  %v6522 = vpop.f32.mrf.mxu0
  %v6523 = vadd.f32 %v6474, %v6522
  %6524 = vdwg.mxu0
  %v6541 = vunpack.c.l.b16 %v3556
  %v6542 = vunpack.c.h.b16 %v3556
  %v6543 = vunpack.c.l.b16 %v3557
  %v6544 = vunpack.c.h.b16 %v3557
  %v6545 = vunpack.c.l.b16 %v3558
  %v6546 = vunpack.c.h.b16 %v3558
  %v6547 = vunpack.c.l.b16 %v3559
  %v6548 = vunpack.c.h.b16 %v3559
  %v6549 = vunpack.c.l.b16 %v3560
  %v6550 = vunpack.c.h.b16 %v3560
  %v6551 = vunpack.c.l.b16 %v3561
  %v6552 = vunpack.c.h.b16 %v3561
  %v6553 = vunpack.c.l.b16 %v3562
  %v6554 = vunpack.c.h.b16 %v3562
  %v6555 = vunpack.c.l.b16 %v3563
  %v6556 = vunpack.c.h.b16 %v3563
  %v6557 = vunpack.c.l.b16 %v3564
  %v6558 = vunpack.c.h.b16 %v3564
  %v6559 = vunpack.c.l.b16 %v3565
  %v6560 = vunpack.c.h.b16 %v3565
  %v6561 = vunpack.c.l.b16 %v3566
  %v6562 = vunpack.c.h.b16 %v3566
  %v6563 = vunpack.c.l.b16 %v3567
  %v6564 = vunpack.c.h.b16 %v3567
  %v6565 = vunpack.c.l.b16 %v3568
  %v6566 = vunpack.c.h.b16 %v3568
  %v6567 = vunpack.c.l.b16 %v3569
  %v6568 = vunpack.c.h.b16 %v3569
  %v6569 = vunpack.c.l.b16 %v3570
  %v6570 = vunpack.c.h.b16 %v3570
  %v6571 = vunpack.c.l.b16 %v3571
  %v6572 = vunpack.c.h.b16 %v3571
  %v6573 = vpack.c.b16 %v6543, %v6541
  %v6574 = vpack.c.b16 %v6544, %v6542
  %v6575 = vpack.c.b16 %v6547, %v6545
  %v6576 = vpack.c.b16 %v6548, %v6546
  %v6577 = vpack.c.b16 %v6551, %v6549
  %v6578 = vpack.c.b16 %v6552, %v6550
  %v6579 = vpack.c.b16 %v6555, %v6553
  %v6580 = vpack.c.b16 %v6556, %v6554
  %v6581 = vpack.c.b16 %v6559, %v6557
  %v6582 = vpack.c.b16 %v6560, %v6558
  %v6583 = vpack.c.b16 %v6563, %v6561
  %v6584 = vpack.c.b16 %v6564, %v6562
  %v6585 = vpack.c.b16 %v6567, %v6565
  %v6586 = vpack.c.b16 %v6568, %v6566
  %v6587 = vpack.c.b16 %v6571, %v6569
  %v6588 = vpack.c.b16 %v6572, %v6570
  %v6598 = vsel %vm3852, %v6574, 0
  %v6601 = vsel %vm3852, %v6576, 0
  %v6604 = vsel %vm3852, %v6578, 0
  %v6607 = vsel %vm3852, %v6580, 0
  %v6610 = vsel %vm3852, %v6582, 0
  %v6613 = vsel %vm3852, %v6584, 0
  %v6616 = vsel %vm3852, %v6586, 0
  %v6619 = vsel %vm3852, %v6588, 0
  %v6621 = vsel %vm3243, %v2877, 0
  %6623 = vmatpush.bf16.msra.mxu0 %v3082
  %6624 = vmatpush.bf16.msra.mxu0 %v3081
  %6625 = vmatpush.bf16.msra.mxu0 %v3080
  %6626 = vmatpush.bf16.msra.mxu0 %v3302
  %6627 = vmatpush.bf16.msra.mxu0 %v2866
  %6628 = vmatpush.bf16.msra.mxu0 %v2865
  %6629 = vmatpush.bf16.msra.mxu0 %v2864
  %6630 = vmatpush.bf16.msra.mxu0 %v2863
  %6631 = vmatmul.bf16.gmra.mxu0 %v6573
  %v6632 = vpop.f32.mrf.mxu0
  %v6633 = vadd.f32 %v3703, %v6632
  %v6634 = vpop.f32.mrf.mxu0
  %v6635 = vadd.f32 %v3708, %v6634
  %6636 = vmatmul.bf16.gmra.mxu0 %v6575
  %v6637 = vpop.f32.mrf.mxu0
  %v6638 = vadd.f32 %v3713, %v6637
  %v6639 = vpop.f32.mrf.mxu0
  %v6640 = vadd.f32 %v3718, %v6639
  %6641 = vmatmul.bf16.gmra.mxu0 %v6577
  %v6642 = vpop.f32.mrf.mxu0
  %v6643 = vadd.f32 %v3723, %v6642
  %v6644 = vpop.f32.mrf.mxu0
  %v6645 = vadd.f32 %v3728, %v6644
  %6646 = vmatmul.bf16.gmra.mxu0 %v6579
  %v6647 = vpop.f32.mrf.mxu0
  %v6648 = vadd.f32 %v3733, %v6647
  %v6649 = vpop.f32.mrf.mxu0
  %v6650 = vadd.f32 %v3738, %v6649
  %6651 = vmatmul.bf16.gmra.mxu0 %v6581
  %v6652 = vpop.f32.mrf.mxu0
  %v6653 = vadd.f32 %v3743, %v6652
  %v6654 = vpop.f32.mrf.mxu0
  %v6655 = vadd.f32 %v3748, %v6654
  %6656 = vmatmul.bf16.gmra.mxu0 %v6583
  %v6657 = vpop.f32.mrf.mxu0
  %v6658 = vadd.f32 %v3753, %v6657
  %v6659 = vpop.f32.mrf.mxu0
  %v6660 = vadd.f32 %v3758, %v6659
  %6661 = vmatmul.bf16.gmra.mxu0 %v6585
  %v6662 = vpop.f32.mrf.mxu0
  %v6663 = vadd.f32 %v3763, %v6662
  %v6664 = vpop.f32.mrf.mxu0
  %v6665 = vadd.f32 %v3768, %v6664
  %6666 = vmatmul.bf16.gmra.mxu0 %v6587
  %v6667 = vpop.f32.mrf.mxu0
  %v6668 = vadd.f32 %v3773, %v6667
  %v6669 = vpop.f32.mrf.mxu0
  %v6670 = vadd.f32 %v3778, %v6669
  %6671 = vdwg.mxu0
  %6672 = vmatpush.bf16.msra.mxu0 0
  %6673 = vmatpush.bf16.msra.mxu0 0
  %6674 = vmatpush.bf16.msra.mxu0 %v6621
  %6675 = vmatpush.bf16.msra.mxu0 %v2876
  %6676 = vmatpush.bf16.msra.mxu0 %v2875
  %6677 = vmatpush.bf16.msra.mxu0 %v2874
  %6678 = vmatpush.bf16.msra.mxu0 %v2873
  %6679 = vmatpush.bf16.msra.mxu0 %v3083
  %6680 = vmatmul.bf16.gmra.mxu0 %v6598
  %v6681 = vpop.f32.mrf.mxu0
  %v6682 = vadd.f32 %v6633, %v6681
  %v6683 = vpop.f32.mrf.mxu0
  %v6684 = vadd.f32 %v6635, %v6683
  %6685 = vmatmul.bf16.gmra.mxu0 %v6601
  %v6686 = vpop.f32.mrf.mxu0
  %v6687 = vadd.f32 %v6638, %v6686
  %v6688 = vpop.f32.mrf.mxu0
  %v6689 = vadd.f32 %v6640, %v6688
  %6690 = vmatmul.bf16.gmra.mxu0 %v6604
  %v6691 = vpop.f32.mrf.mxu0
  %v6692 = vadd.f32 %v6643, %v6691
  %v6693 = vpop.f32.mrf.mxu0
  %v6694 = vadd.f32 %v6645, %v6693
  %6695 = vmatmul.bf16.gmra.mxu0 %v6607
  %v6696 = vpop.f32.mrf.mxu0
  %v6697 = vadd.f32 %v6648, %v6696
  %v6698 = vpop.f32.mrf.mxu0
  %v6699 = vadd.f32 %v6650, %v6698
  %6700 = vmatmul.bf16.gmra.mxu0 %v6610
  %v6701 = vpop.f32.mrf.mxu0
  %v6702 = vadd.f32 %v6653, %v6701
  %v6703 = vpop.f32.mrf.mxu0
  %v6704 = vadd.f32 %v6655, %v6703
  %6705 = vmatmul.bf16.gmra.mxu0 %v6613
  %v6706 = vpop.f32.mrf.mxu0
  %v6707 = vadd.f32 %v6658, %v6706
  %v6708 = vpop.f32.mrf.mxu0
  %v6709 = vadd.f32 %v6660, %v6708
  %6710 = vmatmul.bf16.gmra.mxu0 %v6616
  %v6711 = vpop.f32.mrf.mxu0
  %v6712 = vadd.f32 %v6663, %v6711
  %v6713 = vpop.f32.mrf.mxu0
  %v6714 = vadd.f32 %v6665, %v6713
  %6715 = vmatmul.bf16.gmra.mxu0 %v6619
  %v6716 = vpop.f32.mrf.mxu0
  %v6717 = vadd.f32 %v6668, %v6716
  %v6718 = vpop.f32.mrf.mxu0
  %v6719 = vadd.f32 %v6670, %v6718
  %6720 = vdwg.mxu0
  %v6737 = vunpack.c.l.b16 %v3572
  %v6738 = vunpack.c.h.b16 %v3572
  %v6739 = vunpack.c.l.b16 %v3573
  %v6740 = vunpack.c.h.b16 %v3573
  %v6741 = vunpack.c.l.b16 %v3574
  %v6742 = vunpack.c.h.b16 %v3574
  %v6743 = vunpack.c.l.b16 %v3575
  %v6744 = vunpack.c.h.b16 %v3575
  %v6745 = vunpack.c.l.b16 %v3576
  %v6746 = vunpack.c.h.b16 %v3576
  %v6747 = vunpack.c.l.b16 %v3577
  %v6748 = vunpack.c.h.b16 %v3577
  %v6749 = vunpack.c.l.b16 %v3578
  %v6750 = vunpack.c.h.b16 %v3578
  %v6751 = vunpack.c.l.b16 %v3579
  %v6752 = vunpack.c.h.b16 %v3579
  %v6753 = vunpack.c.l.b16 %v3580
  %v6754 = vunpack.c.h.b16 %v3580
  %v6755 = vunpack.c.l.b16 %v3581
  %v6756 = vunpack.c.h.b16 %v3581
  %v6757 = vunpack.c.l.b16 %v3582
  %v6758 = vunpack.c.h.b16 %v3582
  %v6759 = vunpack.c.l.b16 %v3583
  %v6760 = vunpack.c.h.b16 %v3583
  %v6761 = vunpack.c.l.b16 %v3584
  %v6762 = vunpack.c.h.b16 %v3584
  %v6763 = vunpack.c.l.b16 %v3585
  %v6764 = vunpack.c.h.b16 %v3585
  %v6765 = vunpack.c.l.b16 %v3586
  %v6766 = vunpack.c.h.b16 %v3586
  %v6767 = vunpack.c.l.b16 %v3587
  %v6768 = vunpack.c.h.b16 %v3587
  %v6769 = vpack.c.b16 %v6739, %v6737
  %v6770 = vpack.c.b16 %v6740, %v6738
  %v6771 = vpack.c.b16 %v6743, %v6741
  %v6772 = vpack.c.b16 %v6744, %v6742
  %v6773 = vpack.c.b16 %v6747, %v6745
  %v6774 = vpack.c.b16 %v6748, %v6746
  %v6775 = vpack.c.b16 %v6751, %v6749
  %v6776 = vpack.c.b16 %v6752, %v6750
  %v6777 = vpack.c.b16 %v6755, %v6753
  %v6778 = vpack.c.b16 %v6756, %v6754
  %v6779 = vpack.c.b16 %v6759, %v6757
  %v6780 = vpack.c.b16 %v6760, %v6758
  %v6781 = vpack.c.b16 %v6763, %v6761
  %v6782 = vpack.c.b16 %v6764, %v6762
  %v6783 = vpack.c.b16 %v6767, %v6765
  %v6784 = vpack.c.b16 %v6768, %v6766
  %v6794 = vsel %vm3852, %v6770, 0
  %v6797 = vsel %vm3852, %v6772, 0
  %v6800 = vsel %vm3852, %v6774, 0
  %v6803 = vsel %vm3852, %v6776, 0
  %v6806 = vsel %vm3852, %v6778, 0
  %v6809 = vsel %vm3852, %v6780, 0
  %v6812 = vsel %vm3852, %v6782, 0
  %v6815 = vsel %vm3852, %v6784, 0
  %v6817 = vsel %vm3243, %v2882, 0
  %6819 = vmatpush.bf16.msra.mxu0 %v3087
  %6820 = vmatpush.bf16.msra.mxu0 %v3086
  %6821 = vmatpush.bf16.msra.mxu0 %v3085
  %6822 = vmatpush.bf16.msra.mxu0 %v3306
  %6823 = vmatpush.bf16.msra.mxu0 %v2871
  %6824 = vmatpush.bf16.msra.mxu0 %v2870
  %6825 = vmatpush.bf16.msra.mxu0 %v2869
  %6826 = vmatpush.bf16.msra.mxu0 %v2868
  %6827 = vmatmul.bf16.gmra.mxu0 %v6769
  %v6828 = vpop.f32.mrf.mxu0
  %v6829 = vadd.f32 %v3703, %v6828
  %v6830 = vpop.f32.mrf.mxu0
  %v6831 = vadd.f32 %v3708, %v6830
  %6832 = vmatmul.bf16.gmra.mxu0 %v6771
  %v6833 = vpop.f32.mrf.mxu0
  %v6834 = vadd.f32 %v3713, %v6833
  %v6835 = vpop.f32.mrf.mxu0
  %v6836 = vadd.f32 %v3718, %v6835
  %6837 = vmatmul.bf16.gmra.mxu0 %v6773
  %v6838 = vpop.f32.mrf.mxu0
  %v6839 = vadd.f32 %v3723, %v6838
  %v6840 = vpop.f32.mrf.mxu0
  %v6841 = vadd.f32 %v3728, %v6840
  %6842 = vmatmul.bf16.gmra.mxu0 %v6775
  %v6843 = vpop.f32.mrf.mxu0
  %v6844 = vadd.f32 %v3733, %v6843
  %v6845 = vpop.f32.mrf.mxu0
  %v6846 = vadd.f32 %v3738, %v6845
  %6847 = vmatmul.bf16.gmra.mxu0 %v6777
  %v6848 = vpop.f32.mrf.mxu0
  %v6849 = vadd.f32 %v3743, %v6848
  %v6850 = vpop.f32.mrf.mxu0
  %v6851 = vadd.f32 %v3748, %v6850
  %6852 = vmatmul.bf16.gmra.mxu0 %v6779
  %v6853 = vpop.f32.mrf.mxu0
  %v6854 = vadd.f32 %v3753, %v6853
  %v6855 = vpop.f32.mrf.mxu0
  %v6856 = vadd.f32 %v3758, %v6855
  %6857 = vmatmul.bf16.gmra.mxu0 %v6781
  %v6858 = vpop.f32.mrf.mxu0
  %v6859 = vadd.f32 %v3763, %v6858
  %v6860 = vpop.f32.mrf.mxu0
  %v6861 = vadd.f32 %v3768, %v6860
  %6862 = vmatmul.bf16.gmra.mxu0 %v6783
  %v6863 = vpop.f32.mrf.mxu0
  %v6864 = vadd.f32 %v3773, %v6863
  %v6865 = vpop.f32.mrf.mxu0
  %v6866 = vadd.f32 %v3778, %v6865
  %6867 = vdwg.mxu0
  %6868 = vmatpush.bf16.msra.mxu0 0
  %6869 = vmatpush.bf16.msra.mxu0 0
  %6870 = vmatpush.bf16.msra.mxu0 %v6817
  %6871 = vmatpush.bf16.msra.mxu0 %v2881
  %6872 = vmatpush.bf16.msra.mxu0 %v2880
  %6873 = vmatpush.bf16.msra.mxu0 %v2879
  %6874 = vmatpush.bf16.msra.mxu0 %v2878
  %6875 = vmatpush.bf16.msra.mxu0 %v3088
  %6876 = vmatmul.bf16.gmra.mxu0 %v6794
  %v6877 = vpop.f32.mrf.mxu0
  %v6878 = vadd.f32 %v6829, %v6877
  %v6879 = vpop.f32.mrf.mxu0
  %v6880 = vadd.f32 %v6831, %v6879
  %6881 = vmatmul.bf16.gmra.mxu0 %v6797
  %v6882 = vpop.f32.mrf.mxu0
  %v6883 = vadd.f32 %v6834, %v6882
  %v6884 = vpop.f32.mrf.mxu0
  %v6885 = vadd.f32 %v6836, %v6884
  %6886 = vmatmul.bf16.gmra.mxu0 %v6800
  %v6887 = vpop.f32.mrf.mxu0
  %v6888 = vadd.f32 %v6839, %v6887
  %v6889 = vpop.f32.mrf.mxu0
  %v6890 = vadd.f32 %v6841, %v6889
  %6891 = vmatmul.bf16.gmra.mxu0 %v6803
  %v6892 = vpop.f32.mrf.mxu0
  %v6893 = vadd.f32 %v6844, %v6892
  %v6894 = vpop.f32.mrf.mxu0
  %v6895 = vadd.f32 %v6846, %v6894
  %6896 = vmatmul.bf16.gmra.mxu0 %v6806
  %v6897 = vpop.f32.mrf.mxu0
  %v6898 = vadd.f32 %v6849, %v6897
  %v6899 = vpop.f32.mrf.mxu0
  %v6900 = vadd.f32 %v6851, %v6899
  %6901 = vmatmul.bf16.gmra.mxu0 %v6809
  %v6902 = vpop.f32.mrf.mxu0
  %v6903 = vadd.f32 %v6854, %v6902
  %v6904 = vpop.f32.mrf.mxu0
  %v6905 = vadd.f32 %v6856, %v6904
  %6906 = vmatmul.bf16.gmra.mxu0 %v6812
  %v6907 = vpop.f32.mrf.mxu0
  %v6908 = vadd.f32 %v6859, %v6907
  %v6909 = vpop.f32.mrf.mxu0
  %v6910 = vadd.f32 %v6861, %v6909
  %6911 = vmatmul.bf16.gmra.mxu0 %v6815
  %v6912 = vpop.f32.mrf.mxu0
  %v6913 = vadd.f32 %v6864, %v6912
  %v6914 = vpop.f32.mrf.mxu0
  %v6915 = vadd.f32 %v6866, %v6914
  %6916 = vdwg.mxu0
  %v6933 = vunpack.c.l.b16 %v3588
  %v6934 = vunpack.c.h.b16 %v3588
  %v6935 = vunpack.c.l.b16 %v3589
  %v6936 = vunpack.c.h.b16 %v3589
  %v6937 = vunpack.c.l.b16 %v3590
  %v6938 = vunpack.c.h.b16 %v3590
  %v6939 = vunpack.c.l.b16 %v3591
  %v6940 = vunpack.c.h.b16 %v3591
  %v6941 = vunpack.c.l.b16 %v3592
  %v6942 = vunpack.c.h.b16 %v3592
  %v6943 = vunpack.c.l.b16 %v3593
  %v6944 = vunpack.c.h.b16 %v3593
  %v6945 = vunpack.c.l.b16 %v3594
  %v6946 = vunpack.c.h.b16 %v3594
  %v6947 = vunpack.c.l.b16 %v3595
  %v6948 = vunpack.c.h.b16 %v3595
  %v6949 = vunpack.c.l.b16 %v3596
  %v6950 = vunpack.c.h.b16 %v3596
  %v6951 = vunpack.c.l.b16 %v3597
  %v6952 = vunpack.c.h.b16 %v3597
  %v6953 = vunpack.c.l.b16 %v3598
  %v6954 = vunpack.c.h.b16 %v3598
  %v6955 = vunpack.c.l.b16 %v3599
  %v6956 = vunpack.c.h.b16 %v3599
  %v6957 = vunpack.c.l.b16 %v3600
  %v6958 = vunpack.c.h.b16 %v3600
  %v6959 = vunpack.c.l.b16 %v3601
  %v6960 = vunpack.c.h.b16 %v3601
  %v6961 = vunpack.c.l.b16 %v3602
  %v6962 = vunpack.c.h.b16 %v3602
  %v6963 = vunpack.c.l.b16 %v3603
  %v6964 = vunpack.c.h.b16 %v3603
  %v6965 = vpack.c.b16 %v6935, %v6933
  %v6966 = vpack.c.b16 %v6936, %v6934
  %v6967 = vpack.c.b16 %v6939, %v6937
  %v6968 = vpack.c.b16 %v6940, %v6938
  %v6969 = vpack.c.b16 %v6943, %v6941
  %v6970 = vpack.c.b16 %v6944, %v6942
  %v6971 = vpack.c.b16 %v6947, %v6945
  %v6972 = vpack.c.b16 %v6948, %v6946
  %v6973 = vpack.c.b16 %v6951, %v6949
  %v6974 = vpack.c.b16 %v6952, %v6950
  %v6975 = vpack.c.b16 %v6955, %v6953
  %v6976 = vpack.c.b16 %v6956, %v6954
  %v6977 = vpack.c.b16 %v6959, %v6957
  %v6978 = vpack.c.b16 %v6960, %v6958
  %v6979 = vpack.c.b16 %v6963, %v6961
  %v6980 = vpack.c.b16 %v6964, %v6962
  %v6990 = vsel %vm3852, %v6966, 0
  %v6993 = vsel %vm3852, %v6968, 0
  %v6996 = vsel %vm3852, %v6970, 0
  %v6999 = vsel %vm3852, %v6972, 0
  %v7002 = vsel %vm3852, %v6974, 0
  %v7005 = vsel %vm3852, %v6976, 0
  %v7008 = vsel %vm3852, %v6978, 0
  %v7011 = vsel %vm3852, %v6980, 0
  %v7013 = vsel %vm3243, %v2887, 0
  %7015 = vmatpush.bf16.msra.mxu0 %v3092
  %7016 = vmatpush.bf16.msra.mxu0 %v3091
  %7017 = vmatpush.bf16.msra.mxu0 %v3090
  %7018 = vmatpush.bf16.msra.mxu0 %v3310
  %7019 = vmatpush.bf16.msra.mxu0 %v2876
  %7020 = vmatpush.bf16.msra.mxu0 %v2875
  %7021 = vmatpush.bf16.msra.mxu0 %v2874
  %7022 = vmatpush.bf16.msra.mxu0 %v2873
  %7023 = vmatmul.bf16.gmra.mxu0 %v6965
  %v7024 = vpop.f32.mrf.mxu0
  %v7025 = vadd.f32 %v3703, %v7024
  %v7026 = vpop.f32.mrf.mxu0
  %v7027 = vadd.f32 %v3708, %v7026
  %7028 = vmatmul.bf16.gmra.mxu0 %v6967
  %v7029 = vpop.f32.mrf.mxu0
  %v7030 = vadd.f32 %v3713, %v7029
  %v7031 = vpop.f32.mrf.mxu0
  %v7032 = vadd.f32 %v3718, %v7031
  %7033 = vmatmul.bf16.gmra.mxu0 %v6969
  %v7034 = vpop.f32.mrf.mxu0
  %v7035 = vadd.f32 %v3723, %v7034
  %v7036 = vpop.f32.mrf.mxu0
  %v7037 = vadd.f32 %v3728, %v7036
  %7038 = vmatmul.bf16.gmra.mxu0 %v6971
  %v7039 = vpop.f32.mrf.mxu0
  %v7040 = vadd.f32 %v3733, %v7039
  %v7041 = vpop.f32.mrf.mxu0
  %v7042 = vadd.f32 %v3738, %v7041
  %7043 = vmatmul.bf16.gmra.mxu0 %v6973
  %v7044 = vpop.f32.mrf.mxu0
  %v7045 = vadd.f32 %v3743, %v7044
  %v7046 = vpop.f32.mrf.mxu0
  %v7047 = vadd.f32 %v3748, %v7046
  %7048 = vmatmul.bf16.gmra.mxu0 %v6975
  %v7049 = vpop.f32.mrf.mxu0
  %v7050 = vadd.f32 %v3753, %v7049
  %v7051 = vpop.f32.mrf.mxu0
  %v7052 = vadd.f32 %v3758, %v7051
  %7053 = vmatmul.bf16.gmra.mxu0 %v6977
  %v7054 = vpop.f32.mrf.mxu0
  %v7055 = vadd.f32 %v3763, %v7054
  %v7056 = vpop.f32.mrf.mxu0
  %v7057 = vadd.f32 %v3768, %v7056
  %7058 = vmatmul.bf16.gmra.mxu0 %v6979
  %v7059 = vpop.f32.mrf.mxu0
  %v7060 = vadd.f32 %v3773, %v7059
  %v7061 = vpop.f32.mrf.mxu0
  %v7062 = vadd.f32 %v3778, %v7061
  %7063 = vdwg.mxu0
  %7064 = vmatpush.bf16.msra.mxu0 0
  %7065 = vmatpush.bf16.msra.mxu0 0
  %7066 = vmatpush.bf16.msra.mxu0 %v7013
  %7067 = vmatpush.bf16.msra.mxu0 %v2886
  %7068 = vmatpush.bf16.msra.mxu0 %v2885
  %7069 = vmatpush.bf16.msra.mxu0 %v2884
  %7070 = vmatpush.bf16.msra.mxu0 %v2883
  %7071 = vmatpush.bf16.msra.mxu0 %v3093
  %7072 = vmatmul.bf16.gmra.mxu0 %v6990
  %v7073 = vpop.f32.mrf.mxu0
  %v7074 = vadd.f32 %v7025, %v7073
  %v7075 = vpop.f32.mrf.mxu0
  %v7076 = vadd.f32 %v7027, %v7075
  %7077 = vmatmul.bf16.gmra.mxu0 %v6993
  %v7078 = vpop.f32.mrf.mxu0
  %v7079 = vadd.f32 %v7030, %v7078
  %v7080 = vpop.f32.mrf.mxu0
  %v7081 = vadd.f32 %v7032, %v7080
  %7082 = vmatmul.bf16.gmra.mxu0 %v6996
  %v7083 = vpop.f32.mrf.mxu0
  %v7084 = vadd.f32 %v7035, %v7083
  %v7085 = vpop.f32.mrf.mxu0
  %v7086 = vadd.f32 %v7037, %v7085
  %7087 = vmatmul.bf16.gmra.mxu0 %v6999
  %v7088 = vpop.f32.mrf.mxu0
  %v7089 = vadd.f32 %v7040, %v7088
  %v7090 = vpop.f32.mrf.mxu0
  %v7091 = vadd.f32 %v7042, %v7090
  %7092 = vmatmul.bf16.gmra.mxu0 %v7002
  %v7093 = vpop.f32.mrf.mxu0
  %v7094 = vadd.f32 %v7045, %v7093
  %v7095 = vpop.f32.mrf.mxu0
  %v7096 = vadd.f32 %v7047, %v7095
  %7097 = vmatmul.bf16.gmra.mxu0 %v7005
  %v7098 = vpop.f32.mrf.mxu0
  %v7099 = vadd.f32 %v7050, %v7098
  %v7100 = vpop.f32.mrf.mxu0
  %v7101 = vadd.f32 %v7052, %v7100
  %7102 = vmatmul.bf16.gmra.mxu0 %v7008
  %v7103 = vpop.f32.mrf.mxu0
  %v7104 = vadd.f32 %v7055, %v7103
  %v7105 = vpop.f32.mrf.mxu0
  %v7106 = vadd.f32 %v7057, %v7105
  %7107 = vmatmul.bf16.gmra.mxu0 %v7011
  %v7108 = vpop.f32.mrf.mxu0
  %v7109 = vadd.f32 %v7060, %v7108
  %v7110 = vpop.f32.mrf.mxu0
  %v7111 = vadd.f32 %v7062, %v7110
  %7112 = vdwg.mxu0
  %v7129 = vunpack.c.l.b16 %v3604
  %v7130 = vunpack.c.h.b16 %v3604
  %v7131 = vunpack.c.l.b16 %v3605
  %v7132 = vunpack.c.h.b16 %v3605
  %v7133 = vunpack.c.l.b16 %v3606
  %v7134 = vunpack.c.h.b16 %v3606
  %v7135 = vunpack.c.l.b16 %v3607
  %v7136 = vunpack.c.h.b16 %v3607
  %v7137 = vunpack.c.l.b16 %v3608
  %v7138 = vunpack.c.h.b16 %v3608
  %v7139 = vunpack.c.l.b16 %v3609
  %v7140 = vunpack.c.h.b16 %v3609
  %v7141 = vunpack.c.l.b16 %v3610
  %v7142 = vunpack.c.h.b16 %v3610
  %v7143 = vunpack.c.l.b16 %v3611
  %v7144 = vunpack.c.h.b16 %v3611
  %v7145 = vunpack.c.l.b16 %v3612
  %v7146 = vunpack.c.h.b16 %v3612
  %v7147 = vunpack.c.l.b16 %v3613
  %v7148 = vunpack.c.h.b16 %v3613
  %v7149 = vunpack.c.l.b16 %v3614
  %v7150 = vunpack.c.h.b16 %v3614
  %v7151 = vunpack.c.l.b16 %v3615
  %v7152 = vunpack.c.h.b16 %v3615
  %v7153 = vunpack.c.l.b16 %v3616
  %v7154 = vunpack.c.h.b16 %v3616
  %v7155 = vunpack.c.l.b16 %v3617
  %v7156 = vunpack.c.h.b16 %v3617
  %v7157 = vunpack.c.l.b16 %v3618
  %v7158 = vunpack.c.h.b16 %v3618
  %v7159 = vunpack.c.l.b16 %v3619
  %v7160 = vunpack.c.h.b16 %v3619
  %v7161 = vpack.c.b16 %v7131, %v7129
  %v7162 = vpack.c.b16 %v7132, %v7130
  %v7163 = vpack.c.b16 %v7135, %v7133
  %v7164 = vpack.c.b16 %v7136, %v7134
  %v7165 = vpack.c.b16 %v7139, %v7137
  %v7166 = vpack.c.b16 %v7140, %v7138
  %v7167 = vpack.c.b16 %v7143, %v7141
  %v7168 = vpack.c.b16 %v7144, %v7142
  %v7169 = vpack.c.b16 %v7147, %v7145
  %v7170 = vpack.c.b16 %v7148, %v7146
  %v7171 = vpack.c.b16 %v7151, %v7149
  %v7172 = vpack.c.b16 %v7152, %v7150
  %v7173 = vpack.c.b16 %v7155, %v7153
  %v7174 = vpack.c.b16 %v7156, %v7154
  %v7175 = vpack.c.b16 %v7159, %v7157
  %v7176 = vpack.c.b16 %v7160, %v7158
  %v7186 = vsel %vm3852, %v7162, 0
  %v7189 = vsel %vm3852, %v7164, 0
  %v7192 = vsel %vm3852, %v7166, 0
  %v7195 = vsel %vm3852, %v7168, 0
  %v7198 = vsel %vm3852, %v7170, 0
  %v7201 = vsel %vm3852, %v7172, 0
  %v7204 = vsel %vm3852, %v7174, 0
  %v7207 = vsel %vm3852, %v7176, 0
  %v7209 = vsel %vm3243, %v2892, 0
  %7211 = vmatpush.bf16.msra.mxu0 %v3097
  %7212 = vmatpush.bf16.msra.mxu0 %v3096
  %7213 = vmatpush.bf16.msra.mxu0 %v3095
  %7214 = vmatpush.bf16.msra.mxu0 %v3314
  %7215 = vmatpush.bf16.msra.mxu0 %v2881
  %7216 = vmatpush.bf16.msra.mxu0 %v2880
  %7217 = vmatpush.bf16.msra.mxu0 %v2879
  %7218 = vmatpush.bf16.msra.mxu0 %v2878
  %7219 = vmatmul.bf16.gmra.mxu0 %v7161
  %v7220 = vpop.f32.mrf.mxu0
  %v7221 = vadd.f32 %v3703, %v7220
  %v7222 = vpop.f32.mrf.mxu0
  %v7223 = vadd.f32 %v3708, %v7222
  %7224 = vmatmul.bf16.gmra.mxu0 %v7163
  %v7225 = vpop.f32.mrf.mxu0
  %v7226 = vadd.f32 %v3713, %v7225
  %v7227 = vpop.f32.mrf.mxu0
  %v7228 = vadd.f32 %v3718, %v7227
  %7229 = vmatmul.bf16.gmra.mxu0 %v7165
  %v7230 = vpop.f32.mrf.mxu0
  %v7231 = vadd.f32 %v3723, %v7230
  %v7232 = vpop.f32.mrf.mxu0
  %v7233 = vadd.f32 %v3728, %v7232
  %7234 = vmatmul.bf16.gmra.mxu0 %v7167
  %v7235 = vpop.f32.mrf.mxu0
  %v7236 = vadd.f32 %v3733, %v7235
  %v7237 = vpop.f32.mrf.mxu0
  %v7238 = vadd.f32 %v3738, %v7237
  %7239 = vmatmul.bf16.gmra.mxu0 %v7169
  %v7240 = vpop.f32.mrf.mxu0
  %v7241 = vadd.f32 %v3743, %v7240
  %v7242 = vpop.f32.mrf.mxu0
  %v7243 = vadd.f32 %v3748, %v7242
  %7244 = vmatmul.bf16.gmra.mxu0 %v7171
  %v7245 = vpop.f32.mrf.mxu0
  %v7246 = vadd.f32 %v3753, %v7245
  %v7247 = vpop.f32.mrf.mxu0
  %v7248 = vadd.f32 %v3758, %v7247
  %7249 = vmatmul.bf16.gmra.mxu0 %v7173
  %v7250 = vpop.f32.mrf.mxu0
  %v7251 = vadd.f32 %v3763, %v7250
  %v7252 = vpop.f32.mrf.mxu0
  %v7253 = vadd.f32 %v3768, %v7252
  %7254 = vmatmul.bf16.gmra.mxu0 %v7175
  %v7255 = vpop.f32.mrf.mxu0
  %v7256 = vadd.f32 %v3773, %v7255
  %v7257 = vpop.f32.mrf.mxu0
  %v7258 = vadd.f32 %v3778, %v7257
  %7259 = vdwg.mxu0
  %7260 = vmatpush.bf16.msra.mxu0 0
  %7261 = vmatpush.bf16.msra.mxu0 0
  %7262 = vmatpush.bf16.msra.mxu0 %v7209
  %7263 = vmatpush.bf16.msra.mxu0 %v2891
  %7264 = vmatpush.bf16.msra.mxu0 %v2890
  %7265 = vmatpush.bf16.msra.mxu0 %v2889
  %7266 = vmatpush.bf16.msra.mxu0 %v2888
  %7267 = vmatpush.bf16.msra.mxu0 %v3098
  %7268 = vmatmul.bf16.gmra.mxu0 %v7186
  %v7269 = vpop.f32.mrf.mxu0
  %v7270 = vadd.f32 %v7221, %v7269
  %v7271 = vpop.f32.mrf.mxu0
  %v7272 = vadd.f32 %v7223, %v7271
  %7273 = vmatmul.bf16.gmra.mxu0 %v7189
  %v7274 = vpop.f32.mrf.mxu0
  %v7275 = vadd.f32 %v7226, %v7274
  %v7276 = vpop.f32.mrf.mxu0
  %v7277 = vadd.f32 %v7228, %v7276
  %7278 = vmatmul.bf16.gmra.mxu0 %v7192
  %v7279 = vpop.f32.mrf.mxu0
  %v7280 = vadd.f32 %v7231, %v7279
  %v7281 = vpop.f32.mrf.mxu0
  %v7282 = vadd.f32 %v7233, %v7281
  %7283 = vmatmul.bf16.gmra.mxu0 %v7195
  %v7284 = vpop.f32.mrf.mxu0
  %v7285 = vadd.f32 %v7236, %v7284
  %v7286 = vpop.f32.mrf.mxu0
  %v7287 = vadd.f32 %v7238, %v7286
  %7288 = vmatmul.bf16.gmra.mxu0 %v7198
  %v7289 = vpop.f32.mrf.mxu0
  %v7290 = vadd.f32 %v7241, %v7289
  %v7291 = vpop.f32.mrf.mxu0
  %v7292 = vadd.f32 %v7243, %v7291
  %7293 = vmatmul.bf16.gmra.mxu0 %v7201
  %v7294 = vpop.f32.mrf.mxu0
  %v7295 = vadd.f32 %v7246, %v7294
  %v7296 = vpop.f32.mrf.mxu0
  %v7297 = vadd.f32 %v7248, %v7296
  %7298 = vmatmul.bf16.gmra.mxu0 %v7204
  %v7299 = vpop.f32.mrf.mxu0
  %v7300 = vadd.f32 %v7251, %v7299
  %v7301 = vpop.f32.mrf.mxu0
  %v7302 = vadd.f32 %v7253, %v7301
  %7303 = vmatmul.bf16.gmra.mxu0 %v7207
  %v7304 = vpop.f32.mrf.mxu0
  %v7305 = vadd.f32 %v7256, %v7304
  %v7306 = vpop.f32.mrf.mxu0
  %v7307 = vadd.f32 %v7258, %v7306
  %7308 = vdwg.mxu0
  %v7325 = vunpack.c.l.b16 %v3620
  %v7326 = vunpack.c.h.b16 %v3620
  %v7327 = vunpack.c.l.b16 %v3621
  %v7328 = vunpack.c.h.b16 %v3621
  %v7329 = vunpack.c.l.b16 %v3622
  %v7330 = vunpack.c.h.b16 %v3622
  %v7331 = vunpack.c.l.b16 %v3623
  %v7332 = vunpack.c.h.b16 %v3623
  %v7333 = vunpack.c.l.b16 %v3624
  %v7334 = vunpack.c.h.b16 %v3624
  %v7335 = vunpack.c.l.b16 %v3625
  %v7336 = vunpack.c.h.b16 %v3625
  %v7337 = vunpack.c.l.b16 %v3626
  %v7338 = vunpack.c.h.b16 %v3626
  %v7339 = vunpack.c.l.b16 %v3627
  %v7340 = vunpack.c.h.b16 %v3627
  %v7341 = vunpack.c.l.b16 %v3628
  %v7342 = vunpack.c.h.b16 %v3628
  %v7343 = vunpack.c.l.b16 %v3629
  %v7344 = vunpack.c.h.b16 %v3629
  %v7345 = vunpack.c.l.b16 %v3630
  %v7346 = vunpack.c.h.b16 %v3630
  %v7347 = vunpack.c.l.b16 %v3631
  %v7348 = vunpack.c.h.b16 %v3631
  %v7349 = vunpack.c.l.b16 %v3632
  %v7350 = vunpack.c.h.b16 %v3632
  %v7351 = vunpack.c.l.b16 %v3633
  %v7352 = vunpack.c.h.b16 %v3633
  %v7353 = vunpack.c.l.b16 %v3634
  %v7354 = vunpack.c.h.b16 %v3634
  %v7355 = vunpack.c.l.b16 %v3635
  %v7356 = vunpack.c.h.b16 %v3635
  %v7357 = vpack.c.b16 %v7327, %v7325
  %v7358 = vpack.c.b16 %v7328, %v7326
  %v7359 = vpack.c.b16 %v7331, %v7329
  %v7360 = vpack.c.b16 %v7332, %v7330
  %v7361 = vpack.c.b16 %v7335, %v7333
  %v7362 = vpack.c.b16 %v7336, %v7334
  %v7363 = vpack.c.b16 %v7339, %v7337
  %v7364 = vpack.c.b16 %v7340, %v7338
  %v7365 = vpack.c.b16 %v7343, %v7341
  %v7366 = vpack.c.b16 %v7344, %v7342
  %v7367 = vpack.c.b16 %v7347, %v7345
  %v7368 = vpack.c.b16 %v7348, %v7346
  %v7369 = vpack.c.b16 %v7351, %v7349
  %v7370 = vpack.c.b16 %v7352, %v7350
  %v7371 = vpack.c.b16 %v7355, %v7353
  %v7372 = vpack.c.b16 %v7356, %v7354
  %v7382 = vsel %vm3852, %v7358, 0
  %v7385 = vsel %vm3852, %v7360, 0
  %v7388 = vsel %vm3852, %v7362, 0
  %v7391 = vsel %vm3852, %v7364, 0
  %v7394 = vsel %vm3852, %v7366, 0
  %v7397 = vsel %vm3852, %v7368, 0
  %v7400 = vsel %vm3852, %v7370, 0
  %v7403 = vsel %vm3852, %v7372, 0
  %v7405 = vsel %vm3243, %v2897, 0
  %7407 = vmatpush.bf16.msra.mxu0 %v3102
  %7408 = vmatpush.bf16.msra.mxu0 %v3101
  %7409 = vmatpush.bf16.msra.mxu0 %v3100
  %7410 = vmatpush.bf16.msra.mxu0 %v3318
  %7411 = vmatpush.bf16.msra.mxu0 %v2886
  %7412 = vmatpush.bf16.msra.mxu0 %v2885
  %7413 = vmatpush.bf16.msra.mxu0 %v2884
  %7414 = vmatpush.bf16.msra.mxu0 %v2883
  %7415 = vmatmul.bf16.gmra.mxu0 %v7357
  %v7416 = vpop.f32.mrf.mxu0
  %v7417 = vadd.f32 %v3703, %v7416
  %v7418 = vpop.f32.mrf.mxu0
  %v7419 = vadd.f32 %v3708, %v7418
  %7420 = vmatmul.bf16.gmra.mxu0 %v7359
  %v7421 = vpop.f32.mrf.mxu0
  %v7422 = vadd.f32 %v3713, %v7421
  %v7423 = vpop.f32.mrf.mxu0
  %v7424 = vadd.f32 %v3718, %v7423
  %7425 = vmatmul.bf16.gmra.mxu0 %v7361
  %v7426 = vpop.f32.mrf.mxu0
  %v7427 = vadd.f32 %v3723, %v7426
  %v7428 = vpop.f32.mrf.mxu0
  %v7429 = vadd.f32 %v3728, %v7428
  %7430 = vmatmul.bf16.gmra.mxu0 %v7363
  %v7431 = vpop.f32.mrf.mxu0
  %v7432 = vadd.f32 %v3733, %v7431
  %v7433 = vpop.f32.mrf.mxu0
  %v7434 = vadd.f32 %v3738, %v7433
  %7435 = vmatmul.bf16.gmra.mxu0 %v7365
  %v7436 = vpop.f32.mrf.mxu0
  %v7437 = vadd.f32 %v3743, %v7436
  %v7438 = vpop.f32.mrf.mxu0
  %v7439 = vadd.f32 %v3748, %v7438
  %7440 = vmatmul.bf16.gmra.mxu0 %v7367
  %v7441 = vpop.f32.mrf.mxu0
  %v7442 = vadd.f32 %v3753, %v7441
  %v7443 = vpop.f32.mrf.mxu0
  %v7444 = vadd.f32 %v3758, %v7443
  %7445 = vmatmul.bf16.gmra.mxu0 %v7369
  %v7446 = vpop.f32.mrf.mxu0
  %v7447 = vadd.f32 %v3763, %v7446
  %v7448 = vpop.f32.mrf.mxu0
  %v7449 = vadd.f32 %v3768, %v7448
  %7450 = vmatmul.bf16.gmra.mxu0 %v7371
  %v7451 = vpop.f32.mrf.mxu0
  %v7452 = vadd.f32 %v3773, %v7451
  %v7453 = vpop.f32.mrf.mxu0
  %v7454 = vadd.f32 %v3778, %v7453
  %7455 = vdwg.mxu0
  %7456 = vmatpush.bf16.msra.mxu0 0
  %7457 = vmatpush.bf16.msra.mxu0 0
  %7458 = vmatpush.bf16.msra.mxu0 %v7405
  %7459 = vmatpush.bf16.msra.mxu0 %v2896
  %7460 = vmatpush.bf16.msra.mxu0 %v2895
  %7461 = vmatpush.bf16.msra.mxu0 %v2894
  %7462 = vmatpush.bf16.msra.mxu0 %v2893
  %7463 = vmatpush.bf16.msra.mxu0 %v3103
  %7464 = vmatmul.bf16.gmra.mxu0 %v7382
  %v7465 = vpop.f32.mrf.mxu0
  %v7466 = vadd.f32 %v7417, %v7465
  %v7467 = vpop.f32.mrf.mxu0
  %v7468 = vadd.f32 %v7419, %v7467
  %7469 = vmatmul.bf16.gmra.mxu0 %v7385
  %v7470 = vpop.f32.mrf.mxu0
  %v7471 = vadd.f32 %v7422, %v7470
  %v7472 = vpop.f32.mrf.mxu0
  %v7473 = vadd.f32 %v7424, %v7472
  %7474 = vmatmul.bf16.gmra.mxu0 %v7388
  %v7475 = vpop.f32.mrf.mxu0
  %v7476 = vadd.f32 %v7427, %v7475
  %v7477 = vpop.f32.mrf.mxu0
  %v7478 = vadd.f32 %v7429, %v7477
  %7479 = vmatmul.bf16.gmra.mxu0 %v7391
  %v7480 = vpop.f32.mrf.mxu0
  %v7481 = vadd.f32 %v7432, %v7480
  %v7482 = vpop.f32.mrf.mxu0
  %v7483 = vadd.f32 %v7434, %v7482
  %7484 = vmatmul.bf16.gmra.mxu0 %v7394
  %v7485 = vpop.f32.mrf.mxu0
  %v7486 = vadd.f32 %v7437, %v7485
  %v7487 = vpop.f32.mrf.mxu0
  %v7488 = vadd.f32 %v7439, %v7487
  %7489 = vmatmul.bf16.gmra.mxu0 %v7397
  %v7490 = vpop.f32.mrf.mxu0
  %v7491 = vadd.f32 %v7442, %v7490
  %v7492 = vpop.f32.mrf.mxu0
  %v7493 = vadd.f32 %v7444, %v7492
  %7494 = vmatmul.bf16.gmra.mxu0 %v7400
  %v7495 = vpop.f32.mrf.mxu0
  %v7496 = vadd.f32 %v7447, %v7495
  %v7497 = vpop.f32.mrf.mxu0
  %v7498 = vadd.f32 %v7449, %v7497
  %7499 = vmatmul.bf16.gmra.mxu0 %v7403
  %v7500 = vpop.f32.mrf.mxu0
  %v7501 = vadd.f32 %v7452, %v7500
  %v7502 = vpop.f32.mrf.mxu0
  %v7503 = vadd.f32 %v7454, %v7502
  %7504 = vdwg.mxu0
  %v7521 = vunpack.c.l.b16 %v3636
  %v7522 = vunpack.c.h.b16 %v3636
  %v7523 = vunpack.c.l.b16 %v3637
  %v7524 = vunpack.c.h.b16 %v3637
  %v7525 = vunpack.c.l.b16 %v3638
  %v7526 = vunpack.c.h.b16 %v3638
  %v7527 = vunpack.c.l.b16 %v3639
  %v7528 = vunpack.c.h.b16 %v3639
  %v7529 = vunpack.c.l.b16 %v3640
  %v7530 = vunpack.c.h.b16 %v3640
  %v7531 = vunpack.c.l.b16 %v3641
  %v7532 = vunpack.c.h.b16 %v3641
  %v7533 = vunpack.c.l.b16 %v3642
  %v7534 = vunpack.c.h.b16 %v3642
  %v7535 = vunpack.c.l.b16 %v3643
  %v7536 = vunpack.c.h.b16 %v3643
  %v7537 = vunpack.c.l.b16 %v3644
  %v7538 = vunpack.c.h.b16 %v3644
  %v7539 = vunpack.c.l.b16 %v3645
  %v7540 = vunpack.c.h.b16 %v3645
  %v7541 = vunpack.c.l.b16 %v3646
  %v7542 = vunpack.c.h.b16 %v3646
  %v7543 = vunpack.c.l.b16 %v3647
  %v7544 = vunpack.c.h.b16 %v3647
  %v7545 = vunpack.c.l.b16 %v3648
  %v7546 = vunpack.c.h.b16 %v3648
  %v7547 = vunpack.c.l.b16 %v3649
  %v7548 = vunpack.c.h.b16 %v3649
  %v7549 = vunpack.c.l.b16 %v3650
  %v7550 = vunpack.c.h.b16 %v3650
  %v7551 = vunpack.c.l.b16 %v3651
  %v7552 = vunpack.c.h.b16 %v3651
  %v7553 = vpack.c.b16 %v7523, %v7521
  %v7554 = vpack.c.b16 %v7524, %v7522
  %v7555 = vpack.c.b16 %v7527, %v7525
  %v7556 = vpack.c.b16 %v7528, %v7526
  %v7557 = vpack.c.b16 %v7531, %v7529
  %v7558 = vpack.c.b16 %v7532, %v7530
  %v7559 = vpack.c.b16 %v7535, %v7533
  %v7560 = vpack.c.b16 %v7536, %v7534
  %v7561 = vpack.c.b16 %v7539, %v7537
  %v7562 = vpack.c.b16 %v7540, %v7538
  %v7563 = vpack.c.b16 %v7543, %v7541
  %v7564 = vpack.c.b16 %v7544, %v7542
  %v7565 = vpack.c.b16 %v7547, %v7545
  %v7566 = vpack.c.b16 %v7548, %v7546
  %v7567 = vpack.c.b16 %v7551, %v7549
  %v7568 = vpack.c.b16 %v7552, %v7550
  %v7578 = vsel %vm3852, %v7554, 0
  %v7581 = vsel %vm3852, %v7556, 0
  %v7584 = vsel %vm3852, %v7558, 0
  %v7587 = vsel %vm3852, %v7560, 0
  %v7590 = vsel %vm3852, %v7562, 0
  %v7593 = vsel %vm3852, %v7564, 0
  %v7596 = vsel %vm3852, %v7566, 0
  %v7599 = vsel %vm3852, %v7568, 0
  %v7601 = vsel %vm3243, %v2902, 0
  %7603 = vmatpush.bf16.msra.mxu0 %v3107
  %7604 = vmatpush.bf16.msra.mxu0 %v3106
  %7605 = vmatpush.bf16.msra.mxu0 %v3105
  %7606 = vmatpush.bf16.msra.mxu0 %v3322
  %7607 = vmatpush.bf16.msra.mxu0 %v2891
  %7608 = vmatpush.bf16.msra.mxu0 %v2890
  %7609 = vmatpush.bf16.msra.mxu0 %v2889
  %7610 = vmatpush.bf16.msra.mxu0 %v2888
  %7611 = vmatmul.bf16.gmra.mxu0 %v7553
  %v7612 = vpop.f32.mrf.mxu0
  %v7613 = vadd.f32 %v3703, %v7612
  %v7614 = vpop.f32.mrf.mxu0
  %v7615 = vadd.f32 %v3708, %v7614
  %7616 = vmatmul.bf16.gmra.mxu0 %v7555
  %v7617 = vpop.f32.mrf.mxu0
  %v7618 = vadd.f32 %v3713, %v7617
  %v7619 = vpop.f32.mrf.mxu0
  %v7620 = vadd.f32 %v3718, %v7619
  %7621 = vmatmul.bf16.gmra.mxu0 %v7557
  %v7622 = vpop.f32.mrf.mxu0
  %v7623 = vadd.f32 %v3723, %v7622
  %v7624 = vpop.f32.mrf.mxu0
  %v7625 = vadd.f32 %v3728, %v7624
  %7626 = vmatmul.bf16.gmra.mxu0 %v7559
  %v7627 = vpop.f32.mrf.mxu0
  %v7628 = vadd.f32 %v3733, %v7627
  %v7629 = vpop.f32.mrf.mxu0
  %v7630 = vadd.f32 %v3738, %v7629
  %7631 = vmatmul.bf16.gmra.mxu0 %v7561
  %v7632 = vpop.f32.mrf.mxu0
  %v7633 = vadd.f32 %v3743, %v7632
  %v7634 = vpop.f32.mrf.mxu0
  %v7635 = vadd.f32 %v3748, %v7634
  %7636 = vmatmul.bf16.gmra.mxu0 %v7563
  %v7637 = vpop.f32.mrf.mxu0
  %v7638 = vadd.f32 %v3753, %v7637
  %v7639 = vpop.f32.mrf.mxu0
  %v7640 = vadd.f32 %v3758, %v7639
  %7641 = vmatmul.bf16.gmra.mxu0 %v7565
  %v7642 = vpop.f32.mrf.mxu0
  %v7643 = vadd.f32 %v3763, %v7642
  %v7644 = vpop.f32.mrf.mxu0
  %v7645 = vadd.f32 %v3768, %v7644
  %7646 = vmatmul.bf16.gmra.mxu0 %v7567
  %v7647 = vpop.f32.mrf.mxu0
  %v7648 = vadd.f32 %v3773, %v7647
  %v7649 = vpop.f32.mrf.mxu0
  %v7650 = vadd.f32 %v3778, %v7649
  %7651 = vdwg.mxu0
  %7652 = vmatpush.bf16.msra.mxu0 0
  %7653 = vmatpush.bf16.msra.mxu0 0
  %7654 = vmatpush.bf16.msra.mxu0 %v7601
  %7655 = vmatpush.bf16.msra.mxu0 %v2901
  %7656 = vmatpush.bf16.msra.mxu0 %v2900
  %7657 = vmatpush.bf16.msra.mxu0 %v2899
  %7658 = vmatpush.bf16.msra.mxu0 %v2898
  %7659 = vmatpush.bf16.msra.mxu0 %v3108
  %7660 = vmatmul.bf16.gmra.mxu0 %v7578
  %v7661 = vpop.f32.mrf.mxu0
  %v7662 = vadd.f32 %v7613, %v7661
  %v7663 = vpop.f32.mrf.mxu0
  %v7664 = vadd.f32 %v7615, %v7663
  %7665 = vmatmul.bf16.gmra.mxu0 %v7581
  %v7666 = vpop.f32.mrf.mxu0
  %v7667 = vadd.f32 %v7618, %v7666
  %v7668 = vpop.f32.mrf.mxu0
  %v7669 = vadd.f32 %v7620, %v7668
  %7670 = vmatmul.bf16.gmra.mxu0 %v7584
  %v7671 = vpop.f32.mrf.mxu0
  %v7672 = vadd.f32 %v7623, %v7671
  %v7673 = vpop.f32.mrf.mxu0
  %v7674 = vadd.f32 %v7625, %v7673
  %7675 = vmatmul.bf16.gmra.mxu0 %v7587
  %v7676 = vpop.f32.mrf.mxu0
  %v7677 = vadd.f32 %v7628, %v7676
  %v7678 = vpop.f32.mrf.mxu0
  %v7679 = vadd.f32 %v7630, %v7678
  %7680 = vmatmul.bf16.gmra.mxu0 %v7590
  %v7681 = vpop.f32.mrf.mxu0
  %v7682 = vadd.f32 %v7633, %v7681
  %v7683 = vpop.f32.mrf.mxu0
  %v7684 = vadd.f32 %v7635, %v7683
  %7685 = vmatmul.bf16.gmra.mxu0 %v7593
  %v7686 = vpop.f32.mrf.mxu0
  %v7687 = vadd.f32 %v7638, %v7686
  %v7688 = vpop.f32.mrf.mxu0
  %v7689 = vadd.f32 %v7640, %v7688
  %7690 = vmatmul.bf16.gmra.mxu0 %v7596
  %v7691 = vpop.f32.mrf.mxu0
  %v7692 = vadd.f32 %v7643, %v7691
  %v7693 = vpop.f32.mrf.mxu0
  %v7694 = vadd.f32 %v7645, %v7693
  %7695 = vmatmul.bf16.gmra.mxu0 %v7599
  %v7696 = vpop.f32.mrf.mxu0
  %v7697 = vadd.f32 %v7648, %v7696
  %v7698 = vpop.f32.mrf.mxu0
  %v7699 = vadd.f32 %v7650, %v7698
  %7700 = vdwg.mxu0
  %v7717 = vunpack.c.l.b16 %v3652
  %v7718 = vunpack.c.h.b16 %v3652
  %v7719 = vunpack.c.l.b16 %v3653
  %v7720 = vunpack.c.h.b16 %v3653
  %v7721 = vunpack.c.l.b16 %v3654
  %v7722 = vunpack.c.h.b16 %v3654
  %v7723 = vunpack.c.l.b16 %v3655
  %v7724 = vunpack.c.h.b16 %v3655
  %v7725 = vunpack.c.l.b16 %v3656
  %v7726 = vunpack.c.h.b16 %v3656
  %v7727 = vunpack.c.l.b16 %v3657
  %v7728 = vunpack.c.h.b16 %v3657
  %v7729 = vunpack.c.l.b16 %v3658
  %v7730 = vunpack.c.h.b16 %v3658
  %v7731 = vunpack.c.l.b16 %v3659
  %v7732 = vunpack.c.h.b16 %v3659
  %v7733 = vunpack.c.l.b16 %v3660
  %v7734 = vunpack.c.h.b16 %v3660
  %v7735 = vunpack.c.l.b16 %v3661
  %v7736 = vunpack.c.h.b16 %v3661
  %v7737 = vunpack.c.l.b16 %v3662
  %v7738 = vunpack.c.h.b16 %v3662
  %v7739 = vunpack.c.l.b16 %v3663
  %v7740 = vunpack.c.h.b16 %v3663
  %v7741 = vunpack.c.l.b16 %v3664
  %v7742 = vunpack.c.h.b16 %v3664
  %v7743 = vunpack.c.l.b16 %v3665
  %v7744 = vunpack.c.h.b16 %v3665
  %v7745 = vunpack.c.l.b16 %v3666
  %v7746 = vunpack.c.h.b16 %v3666
  %v7747 = vunpack.c.l.b16 %v3667
  %v7748 = vunpack.c.h.b16 %v3667
  %v7749 = vpack.c.b16 %v7719, %v7717
  %v7750 = vpack.c.b16 %v7720, %v7718
  %v7751 = vpack.c.b16 %v7723, %v7721
  %v7752 = vpack.c.b16 %v7724, %v7722
  %v7753 = vpack.c.b16 %v7727, %v7725
  %v7754 = vpack.c.b16 %v7728, %v7726
  %v7755 = vpack.c.b16 %v7731, %v7729
  %v7756 = vpack.c.b16 %v7732, %v7730
  %v7757 = vpack.c.b16 %v7735, %v7733
  %v7758 = vpack.c.b16 %v7736, %v7734
  %v7759 = vpack.c.b16 %v7739, %v7737
  %v7760 = vpack.c.b16 %v7740, %v7738
  %v7761 = vpack.c.b16 %v7743, %v7741
  %v7762 = vpack.c.b16 %v7744, %v7742
  %v7763 = vpack.c.b16 %v7747, %v7745
  %v7764 = vpack.c.b16 %v7748, %v7746
  %v7774 = vsel %vm3852, %v7750, 0
  %v7777 = vsel %vm3852, %v7752, 0
  %v7780 = vsel %vm3852, %v7754, 0
  %v7783 = vsel %vm3852, %v7756, 0
  %v7786 = vsel %vm3852, %v7758, 0
  %v7789 = vsel %vm3852, %v7760, 0
  %v7792 = vsel %vm3852, %v7762, 0
  %v7795 = vsel %vm3852, %v7764, 0
  %v7798 = vsel %vm3243, %v3229, 0
  %7800 = vmatpush.bf16.msra.mxu0 %v3112
  %7801 = vmatpush.bf16.msra.mxu0 %v3111
  %7802 = vmatpush.bf16.msra.mxu0 %v3110
  %7803 = vmatpush.bf16.msra.mxu0 %v3326
  %7804 = vmatpush.bf16.msra.mxu0 %v2896
  %7805 = vmatpush.bf16.msra.mxu0 %v2895
  %7806 = vmatpush.bf16.msra.mxu0 %v2894
  %7807 = vmatpush.bf16.msra.mxu0 %v2893
  %7808 = vmatmul.bf16.gmra.mxu0 %v7749
  %v7809 = vpop.f32.mrf.mxu0
  %v7810 = vadd.f32 %v3703, %v7809
  %v7811 = vpop.f32.mrf.mxu0
  %v7812 = vadd.f32 %v3708, %v7811
  %7813 = vmatmul.bf16.gmra.mxu0 %v7751
  %v7814 = vpop.f32.mrf.mxu0
  %v7815 = vadd.f32 %v3713, %v7814
  %v7816 = vpop.f32.mrf.mxu0
  %v7817 = vadd.f32 %v3718, %v7816
  %7818 = vmatmul.bf16.gmra.mxu0 %v7753
  %v7819 = vpop.f32.mrf.mxu0
  %v7820 = vadd.f32 %v3723, %v7819
  %v7821 = vpop.f32.mrf.mxu0
  %v7822 = vadd.f32 %v3728, %v7821
  %7823 = vmatmul.bf16.gmra.mxu0 %v7755
  %v7824 = vpop.f32.mrf.mxu0
  %v7825 = vadd.f32 %v3733, %v7824
  %v7826 = vpop.f32.mrf.mxu0
  %v7827 = vadd.f32 %v3738, %v7826
  %7828 = vmatmul.bf16.gmra.mxu0 %v7757
  %v7829 = vpop.f32.mrf.mxu0
  %v7830 = vadd.f32 %v3743, %v7829
  %v7831 = vpop.f32.mrf.mxu0
  %v7832 = vadd.f32 %v3748, %v7831
  %7833 = vmatmul.bf16.gmra.mxu0 %v7759
  %v7834 = vpop.f32.mrf.mxu0
  %v7835 = vadd.f32 %v3753, %v7834
  %v7836 = vpop.f32.mrf.mxu0
  %v7837 = vadd.f32 %v3758, %v7836
  %7838 = vmatmul.bf16.gmra.mxu0 %v7761
  %v7839 = vpop.f32.mrf.mxu0
  %v7840 = vadd.f32 %v3763, %v7839
  %v7841 = vpop.f32.mrf.mxu0
  %v7842 = vadd.f32 %v3768, %v7841
  %7843 = vmatmul.bf16.gmra.mxu0 %v7763
  %v7844 = vpop.f32.mrf.mxu0
  %v7845 = vadd.f32 %v3773, %v7844
  %v7846 = vpop.f32.mrf.mxu0
  %v7847 = vadd.f32 %v3778, %v7846
  %7848 = vdwg.mxu0
  %7849 = vmatpush.bf16.msra.mxu0 0
  %7850 = vmatpush.bf16.msra.mxu0 0
  %7851 = vmatpush.bf16.msra.mxu0 %v7798
  %7852 = vmatpush.bf16.msra.mxu0 %v3228
  %7853 = vmatpush.bf16.msra.mxu0 %v3227
  %7854 = vmatpush.bf16.msra.mxu0 %v3226
  %7855 = vmatpush.bf16.msra.mxu0 %v3225
  %7856 = vmatpush.bf16.msra.mxu0 %v3113
  %7857 = vmatmul.bf16.gmra.mxu0 %v7774
  %v7858 = vpop.f32.mrf.mxu0
  %v7859 = vadd.f32 %v7810, %v7858
  %v7860 = vpop.f32.mrf.mxu0
  %v7861 = vadd.f32 %v7812, %v7860
  %7862 = vmatmul.bf16.gmra.mxu0 %v7777
  %v7863 = vpop.f32.mrf.mxu0
  %v7864 = vadd.f32 %v7815, %v7863
  %v7865 = vpop.f32.mrf.mxu0
  %v7866 = vadd.f32 %v7817, %v7865
  %7867 = vmatmul.bf16.gmra.mxu0 %v7780
  %v7868 = vpop.f32.mrf.mxu0
  %v7869 = vadd.f32 %v7820, %v7868
  %v7870 = vpop.f32.mrf.mxu0
  %v7871 = vadd.f32 %v7822, %v7870
  %7872 = vmatmul.bf16.gmra.mxu0 %v7783
  %v7873 = vpop.f32.mrf.mxu0
  %v7874 = vadd.f32 %v7825, %v7873
  %v7875 = vpop.f32.mrf.mxu0
  %v7876 = vadd.f32 %v7827, %v7875
  %7877 = vmatmul.bf16.gmra.mxu0 %v7786
  %v7878 = vpop.f32.mrf.mxu0
  %v7879 = vadd.f32 %v7830, %v7878
  %v7880 = vpop.f32.mrf.mxu0
  %v7881 = vadd.f32 %v7832, %v7880
  %7882 = vmatmul.bf16.gmra.mxu0 %v7789
  %v7883 = vpop.f32.mrf.mxu0
  %v7884 = vadd.f32 %v7835, %v7883
  %v7885 = vpop.f32.mrf.mxu0
  %v7886 = vadd.f32 %v7837, %v7885
  %7887 = vmatmul.bf16.gmra.mxu0 %v7792
  %v7888 = vpop.f32.mrf.mxu0
  %v7889 = vadd.f32 %v7840, %v7888
  %v7890 = vpop.f32.mrf.mxu0
  %v7891 = vadd.f32 %v7842, %v7890
  %7892 = vmatmul.bf16.gmra.mxu0 %v7795
  %v7893 = vpop.f32.mrf.mxu0
  %v7894 = vadd.f32 %v7845, %v7893
  %v7895 = vpop.f32.mrf.mxu0
  %v7896 = vadd.f32 %v7847, %v7895
  %7897 = vdwg.mxu0
  %v7914 = vunpack.c.l.b16 %v3668
  %v7915 = vunpack.c.h.b16 %v3668
  %v7916 = vunpack.c.l.b16 %v3669
  %v7917 = vunpack.c.h.b16 %v3669
  %v7918 = vunpack.c.l.b16 %v3670
  %v7919 = vunpack.c.h.b16 %v3670
  %v7920 = vunpack.c.l.b16 %v3671
  %v7921 = vunpack.c.h.b16 %v3671
  %v7922 = vunpack.c.l.b16 %v3672
  %v7923 = vunpack.c.h.b16 %v3672
  %v7924 = vunpack.c.l.b16 %v3673
  %v7925 = vunpack.c.h.b16 %v3673
  %v7926 = vunpack.c.l.b16 %v3674
  %v7927 = vunpack.c.h.b16 %v3674
  %v7928 = vunpack.c.l.b16 %v3675
  %v7929 = vunpack.c.h.b16 %v3675
  %v7930 = vunpack.c.l.b16 %v3676
  %v7931 = vunpack.c.h.b16 %v3676
  %v7932 = vunpack.c.l.b16 %v3677
  %v7933 = vunpack.c.h.b16 %v3677
  %v7934 = vunpack.c.l.b16 %v3678
  %v7935 = vunpack.c.h.b16 %v3678
  %v7936 = vunpack.c.l.b16 %v3679
  %v7937 = vunpack.c.h.b16 %v3679
  %v7938 = vunpack.c.l.b16 %v3680
  %v7939 = vunpack.c.h.b16 %v3680
  %v7940 = vunpack.c.l.b16 %v3681
  %v7941 = vunpack.c.h.b16 %v3681
  %v7942 = vunpack.c.l.b16 %v3682
  %v7943 = vunpack.c.h.b16 %v3682
  %v7944 = vunpack.c.l.b16 %v3683
  %v7945 = vunpack.c.h.b16 %v3683
  %v7946 = vpack.c.b16 %v7916, %v7914
  %v7947 = vpack.c.b16 %v7917, %v7915
  %v7948 = vpack.c.b16 %v7920, %v7918
  %v7949 = vpack.c.b16 %v7921, %v7919
  %v7950 = vpack.c.b16 %v7924, %v7922
  %v7951 = vpack.c.b16 %v7925, %v7923
  %v7952 = vpack.c.b16 %v7928, %v7926
  %v7953 = vpack.c.b16 %v7929, %v7927
  %v7954 = vpack.c.b16 %v7932, %v7930
  %v7955 = vpack.c.b16 %v7933, %v7931
  %v7956 = vpack.c.b16 %v7936, %v7934
  %v7957 = vpack.c.b16 %v7937, %v7935
  %v7958 = vpack.c.b16 %v7940, %v7938
  %v7959 = vpack.c.b16 %v7941, %v7939
  %v7960 = vpack.c.b16 %v7944, %v7942
  %v7961 = vpack.c.b16 %v7945, %v7943
  %v7971 = vsel %vm3852, %v7947, 0
  %v7974 = vsel %vm3852, %v7949, 0
  %v7977 = vsel %vm3852, %v7951, 0
  %v7980 = vsel %vm3852, %v7953, 0
  %v7983 = vsel %vm3852, %v7955, 0
  %v7986 = vsel %vm3852, %v7957, 0
  %v7989 = vsel %vm3852, %v7959, 0
  %v7992 = vsel %vm3852, %v7961, 0
  %v7995 = vsel %vm3243, %v3234, 0
  %7997 = vmatpush.bf16.msra.mxu0 %v3117
  %7998 = vmatpush.bf16.msra.mxu0 %v3116
  %7999 = vmatpush.bf16.msra.mxu0 %v3115
  %8000 = vmatpush.bf16.msra.mxu0 %v3330
  %8001 = vmatpush.bf16.msra.mxu0 %v2901
  %8002 = vmatpush.bf16.msra.mxu0 %v2900
  %8003 = vmatpush.bf16.msra.mxu0 %v2899
  %8004 = vmatpush.bf16.msra.mxu0 %v2898
  %8005 = vmatmul.bf16.gmra.mxu0 %v7946
  %v8006 = vpop.f32.mrf.mxu0
  %v8007 = vadd.f32 %v3703, %v8006
  %v8008 = vpop.f32.mrf.mxu0
  %v8009 = vadd.f32 %v3708, %v8008
  %8010 = vmatmul.bf16.gmra.mxu0 %v7948
  %v8011 = vpop.f32.mrf.mxu0
  %v8012 = vadd.f32 %v3713, %v8011
  %v8013 = vpop.f32.mrf.mxu0
  %v8014 = vadd.f32 %v3718, %v8013
  %8015 = vmatmul.bf16.gmra.mxu0 %v7950
  %v8016 = vpop.f32.mrf.mxu0
  %v8017 = vadd.f32 %v3723, %v8016
  %v8018 = vpop.f32.mrf.mxu0
  %v8019 = vadd.f32 %v3728, %v8018
  %8020 = vmatmul.bf16.gmra.mxu0 %v7952
  %v8021 = vpop.f32.mrf.mxu0
  %v8022 = vadd.f32 %v3733, %v8021
  %v8023 = vpop.f32.mrf.mxu0
  %v8024 = vadd.f32 %v3738, %v8023
  %8025 = vmatmul.bf16.gmra.mxu0 %v7954
  %v8026 = vpop.f32.mrf.mxu0
  %v8027 = vadd.f32 %v3743, %v8026
  %v8028 = vpop.f32.mrf.mxu0
  %v8029 = vadd.f32 %v3748, %v8028
  %8030 = vmatmul.bf16.gmra.mxu0 %v7956
  %v8031 = vpop.f32.mrf.mxu0
  %v8032 = vadd.f32 %v3753, %v8031
  %v8033 = vpop.f32.mrf.mxu0
  %v8034 = vadd.f32 %v3758, %v8033
  %8035 = vmatmul.bf16.gmra.mxu0 %v7958
  %v8036 = vpop.f32.mrf.mxu0
  %v8037 = vadd.f32 %v3763, %v8036
  %v8038 = vpop.f32.mrf.mxu0
  %v8039 = vadd.f32 %v3768, %v8038
  %8040 = vmatmul.bf16.gmra.mxu0 %v7960
  %v8041 = vpop.f32.mrf.mxu0
  %v8042 = vadd.f32 %v3773, %v8041
  %v8043 = vpop.f32.mrf.mxu0
  %v8044 = vadd.f32 %v3778, %v8043
  %8045 = vdwg.mxu0
  %8046 = vmatpush.bf16.msra.mxu0 0
  %8047 = vmatpush.bf16.msra.mxu0 0
  %8048 = vmatpush.bf16.msra.mxu0 %v7995
  %8049 = vmatpush.bf16.msra.mxu0 %v3233
  %8050 = vmatpush.bf16.msra.mxu0 %v3232
  %8051 = vmatpush.bf16.msra.mxu0 %v3231
  %8052 = vmatpush.bf16.msra.mxu0 %v3230
  %8053 = vmatpush.bf16.msra.mxu0 %v3118
  %8054 = vmatmul.bf16.gmra.mxu0 %v7971
  %v8055 = vpop.f32.mrf.mxu0
  %v8056 = vadd.f32 %v8007, %v8055
  %v8057 = vpop.f32.mrf.mxu0
  %v8058 = vadd.f32 %v8009, %v8057
  %8059 = vmatmul.bf16.gmra.mxu0 %v7974
  %v8060 = vpop.f32.mrf.mxu0
  %v8061 = vadd.f32 %v8012, %v8060
  %v8062 = vpop.f32.mrf.mxu0
  %v8063 = vadd.f32 %v8014, %v8062
  %8064 = vmatmul.bf16.gmra.mxu0 %v7977
  %v8065 = vpop.f32.mrf.mxu0
  %v8066 = vadd.f32 %v8017, %v8065
  %v8067 = vpop.f32.mrf.mxu0
  %v8068 = vadd.f32 %v8019, %v8067
  %8069 = vmatmul.bf16.gmra.mxu0 %v7980
  %v8070 = vpop.f32.mrf.mxu0
  %v8071 = vadd.f32 %v8022, %v8070
  %v8072 = vpop.f32.mrf.mxu0
  %v8073 = vadd.f32 %v8024, %v8072
  %8074 = vmatmul.bf16.gmra.mxu0 %v7983
  %v8075 = vpop.f32.mrf.mxu0
  %v8076 = vadd.f32 %v8027, %v8075
  %v8077 = vpop.f32.mrf.mxu0
  %v8078 = vadd.f32 %v8029, %v8077
  %8079 = vmatmul.bf16.gmra.mxu0 %v7986
  %v8080 = vpop.f32.mrf.mxu0
  %v8081 = vadd.f32 %v8032, %v8080
  %v8082 = vpop.f32.mrf.mxu0
  %v8083 = vadd.f32 %v8034, %v8082
  %8084 = vmatmul.bf16.gmra.mxu0 %v7989
  %v8085 = vpop.f32.mrf.mxu0
  %v8086 = vadd.f32 %v8037, %v8085
  %v8087 = vpop.f32.mrf.mxu0
  %v8088 = vadd.f32 %v8039, %v8087
  %8089 = vmatmul.bf16.gmra.mxu0 %v7992
  %v8090 = vpop.f32.mrf.mxu0
  %v8091 = vadd.f32 %v8042, %v8090
  %v8092 = vpop.f32.mrf.mxu0
  %v8093 = vadd.f32 %v8044, %v8092
  %8094 = vdwg.mxu0
  %v8095 = vmax.f32 %v3938, 0.0
  %v8096 = vmax.f32 %v3940, 0.0
  %v8097 = vmax.f32 %v3943, 0.0
  %v8098 = vmax.f32 %v3945, 0.0
  %v8099 = vmax.f32 %v3948, 0.0
  %v8100 = vmax.f32 %v3950, 0.0
  %v8101 = vmax.f32 %v3953, 0.0
  %v8102 = vmax.f32 %v3955, 0.0
  %v8103 = vmax.f32 %v3958, 0.0
  %v8104 = vmax.f32 %v3960, 0.0
  %v8105 = vmax.f32 %v3963, 0.0
  %v8106 = vmax.f32 %v3965, 0.0
  %v8107 = vmax.f32 %v3968, 0.0
  %v8108 = vmax.f32 %v3970, 0.0
  %v8109 = vmax.f32 %v3973, 0.0
  %v8110 = vmax.f32 %v3975, 0.0
  %v8111 = vmax.f32 %v4134, 0.0
  %v8112 = vmax.f32 %v4136, 0.0
  %v8113 = vmax.f32 %v4139, 0.0
  %v8114 = vmax.f32 %v4141, 0.0
  %v8115 = vmax.f32 %v4144, 0.0
  %v8116 = vmax.f32 %v4146, 0.0
  %v8117 = vmax.f32 %v4149, 0.0
  %v8118 = vmax.f32 %v4151, 0.0
  %v8119 = vmax.f32 %v4154, 0.0
  %v8120 = vmax.f32 %v4156, 0.0
  %v8121 = vmax.f32 %v4159, 0.0
  %v8122 = vmax.f32 %v4161, 0.0
  %v8123 = vmax.f32 %v4164, 0.0
  %v8124 = vmax.f32 %v4166, 0.0
  %v8125 = vmax.f32 %v4169, 0.0
  %v8126 = vmax.f32 %v4171, 0.0
  %v8127 = vmax.f32 %v4330, 0.0
  %v8128 = vmax.f32 %v4332, 0.0
  %v8129 = vmax.f32 %v4335, 0.0
  %v8130 = vmax.f32 %v4337, 0.0
  %v8131 = vmax.f32 %v4340, 0.0
  %v8132 = vmax.f32 %v4342, 0.0
  %v8133 = vmax.f32 %v4345, 0.0
  %v8134 = vmax.f32 %v4347, 0.0
  %v8135 = vmax.f32 %v4350, 0.0
  %v8136 = vmax.f32 %v4352, 0.0
  %v8137 = vmax.f32 %v4355, 0.0
  %v8138 = vmax.f32 %v4357, 0.0
  %v8139 = vmax.f32 %v4360, 0.0
  %v8140 = vmax.f32 %v4362, 0.0
  %v8141 = vmax.f32 %v4365, 0.0
  %v8142 = vmax.f32 %v4367, 0.0
  %v8143 = vmax.f32 %v4526, 0.0
  %v8144 = vmax.f32 %v4528, 0.0
  %v8145 = vmax.f32 %v4531, 0.0
  %v8146 = vmax.f32 %v4533, 0.0
  %v8147 = vmax.f32 %v4536, 0.0
  %v8148 = vmax.f32 %v4538, 0.0
  %v8149 = vmax.f32 %v4541, 0.0
  %v8150 = vmax.f32 %v4543, 0.0
  %v8151 = vmax.f32 %v4546, 0.0
  %v8152 = vmax.f32 %v4548, 0.0
  %v8153 = vmax.f32 %v4551, 0.0
  %v8154 = vmax.f32 %v4553, 0.0
  %v8155 = vmax.f32 %v4556, 0.0
  %v8156 = vmax.f32 %v4558, 0.0
  %v8157 = vmax.f32 %v4561, 0.0
  %v8158 = vmax.f32 %v4563, 0.0
  %v8159 = vmax.f32 %v4722, 0.0
  %v8160 = vmax.f32 %v4724, 0.0
  %v8161 = vmax.f32 %v4727, 0.0
  %v8162 = vmax.f32 %v4729, 0.0
  %v8163 = vmax.f32 %v4732, 0.0
  %v8164 = vmax.f32 %v4734, 0.0
  %v8165 = vmax.f32 %v4737, 0.0
  %v8166 = vmax.f32 %v4739, 0.0
  %v8167 = vmax.f32 %v4742, 0.0
  %v8168 = vmax.f32 %v4744, 0.0
  %v8169 = vmax.f32 %v4747, 0.0
  %v8170 = vmax.f32 %v4749, 0.0
  %v8171 = vmax.f32 %v4752, 0.0
  %v8172 = vmax.f32 %v4754, 0.0
  %v8173 = vmax.f32 %v4757, 0.0
  %v8174 = vmax.f32 %v4759, 0.0
  %v8175 = vmax.f32 %v4918, 0.0
  %v8176 = vmax.f32 %v4920, 0.0
  %v8177 = vmax.f32 %v4923, 0.0
  %v8178 = vmax.f32 %v4925, 0.0
  %v8179 = vmax.f32 %v4928, 0.0
  %v8180 = vmax.f32 %v4930, 0.0
  %v8181 = vmax.f32 %v4933, 0.0
  %v8182 = vmax.f32 %v4935, 0.0
  %v8183 = vmax.f32 %v4938, 0.0
  %v8184 = vmax.f32 %v4940, 0.0
  %v8185 = vmax.f32 %v4943, 0.0
  %v8186 = vmax.f32 %v4945, 0.0
  %v8187 = vmax.f32 %v4948, 0.0
  %v8188 = vmax.f32 %v4950, 0.0
  %v8189 = vmax.f32 %v4953, 0.0
  %v8190 = vmax.f32 %v4955, 0.0
  %v8191 = vmax.f32 %v5114, 0.0
  %v8192 = vmax.f32 %v5116, 0.0
  %v8193 = vmax.f32 %v5119, 0.0
  %v8194 = vmax.f32 %v5121, 0.0
  %v8195 = vmax.f32 %v5124, 0.0
  %v8196 = vmax.f32 %v5126, 0.0
  %v8197 = vmax.f32 %v5129, 0.0
  %v8198 = vmax.f32 %v5131, 0.0
  %v8199 = vmax.f32 %v5134, 0.0
  %v8200 = vmax.f32 %v5136, 0.0
  %v8201 = vmax.f32 %v5139, 0.0
  %v8202 = vmax.f32 %v5141, 0.0
  %v8203 = vmax.f32 %v5144, 0.0
  %v8204 = vmax.f32 %v5146, 0.0
  %v8205 = vmax.f32 %v5149, 0.0
  %v8206 = vmax.f32 %v5151, 0.0
  %v8207 = vmax.f32 %v5310, 0.0
  %v8208 = vmax.f32 %v5312, 0.0
  %v8209 = vmax.f32 %v5315, 0.0
  %v8210 = vmax.f32 %v5317, 0.0
  %v8211 = vmax.f32 %v5320, 0.0
  %v8212 = vmax.f32 %v5322, 0.0
  %v8213 = vmax.f32 %v5325, 0.0
  %v8214 = vmax.f32 %v5327, 0.0
  %v8215 = vmax.f32 %v5330, 0.0
  %v8216 = vmax.f32 %v5332, 0.0
  %v8217 = vmax.f32 %v5335, 0.0
  %v8218 = vmax.f32 %v5337, 0.0
  %v8219 = vmax.f32 %v5340, 0.0
  %v8220 = vmax.f32 %v5342, 0.0
  %v8221 = vmax.f32 %v5345, 0.0
  %v8222 = vmax.f32 %v5347, 0.0
  %v8223 = vmax.f32 %v5506, 0.0
  %v8224 = vmax.f32 %v5508, 0.0
  %v8225 = vmax.f32 %v5511, 0.0
  %v8226 = vmax.f32 %v5513, 0.0
  %v8227 = vmax.f32 %v5516, 0.0
  %v8228 = vmax.f32 %v5518, 0.0
  %v8229 = vmax.f32 %v5521, 0.0
  %v8230 = vmax.f32 %v5523, 0.0
  %v8231 = vmax.f32 %v5526, 0.0
  %v8232 = vmax.f32 %v5528, 0.0
  %v8233 = vmax.f32 %v5531, 0.0
  %v8234 = vmax.f32 %v5533, 0.0
  %v8235 = vmax.f32 %v5536, 0.0
  %v8236 = vmax.f32 %v5538, 0.0
  %v8237 = vmax.f32 %v5541, 0.0
  %v8238 = vmax.f32 %v5543, 0.0
  %v8239 = vmax.f32 %v5702, 0.0
  %v8240 = vmax.f32 %v5704, 0.0
  %v8241 = vmax.f32 %v5707, 0.0
  %v8242 = vmax.f32 %v5709, 0.0
  %v8243 = vmax.f32 %v5712, 0.0
  %v8244 = vmax.f32 %v5714, 0.0
  %v8245 = vmax.f32 %v5717, 0.0
  %v8246 = vmax.f32 %v5719, 0.0
  %v8247 = vmax.f32 %v5722, 0.0
  %v8248 = vmax.f32 %v5724, 0.0
  %v8249 = vmax.f32 %v5727, 0.0
  %v8250 = vmax.f32 %v5729, 0.0
  %v8251 = vmax.f32 %v5732, 0.0
  %v8252 = vmax.f32 %v5734, 0.0
  %v8253 = vmax.f32 %v5737, 0.0
  %v8254 = vmax.f32 %v5739, 0.0
  %v8255 = vmax.f32 %v5898, 0.0
  %v8256 = vmax.f32 %v5900, 0.0
  %v8257 = vmax.f32 %v5903, 0.0
  %v8258 = vmax.f32 %v5905, 0.0
  %v8259 = vmax.f32 %v5908, 0.0
  %v8260 = vmax.f32 %v5910, 0.0
  %v8261 = vmax.f32 %v5913, 0.0
  %v8262 = vmax.f32 %v5915, 0.0
  %v8263 = vmax.f32 %v5918, 0.0
  %v8264 = vmax.f32 %v5920, 0.0
  %v8265 = vmax.f32 %v5923, 0.0
  %v8266 = vmax.f32 %v5925, 0.0
  %v8267 = vmax.f32 %v5928, 0.0
  %v8268 = vmax.f32 %v5930, 0.0
  %v8269 = vmax.f32 %v5933, 0.0
  %v8270 = vmax.f32 %v5935, 0.0
  %v8271 = vmax.f32 %v6094, 0.0
  %v8272 = vmax.f32 %v6096, 0.0
  %v8273 = vmax.f32 %v6099, 0.0
  %v8274 = vmax.f32 %v6101, 0.0
  %v8275 = vmax.f32 %v6104, 0.0
  %v8276 = vmax.f32 %v6106, 0.0
  %v8277 = vmax.f32 %v6109, 0.0
  %v8278 = vmax.f32 %v6111, 0.0
  %v8279 = vmax.f32 %v6114, 0.0
  %v8280 = vmax.f32 %v6116, 0.0
  %v8281 = vmax.f32 %v6119, 0.0
  %v8282 = vmax.f32 %v6121, 0.0
  %v8283 = vmax.f32 %v6124, 0.0
  %v8284 = vmax.f32 %v6126, 0.0
  %v8285 = vmax.f32 %v6129, 0.0
  %v8286 = vmax.f32 %v6131, 0.0
  %v8287 = vmax.f32 %v6290, 0.0
  %v8288 = vmax.f32 %v6292, 0.0
  %v8289 = vmax.f32 %v6295, 0.0
  %v8290 = vmax.f32 %v6297, 0.0
  %v8291 = vmax.f32 %v6300, 0.0
  %v8292 = vmax.f32 %v6302, 0.0
  %v8293 = vmax.f32 %v6305, 0.0
  %v8294 = vmax.f32 %v6307, 0.0
  %v8295 = vmax.f32 %v6310, 0.0
  %v8296 = vmax.f32 %v6312, 0.0
  %v8297 = vmax.f32 %v6315, 0.0
  %v8298 = vmax.f32 %v6317, 0.0
  %v8299 = vmax.f32 %v6320, 0.0
  %v8300 = vmax.f32 %v6322, 0.0
  %v8301 = vmax.f32 %v6325, 0.0
  %v8302 = vmax.f32 %v6327, 0.0
  %v8303 = vmax.f32 %v6486, 0.0
  %v8304 = vmax.f32 %v6488, 0.0
  %v8305 = vmax.f32 %v6491, 0.0
  %v8306 = vmax.f32 %v6493, 0.0
  %v8307 = vmax.f32 %v6496, 0.0
  %v8308 = vmax.f32 %v6498, 0.0
  %v8309 = vmax.f32 %v6501, 0.0
  %v8310 = vmax.f32 %v6503, 0.0
  %v8311 = vmax.f32 %v6506, 0.0
  %v8312 = vmax.f32 %v6508, 0.0
  %v8313 = vmax.f32 %v6511, 0.0
  %v8314 = vmax.f32 %v6513, 0.0
  %v8315 = vmax.f32 %v6516, 0.0
  %v8316 = vmax.f32 %v6518, 0.0
  %v8317 = vmax.f32 %v6521, 0.0
  %v8318 = vmax.f32 %v6523, 0.0
  %v8319 = vmax.f32 %v6682, 0.0
  %v8320 = vmax.f32 %v6684, 0.0
  %v8321 = vmax.f32 %v6687, 0.0
  %v8322 = vmax.f32 %v6689, 0.0
  %v8323 = vmax.f32 %v6692, 0.0
  %v8324 = vmax.f32 %v6694, 0.0
  %v8325 = vmax.f32 %v6697, 0.0
  %v8326 = vmax.f32 %v6699, 0.0
  %v8327 = vmax.f32 %v6702, 0.0
  %v8328 = vmax.f32 %v6704, 0.0
  %v8329 = vmax.f32 %v6707, 0.0
  %v8330 = vmax.f32 %v6709, 0.0
  %v8331 = vmax.f32 %v6712, 0.0
  %v8332 = vmax.f32 %v6714, 0.0
  %v8333 = vmax.f32 %v6717, 0.0
  %v8334 = vmax.f32 %v6719, 0.0
  %v8335 = vmax.f32 %v6878, 0.0
  %v8336 = vmax.f32 %v6880, 0.0
  %v8337 = vmax.f32 %v6883, 0.0
  %v8338 = vmax.f32 %v6885, 0.0
  %v8339 = vmax.f32 %v6888, 0.0
  %v8340 = vmax.f32 %v6890, 0.0
  %v8341 = vmax.f32 %v6893, 0.0
  %v8342 = vmax.f32 %v6895, 0.0
  %v8343 = vmax.f32 %v6898, 0.0
  %v8344 = vmax.f32 %v6900, 0.0
  %v8345 = vmax.f32 %v6903, 0.0
  %v8346 = vmax.f32 %v6905, 0.0
  %v8347 = vmax.f32 %v6908, 0.0
  %v8348 = vmax.f32 %v6910, 0.0
  %v8349 = vmax.f32 %v6913, 0.0
  %v8350 = vmax.f32 %v6915, 0.0
  %v8351 = vmax.f32 %v7074, 0.0
  %v8352 = vmax.f32 %v7076, 0.0
  %v8353 = vmax.f32 %v7079, 0.0
  %v8354 = vmax.f32 %v7081, 0.0
  %v8355 = vmax.f32 %v7084, 0.0
  %v8356 = vmax.f32 %v7086, 0.0
  %v8357 = vmax.f32 %v7089, 0.0
  %v8358 = vmax.f32 %v7091, 0.0
  %v8359 = vmax.f32 %v7094, 0.0
  %v8360 = vmax.f32 %v7096, 0.0
  %v8361 = vmax.f32 %v7099, 0.0
  %v8362 = vmax.f32 %v7101, 0.0
  %v8363 = vmax.f32 %v7104, 0.0
  %v8364 = vmax.f32 %v7106, 0.0
  %v8365 = vmax.f32 %v7109, 0.0
  %v8366 = vmax.f32 %v7111, 0.0
  %v8367 = vmax.f32 %v7270, 0.0
  %v8368 = vmax.f32 %v7272, 0.0
  %v8369 = vmax.f32 %v7275, 0.0
  %v8370 = vmax.f32 %v7277, 0.0
  %v8371 = vmax.f32 %v7280, 0.0
  %v8372 = vmax.f32 %v7282, 0.0
  %v8373 = vmax.f32 %v7285, 0.0
  %v8374 = vmax.f32 %v7287, 0.0
  %v8375 = vmax.f32 %v7290, 0.0
  %v8376 = vmax.f32 %v7292, 0.0
  %v8377 = vmax.f32 %v7295, 0.0
  %v8378 = vmax.f32 %v7297, 0.0
  %v8379 = vmax.f32 %v7300, 0.0
  %v8380 = vmax.f32 %v7302, 0.0
  %v8381 = vmax.f32 %v7305, 0.0
  %v8382 = vmax.f32 %v7307, 0.0
  %v8383 = vmax.f32 %v7466, 0.0
  %v8384 = vmax.f32 %v7468, 0.0
  %v8385 = vmax.f32 %v7471, 0.0
  %v8386 = vmax.f32 %v7473, 0.0
  %v8387 = vmax.f32 %v7476, 0.0
  %v8388 = vmax.f32 %v7478, 0.0
  %v8389 = vmax.f32 %v7481, 0.0
  %v8390 = vmax.f32 %v7483, 0.0
  %v8391 = vmax.f32 %v7486, 0.0
  %v8392 = vmax.f32 %v7488, 0.0
  %v8393 = vmax.f32 %v7491, 0.0
  %v8394 = vmax.f32 %v7493, 0.0
  %v8395 = vmax.f32 %v7496, 0.0
  %v8396 = vmax.f32 %v7498, 0.0
  %v8397 = vmax.f32 %v7501, 0.0
  %v8398 = vmax.f32 %v7503, 0.0
  %v8399 = vmax.f32 %v7662, 0.0
  %v8400 = vmax.f32 %v7664, 0.0
  %v8401 = vmax.f32 %v7667, 0.0
  %v8402 = vmax.f32 %v7669, 0.0
  %v8403 = vmax.f32 %v7672, 0.0
  %v8404 = vmax.f32 %v7674, 0.0
  %v8405 = vmax.f32 %v7677, 0.0
  %v8406 = vmax.f32 %v7679, 0.0
  %v8407 = vmax.f32 %v7682, 0.0
  %v8408 = vmax.f32 %v7684, 0.0
  %v8409 = vmax.f32 %v7687, 0.0
  %v8410 = vmax.f32 %v7689, 0.0
  %v8411 = vmax.f32 %v7692, 0.0
  %v8412 = vmax.f32 %v7694, 0.0
  %v8413 = vmax.f32 %v7697, 0.0
  %v8414 = vmax.f32 %v7699, 0.0
  %v8415 = vmax.f32 %v7859, 0.0
  %v8416 = vmax.f32 %v7861, 0.0
  %v8417 = vmax.f32 %v7864, 0.0
  %v8418 = vmax.f32 %v7866, 0.0
  %v8419 = vmax.f32 %v7869, 0.0
  %v8420 = vmax.f32 %v7871, 0.0
  %v8421 = vmax.f32 %v7874, 0.0
  %v8422 = vmax.f32 %v7876, 0.0
  %v8423 = vmax.f32 %v7879, 0.0
  %v8424 = vmax.f32 %v7881, 0.0
  %v8425 = vmax.f32 %v7884, 0.0
  %v8426 = vmax.f32 %v7886, 0.0
  %v8427 = vmax.f32 %v7889, 0.0
  %v8428 = vmax.f32 %v7891, 0.0
  %v8429 = vmax.f32 %v7894, 0.0
  %v8430 = vmax.f32 %v7896, 0.0
  %v8431 = vmax.f32 %v8056, 0.0
  %v8432 = vmax.f32 %v8058, 0.0
  %v8433 = vmax.f32 %v8061, 0.0
  %v8434 = vmax.f32 %v8063, 0.0
  %v8435 = vmax.f32 %v8066, 0.0
  %v8436 = vmax.f32 %v8068, 0.0
  %v8437 = vmax.f32 %v8071, 0.0
  %v8438 = vmax.f32 %v8073, 0.0
  %v8439 = vmax.f32 %v8076, 0.0
  %v8440 = vmax.f32 %v8078, 0.0
  %v8441 = vmax.f32 %v8081, 0.0
  %v8442 = vmax.f32 %v8083, 0.0
  %v8443 = vmax.f32 %v8086, 0.0
  %v8444 = vmax.f32 %v8088, 0.0
  %v8445 = vmax.f32 %v8091, 0.0
  %v8446 = vmax.f32 %v8093, 0.0
  %v8447 = vmax.f32 %v8095, %v8103
  %v8448 = vmax.f32 %v8096, %v8104
  %v8449 = vmax.f32 %v8097, %v8105
  %v8450 = vmax.f32 %v8098, %v8106
  %v8451 = vmax.f32 %v8099, %v8107
  %v8452 = vmax.f32 %v8100, %v8108
  %v8453 = vmax.f32 %v8101, %v8109
  %v8454 = vmax.f32 %v8102, %v8110
  %v8455 = vmax.f32 %v8111, %v8119
  %v8456 = vmax.f32 %v8112, %v8120
  %v8457 = vmax.f32 %v8113, %v8121
  %v8458 = vmax.f32 %v8114, %v8122
  %v8459 = vmax.f32 %v8115, %v8123
  %v8460 = vmax.f32 %v8116, %v8124
  %v8461 = vmax.f32 %v8117, %v8125
  %v8462 = vmax.f32 %v8118, %v8126
  %v8463 = vmax.f32 %v8127, %v8135
  %v8464 = vmax.f32 %v8128, %v8136
  %v8465 = vmax.f32 %v8129, %v8137
  %v8466 = vmax.f32 %v8130, %v8138
  %v8467 = vmax.f32 %v8131, %v8139
  %v8468 = vmax.f32 %v8132, %v8140
  %v8469 = vmax.f32 %v8133, %v8141
  %v8470 = vmax.f32 %v8134, %v8142
  %v8471 = vmax.f32 %v8143, %v8151
  %v8472 = vmax.f32 %v8144, %v8152
  %v8473 = vmax.f32 %v8145, %v8153
  %v8474 = vmax.f32 %v8146, %v8154
  %v8475 = vmax.f32 %v8147, %v8155
  %v8476 = vmax.f32 %v8148, %v8156
  %v8477 = vmax.f32 %v8149, %v8157
  %v8478 = vmax.f32 %v8150, %v8158
  %v8479 = vmax.f32 %v8159, %v8167
  %v8480 = vmax.f32 %v8160, %v8168
  %v8481 = vmax.f32 %v8161, %v8169
  %v8482 = vmax.f32 %v8162, %v8170
  %v8483 = vmax.f32 %v8163, %v8171
  %v8484 = vmax.f32 %v8164, %v8172
  %v8485 = vmax.f32 %v8165, %v8173
  %v8486 = vmax.f32 %v8166, %v8174
  %v8487 = vmax.f32 %v8175, %v8183
  %v8488 = vmax.f32 %v8176, %v8184
  %v8489 = vmax.f32 %v8177, %v8185
  %v8490 = vmax.f32 %v8178, %v8186
  %v8491 = vmax.f32 %v8179, %v8187
  %v8492 = vmax.f32 %v8180, %v8188
  %v8493 = vmax.f32 %v8181, %v8189
  %v8494 = vmax.f32 %v8182, %v8190
  %v8495 = vmax.f32 %v8191, %v8199
  %v8496 = vmax.f32 %v8192, %v8200
  %v8497 = vmax.f32 %v8193, %v8201
  %v8498 = vmax.f32 %v8194, %v8202
  %v8499 = vmax.f32 %v8195, %v8203
  %v8500 = vmax.f32 %v8196, %v8204
  %v8501 = vmax.f32 %v8197, %v8205
  %v8502 = vmax.f32 %v8198, %v8206
  %v8503 = vmax.f32 %v8207, %v8215
  %v8504 = vmax.f32 %v8208, %v8216
  %v8505 = vmax.f32 %v8209, %v8217
  %v8506 = vmax.f32 %v8210, %v8218
  %v8507 = vmax.f32 %v8211, %v8219
  %v8508 = vmax.f32 %v8212, %v8220
  %v8509 = vmax.f32 %v8213, %v8221
  %v8510 = vmax.f32 %v8214, %v8222
  %v8511 = vmax.f32 %v8223, %v8231
  %v8512 = vmax.f32 %v8224, %v8232
  %v8513 = vmax.f32 %v8225, %v8233
  %v8514 = vmax.f32 %v8226, %v8234
  %v8515 = vmax.f32 %v8227, %v8235
  %v8516 = vmax.f32 %v8228, %v8236
  %v8517 = vmax.f32 %v8229, %v8237
  %v8518 = vmax.f32 %v8230, %v8238
  %v8519 = vmax.f32 %v8239, %v8247
  %v8520 = vmax.f32 %v8240, %v8248
  %v8521 = vmax.f32 %v8241, %v8249
  %v8522 = vmax.f32 %v8242, %v8250
  %v8523 = vmax.f32 %v8243, %v8251
  %v8524 = vmax.f32 %v8244, %v8252
  %v8525 = vmax.f32 %v8245, %v8253
  %v8526 = vmax.f32 %v8246, %v8254
  %v8527 = vmax.f32 %v8255, %v8263
  %v8528 = vmax.f32 %v8256, %v8264
  %v8529 = vmax.f32 %v8257, %v8265
  %v8530 = vmax.f32 %v8258, %v8266
  %v8531 = vmax.f32 %v8259, %v8267
  %v8532 = vmax.f32 %v8260, %v8268
  %v8533 = vmax.f32 %v8261, %v8269
  %v8534 = vmax.f32 %v8262, %v8270
  %v8535 = vmax.f32 %v8271, %v8279
  %v8536 = vmax.f32 %v8272, %v8280
  %v8537 = vmax.f32 %v8273, %v8281
  %v8538 = vmax.f32 %v8274, %v8282
  %v8539 = vmax.f32 %v8275, %v8283
  %v8540 = vmax.f32 %v8276, %v8284
  %v8541 = vmax.f32 %v8277, %v8285
  %v8542 = vmax.f32 %v8278, %v8286
  %v8543 = vmax.f32 %v8287, %v8295
  %v8544 = vmax.f32 %v8288, %v8296
  %v8545 = vmax.f32 %v8289, %v8297
  %v8546 = vmax.f32 %v8290, %v8298
  %v8547 = vmax.f32 %v8291, %v8299
  %v8548 = vmax.f32 %v8292, %v8300
  %v8549 = vmax.f32 %v8293, %v8301
  %v8550 = vmax.f32 %v8294, %v8302
  %v8551 = vmax.f32 %v8303, %v8311
  %v8552 = vmax.f32 %v8304, %v8312
  %v8553 = vmax.f32 %v8305, %v8313
  %v8554 = vmax.f32 %v8306, %v8314
  %v8555 = vmax.f32 %v8307, %v8315
  %v8556 = vmax.f32 %v8308, %v8316
  %v8557 = vmax.f32 %v8309, %v8317
  %v8558 = vmax.f32 %v8310, %v8318
  %v8559 = vmax.f32 %v8319, %v8327
  %v8560 = vmax.f32 %v8320, %v8328
  %v8561 = vmax.f32 %v8321, %v8329
  %v8562 = vmax.f32 %v8322, %v8330
  %v8563 = vmax.f32 %v8323, %v8331
  %v8564 = vmax.f32 %v8324, %v8332
  %v8565 = vmax.f32 %v8325, %v8333
  %v8566 = vmax.f32 %v8326, %v8334
  %v8567 = vmax.f32 %v8335, %v8343
  %v8568 = vmax.f32 %v8336, %v8344
  %v8569 = vmax.f32 %v8337, %v8345
  %v8570 = vmax.f32 %v8338, %v8346
  %v8571 = vmax.f32 %v8339, %v8347
  %v8572 = vmax.f32 %v8340, %v8348
  %v8573 = vmax.f32 %v8341, %v8349
  %v8574 = vmax.f32 %v8342, %v8350
  %v8575 = vmax.f32 %v8351, %v8359
  %v8576 = vmax.f32 %v8352, %v8360
  %v8577 = vmax.f32 %v8353, %v8361
  %v8578 = vmax.f32 %v8354, %v8362
  %v8579 = vmax.f32 %v8355, %v8363
  %v8580 = vmax.f32 %v8356, %v8364
  %v8581 = vmax.f32 %v8357, %v8365
  %v8582 = vmax.f32 %v8358, %v8366
  %v8583 = vmax.f32 %v8367, %v8375
  %v8584 = vmax.f32 %v8368, %v8376
  %v8585 = vmax.f32 %v8369, %v8377
  %v8586 = vmax.f32 %v8370, %v8378
  %v8587 = vmax.f32 %v8371, %v8379
  %v8588 = vmax.f32 %v8372, %v8380
  %v8589 = vmax.f32 %v8373, %v8381
  %v8590 = vmax.f32 %v8374, %v8382
  %v8591 = vmax.f32 %v8383, %v8391
  %v8592 = vmax.f32 %v8384, %v8392
  %v8593 = vmax.f32 %v8385, %v8393
  %v8594 = vmax.f32 %v8386, %v8394
  %v8595 = vmax.f32 %v8387, %v8395
  %v8596 = vmax.f32 %v8388, %v8396
  %v8597 = vmax.f32 %v8389, %v8397
  %v8598 = vmax.f32 %v8390, %v8398
  %v8599 = vmax.f32 %v8399, %v8407
  %v8600 = vmax.f32 %v8400, %v8408
  %v8601 = vmax.f32 %v8401, %v8409
  %v8602 = vmax.f32 %v8402, %v8410
  %v8603 = vmax.f32 %v8403, %v8411
  %v8604 = vmax.f32 %v8404, %v8412
  %v8605 = vmax.f32 %v8405, %v8413
  %v8606 = vmax.f32 %v8406, %v8414
  %v8607 = vmax.f32 %v8415, %v8423
  %v8608 = vmax.f32 %v8416, %v8424
  %v8609 = vmax.f32 %v8417, %v8425
  %v8610 = vmax.f32 %v8418, %v8426
  %v8611 = vmax.f32 %v8419, %v8427
  %v8612 = vmax.f32 %v8420, %v8428
  %v8613 = vmax.f32 %v8421, %v8429
  %v8614 = vmax.f32 %v8422, %v8430
  %v8615 = vmax.f32 %v8431, %v8439
  %v8616 = vmax.f32 %v8432, %v8440
  %v8617 = vmax.f32 %v8433, %v8441
  %v8618 = vmax.f32 %v8434, %v8442
  %v8619 = vmax.f32 %v8435, %v8443
  %v8620 = vmax.f32 %v8436, %v8444
  %v8621 = vmax.f32 %v8437, %v8445
  %v8622 = vmax.f32 %v8438, %v8446
  %v8623 = vmax.f32 %v8447, %v8455
  %v8624 = vmax.f32 %v8448, %v8456
  %v8625 = vmax.f32 %v8449, %v8457
  %v8626 = vmax.f32 %v8450, %v8458
  %v8627 = vmax.f32 %v8451, %v8459
  %v8628 = vmax.f32 %v8452, %v8460
  %v8629 = vmax.f32 %v8453, %v8461
  %v8630 = vmax.f32 %v8454, %v8462
  %v8631 = vmax.f32 %v8463, %v8471
  %v8632 = vmax.f32 %v8464, %v8472
  %v8633 = vmax.f32 %v8465, %v8473
  %v8634 = vmax.f32 %v8466, %v8474
  %v8635 = vmax.f32 %v8467, %v8475
  %v8636 = vmax.f32 %v8468, %v8476
  %v8637 = vmax.f32 %v8469, %v8477
  %v8638 = vmax.f32 %v8470, %v8478
  %v8639 = vmax.f32 %v8479, %v8487
  %v8640 = vmax.f32 %v8480, %v8488
  %v8641 = vmax.f32 %v8481, %v8489
  %v8642 = vmax.f32 %v8482, %v8490
  %v8643 = vmax.f32 %v8483, %v8491
  %v8644 = vmax.f32 %v8484, %v8492
  %v8645 = vmax.f32 %v8485, %v8493
  %v8646 = vmax.f32 %v8486, %v8494
  %v8647 = vmax.f32 %v8495, %v8503
  %v8648 = vmax.f32 %v8496, %v8504
  %v8649 = vmax.f32 %v8497, %v8505
  %v8650 = vmax.f32 %v8498, %v8506
  %v8651 = vmax.f32 %v8499, %v8507
  %v8652 = vmax.f32 %v8500, %v8508
  %v8653 = vmax.f32 %v8501, %v8509
  %v8654 = vmax.f32 %v8502, %v8510
  %v8655 = vmax.f32 %v8511, %v8519
  %v8656 = vmax.f32 %v8512, %v8520
  %v8657 = vmax.f32 %v8513, %v8521
  %v8658 = vmax.f32 %v8514, %v8522
  %v8659 = vmax.f32 %v8515, %v8523
  %v8660 = vmax.f32 %v8516, %v8524
  %v8661 = vmax.f32 %v8517, %v8525
  %v8662 = vmax.f32 %v8518, %v8526
  %v8663 = vmax.f32 %v8527, %v8535
  %v8664 = vmax.f32 %v8528, %v8536
  %v8665 = vmax.f32 %v8529, %v8537
  %v8666 = vmax.f32 %v8530, %v8538
  %v8667 = vmax.f32 %v8531, %v8539
  %v8668 = vmax.f32 %v8532, %v8540
  %v8669 = vmax.f32 %v8533, %v8541
  %v8670 = vmax.f32 %v8534, %v8542
  %v8671 = vmax.f32 %v8543, %v8551
  %v8672 = vmax.f32 %v8544, %v8552
  %v8673 = vmax.f32 %v8545, %v8553
  %v8674 = vmax.f32 %v8546, %v8554
  %v8675 = vmax.f32 %v8547, %v8555
  %v8676 = vmax.f32 %v8548, %v8556
  %v8677 = vmax.f32 %v8549, %v8557
  %v8678 = vmax.f32 %v8550, %v8558
  %v8679 = vmax.f32 %v8559, %v8567
  %v8680 = vmax.f32 %v8560, %v8568
  %v8681 = vmax.f32 %v8561, %v8569
  %v8682 = vmax.f32 %v8562, %v8570
  %v8683 = vmax.f32 %v8563, %v8571
  %v8684 = vmax.f32 %v8564, %v8572
  %v8685 = vmax.f32 %v8565, %v8573
  %v8686 = vmax.f32 %v8566, %v8574
  %v8687 = vmax.f32 %v8575, %v8583
  %v8688 = vmax.f32 %v8576, %v8584
  %v8689 = vmax.f32 %v8577, %v8585
  %v8690 = vmax.f32 %v8578, %v8586
  %v8691 = vmax.f32 %v8579, %v8587
  %v8692 = vmax.f32 %v8580, %v8588
  %v8693 = vmax.f32 %v8581, %v8589
  %v8694 = vmax.f32 %v8582, %v8590
  %v8695 = vmax.f32 %v8591, %v8599
  %v8696 = vmax.f32 %v8592, %v8600
  %v8697 = vmax.f32 %v8593, %v8601
  %v8698 = vmax.f32 %v8594, %v8602
  %v8699 = vmax.f32 %v8595, %v8603
  %v8700 = vmax.f32 %v8596, %v8604
  %v8701 = vmax.f32 %v8597, %v8605
  %v8702 = vmax.f32 %v8598, %v8606
  %v8703 = vmax.f32 %v8607, %v8615
  %v8704 = vmax.f32 %v8608, %v8616
  %v8705 = vmax.f32 %v8609, %v8617
  %v8706 = vmax.f32 %v8610, %v8618
  %v8707 = vmax.f32 %v8611, %v8619
  %v8708 = vmax.f32 %v8612, %v8620
  %v8709 = vmax.f32 %v8613, %v8621
  %v8710 = vmax.f32 %v8614, %v8622
  %v8711 = vpack.c.bf16 %v8623, %v8623
  %v8712 = vpack.c.bf16 %v8624, %v8624
  %v8713 = vpack.c.bf16 %v8625, %v8625
  %v8714 = vpack.c.bf16 %v8626, %v8626
  %v8715 = vpack.c.bf16 %v8627, %v8627
  %v8716 = vpack.c.bf16 %v8628, %v8628
  %v8717 = vpack.c.bf16 %v8629, %v8629
  %v8718 = vpack.c.bf16 %v8630, %v8630
  %v8719 = vpack.c.bf16 %v8631, %v8631
  %v8720 = vpack.c.bf16 %v8632, %v8632
  %v8721 = vpack.c.bf16 %v8633, %v8633
  %v8722 = vpack.c.bf16 %v8634, %v8634
  %v8723 = vpack.c.bf16 %v8635, %v8635
  %v8724 = vpack.c.bf16 %v8636, %v8636
  %v8725 = vpack.c.bf16 %v8637, %v8637
  %v8726 = vpack.c.bf16 %v8638, %v8638
  %v8727 = vpack.c.bf16 %v8639, %v8639
  %v8728 = vpack.c.bf16 %v8640, %v8640
  %v8729 = vpack.c.bf16 %v8641, %v8641
  %v8730 = vpack.c.bf16 %v8642, %v8642
  %v8731 = vpack.c.bf16 %v8643, %v8643
  %v8732 = vpack.c.bf16 %v8644, %v8644
  %v8733 = vpack.c.bf16 %v8645, %v8645
  %v8734 = vpack.c.bf16 %v8646, %v8646
  %v8735 = vpack.c.bf16 %v8647, %v8647
  %v8736 = vpack.c.bf16 %v8648, %v8648
  %v8737 = vpack.c.bf16 %v8649, %v8649
  %v8738 = vpack.c.bf16 %v8650, %v8650
  %v8739 = vpack.c.bf16 %v8651, %v8651
  %v8740 = vpack.c.bf16 %v8652, %v8652
  %v8741 = vpack.c.bf16 %v8653, %v8653
  %v8742 = vpack.c.bf16 %v8654, %v8654
  %v8743 = vpack.c.bf16 %v8655, %v8655
  %v8744 = vpack.c.bf16 %v8656, %v8656
  %v8745 = vpack.c.bf16 %v8657, %v8657
  %v8746 = vpack.c.bf16 %v8658, %v8658
  %v8747 = vpack.c.bf16 %v8659, %v8659
  %v8748 = vpack.c.bf16 %v8660, %v8660
  %v8749 = vpack.c.bf16 %v8661, %v8661
  %v8750 = vpack.c.bf16 %v8662, %v8662
  %v8751 = vpack.c.bf16 %v8663, %v8663
  %v8752 = vpack.c.bf16 %v8664, %v8664
  %v8753 = vpack.c.bf16 %v8665, %v8665
  %v8754 = vpack.c.bf16 %v8666, %v8666
  %v8755 = vpack.c.bf16 %v8667, %v8667
  %v8756 = vpack.c.bf16 %v8668, %v8668
  %v8757 = vpack.c.bf16 %v8669, %v8669
  %v8758 = vpack.c.bf16 %v8670, %v8670
  %v8759 = vpack.c.bf16 %v8671, %v8671
  %v8760 = vpack.c.bf16 %v8672, %v8672
  %v8761 = vpack.c.bf16 %v8673, %v8673
  %v8762 = vpack.c.bf16 %v8674, %v8674
  %v8763 = vpack.c.bf16 %v8675, %v8675
  %v8764 = vpack.c.bf16 %v8676, %v8676
  %v8765 = vpack.c.bf16 %v8677, %v8677
  %v8766 = vpack.c.bf16 %v8678, %v8678
  %v8767 = vpack.c.bf16 %v8679, %v8679
  %v8768 = vpack.c.bf16 %v8680, %v8680
  %v8769 = vpack.c.bf16 %v8681, %v8681
  %v8770 = vpack.c.bf16 %v8682, %v8682
  %v8771 = vpack.c.bf16 %v8683, %v8683
  %v8772 = vpack.c.bf16 %v8684, %v8684
  %v8773 = vpack.c.bf16 %v8685, %v8685
  %v8774 = vpack.c.bf16 %v8686, %v8686
  %v8775 = vpack.c.bf16 %v8687, %v8687
  %v8776 = vpack.c.bf16 %v8688, %v8688
  %v8777 = vpack.c.bf16 %v8689, %v8689
  %v8778 = vpack.c.bf16 %v8690, %v8690
  %v8779 = vpack.c.bf16 %v8691, %v8691
  %v8780 = vpack.c.bf16 %v8692, %v8692
  %v8781 = vpack.c.bf16 %v8693, %v8693
  %v8782 = vpack.c.bf16 %v8694, %v8694
  %v8783 = vpack.c.bf16 %v8695, %v8695
  %v8784 = vpack.c.bf16 %v8696, %v8696
  %v8785 = vpack.c.bf16 %v8697, %v8697
  %v8786 = vpack.c.bf16 %v8698, %v8698
  %v8787 = vpack.c.bf16 %v8699, %v8699
  %v8788 = vpack.c.bf16 %v8700, %v8700
  %v8789 = vpack.c.bf16 %v8701, %v8701
  %v8790 = vpack.c.bf16 %v8702, %v8702
  %v8791 = vpack.c.bf16 %v8703, %v8703
  %v8792 = vpack.c.bf16 %v8704, %v8704
  %v8793 = vpack.c.bf16 %v8705, %v8705
  %v8794 = vpack.c.bf16 %v8706, %v8706
  %v8795 = vpack.c.bf16 %v8707, %v8707
  %v8796 = vpack.c.bf16 %v8708, %v8708
  %v8797 = vpack.c.bf16 %v8709, %v8709
  %v8798 = vpack.c.bf16 %v8710, %v8710
  %v8799 = vld [vmem:[%s2] sm:$0x3f]
  %v8800 = vld [vmem:[%s4] sm:$0x3]
  %8802 = vset.pattern.permute.xlu0 0
  %8803 = vperm.xlu0 %8802, %v8800
  %v8804 = vpop.permute.xlu0 %8803
  %8807 = vst [vmem:[#allocation1] ss:$9 sm:$0xff] %v8799
  %v8808 = vld [vmem:[#allocation1] sm:$0xff]
  %v8809 = vld [vmem:[#allocation1 + $0x9] sm:$0xff]
  %v8810 = vld [vmem:[#allocation1 + $0x12] sm:$0xff]
  %v8811 = vld [vmem:[#allocation1 + $0x1b] sm:$0xff]
  %v8812 = vld [vmem:[#allocation1 + $0x24] sm:$0xff]
  %v8813 = vld [vmem:[#allocation1 + $0x2d] sm:$0xff]
  %v8907 = vunpack.c.l.b16 %v8711
  %v8908 = vunpack.c.l.b16 %v8712
  %v8909 = vunpack.c.l.b16 %v8713
  %v8910 = vunpack.c.l.b16 %v8714
  %v8911 = vunpack.c.l.b16 %v8715
  %v8912 = vunpack.c.l.b16 %v8716
  %v8913 = vunpack.c.l.b16 %v8717
  %v8914 = vunpack.c.l.b16 %v8718
  %v8915 = vunpack.c.l.b16 %v8719
  %v8916 = vunpack.c.l.b16 %v8720
  %v8917 = vunpack.c.l.b16 %v8721
  %v8918 = vunpack.c.l.b16 %v8722
  %v8919 = vunpack.c.l.b16 %v8723
  %v8920 = vunpack.c.l.b16 %v8724
  %v8921 = vunpack.c.l.b16 %v8725
  %v8922 = vunpack.c.l.b16 %v8726
  %v8923 = vunpack.c.l.b16 %v8727
  %v8924 = vunpack.c.l.b16 %v8728
  %v8925 = vunpack.c.l.b16 %v8729
  %v8926 = vunpack.c.l.b16 %v8730
  %v8927 = vunpack.c.l.b16 %v8731
  %v8928 = vunpack.c.l.b16 %v8732
  %v8929 = vunpack.c.l.b16 %v8733
  %v8930 = vunpack.c.l.b16 %v8734
  %v8931 = vunpack.c.l.b16 %v8735
  %v8932 = vunpack.c.l.b16 %v8736
  %v8933 = vunpack.c.l.b16 %v8737
  %v8934 = vunpack.c.l.b16 %v8738
  %v8935 = vunpack.c.l.b16 %v8739
  %v8936 = vunpack.c.l.b16 %v8740
  %v8937 = vunpack.c.l.b16 %v8741
  %v8938 = vunpack.c.l.b16 %v8742
  %v8939 = vunpack.c.l.b16 %v8743
  %v8940 = vunpack.c.l.b16 %v8744
  %v8941 = vunpack.c.l.b16 %v8745
  %v8942 = vunpack.c.l.b16 %v8746
  %v8943 = vunpack.c.l.b16 %v8747
  %v8944 = vunpack.c.l.b16 %v8748
  %v8945 = vunpack.c.l.b16 %v8749
  %v8946 = vunpack.c.l.b16 %v8750
  %v8947 = vunpack.c.l.b16 %v8751
  %v8948 = vunpack.c.l.b16 %v8752
  %v8949 = vunpack.c.l.b16 %v8753
  %v8950 = vunpack.c.l.b16 %v8754
  %v8951 = vunpack.c.l.b16 %v8755
  %v8952 = vunpack.c.l.b16 %v8756
  %v8953 = vunpack.c.l.b16 %v8757
  %v8954 = vunpack.c.l.b16 %v8758
  %v8955 = vunpack.c.l.b16 %v8759
  %v8956 = vunpack.c.l.b16 %v8760
  %v8957 = vunpack.c.l.b16 %v8761
  %v8958 = vunpack.c.l.b16 %v8762
  %v8959 = vunpack.c.l.b16 %v8763
  %v8960 = vunpack.c.l.b16 %v8764
  %v8961 = vunpack.c.l.b16 %v8765
  %v8962 = vunpack.c.l.b16 %v8766
  %v8963 = vunpack.c.l.b16 %v8767
  %v8964 = vunpack.c.l.b16 %v8768
  %v8965 = vunpack.c.l.b16 %v8769
  %v8966 = vunpack.c.l.b16 %v8770
  %v8967 = vunpack.c.l.b16 %v8771
  %v8968 = vunpack.c.l.b16 %v8772
  %v8969 = vunpack.c.l.b16 %v8773
  %v8970 = vunpack.c.l.b16 %v8774
  %v8971 = vunpack.c.l.b16 %v8775
  %v8972 = vunpack.c.l.b16 %v8776
  %v8973 = vunpack.c.l.b16 %v8777
  %v8974 = vunpack.c.l.b16 %v8778
  %v8975 = vunpack.c.l.b16 %v8779
  %v8976 = vunpack.c.l.b16 %v8780
  %v8977 = vunpack.c.l.b16 %v8781
  %v8978 = vunpack.c.l.b16 %v8782
  %v8979 = vunpack.c.l.b16 %v8783
  %v8980 = vunpack.c.l.b16 %v8784
  %v8981 = vunpack.c.l.b16 %v8785
  %v8982 = vunpack.c.l.b16 %v8786
  %v8983 = vunpack.c.l.b16 %v8787
  %v8984 = vunpack.c.l.b16 %v8788
  %v8985 = vunpack.c.l.b16 %v8789
  %v8986 = vunpack.c.l.b16 %v8790
  %v8987 = vunpack.c.l.b16 %v8791
  %v8988 = vunpack.c.l.b16 %v8792
  %v8989 = vunpack.c.l.b16 %v8793
  %v8990 = vunpack.c.l.b16 %v8794
  %v8991 = vunpack.c.l.b16 %v8795
  %v8992 = vunpack.c.l.b16 %v8796
  %v8993 = vunpack.c.l.b16 %v8797
  %v8994 = vunpack.c.l.b16 %v8798
  %v8995 = vpack.c.b16 %v8908, %v8907
  %v8996 = vpack.c.b16 %v8910, %v8909
  %v8997 = vpack.c.b16 %v8912, %v8911
  %v8998 = vpack.c.b16 %v8914, %v8913
  %v8999 = vpack.c.b16 %v8916, %v8915
  %v9000 = vpack.c.b16 %v8918, %v8917
  %v9001 = vpack.c.b16 %v8920, %v8919
  %v9002 = vpack.c.b16 %v8922, %v8921
  %v9003 = vpack.c.b16 %v8924, %v8923
  %v9004 = vpack.c.b16 %v8926, %v8925
  %v9005 = vpack.c.b16 %v8928, %v8927
  %v9006 = vpack.c.b16 %v8930, %v8929
  %v9007 = vpack.c.b16 %v8932, %v8931
  %v9008 = vpack.c.b16 %v8934, %v8933
  %v9009 = vpack.c.b16 %v8936, %v8935
  %v9010 = vpack.c.b16 %v8938, %v8937
  %v9011 = vpack.c.b16 %v8940, %v8939
  %v9012 = vpack.c.b16 %v8942, %v8941
  %v9013 = vpack.c.b16 %v8944, %v8943
  %v9014 = vpack.c.b16 %v8946, %v8945
  %v9015 = vpack.c.b16 %v8948, %v8947
  %v9016 = vpack.c.b16 %v8950, %v8949
  %v9017 = vpack.c.b16 %v8952, %v8951
  %v9018 = vpack.c.b16 %v8954, %v8953
  %v9019 = vpack.c.b16 %v8956, %v8955
  %v9020 = vpack.c.b16 %v8958, %v8957
  %v9021 = vpack.c.b16 %v8960, %v8959
  %v9022 = vpack.c.b16 %v8962, %v8961
  %v9023 = vpack.c.b16 %v8964, %v8963
  %v9024 = vpack.c.b16 %v8966, %v8965
  %v9025 = vpack.c.b16 %v8968, %v8967
  %v9026 = vpack.c.b16 %v8970, %v8969
  %v9027 = vpack.c.b16 %v8972, %v8971
  %v9028 = vpack.c.b16 %v8974, %v8973
  %v9029 = vpack.c.b16 %v8976, %v8975
  %v9030 = vpack.c.b16 %v8978, %v8977
  %v9031 = vpack.c.b16 %v8980, %v8979
  %v9032 = vpack.c.b16 %v8982, %v8981
  %v9033 = vpack.c.b16 %v8984, %v8983
  %v9034 = vpack.c.b16 %v8986, %v8985
  %v9035 = vpack.c.b16 %v8988, %v8987
  %v9036 = vpack.c.b16 %v8990, %v8989
  %v9037 = vpack.c.b16 %v8992, %v8991
  %v9038 = vpack.c.b16 %v8994, %v8993
  %vm9083 = vcmask 523264
  %v9084 = vsel %vm9083, %v8813, 0
  %9086 = vmatpush.bf16.msra.mxu0 %v9002
  %9087 = vmatpush.bf16.msra.mxu0 %v9001
  %9088 = vmatpush.bf16.msra.mxu0 %v9000
  %9089 = vmatpush.bf16.msra.mxu0 %v8999
  %9090 = vmatpush.bf16.msra.mxu0 %v8998
  %9091 = vmatpush.bf16.msra.mxu0 %v8997
  %9092 = vmatpush.bf16.msra.mxu0 %v8996
  %9093 = vmatpush.bf16.msra.mxu0 %v8995
  %9094 = vmatmul.bf16.gmra.mxu0 %v8808
  %v9095 = vpop.f32.mrf.mxu0
  %v9096 = vadd.f32 %v8804, %v9095
  %v9097 = vpop.f32.mrf.mxu0
  %9098 = vdwg.mxu0
  %9099 = vmatpush.bf16.msra.mxu0 %v9010
  %9100 = vmatpush.bf16.msra.mxu0 %v9009
  %9101 = vmatpush.bf16.msra.mxu0 %v9008
  %9102 = vmatpush.bf16.msra.mxu0 %v9007
  %9103 = vmatpush.bf16.msra.mxu0 %v9006
  %9104 = vmatpush.bf16.msra.mxu0 %v9005
  %9105 = vmatpush.bf16.msra.mxu0 %v9004
  %9106 = vmatpush.bf16.msra.mxu0 %v9003
  %9107 = vmatmul.bf16.gmra.mxu0 %v8809
  %v9108 = vpop.f32.mrf.mxu0
  %v9109 = vadd.f32 %v9096, %v9108
  %v9110 = vpop.f32.mrf.mxu0
  %9111 = vdwg.mxu0
  %9112 = vmatpush.bf16.msra.mxu0 %v9018
  %9113 = vmatpush.bf16.msra.mxu0 %v9017
  %9114 = vmatpush.bf16.msra.mxu0 %v9016
  %9115 = vmatpush.bf16.msra.mxu0 %v9015
  %9116 = vmatpush.bf16.msra.mxu0 %v9014
  %9117 = vmatpush.bf16.msra.mxu0 %v9013
  %9118 = vmatpush.bf16.msra.mxu0 %v9012
  %9119 = vmatpush.bf16.msra.mxu0 %v9011
  %9120 = vmatmul.bf16.gmra.mxu0 %v8810
  %v9121 = vpop.f32.mrf.mxu0
  %v9122 = vadd.f32 %v9109, %v9121
  %v9123 = vpop.f32.mrf.mxu0
  %9124 = vdwg.mxu0
  %9125 = vmatpush.bf16.msra.mxu0 %v9026
  %9126 = vmatpush.bf16.msra.mxu0 %v9025
  %9127 = vmatpush.bf16.msra.mxu0 %v9024
  %9128 = vmatpush.bf16.msra.mxu0 %v9023
  %9129 = vmatpush.bf16.msra.mxu0 %v9022
  %9130 = vmatpush.bf16.msra.mxu0 %v9021
  %9131 = vmatpush.bf16.msra.mxu0 %v9020
  %9132 = vmatpush.bf16.msra.mxu0 %v9019
  %9133 = vmatmul.bf16.gmra.mxu0 %v8811
  %v9134 = vpop.f32.mrf.mxu0
  %v9135 = vadd.f32 %v9122, %v9134
  %v9136 = vpop.f32.mrf.mxu0
  %9137 = vdwg.mxu0
  %9138 = vmatpush.bf16.msra.mxu0 %v9034
  %9139 = vmatpush.bf16.msra.mxu0 %v9033
  %9140 = vmatpush.bf16.msra.mxu0 %v9032
  %9141 = vmatpush.bf16.msra.mxu0 %v9031
  %9142 = vmatpush.bf16.msra.mxu0 %v9030
  %9143 = vmatpush.bf16.msra.mxu0 %v9029
  %9144 = vmatpush.bf16.msra.mxu0 %v9028
  %9145 = vmatpush.bf16.msra.mxu0 %v9027
  %9146 = vmatmul.bf16.gmra.mxu0 %v8812
  %v9147 = vpop.f32.mrf.mxu0
  %v9148 = vadd.f32 %v9135, %v9147
  %v9149 = vpop.f32.mrf.mxu0
  %9150 = vdwg.mxu0
  %9151 = vmatpush.bf16.msra.mxu0 0
  %9152 = vmatpush.bf16.msra.mxu0 0
  %9153 = vmatpush.bf16.msra.mxu0 0
  %9154 = vmatpush.bf16.msra.mxu0 0
  %9155 = vmatpush.bf16.msra.mxu0 %v9038
  %9156 = vmatpush.bf16.msra.mxu0 %v9037
  %9157 = vmatpush.bf16.msra.mxu0 %v9036
  %9158 = vmatpush.bf16.msra.mxu0 %v9035
  %9159 = vmatmul.bf16.gmra.mxu0 %v9084
  %v9160 = vpop.f32.mrf.mxu0
  %v9161 = vadd.f32 %v9148, %v9160
  %v9162 = vpop.f32.mrf.mxu0
  %9163 = vdwg.mxu0
  %v9165 = vrot.slane %v9161, 1
  %v9167 = vmax.f32 %v9161, %v9165
  %v9168 = vperm.slane %v9167, 0
  %v9169 = vsub.f32 %v9161, %v9168
  %v9170 = vmul.f32 %v9169, 1.442695
  %v9171 = vpow.pop %v9170
  %v9173 = vrot.slane %v9171, 1
  %v9175 = vadd.f32 %v9171, %v9173
  %v9176 = vlog2.pop %v9175
  %v9177 = vmul.f32 %v9176, 0.6931472
  %v9178 = vperm.slane %v9177, 0
  %v9179 = vsub.f32 %v9169, %v9178
  %9180 = vst [vmem:[%s5] sm:$0x3] %v9179
  // Predicated region
  $region22: #{classical1_forward.1} parent=0 // pred_check
    _
  $region23: #{classical1_forward.1} parent=0 // pred_check_branch
    %9182 = sbr.rel (0) target = $region25
  $region24: #{classical1_forward.1} parent=0 // pred_region
    _
  $region25: #{classical1_forward.1} parent=0 // pred_fallthru
    _
  // Predicated region
  $region26: #{classical1_forward.1} parent=0 // pred_check
    _
  $region27: #{classical1_forward.1} parent=0 // pred_check_branch
    %9184 = sbr.rel (0) target = $region29
  $region28: #{classical1_forward.1} parent=0 // pred_region
    _
  $region29: #{classical1_forward.1} parent=0 // pred_fallthru
    _

</llo_original>
